<compile_context>
chip_gen: v6e
topology: v6e:2x2x1
jax: 0.10.0
libtpu: 0.0.40
codegen_flags: <defaults>
</compile_context>

<pallas_src>
import functools

import jax
import jax.numpy as jnp
from jax import lax
from jax.experimental import pallas as pl
from jax.experimental.pallas import tpu as pltpu

KS = 3  # Conv3d kernel_size used by the module


def _round_up(x, m):
    return ((x + m - 1) // m) * m


def _pick_depth_block(D, c_in, c_out, L, Mout, in_bytes, out_bytes,
                      td_max=8, vmem_budget=24 * 1024 * 1024):
    """Largest divisor of D (<= td_max) whose blocks fit the VMEM budget (v7x-safe)."""
    for td in range(min(td_max, D), 0, -1):
        if D % td:
            continue
        need = (2 * c_out * td * Mout * out_bytes            # double-buffered out block
                + (td + KS - 1) * c_in * L * in_bytes)       # input halo slab
        if need <= vmem_budget:
            return td
    return 1


def _conv3d_relu_kernel(x_hbm, w_ref, b_ref, o_ref, slab_ref, dma_sem,
                        *, TD, Wp, Mout, MC, c_in, c_out):
    """One (batch, depth-block of TD output planes) tile per grid step.

    x_hbm:    (N, Dp*c_in, L) bf16 in HBM (pl.ANY)   rows = padded_plane*c_in + ci
    w_ref:    (KS*KS, c_out, KS*c_in) bf16           tap index = kh*KS + kw
    b_ref:    (c_out, 1) f32
    o_ref:    (1, c_out, TD*Mout) f32                channel-major, lane-dense planes
    slab_ref: ((TD+2)*c_in, L) bf16 VMEM scratch     halo slab for this depth block
    """
    KC = KS * c_in
    n = pl.program_id(0)
    db = pl.program_id(1)

    # Manual halo DMA: padded depth planes [db*TD, db*TD + TD + 2) for this block.
    row0 = pl.multiple_of(db * (TD * c_in), TD * c_in)
    cp = pltpu.make_async_copy(
        x_hbm.at[n, pl.ds(row0, (TD + KS - 1) * c_in)], slab_ref, dma_sem)
    cp.start()
    cp.wait()

    for t in range(TD):                         # output plane within the block (static)
        r0 = t * c_in                           # slab rows (kd, ci) = [r0, r0 + KC)
        for cs in range(0, Mout, MC):           # lane chunks -> bounded vreg pressure
            mc = min(MC, Mout - cs)             # always a multiple of 128
            acc = jnp.zeros((c_out, mc), jnp.float32)
            for kh in range(KS):
                for kw in range(KS):
                    off = cs + kh * Wp + kw     # flat-shift (kh, kw) tap
                    xs = slab_ref[r0:r0 + KC, off:off + mc]        # (KC, mc) bf16
                    acc = acc + jnp.dot(w_ref[kh * KS + kw], xs,
                                        preferred_element_type=jnp.float32)
            out = jnp.maximum(acc + b_ref[...], 0.0)               # bias + ReLU
            o_ref[0, :, t * Mout + cs: t * Mout + cs + mc] = out.astype(o_ref.dtype)


def conv3d_ccvnorm_forward(x_ncdhw, weight_oidhw, bias, compute_dtype=jnp.bfloat16):
    """ReLU(Conv3d(x)) with k=3, stride=1, padding=1, bias=True (flag_bn=False)."""
    N, c_in, D, H, W = x_ncdhw.shape
    c_out = weight_oidhw.shape[0]
    Dp, Hp, Wp = D + KS - 1, H + KS - 1, W + KS - 1
    KC = KS * c_in
    Mout = _round_up(Hp * Wp, 128)                       # lane-dense output plane width
    L = _round_up(Mout + (KS - 1) * Wp + (KS - 1), 128)  # input lanes incl. tap halo

    in_b = jnp.dtype(compute_dtype).itemsize
    out_b = jnp.dtype(x_ncdhw.dtype).itemsize
    TD = _pick_depth_block(D, c_in, c_out, L, Mout, in_b, out_b)
    MC = min(512, Mout)                                  # lane chunk (spill guard)

    # --- wrapper-side layout glue (pad + flatten only; NO kd-unfold copy) -----------
    xq = x_ncdhw.astype(compute_dtype)
    xp = jnp.pad(xq, ((0, 0), (0, 0), (1, 1), (1, 1), (1, 1)))      # (N,ci,Dp,Hp,Wp)
    xp = jnp.transpose(xp, (0, 2, 1, 3, 4)).reshape(N, Dp, c_in, Hp * Wp)
    xp = jnp.pad(xp, ((0, 0), (0, 0), (0, 0), (0, L - Hp * Wp)))    # zero lane halo
    xp = xp.reshape(N, Dp * c_in, L)                                 # rows = d*c_in+ci

    # (c_out, c_in, kd, kh, kw) -> (kh*KS+kw, c_out, kd*c_in+ci)
    w2 = jnp.transpose(weight_oidhw, (3, 4, 0, 2, 1)).reshape(KS * KS, c_out, KC)
    w2 = w2.astype(compute_dtype)
    b2 = bias.astype(jnp.float32).reshape(c_out, 1)

    kernel = functools.partial(_conv3d_relu_kernel, TD=TD, Wp=Wp, Mout=Mout,
                               MC=MC, c_in=c_in, c_out=c_out)

    out = pl.pallas_call(
        kernel,
        out_shape=jax.ShapeDtypeStruct((N, c_out, D * Mout), x_ncdhw.dtype),
        grid_spec=pltpu.PrefetchScalarGridSpec(
            num_scalar_prefetch=0,
            grid=(N, D // TD),
            in_specs=[
                pl.BlockSpec(memory_space=pl.ANY),                          # x: raw HBM
                pl.BlockSpec((KS * KS, c_out, KC), lambda n, d: (0, 0, 0)),  # resident
                pl.BlockSpec((c_out, 1), lambda n, d: (0, 0)),               # resident
            ],
            out_specs=pl.BlockSpec((1, c_out, TD * Mout), lambda n, d: (n, 0, d)),
            scratch_shapes=[
                pltpu.VMEM(((TD + KS - 1) * c_in, L), compute_dtype),  # halo slab
                pltpu.SemaphoreType.DMA,
            ],
        ),
        compiler_params=pltpu.CompilerParams(
            dimension_semantics=("parallel", "parallel"),
            vmem_limit_bytes=32 * 1024 * 1024),
    )(xp, w2, b2)

    # Crop the padded frame; result is already channel-major NCDHW -> no transpose.
    out = out.reshape(N, c_out, D, Mout)[..., :Hp * Wp]
    out = out.reshape(N, c_out, D, Hp, Wp)[..., :H, :W]
    return out


if __name__ == "__main__":
    # Module config: conv3d_ccvnorm(in_planes=4, out_planes=8, D=8) on a small cost volume.
    N, c_in, c_out = 2, 4, 8
    D, H, W = 8, 16, 16

    key = jax.random.PRNGKey(0)
    k1, k2, k3, k4 = jax.random.split(key, 4)

    # Deterministic parameter init (PyTorch-style uniform bound = 1/sqrt(fan_in)).
    fan_in = c_in * KS ** 3
    bound = 1.0 / float(fan_in) ** 0.5
    weight = jax.random.uniform(k1, (c_out, c_in, KS, KS, KS), jnp.float32,
                                -bound, bound)
    bias = jax.random.uniform(k2, (c_out,), jnp.float32, -bound, bound)

    x = jax.random.normal(k3, (N, c_in, D, H, W), jnp.float32)
    c = jax.random.normal(k4, (N, D, H, W), jnp.float32)  # unused: flag_bn=False
    # TODO(synk): the CCVNorm branch (self.bn_layer(x, c)) is disabled by default
    # (flag_bn=False) and its ccvnorm.* classes are not part of this module.

    y = conv3d_ccvnorm_forward(x, weight, bias)
    y = jax.block_until_ready(y)

    # Pure-JAX reference at the same input quantization (bf16 inputs/weights,
    # f32 accumulation), so the comparison isolates kernel correctness.
    xq = x.astype(jnp.bfloat16).astype(jnp.float32)
    wq = weight.astype(jnp.bfloat16).astype(jnp.float32)
    ref = lax.conv_general_dilated(
        xq, wq, window_strides=(1, 1, 1),
        padding=((1, 1), (1, 1), (1, 1)),
        dimension_numbers=("NCDHW", "OIDHW", "NCDHW"))
    ref = jnp.maximum(ref + bias.reshape(1, c_out, 1, 1, 1), 0.0)

    assert y.shape == (N, c_out, D, H, W) and y.dtype == jnp.float32
    max_err = float(jnp.max(jnp.abs(y - ref)))
    assert jnp.allclose(y, ref, atol=2e-3, rtol=2e-3), f"max abs err = {max_err}"
    print("KERNEL_OK")
</pallas_src>

<mosaic_0001>
module attributes {stable_mosaic.version = 11 : i64} {
  func.func @_conv3d_relu_kernel(%arg0: i32, %arg1: i32, %arg2: memref<2x40x512xbf16, #tpu.memory_space<any>>, %arg3: memref<9x8x12xbf16, #tpu.memory_space<vmem>>, %arg4: memref<8x1xf32, #tpu.memory_space<vmem>>, %arg5: memref<1x8x3072xf32, #tpu.memory_space<vmem>>, %arg6: memref<40x512xbf16, #tpu.memory_space<vmem>>, %arg7: memref<!tpu.dma_semaphore, #tpu.memory_space<semaphore_mem>>) attributes {dimension_semantics = [#tpu.dimension_semantics<parallel>, #tpu.dimension_semantics<parallel>], iteration_bounds = array<i64: 2, 1>, scalar_prefetch = 0 : i64, scratch_operands = 2 : i64, tpu.core_type = #tpu.core_type<tc>, window_params = [{}, {pipeline_mode = #tpu.pipeline_mode<synchronous>, transform_indices = @transform_1, window_bounds = array<i64: 9, 8, 12>}, {pipeline_mode = #tpu.pipeline_mode<synchronous>, transform_indices = @transform_2, window_bounds = array<i64: 8, 1>}, {transform_indices = @transform_3, window_bounds = array<i64: 1, 8, 3072>}]} {
    %c32_i32 = arith.constant 32 : i32
    %0 = arith.muli %arg1, %c32_i32 : i32
    %1 = tpu.assume_multiple %0, 32 : i32
    %c0_i32 = arith.constant 0 : i32
    %2 = tpu.memref_slice %arg2[%arg0, %1, %c0_i32] : memref<2x40x512xbf16, #tpu.memory_space<any>> -> memref<1x40x512xbf16, #tpu.memory_space<any>>
    %3 = tpu.memref_squeeze %2 : memref<1x40x512xbf16, #tpu.memory_space<any>> -> memref<40x512xbf16, #tpu.memory_space<any>>
    tpu.enqueue_dma source(%3 : memref<40x512xbf16, #tpu.memory_space<any>>) target(%arg6 : memref<40x512xbf16, #tpu.memory_space<vmem>>) target_semaphore(%arg7 : memref<!tpu.dma_semaphore, #tpu.memory_space<semaphore_mem>>)
    %c0_i32_0 = arith.constant 0 : i32
    %4 = tpu.memref_slice %arg2[%arg0, %1, %c0_i32_0] : memref<2x40x512xbf16, #tpu.memory_space<any>> -> memref<1x40x512xbf16, #tpu.memory_space<any>>
    %5 = tpu.memref_squeeze %4 : memref<1x40x512xbf16, #tpu.memory_space<any>> -> memref<40x512xbf16, #tpu.memory_space<any>>
    tpu.wait_dma2 semaphore(%arg7 : memref<!tpu.dma_semaphore, #tpu.memory_space<semaphore_mem>>) src(%5 : memref<40x512xbf16, #tpu.memory_space<any>>) dst(%arg6 : memref<40x512xbf16, #tpu.memory_space<vmem>>)
    %cst = arith.constant 0.000000e+00 : f32
    %6 = vector.broadcast %cst : f32 to vector<8x384xf32>
    %c0 = arith.constant 0 : index
    %c0_1 = arith.constant 0 : index
    %7 = vector.load %arg6[%c0, %c0_1] : memref<40x512xbf16, #tpu.memory_space<vmem>>, vector<12x384xbf16>
    %c0_2 = arith.constant 0 : index
    %c0_3 = arith.constant 0 : index
    %c0_4 = arith.constant 0 : index
    %8 = vector.load %arg3[%c0_2, %c0_3, %c0_4] : memref<9x8x12xbf16, #tpu.memory_space<vmem>>, vector<1x8x12xbf16>
    %9 = vector.shape_cast %8 : vector<1x8x12xbf16> to vector<8x12xbf16>
    %cst_5 = arith.constant dense<0.000000e+00> : vector<8x384xf32>
    %10 = tpu.matmul %9, %7, %cst_5 {dimension_numbers = #tpu.dot_dimension_numbers<[1], [0], [0], [1], [0, 0, 1, 1], [], []>} : vector<8x12xbf16>, vector<12x384xbf16>, vector<8x384xf32> -> vector<8x384xf32>
    %11 = arith.addf %6, %10 : vector<8x384xf32>
    %c0_6 = arith.constant 0 : index
    %c1 = arith.constant 1 : index
    %12 = vector.load %arg6[%c0_6, %c1] : memref<40x512xbf16, #tpu.memory_space<vmem>>, vector<12x384xbf16>
    %c1_7 = arith.constant 1 : index
    %c0_8 = arith.constant 0 : index
    %c0_9 = arith.constant 0 : index
    %13 = vector.load %arg3[%c1_7, %c0_8, %c0_9] : memref<9x8x12xbf16, #tpu.memory_space<vmem>>, vector<1x8x12xbf16>
    %14 = vector.shape_cast %13 : vector<1x8x12xbf16> to vector<8x12xbf16>
    %cst_10 = arith.constant dense<0.000000e+00> : vector<8x384xf32>
    %15 = tpu.matmul %14, %12, %cst_10 {dimension_numbers = #tpu.dot_dimension_numbers<[1], [0], [0], [1], [0, 0, 1, 1], [], []>} : vector<8x12xbf16>, vector<12x384xbf16>, vector<8x384xf32> -> vector<8x384xf32>
    %16 = arith.addf %11, %15 : vector<8x384xf32>
    %c0_11 = arith.constant 0 : index
    %c2 = arith.constant 2 : index
    %17 = vector.load %arg6[%c0_11, %c2] : memref<40x512xbf16, #tpu.memory_space<vmem>>, vector<12x384xbf16>
    %c2_12 = arith.constant 2 : index
    %c0_13 = arith.constant 0 : index
    %c0_14 = arith.constant 0 : index
    %18 = vector.load %arg3[%c2_12, %c0_13, %c0_14] : memref<9x8x12xbf16, #tpu.memory_space<vmem>>, vector<1x8x12xbf16>
    %19 = vector.shape_cast %18 : vector<1x8x12xbf16> to vector<8x12xbf16>
    %cst_15 = arith.constant dense<0.000000e+00> : vector<8x384xf32>
    %20 = tpu.matmul %19, %17, %cst_15 {dimension_numbers = #tpu.dot_dimension_numbers<[1], [0], [0], [1], [0, 0, 1, 1], [], []>} : vector<8x12xbf16>, vector<12x384xbf16>, vector<8x384xf32> -> vector<8x384xf32>
    %21 = arith.addf %16, %20 : vector<8x384xf32>
    %c0_16 = arith.constant 0 : index
    %c18 = arith.constant 18 : index
    %22 = vector.load %arg6[%c0_16, %c18] : memref<40x512xbf16, #tpu.memory_space<vmem>>, vector<12x384xbf16>
    %c3 = arith.constant 3 : index
    %c0_17 = arith.constant 0 : index
    %c0_18 = arith.constant 0 : index
    %23 = vector.load %arg3[%c3, %c0_17, %c0_18] : memref<9x8x12xbf16, #tpu.memory_space<vmem>>, vector<1x8x12xbf16>
    %24 = vector.shape_cast %23 : vector<1x8x12xbf16> to vector<8x12xbf16>
    %cst_19 = arith.constant dense<0.000000e+00> : vector<8x384xf32>
    %25 = tpu.matmul %24, %22, %cst_19 {dimension_numbers = #tpu.dot_dimension_numbers<[1], [0], [0], [1], [0, 0, 1, 1], [], []>} : vector<8x12xbf16>, vector<12x384xbf16>, vector<8x384xf32> -> vector<8x384xf32>
    %26 = arith.addf %21, %25 : vector<8x384xf32>
    %c0_20 = arith.constant 0 : index
    %c19 = arith.constant 19 : index
    %27 = vector.load %arg6[%c0_20, %c19] : memref<40x512xbf16, #tpu.memory_space<vmem>>, vector<12x384xbf16>
    %c4 = arith.constant 4 : index
    %c0_21 = arith.constant 0 : index
    %c0_22 = arith.constant 0 : index
    %28 = vector.load %arg3[%c4, %c0_21, %c0_22] : memref<9x8x12xbf16, #tpu.memory_space<vmem>>, vector<1x8x12xbf16>
    %29 = vector.shape_cast %28 : vector<1x8x12xbf16> to vector<8x12xbf16>
    %cst_23 = arith.constant dense<0.000000e+00> : vector<8x384xf32>
    %30 = tpu.matmul %29, %27, %cst_23 {dimension_numbers = #tpu.dot_dimension_numbers<[1], [0], [0], [1], [0, 0, 1, 1], [], []>} : vector<8x12xbf16>, vector<12x384xbf16>, vector<8x384xf32> -> vector<8x384xf32>
    %31 = arith.addf %26, %30 : vector<8x384xf32>
    %c0_24 = arith.constant 0 : index
    %c20 = arith.constant 20 : index
    %32 = vector.load %arg6[%c0_24, %c20] : memref<40x512xbf16, #tpu.memory_space<vmem>>, vector<12x384xbf16>
    %c5 = arith.constant 5 : index
    %c0_25 = arith.constant 0 : index
    %c0_26 = arith.constant 0 : index
    %33 = vector.load %arg3[%c5, %c0_25, %c0_26] : memref<9x8x12xbf16, #tpu.memory_space<vmem>>, vector<1x8x12xbf16>
    %34 = vector.shape_cast %33 : vector<1x8x12xbf16> to vector<8x12xbf16>
    %cst_27 = arith.constant dense<0.000000e+00> : vector<8x384xf32>
    %35 = tpu.matmul %34, %32, %cst_27 {dimension_numbers = #tpu.dot_dimension_numbers<[1], [0], [0], [1], [0, 0, 1, 1], [], []>} : vector<8x12xbf16>, vector<12x384xbf16>, vector<8x384xf32> -> vector<8x384xf32>
    %36 = arith.addf %31, %35 : vector<8x384xf32>
    %c0_28 = arith.constant 0 : index
    %c36 = arith.constant 36 : index
    %37 = vector.load %arg6[%c0_28, %c36] : memref<40x512xbf16, #tpu.memory_space<vmem>>, vector<12x384xbf16>
    %c6 = arith.constant 6 : index
    %c0_29 = arith.constant 0 : index
    %c0_30 = arith.constant 0 : index
    %38 = vector.load %arg3[%c6, %c0_29, %c0_30] : memref<9x8x12xbf16, #tpu.memory_space<vmem>>, vector<1x8x12xbf16>
    %39 = vector.shape_cast %38 : vector<1x8x12xbf16> to vector<8x12xbf16>
    %cst_31 = arith.constant dense<0.000000e+00> : vector<8x384xf32>
    %40 = tpu.matmul %39, %37, %cst_31 {dimension_numbers = #tpu.dot_dimension_numbers<[1], [0], [0], [1], [0, 0, 1, 1], [], []>} : vector<8x12xbf16>, vector<12x384xbf16>, vector<8x384xf32> -> vector<8x384xf32>
    %41 = arith.addf %36, %40 : vector<8x384xf32>
    %c0_32 = arith.constant 0 : index
    %c37 = arith.constant 37 : index
    %42 = vector.load %arg6[%c0_32, %c37] : memref<40x512xbf16, #tpu.memory_space<vmem>>, vector<12x384xbf16>
    %c7 = arith.constant 7 : index
    %c0_33 = arith.constant 0 : index
    %c0_34 = arith.constant 0 : index
    %43 = vector.load %arg3[%c7, %c0_33, %c0_34] : memref<9x8x12xbf16, #tpu.memory_space<vmem>>, vector<1x8x12xbf16>
    %44 = vector.shape_cast %43 : vector<1x8x12xbf16> to vector<8x12xbf16>
    %cst_35 = arith.constant dense<0.000000e+00> : vector<8x384xf32>
    %45 = tpu.matmul %44, %42, %cst_35 {dimension_numbers = #tpu.dot_dimension_numbers<[1], [0], [0], [1], [0, 0, 1, 1], [], []>} : vector<8x12xbf16>, vector<12x384xbf16>, vector<8x384xf32> -> vector<8x384xf32>
    %46 = arith.addf %41, %45 : vector<8x384xf32>
    %c0_36 = arith.constant 0 : index
    %c38 = arith.constant 38 : index
    %47 = vector.load %arg6[%c0_36, %c38] : memref<40x512xbf16, #tpu.memory_space<vmem>>, vector<12x384xbf16>
    %c8 = arith.constant 8 : index
    %c0_37 = arith.constant 0 : index
    %c0_38 = arith.constant 0 : index
    %48 = vector.load %arg3[%c8, %c0_37, %c0_38] : memref<9x8x12xbf16, #tpu.memory_space<vmem>>, vector<1x8x12xbf16>
    %49 = vector.shape_cast %48 : vector<1x8x12xbf16> to vector<8x12xbf16>
    %cst_39 = arith.constant dense<0.000000e+00> : vector<8x384xf32>
    %50 = tpu.matmul %49, %47, %cst_39 {dimension_numbers = #tpu.dot_dimension_numbers<[1], [0], [0], [1], [0, 0, 1, 1], [], []>} : vector<8x12xbf16>, vector<12x384xbf16>, vector<8x384xf32> -> vector<8x384xf32>
    %51 = arith.addf %46, %50 : vector<8x384xf32>
    %c0_40 = arith.constant 0 : index
    %c0_41 = arith.constant 0 : index
    %52 = vector.load %arg4[%c0_40, %c0_41] : memref<8x1xf32, #tpu.memory_space<vmem>>, vector<8x1xf32>
    %53 = vector.broadcast %52 : vector<8x1xf32> to vector<8x384xf32>
    %54 = arith.addf %51, %53 : vector<8x384xf32>
    %cst_42 = arith.constant 0.000000e+00 : f32
    %55 = vector.broadcast %cst_42 : f32 to vector<8x384xf32>
    %56 = arith.maximumf %54, %55 : vector<8x384xf32>
    %c0_43 = arith.constant 0 : index
    %c0_44 = arith.constant 0 : index
    %c0_45 = arith.constant 0 : index
    %57 = vector.load %arg5[%c0_43, %c0_44, %c0_45] : memref<1x8x3072xf32, #tpu.memory_space<vmem>>, vector<1x8x384xf32>
    %58 = vector.shape_cast %57 : vector<1x8x384xf32> to vector<8x384xf32>
    %59 = vector.shape_cast %56 : vector<8x384xf32> to vector<1x8x384xf32>
    tpu.vector_store %arg5[%c0_43, %c0_44, %c0_45], %59 {strides = array<i32>} : memref<1x8x3072xf32, #tpu.memory_space<vmem>>, vector<1x8x384xf32>,
    %cst_46 = arith.constant 0.000000e+00 : f32
    %60 = vector.broadcast %cst_46 : f32 to vector<8x384xf32>
    %c4_47 = arith.constant 4 : index
    %c0_48 = arith.constant 0 : index
    %61 = vector.load %arg6[%c4_47, %c0_48] : memref<40x512xbf16, #tpu.memory_space<vmem>>, vector<12x384xbf16>
    %c0_49 = arith.constant 0 : index
    %c0_50 = arith.constant 0 : index
    %c0_51 = arith.constant 0 : index
    %62 = vector.load %arg3[%c0_49, %c0_50, %c0_51] : memref<9x8x12xbf16, #tpu.memory_space<vmem>>, vector<1x8x12xbf16>
    %63 = vector.shape_cast %62 : vector<1x8x12xbf16> to vector<8x12xbf16>
    %cst_52 = arith.constant dense<0.000000e+00> : vector<8x384xf32>
    %64 = tpu.matmul %63, %61, %cst_52 {dimension_numbers = #tpu.dot_dimension_numbers<[1], [0], [0], [1], [0, 0, 1, 1], [], []>} : vector<8x12xbf16>, vector<12x384xbf16>, vector<8x384xf32> -> vector<8x384xf32>
    %65 = arith.addf %60, %64 : vector<8x384xf32>
    %c4_53 = arith.constant 4 : index
    %c1_54 = arith.constant 1 : index
    %66 = vector.load %arg6[%c4_53, %c1_54] : memref<40x512xbf16, #tpu.memory_space<vmem>>, vector<12x384xbf16>
    %c1_55 = arith.constant 1 : index
    %c0_56 = arith.constant 0 : index
    %c0_57 = arith.constant 0 : index
    %67 = vector.load %arg3[%c1_55, %c0_56, %c0_57] : memref<9x8x12xbf16, #tpu.memory_space<vmem>>, vector<1x8x12xbf16>
    %68 = vector.shape_cast %67 : vector<1x8x12xbf16> to vector<8x12xbf16>
    %cst_58 = arith.constant dense<0.000000e+00> : vector<8x384xf32>
    %69 = tpu.matmul %68, %66, %cst_58 {dimension_numbers = #tpu.dot_dimension_numbers<[1], [0], [0], [1], [0, 0, 1, 1], [], []>} : vector<8x12xbf16>, vector<12x384xbf16>, vector<8x384xf32> -> vector<8x384xf32>
    %70 = arith.addf %65, %69 : vector<8x384xf32>
    %c4_59 = arith.constant 4 : index
    %c2_60 = arith.constant 2 : index
    %71 = vector.load %arg6[%c4_59, %c2_60] : memref<40x512xbf16, #tpu.memory_space<vmem>>, vector<12x384xbf16>
    %c2_61 = arith.constant 2 : index
    %c0_62 = arith.constant 0 : index
    %c0_63 = arith.constant 0 : index
    %72 = vector.load %arg3[%c2_61, %c0_62, %c0_63] : memref<9x8x12xbf16, #tpu.memory_space<vmem>>, vector<1x8x12xbf16>
    %73 = vector.shape_cast %72 : vector<1x8x12xbf16> to vector<8x12xbf16>
    %cst_64 = arith.constant dense<0.000000e+00> : vector<8x384xf32>
    %74 = tpu.matmul %73, %71, %cst_64 {dimension_numbers = #tpu.dot_dimension_numbers<[1], [0], [0], [1], [0, 0, 1, 1], [], []>} : vector<8x12xbf16>, vector<12x384xbf16>, vector<8x384xf32> -> vector<8x384xf32>
    %75 = arith.addf %70, %74 : vector<8x384xf32>
    %c4_65 = arith.constant 4 : index
    %c18_66 = arith.constant 18 : index
    %76 = vector.load %arg6[%c4_65, %c18_66] : memref<40x512xbf16, #tpu.memory_space<vmem>>, vector<12x384xbf16>
    %c3_67 = arith.constant 3 : index
    %c0_68 = arith.constant 0 : index
    %c0_69 = arith.constant 0 : index
    %77 = vector.load %arg3[%c3_67, %c0_68, %c0_69] : memref<9x8x12xbf16, #tpu.memory_space<vmem>>, vector<1x8x12xbf16>
    %78 = vector.shape_cast %77 : vector<1x8x12xbf16> to vector<8x12xbf16>
    %cst_70 = arith.constant dense<0.000000e+00> : vector<8x384xf32>
    %79 = tpu.matmul %78, %76, %cst_70 {dimension_numbers = #tpu.dot_dimension_numbers<[1], [0], [0], [1], [0, 0, 1, 1], [], []>} : vector<8x12xbf16>, vector<12x384xbf16>, vector<8x384xf32> -> vector<8x384xf32>
    %80 = arith.addf %75, %79 : vector<8x384xf32>
    %c4_71 = arith.constant 4 : index
    %c19_72 = arith.constant 19 : index
    %81 = vector.load %arg6[%c4_71, %c19_72] : memref<40x512xbf16, #tpu.memory_space<vmem>>, vector<12x384xbf16>
    %c4_73 = arith.constant 4 : index
    %c0_74 = arith.constant 0 : index
    %c0_75 = arith.constant 0 : index
    %82 = vector.load %arg3[%c4_73, %c0_74, %c0_75] : memref<9x8x12xbf16, #tpu.memory_space<vmem>>, vector<1x8x12xbf16>
    %83 = vector.shape_cast %82 : vector<1x8x12xbf16> to vector<8x12xbf16>
    %cst_76 = arith.constant dense<0.000000e+00> : vector<8x384xf32>
    %84 = tpu.matmul %83, %81, %cst_76 {dimension_numbers = #tpu.dot_dimension_numbers<[1], [0], [0], [1], [0, 0, 1, 1], [], []>} : vector<8x12xbf16>, vector<12x384xbf16>, vector<8x384xf32> -> vector<8x384xf32>
    %85 = arith.addf %80, %84 : vector<8x384xf32>
    %c4_77 = arith.constant 4 : index
    %c20_78 = arith.constant 20 : index
    %86 = vector.load %arg6[%c4_77, %c20_78] : memref<40x512xbf16, #tpu.memory_space<vmem>>, vector<12x384xbf16>
    %c5_79 = arith.constant 5 : index
    %c0_80 = arith.constant 0 : index
    %c0_81 = arith.constant 0 : index
    %87 = vector.load %arg3[%c5_79, %c0_80, %c0_81] : memref<9x8x12xbf16, #tpu.memory_space<vmem>>, vector<1x8x12xbf16>
    %88 = vector.shape_cast %87 : vector<1x8x12xbf16> to vector<8x12xbf16>
    %cst_82 = arith.constant dense<0.000000e+00> : vector<8x384xf32>
    %89 = tpu.matmul %88, %86, %cst_82 {dimension_numbers = #tpu.dot_dimension_numbers<[1], [0], [0], [1], [0, 0, 1, 1], [], []>} : vector<8x12xbf16>, vector<12x384xbf16>, vector<8x384xf32> -> vector<8x384xf32>
    %90 = arith.addf %85, %89 : vector<8x384xf32>
    %c4_83 = arith.constant 4 : index
    %c36_84 = arith.constant 36 : index
    %91 = vector.load %arg6[%c4_83, %c36_84] : memref<40x512xbf16, #tpu.memory_space<vmem>>, vector<12x384xbf16>
    %c6_85 = arith.constant 6 : index
    %c0_86 = arith.constant 0 : index
    %c0_87 = arith.constant 0 : index
    %92 = vector.load %arg3[%c6_85, %c0_86, %c0_87] : memref<9x8x12xbf16, #tpu.memory_space<vmem>>, vector<1x8x12xbf16>
    %93 = vector.shape_cast %92 : vector<1x8x12xbf16> to vector<8x12xbf16>
    %cst_88 = arith.constant dense<0.000000e+00> : vector<8x384xf32>
    %94 = tpu.matmul %93, %91, %cst_88 {dimension_numbers = #tpu.dot_dimension_numbers<[1], [0], [0], [1], [0, 0, 1, 1], [], []>} : vector<8x12xbf16>, vector<12x384xbf16>, vector<8x384xf32> -> vector<8x384xf32>
    %95 = arith.addf %90, %94 : vector<8x384xf32>
    %c4_89 = arith.constant 4 : index
    %c37_90 = arith.constant 37 : index
    %96 = vector.load %arg6[%c4_89, %c37_90] : memref<40x512xbf16, #tpu.memory_space<vmem>>, vector<12x384xbf16>
    %c7_91 = arith.constant 7 : index
    %c0_92 = arith.constant 0 : index
    %c0_93 = arith.constant 0 : index
    %97 = vector.load %arg3[%c7_91, %c0_92, %c0_93] : memref<9x8x12xbf16, #tpu.memory_space<vmem>>, vector<1x8x12xbf16>
    %98 = vector.shape_cast %97 : vector<1x8x12xbf16> to vector<8x12xbf16>
    %cst_94 = arith.constant dense<0.000000e+00> : vector<8x384xf32>
    %99 = tpu.matmul %98, %96, %cst_94 {dimension_numbers = #tpu.dot_dimension_numbers<[1], [0], [0], [1], [0, 0, 1, 1], [], []>} : vector<8x12xbf16>, vector<12x384xbf16>, vector<8x384xf32> -> vector<8x384xf32>
    %100 = arith.addf %95, %99 : vector<8x384xf32>
    %c4_95 = arith.constant 4 : index
    %c38_96 = arith.constant 38 : index
    %101 = vector.load %arg6[%c4_95, %c38_96] : memref<40x512xbf16, #tpu.memory_space<vmem>>, vector<12x384xbf16>
    %c8_97 = arith.constant 8 : index
    %c0_98 = arith.constant 0 : index
    %c0_99 = arith.constant 0 : index
    %102 = vector.load %arg3[%c8_97, %c0_98, %c0_99] : memref<9x8x12xbf16, #tpu.memory_space<vmem>>, vector<1x8x12xbf16>
    %103 = vector.shape_cast %102 : vector<1x8x12xbf16> to vector<8x12xbf16>
    %cst_100 = arith.constant dense<0.000000e+00> : vector<8x384xf32>
    %104 = tpu.matmul %103, %101, %cst_100 {dimension_numbers = #tpu.dot_dimension_numbers<[1], [0], [0], [1], [0, 0, 1, 1], [], []>} : vector<8x12xbf16>, vector<12x384xbf16>, vector<8x384xf32> -> vector<8x384xf32>
    %105 = arith.addf %100, %104 : vector<8x384xf32>
    %c0_101 = arith.constant 0 : index
    %c0_102 = arith.constant 0 : index
    %106 = vector.load %arg4[%c0_101, %c0_102] : memref<8x1xf32, #tpu.memory_space<vmem>>, vector<8x1xf32>
    %107 = vector.broadcast %106 : vector<8x1xf32> to vector<8x384xf32>
    %108 = arith.addf %105, %107 : vector<8x384xf32>
    %cst_103 = arith.constant 0.000000e+00 : f32
    %109 = vector.broadcast %cst_103 : f32 to vector<8x384xf32>
    %110 = arith.maximumf %108, %109 : vector<8x384xf32>
    %c0_104 = arith.constant 0 : index
    %c0_105 = arith.constant 0 : index
    %c384 = arith.constant 384 : index
    %111 = vector.load %arg5[%c0_104, %c0_105, %c384] : memref<1x8x3072xf32, #tpu.memory_space<vmem>>, vector<1x8x384xf32>
    %112 = vector.shape_cast %111 : vector<1x8x384xf32> to vector<8x384xf32>
    %113 = vector.shape_cast %110 : vector<8x384xf32> to vector<1x8x384xf32>
    tpu.vector_store %arg5[%c0_104, %c0_105, %c384], %113 {strides = array<i32>} : memref<1x8x3072xf32, #tpu.memory_space<vmem>>, vector<1x8x384xf32>,
    %cst_106 = arith.constant 0.000000e+00 : f32
    %114 = vector.broadcast %cst_106 : f32 to vector<8x384xf32>
    %c8_107 = arith.constant 8 : index
    %c0_108 = arith.constant 0 : index
    %115 = vector.load %arg6[%c8_107, %c0_108] : memref<40x512xbf16, #tpu.memory_space<vmem>>, vector<12x384xbf16>
    %c0_109 = arith.constant 0 : index
    %c0_110 = arith.constant 0 : index
    %c0_111 = arith.constant 0 : index
    %116 = vector.load %arg3[%c0_109, %c0_110, %c0_111] : memref<9x8x12xbf16, #tpu.memory_space<vmem>>, vector<1x8x12xbf16>
    %117 = vector.shape_cast %116 : vector<1x8x12xbf16> to vector<8x12xbf16>
    %cst_112 = arith.constant dense<0.000000e+00> : vector<8x384xf32>
    %118 = tpu.matmul %117, %115, %cst_112 {dimension_numbers = #tpu.dot_dimension_numbers<[1], [0], [0], [1], [0, 0, 1, 1], [], []>} : vector<8x12xbf16>, vector<12x384xbf16>, vector<8x384xf32> -> vector<8x384xf32>
    %119 = arith.addf %114, %118 : vector<8x384xf32>
    %c8_113 = arith.constant 8 : index
    %c1_114 = arith.constant 1 : index
    %120 = vector.load %arg6[%c8_113, %c1_114] : memref<40x512xbf16, #tpu.memory_space<vmem>>, vector<12x384xbf16>
    %c1_115 = arith.constant 1 : index
    %c0_116 = arith.constant 0 : index
    %c0_117 = arith.constant 0 : index
    %121 = vector.load %arg3[%c1_115, %c0_116, %c0_117] : memref<9x8x12xbf16, #tpu.memory_space<vmem>>, vector<1x8x12xbf16>
    %122 = vector.shape_cast %121 : vector<1x8x12xbf16> to vector<8x12xbf16>
    %cst_118 = arith.constant dense<0.000000e+00> : vector<8x384xf32>
    %123 = tpu.matmul %122, %120, %cst_118 {dimension_numbers = #tpu.dot_dimension_numbers<[1], [0], [0], [1], [0, 0, 1, 1], [], []>} : vector<8x12xbf16>, vector<12x384xbf16>, vector<8x384xf32> -> vector<8x384xf32>
    %124 = arith.addf %119, %123 : vector<8x384xf32>
    %c8_119 = arith.constant 8 : index
    %c2_120 = arith.constant 2 : index
    %125 = vector.load %arg6[%c8_119, %c2_120] : memref<40x512xbf16, #tpu.memory_space<vmem>>, vector<12x384xbf16>
    %c2_121 = arith.constant 2 : index
    %c0_122 = arith.constant 0 : index
    %c0_123 = arith.constant 0 : index
    %126 = vector.load %arg3[%c2_121, %c0_122, %c0_123] : memref<9x8x12xbf16, #tpu.memory_space<vmem>>, vector<1x8x12xbf16>
    %127 = vector.shape_cast %126 : vector<1x8x12xbf16> to vector<8x12xbf16>
    %cst_124 = arith.constant dense<0.000000e+00> : vector<8x384xf32>
    %128 = tpu.matmul %127, %125, %cst_124 {dimension_numbers = #tpu.dot_dimension_numbers<[1], [0], [0], [1], [0, 0, 1, 1], [], []>} : vector<8x12xbf16>, vector<12x384xbf16>, vector<8x384xf32> -> vector<8x384xf32>
    %129 = arith.addf %124, %128 : vector<8x384xf32>
    %c8_125 = arith.constant 8 : index
    %c18_126 = arith.constant 18 : index
    %130 = vector.load %arg6[%c8_125, %c18_126] : memref<40x512xbf16, #tpu.memory_space<vmem>>, vector<12x384xbf16>
    %c3_127 = arith.constant 3 : index
    %c0_128 = arith.constant 0 : index
    %c0_129 = arith.constant 0 : index
    %131 = vector.load %arg3[%c3_127, %c0_128, %c0_129] : memref<9x8x12xbf16, #tpu.memory_space<vmem>>, vector<1x8x12xbf16>
    %132 = vector.shape_cast %131 : vector<1x8x12xbf16> to vector<8x12xbf16>
    %cst_130 = arith.constant dense<0.000000e+00> : vector<8x384xf32>
    %133 = tpu.matmul %132, %130, %cst_130 {dimension_numbers = #tpu.dot_dimension_numbers<[1], [0], [0], [1], [0, 0, 1, 1], [], []>} : vector<8x12xbf16>, vector<12x384xbf16>, vector<8x384xf32> -> vector<8x384xf32>
    %134 = arith.addf %129, %133 : vector<8x384xf32>
    %c8_131 = arith.constant 8 : index
    %c19_132 = arith.constant 19 : index
    %135 = vector.load %arg6[%c8_131, %c19_132] : memref<40x512xbf16, #tpu.memory_space<vmem>>, vector<12x384xbf16>
    %c4_133 = arith.constant 4 : index
    %c0_134 = arith.constant 0 : index
    %c0_135 = arith.constant 0 : index
    %136 = vector.load %arg3[%c4_133, %c0_134, %c0_135] : memref<9x8x12xbf16, #tpu.memory_space<vmem>>, vector<1x8x12xbf16>
    %137 = vector.shape_cast %136 : vector<1x8x12xbf16> to vector<8x12xbf16>
    %cst_136 = arith.constant dense<0.000000e+00> : vector<8x384xf32>
    %138 = tpu.matmul %137, %135, %cst_136 {dimension_numbers = #tpu.dot_dimension_numbers<[1], [0], [0], [1], [0, 0, 1, 1], [], []>} : vector<8x12xbf16>, vector<12x384xbf16>, vector<8x384xf32> -> vector<8x384xf32>
    %139 = arith.addf %134, %138 : vector<8x384xf32>
    %c8_137 = arith.constant 8 : index
    %c20_138 = arith.constant 20 : index
    %140 = vector.load %arg6[%c8_137, %c20_138] : memref<40x512xbf16, #tpu.memory_space<vmem>>, vector<12x384xbf16>
    %c5_139 = arith.constant 5 : index
    %c0_140 = arith.constant 0 : index
    %c0_141 = arith.constant 0 : index
    %141 = vector.load %arg3[%c5_139, %c0_140, %c0_141] : memref<9x8x12xbf16, #tpu.memory_space<vmem>>, vector<1x8x12xbf16>
    %142 = vector.shape_cast %141 : vector<1x8x12xbf16> to vector<8x12xbf16>
    %cst_142 = arith.constant dense<0.000000e+00> : vector<8x384xf32>
    %143 = tpu.matmul %142, %140, %cst_142 {dimension_numbers = #tpu.dot_dimension_numbers<[1], [0], [0], [1], [0, 0, 1, 1], [], []>} : vector<8x12xbf16>, vector<12x384xbf16>, vector<8x384xf32> -> vector<8x384xf32>
    %144 = arith.addf %139, %143 : vector<8x384xf32>
    %c8_143 = arith.constant 8 : index
    %c36_144 = arith.constant 36 : index
    %145 = vector.load %arg6[%c8_143, %c36_144] : memref<40x512xbf16, #tpu.memory_space<vmem>>, vector<12x384xbf16>
    %c6_145 = arith.constant 6 : index
    %c0_146 = arith.constant 0 : index
    %c0_147 = arith.constant 0 : index
    %146 = vector.load %arg3[%c6_145, %c0_146, %c0_147] : memref<9x8x12xbf16, #tpu.memory_space<vmem>>, vector<1x8x12xbf16>
    %147 = vector.shape_cast %146 : vector<1x8x12xbf16> to vector<8x12xbf16>
    %cst_148 = arith.constant dense<0.000000e+00> : vector<8x384xf32>
    %148 = tpu.matmul %147, %145, %cst_148 {dimension_numbers = #tpu.dot_dimension_numbers<[1], [0], [0], [1], [0, 0, 1, 1], [], []>} : vector<8x12xbf16>, vector<12x384xbf16>, vector<8x384xf32> -> vector<8x384xf32>
    %149 = arith.addf %144, %148 : vector<8x384xf32>
    %c8_149 = arith.constant 8 : index
    %c37_150 = arith.constant 37 : index
    %150 = vector.load %arg6[%c8_149, %c37_150] : memref<40x512xbf16, #tpu.memory_space<vmem>>, vector<12x384xbf16>
    %c7_151 = arith.constant 7 : index
    %c0_152 = arith.constant 0 : index
    %c0_153 = arith.constant 0 : index
    %151 = vector.load %arg3[%c7_151, %c0_152, %c0_153] : memref<9x8x12xbf16, #tpu.memory_space<vmem>>, vector<1x8x12xbf16>
    %152 = vector.shape_cast %151 : vector<1x8x12xbf16> to vector<8x12xbf16>
    %cst_154 = arith.constant dense<0.000000e+00> : vector<8x384xf32>
    %153 = tpu.matmul %152, %150, %cst_154 {dimension_numbers = #tpu.dot_dimension_numbers<[1], [0], [0], [1], [0, 0, 1, 1], [], []>} : vector<8x12xbf16>, vector<12x384xbf16>, vector<8x384xf32> -> vector<8x384xf32>
    %154 = arith.addf %149, %153 : vector<8x384xf32>
    %c8_155 = arith.constant 8 : index
    %c38_156 = arith.constant 38 : index
    %155 = vector.load %arg6[%c8_155, %c38_156] : memref<40x512xbf16, #tpu.memory_space<vmem>>, vector<12x384xbf16>
    %c8_157 = arith.constant 8 : index
    %c0_158 = arith.constant 0 : index
    %c0_159 = arith.constant 0 : index
    %156 = vector.load %arg3[%c8_157, %c0_158, %c0_159] : memref<9x8x12xbf16, #tpu.memory_space<vmem>>, vector<1x8x12xbf16>
    %157 = vector.shape_cast %156 : vector<1x8x12xbf16> to vector<8x12xbf16>
    %cst_160 = arith.constant dense<0.000000e+00> : vector<8x384xf32>
    %158 = tpu.matmul %157, %155, %cst_160 {dimension_numbers = #tpu.dot_dimension_numbers<[1], [0], [0], [1], [0, 0, 1, 1], [], []>} : vector<8x12xbf16>, vector<12x384xbf16>, vector<8x384xf32> -> vector<8x384xf32>
    %159 = arith.addf %154, %158 : vector<8x384xf32>
    %c0_161 = arith.constant 0 : index
    %c0_162 = arith.constant 0 : index
    %160 = vector.load %arg4[%c0_161, %c0_162] : memref<8x1xf32, #tpu.memory_space<vmem>>, vector<8x1xf32>
    %161 = vector.broadcast %160 : vector<8x1xf32> to vector<8x384xf32>
    %162 = arith.addf %159, %161 : vector<8x384xf32>
    %cst_163 = arith.constant 0.000000e+00 : f32
    %163 = vector.broadcast %cst_163 : f32 to vector<8x384xf32>
    %164 = arith.maximumf %162, %163 : vector<8x384xf32>
    %c0_164 = arith.constant 0 : index
    %c0_165 = arith.constant 0 : index
    %c768 = arith.constant 768 : index
    %165 = vector.load %arg5[%c0_164, %c0_165, %c768] : memref<1x8x3072xf32, #tpu.memory_space<vmem>>, vector<1x8x384xf32>
    %166 = vector.shape_cast %165 : vector<1x8x384xf32> to vector<8x384xf32>
    %167 = vector.shape_cast %164 : vector<8x384xf32> to vector<1x8x384xf32>
    tpu.vector_store %arg5[%c0_164, %c0_165, %c768], %167 {strides = array<i32>} : memref<1x8x3072xf32, #tpu.memory_space<vmem>>, vector<1x8x384xf32>,
    %cst_166 = arith.constant 0.000000e+00 : f32
    %168 = vector.broadcast %cst_166 : f32 to vector<8x384xf32>
    %c12 = arith.constant 12 : index
    %c0_167 = arith.constant 0 : index
    %169 = vector.load %arg6[%c12, %c0_167] : memref<40x512xbf16, #tpu.memory_space<vmem>>, vector<12x384xbf16>
    %c0_168 = arith.constant 0 : index
    %c0_169 = arith.constant 0 : index
    %c0_170 = arith.constant 0 : index
    %170 = vector.load %arg3[%c0_168, %c0_169, %c0_170] : memref<9x8x12xbf16, #tpu.memory_space<vmem>>, vector<1x8x12xbf16>
    %171 = vector.shape_cast %170 : vector<1x8x12xbf16> to vector<8x12xbf16>
    %cst_171 = arith.constant dense<0.000000e+00> : vector<8x384xf32>
    %172 = tpu.matmul %171, %169, %cst_171 {dimension_numbers = #tpu.dot_dimension_numbers<[1], [0], [0], [1], [0, 0, 1, 1], [], []>} : vector<8x12xbf16>, vector<12x384xbf16>, vector<8x384xf32> -> vector<8x384xf32>
    %173 = arith.addf %168, %172 : vector<8x384xf32>
    %c12_172 = arith.constant 12 : index
    %c1_173 = arith.constant 1 : index
    %174 = vector.load %arg6[%c12_172, %c1_173] : memref<40x512xbf16, #tpu.memory_space<vmem>>, vector<12x384xbf16>
    %c1_174 = arith.constant 1 : index
    %c0_175 = arith.constant 0 : index
    %c0_176 = arith.constant 0 : index
    %175 = vector.load %arg3[%c1_174, %c0_175, %c0_176] : memref<9x8x12xbf16, #tpu.memory_space<vmem>>, vector<1x8x12xbf16>
    %176 = vector.shape_cast %175 : vector<1x8x12xbf16> to vector<8x12xbf16>
    %cst_177 = arith.constant dense<0.000000e+00> : vector<8x384xf32>
    %177 = tpu.matmul %176, %174, %cst_177 {dimension_numbers = #tpu.dot_dimension_numbers<[1], [0], [0], [1], [0, 0, 1, 1], [], []>} : vector<8x12xbf16>, vector<12x384xbf16>, vector<8x384xf32> -> vector<8x384xf32>
    %178 = arith.addf %173, %177 : vector<8x384xf32>
    %c12_178 = arith.constant 12 : index
    %c2_179 = arith.constant 2 : index
    %179 = vector.load %arg6[%c12_178, %c2_179] : memref<40x512xbf16, #tpu.memory_space<vmem>>, vector<12x384xbf16>
    %c2_180 = arith.constant 2 : index
    %c0_181 = arith.constant 0 : index
    %c0_182 = arith.constant 0 : index
    %180 = vector.load %arg3[%c2_180, %c0_181, %c0_182] : memref<9x8x12xbf16, #tpu.memory_space<vmem>>, vector<1x8x12xbf16>
    %181 = vector.shape_cast %180 : vector<1x8x12xbf16> to vector<8x12xbf16>
    %cst_183 = arith.constant dense<0.000000e+00> : vector<8x384xf32>
    %182 = tpu.matmul %181, %179, %cst_183 {dimension_numbers = #tpu.dot_dimension_numbers<[1], [0], [0], [1], [0, 0, 1, 1], [], []>} : vector<8x12xbf16>, vector<12x384xbf16>, vector<8x384xf32> -> vector<8x384xf32>
    %183 = arith.addf %178, %182 : vector<8x384xf32>
    %c12_184 = arith.constant 12 : index
    %c18_185 = arith.constant 18 : index
    %184 = vector.load %arg6[%c12_184, %c18_185] : memref<40x512xbf16, #tpu.memory_space<vmem>>, vector<12x384xbf16>
    %c3_186 = arith.constant 3 : index
    %c0_187 = arith.constant 0 : index
    %c0_188 = arith.constant 0 : index
    %185 = vector.load %arg3[%c3_186, %c0_187, %c0_188] : memref<9x8x12xbf16, #tpu.memory_space<vmem>>, vector<1x8x12xbf16>
    %186 = vector.shape_cast %185 : vector<1x8x12xbf16> to vector<8x12xbf16>
    %cst_189 = arith.constant dense<0.000000e+00> : vector<8x384xf32>
    %187 = tpu.matmul %186, %184, %cst_189 {dimension_numbers = #tpu.dot_dimension_numbers<[1], [0], [0], [1], [0, 0, 1, 1], [], []>} : vector<8x12xbf16>, vector<12x384xbf16>, vector<8x384xf32> -> vector<8x384xf32>
    %188 = arith.addf %183, %187 : vector<8x384xf32>
    %c12_190 = arith.constant 12 : index
    %c19_191 = arith.constant 19 : index
    %189 = vector.load %arg6[%c12_190, %c19_191] : memref<40x512xbf16, #tpu.memory_space<vmem>>, vector<12x384xbf16>
    %c4_192 = arith.constant 4 : index
    %c0_193 = arith.constant 0 : index
    %c0_194 = arith.constant 0 : index
    %190 = vector.load %arg3[%c4_192, %c0_193, %c0_194] : memref<9x8x12xbf16, #tpu.memory_space<vmem>>, vector<1x8x12xbf16>
    %191 = vector.shape_cast %190 : vector<1x8x12xbf16> to vector<8x12xbf16>
    %cst_195 = arith.constant dense<0.000000e+00> : vector<8x384xf32>
    %192 = tpu.matmul %191, %189, %cst_195 {dimension_numbers = #tpu.dot_dimension_numbers<[1], [0], [0], [1], [0, 0, 1, 1], [], []>} : vector<8x12xbf16>, vector<12x384xbf16>, vector<8x384xf32> -> vector<8x384xf32>
    %193 = arith.addf %188, %192 : vector<8x384xf32>
    %c12_196 = arith.constant 12 : index
    %c20_197 = arith.constant 20 : index
    %194 = vector.load %arg6[%c12_196, %c20_197] : memref<40x512xbf16, #tpu.memory_space<vmem>>, vector<12x384xbf16>
    %c5_198 = arith.constant 5 : index
    %c0_199 = arith.constant 0 : index
    %c0_200 = arith.constant 0 : index
    %195 = vector.load %arg3[%c5_198, %c0_199, %c0_200] : memref<9x8x12xbf16, #tpu.memory_space<vmem>>, vector<1x8x12xbf16>
    %196 = vector.shape_cast %195 : vector<1x8x12xbf16> to vector<8x12xbf16>
    %cst_201 = arith.constant dense<0.000000e+00> : vector<8x384xf32>
    %197 = tpu.matmul %196, %194, %cst_201 {dimension_numbers = #tpu.dot_dimension_numbers<[1], [0], [0], [1], [0, 0, 1, 1], [], []>} : vector<8x12xbf16>, vector<12x384xbf16>, vector<8x384xf32> -> vector<8x384xf32>
    %198 = arith.addf %193, %197 : vector<8x384xf32>
    %c12_202 = arith.constant 12 : index
    %c36_203 = arith.constant 36 : index
    %199 = vector.load %arg6[%c12_202, %c36_203] : memref<40x512xbf16, #tpu.memory_space<vmem>>, vector<12x384xbf16>
    %c6_204 = arith.constant 6 : index
    %c0_205 = arith.constant 0 : index
    %c0_206 = arith.constant 0 : index
    %200 = vector.load %arg3[%c6_204, %c0_205, %c0_206] : memref<9x8x12xbf16, #tpu.memory_space<vmem>>, vector<1x8x12xbf16>
    %201 = vector.shape_cast %200 : vector<1x8x12xbf16> to vector<8x12xbf16>
    %cst_207 = arith.constant dense<0.000000e+00> : vector<8x384xf32>
    %202 = tpu.matmul %201, %199, %cst_207 {dimension_numbers = #tpu.dot_dimension_numbers<[1], [0], [0], [1], [0, 0, 1, 1], [], []>} : vector<8x12xbf16>, vector<12x384xbf16>, vector<8x384xf32> -> vector<8x384xf32>
    %203 = arith.addf %198, %202 : vector<8x384xf32>
    %c12_208 = arith.constant 12 : index
    %c37_209 = arith.constant 37 : index
    %204 = vector.load %arg6[%c12_208, %c37_209] : memref<40x512xbf16, #tpu.memory_space<vmem>>, vector<12x384xbf16>
    %c7_210 = arith.constant 7 : index
    %c0_211 = arith.constant 0 : index
    %c0_212 = arith.constant 0 : index
    %205 = vector.load %arg3[%c7_210, %c0_211, %c0_212] : memref<9x8x12xbf16, #tpu.memory_space<vmem>>, vector<1x8x12xbf16>
    %206 = vector.shape_cast %205 : vector<1x8x12xbf16> to vector<8x12xbf16>
    %cst_213 = arith.constant dense<0.000000e+00> : vector<8x384xf32>
    %207 = tpu.matmul %206, %204, %cst_213 {dimension_numbers = #tpu.dot_dimension_numbers<[1], [0], [0], [1], [0, 0, 1, 1], [], []>} : vector<8x12xbf16>, vector<12x384xbf16>, vector<8x384xf32> -> vector<8x384xf32>
    %208 = arith.addf %203, %207 : vector<8x384xf32>
    %c12_214 = arith.constant 12 : index
    %c38_215 = arith.constant 38 : index
    %209 = vector.load %arg6[%c12_214, %c38_215] : memref<40x512xbf16, #tpu.memory_space<vmem>>, vector<12x384xbf16>
    %c8_216 = arith.constant 8 : index
    %c0_217 = arith.constant 0 : index
    %c0_218 = arith.constant 0 : index
    %210 = vector.load %arg3[%c8_216, %c0_217, %c0_218] : memref<9x8x12xbf16, #tpu.memory_space<vmem>>, vector<1x8x12xbf16>
    %211 = vector.shape_cast %210 : vector<1x8x12xbf16> to vector<8x12xbf16>
    %cst_219 = arith.constant dense<0.000000e+00> : vector<8x384xf32>
    %212 = tpu.matmul %211, %209, %cst_219 {dimension_numbers = #tpu.dot_dimension_numbers<[1], [0], [0], [1], [0, 0, 1, 1], [], []>} : vector<8x12xbf16>, vector<12x384xbf16>, vector<8x384xf32> -> vector<8x384xf32>
    %213 = arith.addf %208, %212 : vector<8x384xf32>
    %c0_220 = arith.constant 0 : index
    %c0_221 = arith.constant 0 : index
    %214 = vector.load %arg4[%c0_220, %c0_221] : memref<8x1xf32, #tpu.memory_space<vmem>>, vector<8x1xf32>
    %215 = vector.broadcast %214 : vector<8x1xf32> to vector<8x384xf32>
    %216 = arith.addf %213, %215 : vector<8x384xf32>
    %cst_222 = arith.constant 0.000000e+00 : f32
    %217 = vector.broadcast %cst_222 : f32 to vector<8x384xf32>
    %218 = arith.maximumf %216, %217 : vector<8x384xf32>
    %c0_223 = arith.constant 0 : index
    %c0_224 = arith.constant 0 : index
    %c1152 = arith.constant 1152 : index
    %219 = vector.load %arg5[%c0_223, %c0_224, %c1152] : memref<1x8x3072xf32, #tpu.memory_space<vmem>>, vector<1x8x384xf32>
    %220 = vector.shape_cast %219 : vector<1x8x384xf32> to vector<8x384xf32>
    %221 = vector.shape_cast %218 : vector<8x384xf32> to vector<1x8x384xf32>
    tpu.vector_store %arg5[%c0_223, %c0_224, %c1152], %221 {strides = array<i32>} : memref<1x8x3072xf32, #tpu.memory_space<vmem>>, vector<1x8x384xf32>,
    %cst_225 = arith.constant 0.000000e+00 : f32
    %222 = vector.broadcast %cst_225 : f32 to vector<8x384xf32>
    %c16 = arith.constant 16 : index
    %c0_226 = arith.constant 0 : index
    %223 = vector.load %arg6[%c16, %c0_226] : memref<40x512xbf16, #tpu.memory_space<vmem>>, vector<12x384xbf16>
    %c0_227 = arith.constant 0 : index
    %c0_228 = arith.constant 0 : index
    %c0_229 = arith.constant 0 : index
    %224 = vector.load %arg3[%c0_227, %c0_228, %c0_229] : memref<9x8x12xbf16, #tpu.memory_space<vmem>>, vector<1x8x12xbf16>
    %225 = vector.shape_cast %224 : vector<1x8x12xbf16> to vector<8x12xbf16>
    %cst_230 = arith.constant dense<0.000000e+00> : vector<8x384xf32>
    %226 = tpu.matmul %225, %223, %cst_230 {dimension_numbers = #tpu.dot_dimension_numbers<[1], [0], [0], [1], [0, 0, 1, 1], [], []>} : vector<8x12xbf16>, vector<12x384xbf16>, vector<8x384xf32> -> vector<8x384xf32>
    %227 = arith.addf %222, %226 : vector<8x384xf32>
    %c16_231 = arith.constant 16 : index
    %c1_232 = arith.constant 1 : index
    %228 = vector.load %arg6[%c16_231, %c1_232] : memref<40x512xbf16, #tpu.memory_space<vmem>>, vector<12x384xbf16>
    %c1_233 = arith.constant 1 : index
    %c0_234 = arith.constant 0 : index
    %c0_235 = arith.constant 0 : index
    %229 = vector.load %arg3[%c1_233, %c0_234, %c0_235] : memref<9x8x12xbf16, #tpu.memory_space<vmem>>, vector<1x8x12xbf16>
    %230 = vector.shape_cast %229 : vector<1x8x12xbf16> to vector<8x12xbf16>
    %cst_236 = arith.constant dense<0.000000e+00> : vector<8x384xf32>
    %231 = tpu.matmul %230, %228, %cst_236 {dimension_numbers = #tpu.dot_dimension_numbers<[1], [0], [0], [1], [0, 0, 1, 1], [], []>} : vector<8x12xbf16>, vector<12x384xbf16>, vector<8x384xf32> -> vector<8x384xf32>
    %232 = arith.addf %227, %231 : vector<8x384xf32>
    %c16_237 = arith.constant 16 : index
    %c2_238 = arith.constant 2 : index
    %233 = vector.load %arg6[%c16_237, %c2_238] : memref<40x512xbf16, #tpu.memory_space<vmem>>, vector<12x384xbf16>
    %c2_239 = arith.constant 2 : index
    %c0_240 = arith.constant 0 : index
    %c0_241 = arith.constant 0 : index
    %234 = vector.load %arg3[%c2_239, %c0_240, %c0_241] : memref<9x8x12xbf16, #tpu.memory_space<vmem>>, vector<1x8x12xbf16>
    %235 = vector.shape_cast %234 : vector<1x8x12xbf16> to vector<8x12xbf16>
    %cst_242 = arith.constant dense<0.000000e+00> : vector<8x384xf32>
    %236 = tpu.matmul %235, %233, %cst_242 {dimension_numbers = #tpu.dot_dimension_numbers<[1], [0], [0], [1], [0, 0, 1, 1], [], []>} : vector<8x12xbf16>, vector<12x384xbf16>, vector<8x384xf32> -> vector<8x384xf32>
    %237 = arith.addf %232, %236 : vector<8x384xf32>
    %c16_243 = arith.constant 16 : index
    %c18_244 = arith.constant 18 : index
    %238 = vector.load %arg6[%c16_243, %c18_244] : memref<40x512xbf16, #tpu.memory_space<vmem>>, vector<12x384xbf16>
    %c3_245 = arith.constant 3 : index
    %c0_246 = arith.constant 0 : index
    %c0_247 = arith.constant 0 : index
    %239 = vector.load %arg3[%c3_245, %c0_246, %c0_247] : memref<9x8x12xbf16, #tpu.memory_space<vmem>>, vector<1x8x12xbf16>
    %240 = vector.shape_cast %239 : vector<1x8x12xbf16> to vector<8x12xbf16>
    %cst_248 = arith.constant dense<0.000000e+00> : vector<8x384xf32>
    %241 = tpu.matmul %240, %238, %cst_248 {dimension_numbers = #tpu.dot_dimension_numbers<[1], [0], [0], [1], [0, 0, 1, 1], [], []>} : vector<8x12xbf16>, vector<12x384xbf16>, vector<8x384xf32> -> vector<8x384xf32>
    %242 = arith.addf %237, %241 : vector<8x384xf32>
    %c16_249 = arith.constant 16 : index
    %c19_250 = arith.constant 19 : index
    %243 = vector.load %arg6[%c16_249, %c19_250] : memref<40x512xbf16, #tpu.memory_space<vmem>>, vector<12x384xbf16>
    %c4_251 = arith.constant 4 : index
    %c0_252 = arith.constant 0 : index
    %c0_253 = arith.constant 0 : index
    %244 = vector.load %arg3[%c4_251, %c0_252, %c0_253] : memref<9x8x12xbf16, #tpu.memory_space<vmem>>, vector<1x8x12xbf16>
    %245 = vector.shape_cast %244 : vector<1x8x12xbf16> to vector<8x12xbf16>
    %cst_254 = arith.constant dense<0.000000e+00> : vector<8x384xf32>
    %246 = tpu.matmul %245, %243, %cst_254 {dimension_numbers = #tpu.dot_dimension_numbers<[1], [0], [0], [1], [0, 0, 1, 1], [], []>} : vector<8x12xbf16>, vector<12x384xbf16>, vector<8x384xf32> -> vector<8x384xf32>
    %247 = arith.addf %242, %246 : vector<8x384xf32>
    %c16_255 = arith.constant 16 : index
    %c20_256 = arith.constant 20 : index
    %248 = vector.load %arg6[%c16_255, %c20_256] : memref<40x512xbf16, #tpu.memory_space<vmem>>, vector<12x384xbf16>
    %c5_257 = arith.constant 5 : index
    %c0_258 = arith.constant 0 : index
    %c0_259 = arith.constant 0 : index
    %249 = vector.load %arg3[%c5_257, %c0_258, %c0_259] : memref<9x8x12xbf16, #tpu.memory_space<vmem>>, vector<1x8x12xbf16>
    %250 = vector.shape_cast %249 : vector<1x8x12xbf16> to vector<8x12xbf16>
    %cst_260 = arith.constant dense<0.000000e+00> : vector<8x384xf32>
    %251 = tpu.matmul %250, %248, %cst_260 {dimension_numbers = #tpu.dot_dimension_numbers<[1], [0], [0], [1], [0, 0, 1, 1], [], []>} : vector<8x12xbf16>, vector<12x384xbf16>, vector<8x384xf32> -> vector<8x384xf32>
    %252 = arith.addf %247, %251 : vector<8x384xf32>
    %c16_261 = arith.constant 16 : index
    %c36_262 = arith.constant 36 : index
    %253 = vector.load %arg6[%c16_261, %c36_262] : memref<40x512xbf16, #tpu.memory_space<vmem>>, vector<12x384xbf16>
    %c6_263 = arith.constant 6 : index
    %c0_264 = arith.constant 0 : index
    %c0_265 = arith.constant 0 : index
    %254 = vector.load %arg3[%c6_263, %c0_264, %c0_265] : memref<9x8x12xbf16, #tpu.memory_space<vmem>>, vector<1x8x12xbf16>
    %255 = vector.shape_cast %254 : vector<1x8x12xbf16> to vector<8x12xbf16>
    %cst_266 = arith.constant dense<0.000000e+00> : vector<8x384xf32>
    %256 = tpu.matmul %255, %253, %cst_266 {dimension_numbers = #tpu.dot_dimension_numbers<[1], [0], [0], [1], [0, 0, 1, 1], [], []>} : vector<8x12xbf16>, vector<12x384xbf16>, vector<8x384xf32> -> vector<8x384xf32>
    %257 = arith.addf %252, %256 : vector<8x384xf32>
    %c16_267 = arith.constant 16 : index
    %c37_268 = arith.constant 37 : index
    %258 = vector.load %arg6[%c16_267, %c37_268] : memref<40x512xbf16, #tpu.memory_space<vmem>>, vector<12x384xbf16>
    %c7_269 = arith.constant 7 : index
    %c0_270 = arith.constant 0 : index
    %c0_271 = arith.constant 0 : index
    %259 = vector.load %arg3[%c7_269, %c0_270, %c0_271] : memref<9x8x12xbf16, #tpu.memory_space<vmem>>, vector<1x8x12xbf16>
    %260 = vector.shape_cast %259 : vector<1x8x12xbf16> to vector<8x12xbf16>
    %cst_272 = arith.constant dense<0.000000e+00> : vector<8x384xf32>
    %261 = tpu.matmul %260, %258, %cst_272 {dimension_numbers = #tpu.dot_dimension_numbers<[1], [0], [0], [1], [0, 0, 1, 1], [], []>} : vector<8x12xbf16>, vector<12x384xbf16>, vector<8x384xf32> -> vector<8x384xf32>
    %262 = arith.addf %257, %261 : vector<8x384xf32>
    %c16_273 = arith.constant 16 : index
    %c38_274 = arith.constant 38 : index
    %263 = vector.load %arg6[%c16_273, %c38_274] : memref<40x512xbf16, #tpu.memory_space<vmem>>, vector<12x384xbf16>
    %c8_275 = arith.constant 8 : index
    %c0_276 = arith.constant 0 : index
    %c0_277 = arith.constant 0 : index
    %264 = vector.load %arg3[%c8_275, %c0_276, %c0_277] : memref<9x8x12xbf16, #tpu.memory_space<vmem>>, vector<1x8x12xbf16>
    %265 = vector.shape_cast %264 : vector<1x8x12xbf16> to vector<8x12xbf16>
    %cst_278 = arith.constant dense<0.000000e+00> : vector<8x384xf32>
    %266 = tpu.matmul %265, %263, %cst_278 {dimension_numbers = #tpu.dot_dimension_numbers<[1], [0], [0], [1], [0, 0, 1, 1], [], []>} : vector<8x12xbf16>, vector<12x384xbf16>, vector<8x384xf32> -> vector<8x384xf32>
    %267 = arith.addf %262, %266 : vector<8x384xf32>
    %c0_279 = arith.constant 0 : index
    %c0_280 = arith.constant 0 : index
    %268 = vector.load %arg4[%c0_279, %c0_280] : memref<8x1xf32, #tpu.memory_space<vmem>>, vector<8x1xf32>
    %269 = vector.broadcast %268 : vector<8x1xf32> to vector<8x384xf32>
    %270 = arith.addf %267, %269 : vector<8x384xf32>
    %cst_281 = arith.constant 0.000000e+00 : f32
    %271 = vector.broadcast %cst_281 : f32 to vector<8x384xf32>
    %272 = arith.maximumf %270, %271 : vector<8x384xf32>
    %c0_282 = arith.constant 0 : index
    %c0_283 = arith.constant 0 : index
    %c1536 = arith.constant 1536 : index
    %273 = vector.load %arg5[%c0_282, %c0_283, %c1536] : memref<1x8x3072xf32, #tpu.memory_space<vmem>>, vector<1x8x384xf32>
    %274 = vector.shape_cast %273 : vector<1x8x384xf32> to vector<8x384xf32>
    %275 = vector.shape_cast %272 : vector<8x384xf32> to vector<1x8x384xf32>
    tpu.vector_store %arg5[%c0_282, %c0_283, %c1536], %275 {strides = array<i32>} : memref<1x8x3072xf32, #tpu.memory_space<vmem>>, vector<1x8x384xf32>,
    %cst_284 = arith.constant 0.000000e+00 : f32
    %276 = vector.broadcast %cst_284 : f32 to vector<8x384xf32>
    %c20_285 = arith.constant 20 : index
    %c0_286 = arith.constant 0 : index
    %277 = vector.load %arg6[%c20_285, %c0_286] : memref<40x512xbf16, #tpu.memory_space<vmem>>, vector<12x384xbf16>
    %c0_287 = arith.constant 0 : index
    %c0_288 = arith.constant 0 : index
    %c0_289 = arith.constant 0 : index
    %278 = vector.load %arg3[%c0_287, %c0_288, %c0_289] : memref<9x8x12xbf16, #tpu.memory_space<vmem>>, vector<1x8x12xbf16>
    %279 = vector.shape_cast %278 : vector<1x8x12xbf16> to vector<8x12xbf16>
    %cst_290 = arith.constant dense<0.000000e+00> : vector<8x384xf32>
    %280 = tpu.matmul %279, %277, %cst_290 {dimension_numbers = #tpu.dot_dimension_numbers<[1], [0], [0], [1], [0, 0, 1, 1], [], []>} : vector<8x12xbf16>, vector<12x384xbf16>, vector<8x384xf32> -> vector<8x384xf32>
    %281 = arith.addf %276, %280 : vector<8x384xf32>
    %c20_291 = arith.constant 20 : index
    %c1_292 = arith.constant 1 : index
    %282 = vector.load %arg6[%c20_291, %c1_292] : memref<40x512xbf16, #tpu.memory_space<vmem>>, vector<12x384xbf16>
    %c1_293 = arith.constant 1 : index
    %c0_294 = arith.constant 0 : index
    %c0_295 = arith.constant 0 : index
    %283 = vector.load %arg3[%c1_293, %c0_294, %c0_295] : memref<9x8x12xbf16, #tpu.memory_space<vmem>>, vector<1x8x12xbf16>
    %284 = vector.shape_cast %283 : vector<1x8x12xbf16> to vector<8x12xbf16>
    %cst_296 = arith.constant dense<0.000000e+00> : vector<8x384xf32>
    %285 = tpu.matmul %284, %282, %cst_296 {dimension_numbers = #tpu.dot_dimension_numbers<[1], [0], [0], [1], [0, 0, 1, 1], [], []>} : vector<8x12xbf16>, vector<12x384xbf16>, vector<8x384xf32> -> vector<8x384xf32>
    %286 = arith.addf %281, %285 : vector<8x384xf32>
    %c20_297 = arith.constant 20 : index
    %c2_298 = arith.constant 2 : index
    %287 = vector.load %arg6[%c20_297, %c2_298] : memref<40x512xbf16, #tpu.memory_space<vmem>>, vector<12x384xbf16>
    %c2_299 = arith.constant 2 : index
    %c0_300 = arith.constant 0 : index
    %c0_301 = arith.constant 0 : index
    %288 = vector.load %arg3[%c2_299, %c0_300, %c0_301] : memref<9x8x12xbf16, #tpu.memory_space<vmem>>, vector<1x8x12xbf16>
    %289 = vector.shape_cast %288 : vector<1x8x12xbf16> to vector<8x12xbf16>
    %cst_302 = arith.constant dense<0.000000e+00> : vector<8x384xf32>
    %290 = tpu.matmul %289, %287, %cst_302 {dimension_numbers = #tpu.dot_dimension_numbers<[1], [0], [0], [1], [0, 0, 1, 1], [], []>} : vector<8x12xbf16>, vector<12x384xbf16>, vector<8x384xf32> -> vector<8x384xf32>
    %291 = arith.addf %286, %290 : vector<8x384xf32>
    %c20_303 = arith.constant 20 : index
    %c18_304 = arith.constant 18 : index
    %292 = vector.load %arg6[%c20_303, %c18_304] : memref<40x512xbf16, #tpu.memory_space<vmem>>, vector<12x384xbf16>
    %c3_305 = arith.constant 3 : index
    %c0_306 = arith.constant 0 : index
    %c0_307 = arith.constant 0 : index
    %293 = vector.load %arg3[%c3_305, %c0_306, %c0_307] : memref<9x8x12xbf16, #tpu.memory_space<vmem>>, vector<1x8x12xbf16>
    %294 = vector.shape_cast %293 : vector<1x8x12xbf16> to vector<8x12xbf16>
    %cst_308 = arith.constant dense<0.000000e+00> : vector<8x384xf32>
    %295 = tpu.matmul %294, %292, %cst_308 {dimension_numbers = #tpu.dot_dimension_numbers<[1], [0], [0], [1], [0, 0, 1, 1], [], []>} : vector<8x12xbf16>, vector<12x384xbf16>, vector<8x384xf32> -> vector<8x384xf32>
    %296 = arith.addf %291, %295 : vector<8x384xf32>
    %c20_309 = arith.constant 20 : index
    %c19_310 = arith.constant 19 : index
    %297 = vector.load %arg6[%c20_309, %c19_310] : memref<40x512xbf16, #tpu.memory_space<vmem>>, vector<12x384xbf16>
    %c4_311 = arith.constant 4 : index
    %c0_312 = arith.constant 0 : index
    %c0_313 = arith.constant 0 : index
    %298 = vector.load %arg3[%c4_311, %c0_312, %c0_313] : memref<9x8x12xbf16, #tpu.memory_space<vmem>>, vector<1x8x12xbf16>
    %299 = vector.shape_cast %298 : vector<1x8x12xbf16> to vector<8x12xbf16>
    %cst_314 = arith.constant dense<0.000000e+00> : vector<8x384xf32>
    %300 = tpu.matmul %299, %297, %cst_314 {dimension_numbers = #tpu.dot_dimension_numbers<[1], [0], [0], [1], [0, 0, 1, 1], [], []>} : vector<8x12xbf16>, vector<12x384xbf16>, vector<8x384xf32> -> vector<8x384xf32>
    %301 = arith.addf %296, %300 : vector<8x384xf32>
    %c20_315 = arith.constant 20 : index
    %c20_316 = arith.constant 20 : index
    %302 = vector.load %arg6[%c20_315, %c20_316] : memref<40x512xbf16, #tpu.memory_space<vmem>>, vector<12x384xbf16>
    %c5_317 = arith.constant 5 : index
    %c0_318 = arith.constant 0 : index
    %c0_319 = arith.constant 0 : index
    %303 = vector.load %arg3[%c5_317, %c0_318, %c0_319] : memref<9x8x12xbf16, #tpu.memory_space<vmem>>, vector<1x8x12xbf16>
    %304 = vector.shape_cast %303 : vector<1x8x12xbf16> to vector<8x12xbf16>
    %cst_320 = arith.constant dense<0.000000e+00> : vector<8x384xf32>
    %305 = tpu.matmul %304, %302, %cst_320 {dimension_numbers = #tpu.dot_dimension_numbers<[1], [0], [0], [1], [0, 0, 1, 1], [], []>} : vector<8x12xbf16>, vector<12x384xbf16>, vector<8x384xf32> -> vector<8x384xf32>
    %306 = arith.addf %301, %305 : vector<8x384xf32>
    %c20_321 = arith.constant 20 : index
    %c36_322 = arith.constant 36 : index
    %307 = vector.load %arg6[%c20_321, %c36_322] : memref<40x512xbf16, #tpu.memory_space<vmem>>, vector<12x384xbf16>
    %c6_323 = arith.constant 6 : index
    %c0_324 = arith.constant 0 : index
    %c0_325 = arith.constant 0 : index
    %308 = vector.load %arg3[%c6_323, %c0_324, %c0_325] : memref<9x8x12xbf16, #tpu.memory_space<vmem>>, vector<1x8x12xbf16>
    %309 = vector.shape_cast %308 : vector<1x8x12xbf16> to vector<8x12xbf16>
    %cst_326 = arith.constant dense<0.000000e+00> : vector<8x384xf32>
    %310 = tpu.matmul %309, %307, %cst_326 {dimension_numbers = #tpu.dot_dimension_numbers<[1], [0], [0], [1], [0, 0, 1, 1], [], []>} : vector<8x12xbf16>, vector<12x384xbf16>, vector<8x384xf32> -> vector<8x384xf32>
    %311 = arith.addf %306, %310 : vector<8x384xf32>
    %c20_327 = arith.constant 20 : index
    %c37_328 = arith.constant 37 : index
    %312 = vector.load %arg6[%c20_327, %c37_328] : memref<40x512xbf16, #tpu.memory_space<vmem>>, vector<12x384xbf16>
    %c7_329 = arith.constant 7 : index
    %c0_330 = arith.constant 0 : index
    %c0_331 = arith.constant 0 : index
    %313 = vector.load %arg3[%c7_329, %c0_330, %c0_331] : memref<9x8x12xbf16, #tpu.memory_space<vmem>>, vector<1x8x12xbf16>
    %314 = vector.shape_cast %313 : vector<1x8x12xbf16> to vector<8x12xbf16>
    %cst_332 = arith.constant dense<0.000000e+00> : vector<8x384xf32>
    %315 = tpu.matmul %314, %312, %cst_332 {dimension_numbers = #tpu.dot_dimension_numbers<[1], [0], [0], [1], [0, 0, 1, 1], [], []>} : vector<8x12xbf16>, vector<12x384xbf16>, vector<8x384xf32> -> vector<8x384xf32>
    %316 = arith.addf %311, %315 : vector<8x384xf32>
    %c20_333 = arith.constant 20 : index
    %c38_334 = arith.constant 38 : index
    %317 = vector.load %arg6[%c20_333, %c38_334] : memref<40x512xbf16, #tpu.memory_space<vmem>>, vector<12x384xbf16>
    %c8_335 = arith.constant 8 : index
    %c0_336 = arith.constant 0 : index
    %c0_337 = arith.constant 0 : index
    %318 = vector.load %arg3[%c8_335, %c0_336, %c0_337] : memref<9x8x12xbf16, #tpu.memory_space<vmem>>, vector<1x8x12xbf16>
    %319 = vector.shape_cast %318 : vector<1x8x12xbf16> to vector<8x12xbf16>
    %cst_338 = arith.constant dense<0.000000e+00> : vector<8x384xf32>
    %320 = tpu.matmul %319, %317, %cst_338 {dimension_numbers = #tpu.dot_dimension_numbers<[1], [0], [0], [1], [0, 0, 1, 1], [], []>} : vector<8x12xbf16>, vector<12x384xbf16>, vector<8x384xf32> -> vector<8x384xf32>
    %321 = arith.addf %316, %320 : vector<8x384xf32>
    %c0_339 = arith.constant 0 : index
    %c0_340 = arith.constant 0 : index
    %322 = vector.load %arg4[%c0_339, %c0_340] : memref<8x1xf32, #tpu.memory_space<vmem>>, vector<8x1xf32>
    %323 = vector.broadcast %322 : vector<8x1xf32> to vector<8x384xf32>
    %324 = arith.addf %321, %323 : vector<8x384xf32>
    %cst_341 = arith.constant 0.000000e+00 : f32
    %325 = vector.broadcast %cst_341 : f32 to vector<8x384xf32>
    %326 = arith.maximumf %324, %325 : vector<8x384xf32>
    %c0_342 = arith.constant 0 : index
    %c0_343 = arith.constant 0 : index
    %c1920 = arith.constant 1920 : index
    %327 = vector.load %arg5[%c0_342, %c0_343, %c1920] : memref<1x8x3072xf32, #tpu.memory_space<vmem>>, vector<1x8x384xf32>
    %328 = vector.shape_cast %327 : vector<1x8x384xf32> to vector<8x384xf32>
    %329 = vector.shape_cast %326 : vector<8x384xf32> to vector<1x8x384xf32>
    tpu.vector_store %arg5[%c0_342, %c0_343, %c1920], %329 {strides = array<i32>} : memref<1x8x3072xf32, #tpu.memory_space<vmem>>, vector<1x8x384xf32>,
    %cst_344 = arith.constant 0.000000e+00 : f32
    %330 = vector.broadcast %cst_344 : f32 to vector<8x384xf32>
    %c24 = arith.constant 24 : index
    %c0_345 = arith.constant 0 : index
    %331 = vector.load %arg6[%c24, %c0_345] : memref<40x512xbf16, #tpu.memory_space<vmem>>, vector<12x384xbf16>
    %c0_346 = arith.constant 0 : index
    %c0_347 = arith.constant 0 : index
    %c0_348 = arith.constant 0 : index
    %332 = vector.load %arg3[%c0_346, %c0_347, %c0_348] : memref<9x8x12xbf16, #tpu.memory_space<vmem>>, vector<1x8x12xbf16>
    %333 = vector.shape_cast %332 : vector<1x8x12xbf16> to vector<8x12xbf16>
    %cst_349 = arith.constant dense<0.000000e+00> : vector<8x384xf32>
    %334 = tpu.matmul %333, %331, %cst_349 {dimension_numbers = #tpu.dot_dimension_numbers<[1], [0], [0], [1], [0, 0, 1, 1], [], []>} : vector<8x12xbf16>, vector<12x384xbf16>, vector<8x384xf32> -> vector<8x384xf32>
    %335 = arith.addf %330, %334 : vector<8x384xf32>
    %c24_350 = arith.constant 24 : index
    %c1_351 = arith.constant 1 : index
    %336 = vector.load %arg6[%c24_350, %c1_351] : memref<40x512xbf16, #tpu.memory_space<vmem>>, vector<12x384xbf16>
    %c1_352 = arith.constant 1 : index
    %c0_353 = arith.constant 0 : index
    %c0_354 = arith.constant 0 : index
    %337 = vector.load %arg3[%c1_352, %c0_353, %c0_354] : memref<9x8x12xbf16, #tpu.memory_space<vmem>>, vector<1x8x12xbf16>
    %338 = vector.shape_cast %337 : vector<1x8x12xbf16> to vector<8x12xbf16>
    %cst_355 = arith.constant dense<0.000000e+00> : vector<8x384xf32>
    %339 = tpu.matmul %338, %336, %cst_355 {dimension_numbers = #tpu.dot_dimension_numbers<[1], [0], [0], [1], [0, 0, 1, 1], [], []>} : vector<8x12xbf16>, vector<12x384xbf16>, vector<8x384xf32> -> vector<8x384xf32>
    %340 = arith.addf %335, %339 : vector<8x384xf32>
    %c24_356 = arith.constant 24 : index
    %c2_357 = arith.constant 2 : index
    %341 = vector.load %arg6[%c24_356, %c2_357] : memref<40x512xbf16, #tpu.memory_space<vmem>>, vector<12x384xbf16>
    %c2_358 = arith.constant 2 : index
    %c0_359 = arith.constant 0 : index
    %c0_360 = arith.constant 0 : index
    %342 = vector.load %arg3[%c2_358, %c0_359, %c0_360] : memref<9x8x12xbf16, #tpu.memory_space<vmem>>, vector<1x8x12xbf16>
    %343 = vector.shape_cast %342 : vector<1x8x12xbf16> to vector<8x12xbf16>
    %cst_361 = arith.constant dense<0.000000e+00> : vector<8x384xf32>
    %344 = tpu.matmul %343, %341, %cst_361 {dimension_numbers = #tpu.dot_dimension_numbers<[1], [0], [0], [1], [0, 0, 1, 1], [], []>} : vector<8x12xbf16>, vector<12x384xbf16>, vector<8x384xf32> -> vector<8x384xf32>
    %345 = arith.addf %340, %344 : vector<8x384xf32>
    %c24_362 = arith.constant 24 : index
    %c18_363 = arith.constant 18 : index
    %346 = vector.load %arg6[%c24_362, %c18_363] : memref<40x512xbf16, #tpu.memory_space<vmem>>, vector<12x384xbf16>
    %c3_364 = arith.constant 3 : index
    %c0_365 = arith.constant 0 : index
    %c0_366 = arith.constant 0 : index
    %347 = vector.load %arg3[%c3_364, %c0_365, %c0_366] : memref<9x8x12xbf16, #tpu.memory_space<vmem>>, vector<1x8x12xbf16>
    %348 = vector.shape_cast %347 : vector<1x8x12xbf16> to vector<8x12xbf16>
    %cst_367 = arith.constant dense<0.000000e+00> : vector<8x384xf32>
    %349 = tpu.matmul %348, %346, %cst_367 {dimension_numbers = #tpu.dot_dimension_numbers<[1], [0], [0], [1], [0, 0, 1, 1], [], []>} : vector<8x12xbf16>, vector<12x384xbf16>, vector<8x384xf32> -> vector<8x384xf32>
    %350 = arith.addf %345, %349 : vector<8x384xf32>
    %c24_368 = arith.constant 24 : index
    %c19_369 = arith.constant 19 : index
    %351 = vector.load %arg6[%c24_368, %c19_369] : memref<40x512xbf16, #tpu.memory_space<vmem>>, vector<12x384xbf16>
    %c4_370 = arith.constant 4 : index
    %c0_371 = arith.constant 0 : index
    %c0_372 = arith.constant 0 : index
    %352 = vector.load %arg3[%c4_370, %c0_371, %c0_372] : memref<9x8x12xbf16, #tpu.memory_space<vmem>>, vector<1x8x12xbf16>
    %353 = vector.shape_cast %352 : vector<1x8x12xbf16> to vector<8x12xbf16>
    %cst_373 = arith.constant dense<0.000000e+00> : vector<8x384xf32>
    %354 = tpu.matmul %353, %351, %cst_373 {dimension_numbers = #tpu.dot_dimension_numbers<[1], [0], [0], [1], [0, 0, 1, 1], [], []>} : vector<8x12xbf16>, vector<12x384xbf16>, vector<8x384xf32> -> vector<8x384xf32>
    %355 = arith.addf %350, %354 : vector<8x384xf32>
    %c24_374 = arith.constant 24 : index
    %c20_375 = arith.constant 20 : index
    %356 = vector.load %arg6[%c24_374, %c20_375] : memref<40x512xbf16, #tpu.memory_space<vmem>>, vector<12x384xbf16>
    %c5_376 = arith.constant 5 : index
    %c0_377 = arith.constant 0 : index
    %c0_378 = arith.constant 0 : index
    %357 = vector.load %arg3[%c5_376, %c0_377, %c0_378] : memref<9x8x12xbf16, #tpu.memory_space<vmem>>, vector<1x8x12xbf16>
    %358 = vector.shape_cast %357 : vector<1x8x12xbf16> to vector<8x12xbf16>
    %cst_379 = arith.constant dense<0.000000e+00> : vector<8x384xf32>
    %359 = tpu.matmul %358, %356, %cst_379 {dimension_numbers = #tpu.dot_dimension_numbers<[1], [0], [0], [1], [0, 0, 1, 1], [], []>} : vector<8x12xbf16>, vector<12x384xbf16>, vector<8x384xf32> -> vector<8x384xf32>
    %360 = arith.addf %355, %359 : vector<8x384xf32>
    %c24_380 = arith.constant 24 : index
    %c36_381 = arith.constant 36 : index
    %361 = vector.load %arg6[%c24_380, %c36_381] : memref<40x512xbf16, #tpu.memory_space<vmem>>, vector<12x384xbf16>
    %c6_382 = arith.constant 6 : index
    %c0_383 = arith.constant 0 : index
    %c0_384 = arith.constant 0 : index
    %362 = vector.load %arg3[%c6_382, %c0_383, %c0_384] : memref<9x8x12xbf16, #tpu.memory_space<vmem>>, vector<1x8x12xbf16>
    %363 = vector.shape_cast %362 : vector<1x8x12xbf16> to vector<8x12xbf16>
    %cst_385 = arith.constant dense<0.000000e+00> : vector<8x384xf32>
    %364 = tpu.matmul %363, %361, %cst_385 {dimension_numbers = #tpu.dot_dimension_numbers<[1], [0], [0], [1], [0, 0, 1, 1], [], []>} : vector<8x12xbf16>, vector<12x384xbf16>, vector<8x384xf32> -> vector<8x384xf32>
    %365 = arith.addf %360, %364 : vector<8x384xf32>
    %c24_386 = arith.constant 24 : index
    %c37_387 = arith.constant 37 : index
    %366 = vector.load %arg6[%c24_386, %c37_387] : memref<40x512xbf16, #tpu.memory_space<vmem>>, vector<12x384xbf16>
    %c7_388 = arith.constant 7 : index
    %c0_389 = arith.constant 0 : index
    %c0_390 = arith.constant 0 : index
    %367 = vector.load %arg3[%c7_388, %c0_389, %c0_390] : memref<9x8x12xbf16, #tpu.memory_space<vmem>>, vector<1x8x12xbf16>
    %368 = vector.shape_cast %367 : vector<1x8x12xbf16> to vector<8x12xbf16>
    %cst_391 = arith.constant dense<0.000000e+00> : vector<8x384xf32>
    %369 = tpu.matmul %368, %366, %cst_391 {dimension_numbers = #tpu.dot_dimension_numbers<[1], [0], [0], [1], [0, 0, 1, 1], [], []>} : vector<8x12xbf16>, vector<12x384xbf16>, vector<8x384xf32> -> vector<8x384xf32>
    %370 = arith.addf %365, %369 : vector<8x384xf32>
    %c24_392 = arith.constant 24 : index
    %c38_393 = arith.constant 38 : index
    %371 = vector.load %arg6[%c24_392, %c38_393] : memref<40x512xbf16, #tpu.memory_space<vmem>>, vector<12x384xbf16>
    %c8_394 = arith.constant 8 : index
    %c0_395 = arith.constant 0 : index
    %c0_396 = arith.constant 0 : index
    %372 = vector.load %arg3[%c8_394, %c0_395, %c0_396] : memref<9x8x12xbf16, #tpu.memory_space<vmem>>, vector<1x8x12xbf16>
    %373 = vector.shape_cast %372 : vector<1x8x12xbf16> to vector<8x12xbf16>
    %cst_397 = arith.constant dense<0.000000e+00> : vector<8x384xf32>
    %374 = tpu.matmul %373, %371, %cst_397 {dimension_numbers = #tpu.dot_dimension_numbers<[1], [0], [0], [1], [0, 0, 1, 1], [], []>} : vector<8x12xbf16>, vector<12x384xbf16>, vector<8x384xf32> -> vector<8x384xf32>
    %375 = arith.addf %370, %374 : vector<8x384xf32>
    %c0_398 = arith.constant 0 : index
    %c0_399 = arith.constant 0 : index
    %376 = vector.load %arg4[%c0_398, %c0_399] : memref<8x1xf32, #tpu.memory_space<vmem>>, vector<8x1xf32>
    %377 = vector.broadcast %376 : vector<8x1xf32> to vector<8x384xf32>
    %378 = arith.addf %375, %377 : vector<8x384xf32>
    %cst_400 = arith.constant 0.000000e+00 : f32
    %379 = vector.broadcast %cst_400 : f32 to vector<8x384xf32>
    %380 = arith.maximumf %378, %379 : vector<8x384xf32>
    %c0_401 = arith.constant 0 : index
    %c0_402 = arith.constant 0 : index
    %c2304 = arith.constant 2304 : index
    %381 = vector.load %arg5[%c0_401, %c0_402, %c2304] : memref<1x8x3072xf32, #tpu.memory_space<vmem>>, vector<1x8x384xf32>
    %382 = vector.shape_cast %381 : vector<1x8x384xf32> to vector<8x384xf32>
    %383 = vector.shape_cast %380 : vector<8x384xf32> to vector<1x8x384xf32>
    tpu.vector_store %arg5[%c0_401, %c0_402, %c2304], %383 {strides = array<i32>} : memref<1x8x3072xf32, #tpu.memory_space<vmem>>, vector<1x8x384xf32>,
    %cst_403 = arith.constant 0.000000e+00 : f32
    %384 = vector.broadcast %cst_403 : f32 to vector<8x384xf32>
    %c28 = arith.constant 28 : index
    %c0_404 = arith.constant 0 : index
    %385 = vector.load %arg6[%c28, %c0_404] : memref<40x512xbf16, #tpu.memory_space<vmem>>, vector<12x384xbf16>
    %c0_405 = arith.constant 0 : index
    %c0_406 = arith.constant 0 : index
    %c0_407 = arith.constant 0 : index
    %386 = vector.load %arg3[%c0_405, %c0_406, %c0_407] : memref<9x8x12xbf16, #tpu.memory_space<vmem>>, vector<1x8x12xbf16>
    %387 = vector.shape_cast %386 : vector<1x8x12xbf16> to vector<8x12xbf16>
    %cst_408 = arith.constant dense<0.000000e+00> : vector<8x384xf32>
    %388 = tpu.matmul %387, %385, %cst_408 {dimension_numbers = #tpu.dot_dimension_numbers<[1], [0], [0], [1], [0, 0, 1, 1], [], []>} : vector<8x12xbf16>, vector<12x384xbf16>, vector<8x384xf32> -> vector<8x384xf32>
    %389 = arith.addf %384, %388 : vector<8x384xf32>
    %c28_409 = arith.constant 28 : index
    %c1_410 = arith.constant 1 : index
    %390 = vector.load %arg6[%c28_409, %c1_410] : memref<40x512xbf16, #tpu.memory_space<vmem>>, vector<12x384xbf16>
    %c1_411 = arith.constant 1 : index
    %c0_412 = arith.constant 0 : index
    %c0_413 = arith.constant 0 : index
    %391 = vector.load %arg3[%c1_411, %c0_412, %c0_413] : memref<9x8x12xbf16, #tpu.memory_space<vmem>>, vector<1x8x12xbf16>
    %392 = vector.shape_cast %391 : vector<1x8x12xbf16> to vector<8x12xbf16>
    %cst_414 = arith.constant dense<0.000000e+00> : vector<8x384xf32>
    %393 = tpu.matmul %392, %390, %cst_414 {dimension_numbers = #tpu.dot_dimension_numbers<[1], [0], [0], [1], [0, 0, 1, 1], [], []>} : vector<8x12xbf16>, vector<12x384xbf16>, vector<8x384xf32> -> vector<8x384xf32>
    %394 = arith.addf %389, %393 : vector<8x384xf32>
    %c28_415 = arith.constant 28 : index
    %c2_416 = arith.constant 2 : index
    %395 = vector.load %arg6[%c28_415, %c2_416] : memref<40x512xbf16, #tpu.memory_space<vmem>>, vector<12x384xbf16>
    %c2_417 = arith.constant 2 : index
    %c0_418 = arith.constant 0 : index
    %c0_419 = arith.constant 0 : index
    %396 = vector.load %arg3[%c2_417, %c0_418, %c0_419] : memref<9x8x12xbf16, #tpu.memory_space<vmem>>, vector<1x8x12xbf16>
    %397 = vector.shape_cast %396 : vector<1x8x12xbf16> to vector<8x12xbf16>
    %cst_420 = arith.constant dense<0.000000e+00> : vector<8x384xf32>
    %398 = tpu.matmul %397, %395, %cst_420 {dimension_numbers = #tpu.dot_dimension_numbers<[1], [0], [0], [1], [0, 0, 1, 1], [], []>} : vector<8x12xbf16>, vector<12x384xbf16>, vector<8x384xf32> -> vector<8x384xf32>
    %399 = arith.addf %394, %398 : vector<8x384xf32>
    %c28_421 = arith.constant 28 : index
    %c18_422 = arith.constant 18 : index
    %400 = vector.load %arg6[%c28_421, %c18_422] : memref<40x512xbf16, #tpu.memory_space<vmem>>, vector<12x384xbf16>
    %c3_423 = arith.constant 3 : index
    %c0_424 = arith.constant 0 : index
    %c0_425 = arith.constant 0 : index
    %401 = vector.load %arg3[%c3_423, %c0_424, %c0_425] : memref<9x8x12xbf16, #tpu.memory_space<vmem>>, vector<1x8x12xbf16>
    %402 = vector.shape_cast %401 : vector<1x8x12xbf16> to vector<8x12xbf16>
    %cst_426 = arith.constant dense<0.000000e+00> : vector<8x384xf32>
    %403 = tpu.matmul %402, %400, %cst_426 {dimension_numbers = #tpu.dot_dimension_numbers<[1], [0], [0], [1], [0, 0, 1, 1], [], []>} : vector<8x12xbf16>, vector<12x384xbf16>, vector<8x384xf32> -> vector<8x384xf32>
    %404 = arith.addf %399, %403 : vector<8x384xf32>
    %c28_427 = arith.constant 28 : index
    %c19_428 = arith.constant 19 : index
    %405 = vector.load %arg6[%c28_427, %c19_428] : memref<40x512xbf16, #tpu.memory_space<vmem>>, vector<12x384xbf16>
    %c4_429 = arith.constant 4 : index
    %c0_430 = arith.constant 0 : index
    %c0_431 = arith.constant 0 : index
    %406 = vector.load %arg3[%c4_429, %c0_430, %c0_431] : memref<9x8x12xbf16, #tpu.memory_space<vmem>>, vector<1x8x12xbf16>
    %407 = vector.shape_cast %406 : vector<1x8x12xbf16> to vector<8x12xbf16>
    %cst_432 = arith.constant dense<0.000000e+00> : vector<8x384xf32>
    %408 = tpu.matmul %407, %405, %cst_432 {dimension_numbers = #tpu.dot_dimension_numbers<[1], [0], [0], [1], [0, 0, 1, 1], [], []>} : vector<8x12xbf16>, vector<12x384xbf16>, vector<8x384xf32> -> vector<8x384xf32>
    %409 = arith.addf %404, %408 : vector<8x384xf32>
    %c28_433 = arith.constant 28 : index
    %c20_434 = arith.constant 20 : index
    %410 = vector.load %arg6[%c28_433, %c20_434] : memref<40x512xbf16, #tpu.memory_space<vmem>>, vector<12x384xbf16>
    %c5_435 = arith.constant 5 : index
    %c0_436 = arith.constant 0 : index
    %c0_437 = arith.constant 0 : index
    %411 = vector.load %arg3[%c5_435, %c0_436, %c0_437] : memref<9x8x12xbf16, #tpu.memory_space<vmem>>, vector<1x8x12xbf16>
    %412 = vector.shape_cast %411 : vector<1x8x12xbf16> to vector<8x12xbf16>
    %cst_438 = arith.constant dense<0.000000e+00> : vector<8x384xf32>
    %413 = tpu.matmul %412, %410, %cst_438 {dimension_numbers = #tpu.dot_dimension_numbers<[1], [0], [0], [1], [0, 0, 1, 1], [], []>} : vector<8x12xbf16>, vector<12x384xbf16>, vector<8x384xf32> -> vector<8x384xf32>
    %414 = arith.addf %409, %413 : vector<8x384xf32>
    %c28_439 = arith.constant 28 : index
    %c36_440 = arith.constant 36 : index
    %415 = vector.load %arg6[%c28_439, %c36_440] : memref<40x512xbf16, #tpu.memory_space<vmem>>, vector<12x384xbf16>
    %c6_441 = arith.constant 6 : index
    %c0_442 = arith.constant 0 : index
    %c0_443 = arith.constant 0 : index
    %416 = vector.load %arg3[%c6_441, %c0_442, %c0_443] : memref<9x8x12xbf16, #tpu.memory_space<vmem>>, vector<1x8x12xbf16>
    %417 = vector.shape_cast %416 : vector<1x8x12xbf16> to vector<8x12xbf16>
    %cst_444 = arith.constant dense<0.000000e+00> : vector<8x384xf32>
    %418 = tpu.matmul %417, %415, %cst_444 {dimension_numbers = #tpu.dot_dimension_numbers<[1], [0], [0], [1], [0, 0, 1, 1], [], []>} : vector<8x12xbf16>, vector<12x384xbf16>, vector<8x384xf32> -> vector<8x384xf32>
    %419 = arith.addf %414, %418 : vector<8x384xf32>
    %c28_445 = arith.constant 28 : index
    %c37_446 = arith.constant 37 : index
    %420 = vector.load %arg6[%c28_445, %c37_446] : memref<40x512xbf16, #tpu.memory_space<vmem>>, vector<12x384xbf16>
    %c7_447 = arith.constant 7 : index
    %c0_448 = arith.constant 0 : index
    %c0_449 = arith.constant 0 : index
    %421 = vector.load %arg3[%c7_447, %c0_448, %c0_449] : memref<9x8x12xbf16, #tpu.memory_space<vmem>>, vector<1x8x12xbf16>
    %422 = vector.shape_cast %421 : vector<1x8x12xbf16> to vector<8x12xbf16>
    %cst_450 = arith.constant dense<0.000000e+00> : vector<8x384xf32>
    %423 = tpu.matmul %422, %420, %cst_450 {dimension_numbers = #tpu.dot_dimension_numbers<[1], [0], [0], [1], [0, 0, 1, 1], [], []>} : vector<8x12xbf16>, vector<12x384xbf16>, vector<8x384xf32> -> vector<8x384xf32>
    %424 = arith.addf %419, %423 : vector<8x384xf32>
    %c28_451 = arith.constant 28 : index
    %c38_452 = arith.constant 38 : index
    %425 = vector.load %arg6[%c28_451, %c38_452] : memref<40x512xbf16, #tpu.memory_space<vmem>>, vector<12x384xbf16>
    %c8_453 = arith.constant 8 : index
    %c0_454 = arith.constant 0 : index
    %c0_455 = arith.constant 0 : index
    %426 = vector.load %arg3[%c8_453, %c0_454, %c0_455] : memref<9x8x12xbf16, #tpu.memory_space<vmem>>, vector<1x8x12xbf16>
    %427 = vector.shape_cast %426 : vector<1x8x12xbf16> to vector<8x12xbf16>
    %cst_456 = arith.constant dense<0.000000e+00> : vector<8x384xf32>
    %428 = tpu.matmul %427, %425, %cst_456 {dimension_numbers = #tpu.dot_dimension_numbers<[1], [0], [0], [1], [0, 0, 1, 1], [], []>} : vector<8x12xbf16>, vector<12x384xbf16>, vector<8x384xf32> -> vector<8x384xf32>
    %429 = arith.addf %424, %428 : vector<8x384xf32>
    %c0_457 = arith.constant 0 : index
    %c0_458 = arith.constant 0 : index
    %430 = vector.load %arg4[%c0_457, %c0_458] : memref<8x1xf32, #tpu.memory_space<vmem>>, vector<8x1xf32>
    %431 = vector.broadcast %430 : vector<8x1xf32> to vector<8x384xf32>
    %432 = arith.addf %429, %431 : vector<8x384xf32>
    %cst_459 = arith.constant 0.000000e+00 : f32
    %433 = vector.broadcast %cst_459 : f32 to vector<8x384xf32>
    %434 = arith.maximumf %432, %433 : vector<8x384xf32>
    %c0_460 = arith.constant 0 : index
    %c0_461 = arith.constant 0 : index
    %c2688 = arith.constant 2688 : index
    %435 = vector.load %arg5[%c0_460, %c0_461, %c2688] : memref<1x8x3072xf32, #tpu.memory_space<vmem>>, vector<1x8x384xf32>
    %436 = vector.shape_cast %435 : vector<1x8x384xf32> to vector<8x384xf32>
    %437 = vector.shape_cast %434 : vector<8x384xf32> to vector<1x8x384xf32>
    tpu.vector_store %arg5[%c0_460, %c0_461, %c2688], %437 {strides = array<i32>} : memref<1x8x3072xf32, #tpu.memory_space<vmem>>, vector<1x8x384xf32>,
    return
  }
  func.func @transform_1(%arg0: i32, %arg1: i32) -> (i32, i32, i32) {
    %c0_i32 = arith.constant 0 : i32
    %c0_i32_0 = arith.constant 0 : i32
    %c0_i32_1 = arith.constant 0 : i32
    %c0_i32_2 = arith.constant 0 : i32
    return %c0_i32, %c0_i32_0, %c0_i32_1 : i32, i32, i32
  }
  func.func @transform_2(%arg0: i32, %arg1: i32) -> (i32, i32) {
    %c0_i32 = arith.constant 0 : i32
    %c0_i32_0 = arith.constant 0 : i32
    %c0_i32_1 = arith.constant 0 : i32
    return %c0_i32, %c0_i32_0 : i32, i32
  }
  func.func @transform_3(%arg0: i32, %arg1: i32) -> (i32, i32, i32) {
    %c0_i32 = arith.constant 0 : i32
    %c0_i32_0 = arith.constant 0 : i32
    return %arg0, %c0_i32, %arg1 : i32, i32, i32
  }
}

</mosaic_0001>

<llo_original>
// kernel: tpu_custom_call.1
$region0: #{tpu_custom_call.1}
  #allocation0 [shape = 'u32[]', space=smem, size = 0x4, offset = 0x4, fixed_abs, tag = 'smem constant byte address 0x4 - core index']
  #allocation1 [shape = 'u32[144,128]{1,0:T(1,128)}', space=vmem, size = 0x12000, scoped, tag = 'internal scratch']
  #allocation2 [shape = 'bf16[40,512]{1,0:T(8,128)(2,1)}', space=vmem, size = 0xa000, scoped, tag = 'scratch operand']
  #allocation3 [shape = 's32[1]{0}', space=sflag, size = 0x4, scoped, tag = 'scratch operand']
  #allocation8 [shape = 's32[]', space=sflag, size = 0x4, offset = 0, fixed_abs, tag = 'sflag constant byte address 0x0 - dummy sync flag']
  #allocation9 [shape = 's32[]', space=sflag, size = 0x4, offset = 0, fixed_abs, tag = 'sflag constant byte address 0x0 - dummy sync flag']
  #allocation10 [shape = 'u32[]', space=smem, size = 0x4, offset = 0x44, fixed_abs, tag = 'smem constant byte address 0x44 - assertion arg 0']
  #allocation11 [shape = 'u32[]', space=smem, size = 0x4, offset = 0x48, fixed_abs, tag = 'smem constant byte address 0x48 - assertion arg 1']
  %s0 = inlined_call_operand.hbm [shape: bf16[2,40,512], index: 0, kind: input, shape index: {}]
  %s1 = inlined_call_operand.hbm [shape: bf16[9,8,12], index: 1, kind: input, shape index: {}]
  %s2 = inlined_call_operand.vmem [shape: f32[8,1], index: 2, kind: input, shape index: {}]
  %s3 = inlined_call_operand.hbm [shape: f32[2,8,3072], index: 3, kind: output, shape index: {}]
  %s4 = sld [smem:[#allocation0]]
  $region49: #{tpu_custom_call.1} parent=0
    _
  %s6 = ssub.s32 1, %s4
  %s7 = scalar_select 0, %s6, %s4
  $region1: #{tpu_custom_call.1} parent=0
    #allocation4 [shape = 'u8[18432]{0}', space=vmem, size = 0x4800, scoped, tag = 'input window, operand 1, single buffered']
    #allocation5 [shape = 's32[2]{0}', space=sflag, size = 0x8, scoped, tag = 'scoped memory for tpu_custom_call.1']
    #allocation6 [shape = 's32[2]{0}', space=sflag, size = 0x8, scoped, tag = 'scoped memory for tpu_custom_call.1']
    #allocation7 [shape = 'u8[196608]{0}', space=vmem, size = 0x30000, scoped, tag = 'output window, operand 0']
    %8 = vsyncpa [#allocation5], 0
    %9 = vsyncpa [#allocation6], 0
    %s10 = scalar_lea.sflag [#allocation6], 1
    %11 = vsyncpa %s10, 0
    loop: start=0, step=1, limit=4
    $region2: #{tpu_custom_call.1} parent=1 // loop_pre_header
      _
    $region3: #{tpu_custom_call.1} parent=1 // loop_header
      %s13 = sphi 0, %s17
      %p14 = scmp.ge.s32.totalorder %s13, 4
      %s20 = sphi 0, %s32
      %s21 = sphi 0, %s28
      %s22 = sphi 0, %s20
      %s23 = sphi 0, %s21
      %s24 = sphi 0, %s22
      %s25 = sphi 0, %s23
      %s33 = sphi 0, %s33
      %s35 = sphi 0, %s33
      %s36 = sphi 0, %s35
      %s50 = sphi 0, %s36
      %s54 = sphi 0, %s54
      %s56 = sphi 0, %s54
      %s57 = sphi 0, %s56
      %s71 = sphi 0, %s57
      %s79 = sphi 0, %s81
      %s82 = sphi 0, %s79
      %s83 = sphi 0, %s82
      %s99 = sphi 0, %s83
    $region4: #{tpu_custom_call.1} parent=1 // loop_header_branch
      %16 = sbr.rel (%p14) target = $region8
    $region5: #{tpu_custom_call.1} parent=1 // loop_body
      %s18 = ssub.s32 %s13, 1
      %s19 = ssub.s32 %s13, 2
      %s26 = sadd.s32 1, %s21
      %p27 = scmp.ge.s32.totalorder %s26, 1
      %s28 = scalar_select %p27, 0, %s26
      %s29 = sadd.s32 1, %s20
      %s30 = scalar_select %p27, %s29, %s20
      %p31 = scmp.ge.s32.totalorder %s30, 2
      %s32 = scalar_select %p31, 0, %s30
      %s34 = sadd.s32 %s33, 1
      %p37 = scmp.eq.s32.totalorder %s13, 1
      %p38 = scmp.ne.s32.totalorder %s33, %s35
      %p39 = scmp.eq.s32.totalorder %s13, 0
      %p40 = por %p38, %p39
      %p41 = scmp.ne.s32.totalorder %s33, %s35
      %p42 = scmp.eq.s32.totalorder %s18, 1
      %p43 = por %p41, %p42
      %p44 = scmp.ne.s32.totalorder %s35, %s36
      %p45 = scmp.eq.s32.totalorder %s18, 0
      %p46 = por %p44, %p45
      %p47 = scmp.ne.s32.totalorder %s35, %s36
      %p48 = scmp.eq.s32.totalorder %s19, 1
      %p49 = por %p47, %p48
      %p51 = scmp.ne.s32.totalorder %s36, %s50
      %p52 = scmp.eq.s32.totalorder %s19, 0
      %p53 = por %p51, %p52
      %s55 = sadd.s32 %s54, 1
      %p58 = scmp.eq.s32.totalorder %s13, 1
      %p59 = scmp.ne.s32.totalorder %s54, %s56
      %p60 = scmp.eq.s32.totalorder %s13, 0
      %p61 = por %p59, %p60
      %p62 = scmp.ne.s32.totalorder %s54, %s56
      %p63 = scmp.eq.s32.totalorder %s18, 1
      %p64 = por %p62, %p63
      %p65 = scmp.ne.s32.totalorder %s56, %s57
      %p66 = scmp.eq.s32.totalorder %s18, 0
      %p67 = por %p65, %p66
      %p68 = scmp.ne.s32.totalorder %s56, %s57
      %p69 = scmp.eq.s32.totalorder %s19, 1
      %p70 = por %p68, %p69
      %p72 = scmp.ne.s32.totalorder %s57, %s71
      %p73 = scmp.eq.s32.totalorder %s19, 0
      %p74 = por %p72, %p73
      %s75 = ssub.s32 %s20, %s32
      %s76 = ssub.s32 %s21, %s28
      %s77 = sor.u32 %s75, %s76
      %p78 = scmp.eq.s32.totalorder %s77, 0
      %s80 = sadd.s32 %s79, 1
      %s81 = scalar_select %p78, %s79, %s80
      %p84 = pneg %p78
      %p85 = scmp.eq.s32.totalorder %s13, 1
      %p86 = por %p84, %p85
      %p87 = scmp.ne.s32.totalorder %s79, %s82
      %p88 = scmp.eq.s32.totalorder %s13, 0
      %p89 = por %p87, %p88
      %p90 = scmp.ne.s32.totalorder %s79, %s82
      %p91 = scmp.eq.s32.totalorder %s18, 1
      %p92 = por %p90, %p91
      %p93 = scmp.ne.s32.totalorder %s82, %s83
      %p94 = scmp.eq.s32.totalorder %s18, 0
      %p95 = por %p93, %p94
      %p96 = scmp.ne.s32.totalorder %s82, %s83
      %p97 = scmp.eq.s32.totalorder %s19, 1
      %p98 = por %p96, %p97
      %p100 = scmp.ne.s32.totalorder %s83, %s99
      %p101 = scmp.eq.s32.totalorder %s19, 0
      %p102 = por %p100, %p101
      %p103 = scmp.le.s32.totalorder 1, %s13
      %p104 = scmp.lt.s32.totalorder %s13, 3
      %p105 = pnand %p103, %p104
      %p106 = pneg %p105
      // Predicated region
      $region9: #{tpu_custom_call.1} parent=5 // pred_check
        _
      $region10: #{tpu_custom_call.1} parent=5 // pred_check_branch
        %108 = sbr.rel (%p105) target = $region12
      $region11: #{tpu_custom_call.1} parent=5 // pred_region
        %s109 = ssub.s32 %s13, 1
        // Predicated region
        $region13: #{tpu_custom_call.1} parent=11 // pred_check
          %p110 = pneg %p46
        $region14: #{tpu_custom_call.1} parent=11 // pred_check_branch
          %112 = sbr.rel (%p110) target = $region16
        $region15: #{tpu_custom_call.1} parent=11 // pred_region
          %s114 = ssub.s32 576, 576
          %115 = vsyncadd [#allocation5], %s114
          %s116 = sshll.u32 [#allocation4], 4
          %s117 = int_to_ptr.vmem [resolvable:$true] %s116
          %122 = dma.hbm_to_vmem [thread:$0]  %s1, 576, %s117, [#allocation5], 64, 64, 4
        $region16: #{tpu_custom_call.1} parent=11 // pred_fallthru
          _
        // Predicated region
        $region17: #{tpu_custom_call.1} parent=11 // pred_check
          %p123 = pneg %p67
        $region18: #{tpu_custom_call.1} parent=11 // pred_check_branch
          %125 = sbr.rel (%p123) target = $region20
        $region19: #{tpu_custom_call.1} parent=11 // pred_region
          _
        $region20: #{tpu_custom_call.1} parent=11 // pred_fallthru
          _
      $region12: #{tpu_custom_call.1} parent=5 // pred_fallthru
        _
      %p126 = scmp.lt.s32.totalorder %s13, 2
      // Predicated region
      $region21: #{tpu_custom_call.1} parent=5 // pred_check
        %p127 = pneg %p126
      $region22: #{tpu_custom_call.1} parent=5 // pred_check_branch
        %129 = sbr.rel (%p127) target = $region24
      $region23: #{tpu_custom_call.1} parent=5 // pred_region
        _
      $region24: #{tpu_custom_call.1} parent=5 // pred_fallthru
        _
      %p130 = scmp.le.s32.totalorder 1, %s13
      %p131 = scmp.lt.s32.totalorder %s13, 3
      %p132 = pnand %p130, %p131
      %p133 = pneg %p132
      // Predicated region
      $region25: #{tpu_custom_call.1} parent=5 // pred_check
        _
      $region26: #{tpu_custom_call.1} parent=5 // pred_check_branch
        %135 = sbr.rel (%p132) target = $region28
      $region27: #{tpu_custom_call.1} parent=5 // pred_region
        %s136 = ssub.s32 %s13, 1
        // Predicated region
        $region29: #{tpu_custom_call.1} parent=27 // pred_check
          %p137 = pneg %p46
        $region30: #{tpu_custom_call.1} parent=27 // pred_check_branch
          %139 = sbr.rel (%p137) target = $region32
        $region31: #{tpu_custom_call.1} parent=27 // pred_region
          %140 = dma.done [#allocation5], 576
        $region32: #{tpu_custom_call.1} parent=27 // pred_fallthru
          _
        %p141 = pneg %p46
        %p142 = pneg %p43
        %p143 = pneg %p67
        %p144 = pneg %p64
        %p145 = pneg %p95
        %p146 = pneg %p92
        %s147 = sand.u32 %s82, 1
        %s148 = scalar_lea.sflag [#allocation6], %s147
        %s149 = sand.u32 %s82, 1
        %s150 = smul.addr %s149, 192
        %s151 = scalar_lea.vmem [#allocation7], %s150
        %s152 = smul.u32 24, %s23
        %s154 = smul.u32 %s23, 32
        %s155 = sshra.s32 %s154, 3
        %s156 = sand.u32 %s154, 7
        %s157 = smul.u32 %s155, 4
        %s158 = smul.u32 %s22, 20
        %s159 = sadd.s32 %s157, %s158
        %s160 = smul.addr %s159, 64
        %s161 = scalar_lea.hbm %s0, %s160
        // Predicated region
        $region33: #{tpu_custom_call.1} parent=27 // pred_check
          _
        $region34: #{tpu_custom_call.1} parent=27 // pred_check_branch
          %163 = sbr.rel target = $region36
        $region35: #{tpu_custom_call.1} parent=27 // pred_region
          %164 = sst [smem:[#allocation10]] [#allocation9]
          %165 = sst [smem:[#allocation11]] [#allocation8]
        $region36: #{tpu_custom_call.1} parent=27 // pred_fallthru
          _
        %167 = shalt.err (0)
        %s169 = sshll.u32 [#allocation2], 4
        %s170 = int_to_ptr.vmem [resolvable:$true] %s169
        %172 = dma.hbm_to_vmem [thread:$0]  %s161, 1280, %s170, [#allocation3]
        %s173 = smul.u32 4, 5
        %s174 = smul.u32 %s173, 4
        %s175 = sshll.u32 %s174, 4
        %176 = dma.done [#allocation3], %s175
        %v177 = vld [vmem:[#allocation2] sm:$0xff]
        %v178 = vld [vmem:[#allocation2 + $0x8] sm:$0xf]
        %v179 = vld [vmem:[#allocation2 + $0x10] sm:$0x33]
        %v180 = vld [vmem:[#allocation2 + $0x18] sm:$0x3]
        %v181 = vld [vmem:[#allocation4] sm:$0xf]
        %v182 = vld [vmem:[#allocation2 + $0x8] sm:$0xff]
        %v183 = vld [vmem:[#allocation2 + $0x18] sm:$0x33]
        %s184 = scalar_lea.vmem [#allocation4], 4
        %v185 = vld [vmem:[%s184] sm:$0xf]
        %v190 = vunpack.c.l.b16 %v177
        %v191 = vunpack.c.h.b16 %v177
        %v192 = vunpack.c.l.b16 %v182
        %v193 = vunpack.c.h.b16 %v182
        %v194 = vunpack.c.l.b16 %v179
        %v195 = vunpack.c.h.b16 %v179
        %v196 = vunpack.c.l.b16 %v183
        %v197 = vunpack.c.h.b16 %v183
        %v198 = vpack.c.b16 %v194, %v190
        %v199 = vpack.c.b16 %v195, %v191
        %v200 = vpack.c.b16 %v196, %v192
        %v201 = vpack.c.b16 %v197, %v193
        %202 = vrot.lane.b32.xlu0 %v198, 127
        %v203 = vpop.permute.xlu0 %202
        %204 = vrot.lane.b32.xlu0 %v199, 127
        %v205 = vpop.permute.xlu0 %204
        %206 = vrot.lane.b32.xlu0 %v200, 127
        %v207 = vpop.permute.xlu0 %206
        %208 = vrot.lane.b32.xlu0 %v201, 127
        %v209 = vpop.permute.xlu0 %208
        %vm210 = vcmask 1039360
        %v211 = vsel %vm210, %v203, %v205
        %v212 = vsel %vm210, %v205, %v207
        %v213 = vsel %vm210, %v207, %v209
        %vm214 = vcmask 97280
        %v216 = vsel %vm214, %v185, 0
        %vm218 = vcmask 1045504
        %v220 = vsel %vm218, %v211, 0
        %v223 = vsel %vm218, %v212, 0
        %v226 = vsel %vm218, %v213, 0
        %228 = vmatprep.subr.bf16.mxu0 0
        %229 = vmatpush1.bf16.msra.mxu0 0
        %230 = vmatprep.subr.bf16.mxu0 0
        %231 = vmatpush1.bf16.msra.mxu0 0
        %232 = vmatprep.subr.bf16.mxu0 0
        %233 = vmatpush1.bf16.msra.mxu0 0
        %234 = vmatprep.subr.bf16.mxu0 0
        %235 = vmatpush1.bf16.msra.mxu0 0
        %236 = vmatprep.subr.bf16.mxu0 0
        %237 = vmatpush1.bf16.msra.mxu0 0
        %238 = vmatprep.subr.bf16.mxu0 0
        %239 = vmatpush1.bf16.msra.mxu0 0
        %240 = vmatprep.subr.bf16.mxu0 0
        %241 = vmatpush1.bf16.msra.mxu0 0
        %242 = vmatprep.subr.bf16.mxu0 %v223
        %243 = vmatpush1.bf16.msra.mxu0 %v220
        %244 = vmatprep.subr.bf16.mxu0 0
        %245 = vmatpush2.bf16.msra.mxu0 0
        %246 = vmatprep.subr.bf16.mxu0 0
        %247 = vmatpush2.bf16.msra.mxu0 0
        %248 = vmatprep.subr.bf16.mxu0 0
        %249 = vmatpush2.bf16.msra.mxu0 0
        %250 = vmatprep.subr.bf16.mxu0 0
        %251 = vmatpush2.bf16.msra.mxu0 0
        %252 = vmatprep.subr.bf16.mxu0 0
        %253 = vmatpush2.bf16.msra.mxu0 0
        %254 = vmatprep.subr.bf16.mxu0 0
        %255 = vmatpush2.bf16.msra.mxu0 0
        %256 = vmatprep.subr.bf16.mxu0 0
        %257 = vmatpush2.bf16.msra.mxu0 0
        %258 = vmatprep.subr.bf16.mxu0 0
        %259 = vmatpush2.bf16.msra.mxu0 0
        %260 = vmatprep.mubr.bf16.mxu0 0
        %261 = vmatmul.mubr.bf16.gmra.mxu0 %v216
        %v262 = vpop.f32.mrf.mxu0
        %v263 = vadd.f32 0.0, %v262
        %v264 = vpop.f32.mrf.mxu0
        %v265 = vadd.f32 0.0, %v264
        %v266 = vpop.f32.mrf.mxu0
        %v267 = vpop.f32.mrf.mxu0
        %268 = vdwg.mxu0
        %269 = vmatprep.subr.bf16.mxu0 0
        %270 = vmatpush1.bf16.msra.mxu0 0
        %271 = vmatprep.subr.bf16.mxu0 0
        %272 = vmatpush1.bf16.msra.mxu0 0
        %273 = vmatprep.subr.bf16.mxu0 0
        %274 = vmatpush1.bf16.msra.mxu0 0
        %275 = vmatprep.subr.bf16.mxu0 0
        %276 = vmatpush1.bf16.msra.mxu0 0
        %277 = vmatprep.subr.bf16.mxu0 0
        %278 = vmatpush1.bf16.msra.mxu0 0
        %279 = vmatprep.subr.bf16.mxu0 0
        %280 = vmatpush1.bf16.msra.mxu0 0
        %281 = vmatprep.subr.bf16.mxu0 0
        %282 = vmatpush1.bf16.msra.mxu0 0
        %283 = vmatprep.subr.bf16.mxu0 0
        %284 = vmatpush1.bf16.msra.mxu0 %v226
        %285 = vmatprep.subr.bf16.mxu0 0
        %286 = vmatpush2.bf16.msra.mxu0 0
        %287 = vmatprep.subr.bf16.mxu0 0
        %288 = vmatpush2.bf16.msra.mxu0 0
        %289 = vmatprep.subr.bf16.mxu0 0
        %290 = vmatpush2.bf16.msra.mxu0 0
        %291 = vmatprep.subr.bf16.mxu0 0
        %292 = vmatpush2.bf16.msra.mxu0 0
        %293 = vmatprep.subr.bf16.mxu0 0
        %294 = vmatpush2.bf16.msra.mxu0 0
        %295 = vmatprep.subr.bf16.mxu0 0
        %296 = vmatpush2.bf16.msra.mxu0 0
        %297 = vmatprep.subr.bf16.mxu0 0
        %298 = vmatpush2.bf16.msra.mxu0 0
        %299 = vmatprep.subr.bf16.mxu0 0
        %300 = vmatpush2.bf16.msra.mxu0 0
        %301 = vmatprep.mubr.bf16.mxu0 0
        %302 = vmatmul.mubr.bf16.gmra.mxu0 %v216
        %v303 = vpop.f32.mrf.mxu0
        %v304 = vadd.f32 0.0, %v303
        %v305 = vpop.f32.mrf.mxu0
        %v306 = vpop.f32.mrf.mxu0
        %v307 = vpop.f32.mrf.mxu0
        %308 = vdwg.mxu0
        %v311 = vunpack.c.l.b16 %v178
        %v312 = vunpack.c.l.b16 %v180
        %v313 = vpack.c.b16 %v312, %v311
        %v315 = vsel %vm214, %v181, 0
        %v318 = vsel %vm218, %v198, 0
        %v321 = vsel %vm218, %v199, 0
        %v324 = vsel %vm218, %v313, 0
        %326 = vmatprep.subr.bf16.mxu0 0
        %327 = vmatpush1.bf16.msra.mxu0 0
        %328 = vmatprep.subr.bf16.mxu0 0
        %329 = vmatpush1.bf16.msra.mxu0 0
        %330 = vmatprep.subr.bf16.mxu0 0
        %331 = vmatpush1.bf16.msra.mxu0 0
        %332 = vmatprep.subr.bf16.mxu0 0
        %333 = vmatpush1.bf16.msra.mxu0 0
        %334 = vmatprep.subr.bf16.mxu0 0
        %335 = vmatpush1.bf16.msra.mxu0 0
        %336 = vmatprep.subr.bf16.mxu0 0
        %337 = vmatpush1.bf16.msra.mxu0 0
        %338 = vmatprep.subr.bf16.mxu0 0
        %339 = vmatpush1.bf16.msra.mxu0 0
        %340 = vmatprep.subr.bf16.mxu0 %v321
        %341 = vmatpush1.bf16.msra.mxu0 %v318
        %342 = vmatprep.subr.bf16.mxu0 0
        %343 = vmatpush2.bf16.msra.mxu0 0
        %344 = vmatprep.subr.bf16.mxu0 0
        %345 = vmatpush2.bf16.msra.mxu0 0
        %346 = vmatprep.subr.bf16.mxu0 0
        %347 = vmatpush2.bf16.msra.mxu0 0
        %348 = vmatprep.subr.bf16.mxu0 0
        %349 = vmatpush2.bf16.msra.mxu0 0
        %350 = vmatprep.subr.bf16.mxu0 0
        %351 = vmatpush2.bf16.msra.mxu0 0
        %352 = vmatprep.subr.bf16.mxu0 0
        %353 = vmatpush2.bf16.msra.mxu0 0
        %354 = vmatprep.subr.bf16.mxu0 0
        %355 = vmatpush2.bf16.msra.mxu0 0
        %356 = vmatprep.subr.bf16.mxu0 0
        %357 = vmatpush2.bf16.msra.mxu0 0
        %358 = vmatprep.mubr.bf16.mxu0 0
        %359 = vmatmul.mubr.bf16.gmra.mxu0 %v315
        %v360 = vpop.f32.mrf.mxu0
        %v361 = vadd.f32 %v263, %v360
        %v362 = vpop.f32.mrf.mxu0
        %v363 = vadd.f32 %v265, %v362
        %v364 = vpop.f32.mrf.mxu0
        %v365 = vpop.f32.mrf.mxu0
        %366 = vdwg.mxu0
        %367 = vmatprep.subr.bf16.mxu0 0
        %368 = vmatpush1.bf16.msra.mxu0 0
        %369 = vmatprep.subr.bf16.mxu0 0
        %370 = vmatpush1.bf16.msra.mxu0 0
        %371 = vmatprep.subr.bf16.mxu0 0
        %372 = vmatpush1.bf16.msra.mxu0 0
        %373 = vmatprep.subr.bf16.mxu0 0
        %374 = vmatpush1.bf16.msra.mxu0 0
        %375 = vmatprep.subr.bf16.mxu0 0
        %376 = vmatpush1.bf16.msra.mxu0 0
        %377 = vmatprep.subr.bf16.mxu0 0
        %378 = vmatpush1.bf16.msra.mxu0 0
        %379 = vmatprep.subr.bf16.mxu0 0
        %380 = vmatpush1.bf16.msra.mxu0 0
        %381 = vmatprep.subr.bf16.mxu0 0
        %382 = vmatpush1.bf16.msra.mxu0 %v324
        %383 = vmatprep.subr.bf16.mxu0 0
        %384 = vmatpush2.bf16.msra.mxu0 0
        %385 = vmatprep.subr.bf16.mxu0 0
        %386 = vmatpush2.bf16.msra.mxu0 0
        %387 = vmatprep.subr.bf16.mxu0 0
        %388 = vmatpush2.bf16.msra.mxu0 0
        %389 = vmatprep.subr.bf16.mxu0 0
        %390 = vmatpush2.bf16.msra.mxu0 0
        %391 = vmatprep.subr.bf16.mxu0 0
        %392 = vmatpush2.bf16.msra.mxu0 0
        %393 = vmatprep.subr.bf16.mxu0 0
        %394 = vmatpush2.bf16.msra.mxu0 0
        %395 = vmatprep.subr.bf16.mxu0 0
        %396 = vmatpush2.bf16.msra.mxu0 0
        %397 = vmatprep.subr.bf16.mxu0 0
        %398 = vmatpush2.bf16.msra.mxu0 0
        %399 = vmatprep.mubr.bf16.mxu0 0
        %400 = vmatmul.mubr.bf16.gmra.mxu0 %v315
        %v401 = vpop.f32.mrf.mxu0
        %v402 = vadd.f32 %v304, %v401
        %v403 = vpop.f32.mrf.mxu0
        %v404 = vpop.f32.mrf.mxu0
        %v405 = vpop.f32.mrf.mxu0
        %406 = vdwg.mxu0
        %s407 = scalar_lea.vmem [#allocation4], 8
        %v408 = vld [vmem:[%s407] sm:$0xf]
        %409 = vrot.lane.b32.xlu0 %v198, 126
        %v410 = vpop.permute.xlu0 %409
        %411 = vrot.lane.b32.xlu0 %v199, 126
        %v412 = vpop.permute.xlu0 %411
        %413 = vrot.lane.b32.xlu0 %v200, 126
        %v414 = vpop.permute.xlu0 %413
        %415 = vrot.lane.b32.xlu0 %v201, 126
        %v416 = vpop.permute.xlu0 %415
        %vm417 = vcmask 1031168
        %v418 = vsel %vm417, %v410, %v412
        %v419 = vsel %vm417, %v412, %v414
        %v420 = vsel %vm417, %v414, %v416
        %v422 = vsel %vm214, %v408, 0
        %v425 = vsel %vm218, %v418, 0
        %v428 = vsel %vm218, %v419, 0
        %v431 = vsel %vm218, %v420, 0
        %433 = vmatprep.subr.bf16.mxu0 0
        %434 = vmatpush1.bf16.msra.mxu0 0
        %435 = vmatprep.subr.bf16.mxu0 0
        %436 = vmatpush1.bf16.msra.mxu0 0
        %437 = vmatprep.subr.bf16.mxu0 0
        %438 = vmatpush1.bf16.msra.mxu0 0
        %439 = vmatprep.subr.bf16.mxu0 0
        %440 = vmatpush1.bf16.msra.mxu0 0
        %441 = vmatprep.subr.bf16.mxu0 0
        %442 = vmatpush1.bf16.msra.mxu0 0
        %443 = vmatprep.subr.bf16.mxu0 0
        %444 = vmatpush1.bf16.msra.mxu0 0
        %445 = vmatprep.subr.bf16.mxu0 0
        %446 = vmatpush1.bf16.msra.mxu0 0
        %447 = vmatprep.subr.bf16.mxu0 %v428
        %448 = vmatpush1.bf16.msra.mxu0 %v425
        %449 = vmatprep.subr.bf16.mxu0 0
        %450 = vmatpush2.bf16.msra.mxu0 0
        %451 = vmatprep.subr.bf16.mxu0 0
        %452 = vmatpush2.bf16.msra.mxu0 0
        %453 = vmatprep.subr.bf16.mxu0 0
        %454 = vmatpush2.bf16.msra.mxu0 0
        %455 = vmatprep.subr.bf16.mxu0 0
        %456 = vmatpush2.bf16.msra.mxu0 0
        %457 = vmatprep.subr.bf16.mxu0 0
        %458 = vmatpush2.bf16.msra.mxu0 0
        %459 = vmatprep.subr.bf16.mxu0 0
        %460 = vmatpush2.bf16.msra.mxu0 0
        %461 = vmatprep.subr.bf16.mxu0 0
        %462 = vmatpush2.bf16.msra.mxu0 0
        %463 = vmatprep.subr.bf16.mxu0 0
        %464 = vmatpush2.bf16.msra.mxu0 0
        %465 = vmatprep.mubr.bf16.mxu0 0
        %466 = vmatmul.mubr.bf16.gmra.mxu0 %v422
        %v467 = vpop.f32.mrf.mxu0
        %v468 = vadd.f32 0.0, %v467
        %v469 = vpop.f32.mrf.mxu0
        %v470 = vadd.f32 0.0, %v469
        %v471 = vpop.f32.mrf.mxu0
        %v472 = vpop.f32.mrf.mxu0
        %473 = vdwg.mxu0
        %474 = vmatprep.subr.bf16.mxu0 0
        %475 = vmatpush1.bf16.msra.mxu0 0
        %476 = vmatprep.subr.bf16.mxu0 0
        %477 = vmatpush1.bf16.msra.mxu0 0
        %478 = vmatprep.subr.bf16.mxu0 0
        %479 = vmatpush1.bf16.msra.mxu0 0
        %480 = vmatprep.subr.bf16.mxu0 0
        %481 = vmatpush1.bf16.msra.mxu0 0
        %482 = vmatprep.subr.bf16.mxu0 0
        %483 = vmatpush1.bf16.msra.mxu0 0
        %484 = vmatprep.subr.bf16.mxu0 0
        %485 = vmatpush1.bf16.msra.mxu0 0
        %486 = vmatprep.subr.bf16.mxu0 0
        %487 = vmatpush1.bf16.msra.mxu0 0
        %488 = vmatprep.subr.bf16.mxu0 0
        %489 = vmatpush1.bf16.msra.mxu0 %v431
        %490 = vmatprep.subr.bf16.mxu0 0
        %491 = vmatpush2.bf16.msra.mxu0 0
        %492 = vmatprep.subr.bf16.mxu0 0
        %493 = vmatpush2.bf16.msra.mxu0 0
        %494 = vmatprep.subr.bf16.mxu0 0
        %495 = vmatpush2.bf16.msra.mxu0 0
        %496 = vmatprep.subr.bf16.mxu0 0
        %497 = vmatpush2.bf16.msra.mxu0 0
        %498 = vmatprep.subr.bf16.mxu0 0
        %499 = vmatpush2.bf16.msra.mxu0 0
        %500 = vmatprep.subr.bf16.mxu0 0
        %501 = vmatpush2.bf16.msra.mxu0 0
        %502 = vmatprep.subr.bf16.mxu0 0
        %503 = vmatpush2.bf16.msra.mxu0 0
        %504 = vmatprep.subr.bf16.mxu0 0
        %505 = vmatpush2.bf16.msra.mxu0 0
        %506 = vmatprep.mubr.bf16.mxu0 0
        %507 = vmatmul.mubr.bf16.gmra.mxu0 %v422
        %v508 = vpop.f32.mrf.mxu0
        %v509 = vadd.f32 0.0, %v508
        %v510 = vpop.f32.mrf.mxu0
        %v511 = vpop.f32.mrf.mxu0
        %v512 = vpop.f32.mrf.mxu0
        %513 = vdwg.mxu0
        %v514 = vadd.f32 %v361, %v468
        %v515 = vadd.f32 %v363, %v470
        %v516 = vadd.f32 %v402, %v509
        %s517 = scalar_lea.vmem [#allocation4], 12
        %v518 = vld [vmem:[%s517] sm:$0xf]
        %519 = vrot.lane.b32.xlu0 %v198, 110
        %v520 = vpop.permute.xlu0 %519
        %521 = vrot.lane.b32.xlu0 %v199, 110
        %v522 = vpop.permute.xlu0 %521
        %523 = vrot.lane.b32.xlu0 %v200, 110
        %v524 = vpop.permute.xlu0 %523
        %525 = vrot.lane.b32.xlu0 %v201, 110
        %v526 = vpop.permute.xlu0 %525
        %vm527 = vcmask 900096
        %v528 = vsel %vm527, %v520, %v522
        %v529 = vsel %vm527, %v522, %v524
        %v530 = vsel %vm527, %v524, %v526
        %v532 = vsel %vm214, %v518, 0
        %v535 = vsel %vm218, %v528, 0
        %v538 = vsel %vm218, %v529, 0
        %v541 = vsel %vm218, %v530, 0
        %543 = vmatprep.subr.bf16.mxu0 0
        %544 = vmatpush1.bf16.msra.mxu0 0
        %545 = vmatprep.subr.bf16.mxu0 0
        %546 = vmatpush1.bf16.msra.mxu0 0
        %547 = vmatprep.subr.bf16.mxu0 0
        %548 = vmatpush1.bf16.msra.mxu0 0
        %549 = vmatprep.subr.bf16.mxu0 0
        %550 = vmatpush1.bf16.msra.mxu0 0
        %551 = vmatprep.subr.bf16.mxu0 0
        %552 = vmatpush1.bf16.msra.mxu0 0
        %553 = vmatprep.subr.bf16.mxu0 0
        %554 = vmatpush1.bf16.msra.mxu0 0
        %555 = vmatprep.subr.bf16.mxu0 0
        %556 = vmatpush1.bf16.msra.mxu0 0
        %557 = vmatprep.subr.bf16.mxu0 %v538
        %558 = vmatpush1.bf16.msra.mxu0 %v535
        %559 = vmatprep.subr.bf16.mxu0 0
        %560 = vmatpush2.bf16.msra.mxu0 0
        %561 = vmatprep.subr.bf16.mxu0 0
        %562 = vmatpush2.bf16.msra.mxu0 0
        %563 = vmatprep.subr.bf16.mxu0 0
        %564 = vmatpush2.bf16.msra.mxu0 0
        %565 = vmatprep.subr.bf16.mxu0 0
        %566 = vmatpush2.bf16.msra.mxu0 0
        %567 = vmatprep.subr.bf16.mxu0 0
        %568 = vmatpush2.bf16.msra.mxu0 0
        %569 = vmatprep.subr.bf16.mxu0 0
        %570 = vmatpush2.bf16.msra.mxu0 0
        %571 = vmatprep.subr.bf16.mxu0 0
        %572 = vmatpush2.bf16.msra.mxu0 0
        %573 = vmatprep.subr.bf16.mxu0 0
        %574 = vmatpush2.bf16.msra.mxu0 0
        %575 = vmatprep.mubr.bf16.mxu0 0
        %576 = vmatmul.mubr.bf16.gmra.mxu0 %v532
        %v577 = vpop.f32.mrf.mxu0
        %v578 = vadd.f32 0.0, %v577
        %v579 = vpop.f32.mrf.mxu0
        %v580 = vadd.f32 0.0, %v579
        %v581 = vpop.f32.mrf.mxu0
        %v582 = vpop.f32.mrf.mxu0
        %583 = vdwg.mxu0
        %584 = vmatprep.subr.bf16.mxu0 0
        %585 = vmatpush1.bf16.msra.mxu0 0
        %586 = vmatprep.subr.bf16.mxu0 0
        %587 = vmatpush1.bf16.msra.mxu0 0
        %588 = vmatprep.subr.bf16.mxu0 0
        %589 = vmatpush1.bf16.msra.mxu0 0
        %590 = vmatprep.subr.bf16.mxu0 0
        %591 = vmatpush1.bf16.msra.mxu0 0
        %592 = vmatprep.subr.bf16.mxu0 0
        %593 = vmatpush1.bf16.msra.mxu0 0
        %594 = vmatprep.subr.bf16.mxu0 0
        %595 = vmatpush1.bf16.msra.mxu0 0
        %596 = vmatprep.subr.bf16.mxu0 0
        %597 = vmatpush1.bf16.msra.mxu0 0
        %598 = vmatprep.subr.bf16.mxu0 0
        %599 = vmatpush1.bf16.msra.mxu0 %v541
        %600 = vmatprep.subr.bf16.mxu0 0
        %601 = vmatpush2.bf16.msra.mxu0 0
        %602 = vmatprep.subr.bf16.mxu0 0
        %603 = vmatpush2.bf16.msra.mxu0 0
        %604 = vmatprep.subr.bf16.mxu0 0
        %605 = vmatpush2.bf16.msra.mxu0 0
        %606 = vmatprep.subr.bf16.mxu0 0
        %607 = vmatpush2.bf16.msra.mxu0 0
        %608 = vmatprep.subr.bf16.mxu0 0
        %609 = vmatpush2.bf16.msra.mxu0 0
        %610 = vmatprep.subr.bf16.mxu0 0
        %611 = vmatpush2.bf16.msra.mxu0 0
        %612 = vmatprep.subr.bf16.mxu0 0
        %613 = vmatpush2.bf16.msra.mxu0 0
        %614 = vmatprep.subr.bf16.mxu0 0
        %615 = vmatpush2.bf16.msra.mxu0 0
        %616 = vmatprep.mubr.bf16.mxu0 0
        %617 = vmatmul.mubr.bf16.gmra.mxu0 %v532
        %v618 = vpop.f32.mrf.mxu0
        %v619 = vadd.f32 0.0, %v618
        %v620 = vpop.f32.mrf.mxu0
        %v621 = vpop.f32.mrf.mxu0
        %v622 = vpop.f32.mrf.mxu0
        %623 = vdwg.mxu0
        %v624 = vadd.f32 %v514, %v578
        %v625 = vadd.f32 %v515, %v580
        %v626 = vadd.f32 %v516, %v619
        %s627 = scalar_lea.vmem [#allocation4], 16
        %v628 = vld [vmem:[%s627] sm:$0xf]
        %629 = vrot.lane.b32.xlu0 %v198, 109
        %v630 = vpop.permute.xlu0 %629
        %631 = vrot.lane.b32.xlu0 %v199, 109
        %v632 = vpop.permute.xlu0 %631
        %633 = vrot.lane.b32.xlu0 %v200, 109
        %v634 = vpop.permute.xlu0 %633
        %635 = vrot.lane.b32.xlu0 %v201, 109
        %v636 = vpop.permute.xlu0 %635
        %vm637 = vcmask 891904
        %v638 = vsel %vm637, %v630, %v632
        %v639 = vsel %vm637, %v632, %v634
        %v640 = vsel %vm637, %v634, %v636
        %v642 = vsel %vm214, %v628, 0
        %v645 = vsel %vm218, %v638, 0
        %v648 = vsel %vm218, %v639, 0
        %v651 = vsel %vm218, %v640, 0
        %653 = vmatprep.subr.bf16.mxu0 0
        %654 = vmatpush1.bf16.msra.mxu0 0
        %655 = vmatprep.subr.bf16.mxu0 0
        %656 = vmatpush1.bf16.msra.mxu0 0
        %657 = vmatprep.subr.bf16.mxu0 0
        %658 = vmatpush1.bf16.msra.mxu0 0
        %659 = vmatprep.subr.bf16.mxu0 0
        %660 = vmatpush1.bf16.msra.mxu0 0
        %661 = vmatprep.subr.bf16.mxu0 0
        %662 = vmatpush1.bf16.msra.mxu0 0
        %663 = vmatprep.subr.bf16.mxu0 0
        %664 = vmatpush1.bf16.msra.mxu0 0
        %665 = vmatprep.subr.bf16.mxu0 0
        %666 = vmatpush1.bf16.msra.mxu0 0
        %667 = vmatprep.subr.bf16.mxu0 %v648
        %668 = vmatpush1.bf16.msra.mxu0 %v645
        %669 = vmatprep.subr.bf16.mxu0 0
        %670 = vmatpush2.bf16.msra.mxu0 0
        %671 = vmatprep.subr.bf16.mxu0 0
        %672 = vmatpush2.bf16.msra.mxu0 0
        %673 = vmatprep.subr.bf16.mxu0 0
        %674 = vmatpush2.bf16.msra.mxu0 0
        %675 = vmatprep.subr.bf16.mxu0 0
        %676 = vmatpush2.bf16.msra.mxu0 0
        %677 = vmatprep.subr.bf16.mxu0 0
        %678 = vmatpush2.bf16.msra.mxu0 0
        %679 = vmatprep.subr.bf16.mxu0 0
        %680 = vmatpush2.bf16.msra.mxu0 0
        %681 = vmatprep.subr.bf16.mxu0 0
        %682 = vmatpush2.bf16.msra.mxu0 0
        %683 = vmatprep.subr.bf16.mxu0 0
        %684 = vmatpush2.bf16.msra.mxu0 0
        %685 = vmatprep.mubr.bf16.mxu0 0
        %686 = vmatmul.mubr.bf16.gmra.mxu0 %v642
        %v687 = vpop.f32.mrf.mxu0
        %v688 = vadd.f32 0.0, %v687
        %v689 = vpop.f32.mrf.mxu0
        %v690 = vadd.f32 0.0, %v689
        %v691 = vpop.f32.mrf.mxu0
        %v692 = vpop.f32.mrf.mxu0
        %693 = vdwg.mxu0
        %694 = vmatprep.subr.bf16.mxu0 0
        %695 = vmatpush1.bf16.msra.mxu0 0
        %696 = vmatprep.subr.bf16.mxu0 0
        %697 = vmatpush1.bf16.msra.mxu0 0
        %698 = vmatprep.subr.bf16.mxu0 0
        %699 = vmatpush1.bf16.msra.mxu0 0
        %700 = vmatprep.subr.bf16.mxu0 0
        %701 = vmatpush1.bf16.msra.mxu0 0
        %702 = vmatprep.subr.bf16.mxu0 0
        %703 = vmatpush1.bf16.msra.mxu0 0
        %704 = vmatprep.subr.bf16.mxu0 0
        %705 = vmatpush1.bf16.msra.mxu0 0
        %706 = vmatprep.subr.bf16.mxu0 0
        %707 = vmatpush1.bf16.msra.mxu0 0
        %708 = vmatprep.subr.bf16.mxu0 0
        %709 = vmatpush1.bf16.msra.mxu0 %v651
        %710 = vmatprep.subr.bf16.mxu0 0
        %711 = vmatpush2.bf16.msra.mxu0 0
        %712 = vmatprep.subr.bf16.mxu0 0
        %713 = vmatpush2.bf16.msra.mxu0 0
        %714 = vmatprep.subr.bf16.mxu0 0
        %715 = vmatpush2.bf16.msra.mxu0 0
        %716 = vmatprep.subr.bf16.mxu0 0
        %717 = vmatpush2.bf16.msra.mxu0 0
        %718 = vmatprep.subr.bf16.mxu0 0
        %719 = vmatpush2.bf16.msra.mxu0 0
        %720 = vmatprep.subr.bf16.mxu0 0
        %721 = vmatpush2.bf16.msra.mxu0 0
        %722 = vmatprep.subr.bf16.mxu0 0
        %723 = vmatpush2.bf16.msra.mxu0 0
        %724 = vmatprep.subr.bf16.mxu0 0
        %725 = vmatpush2.bf16.msra.mxu0 0
        %726 = vmatprep.mubr.bf16.mxu0 0
        %727 = vmatmul.mubr.bf16.gmra.mxu0 %v642
        %v728 = vpop.f32.mrf.mxu0
        %v729 = vadd.f32 0.0, %v728
        %v730 = vpop.f32.mrf.mxu0
        %v731 = vpop.f32.mrf.mxu0
        %v732 = vpop.f32.mrf.mxu0
        %733 = vdwg.mxu0
        %v734 = vadd.f32 %v624, %v688
        %v735 = vadd.f32 %v625, %v690
        %v736 = vadd.f32 %v626, %v729
        %s737 = scalar_lea.vmem [#allocation4], 20
        %v738 = vld [vmem:[%s737] sm:$0xf]
        %739 = vrot.lane.b32.xlu0 %v198, 108
        %v740 = vpop.permute.xlu0 %739
        %741 = vrot.lane.b32.xlu0 %v199, 108
        %v742 = vpop.permute.xlu0 %741
        %743 = vrot.lane.b32.xlu0 %v200, 108
        %v744 = vpop.permute.xlu0 %743
        %745 = vrot.lane.b32.xlu0 %v201, 108
        %v746 = vpop.permute.xlu0 %745
        %vm747 = vcmask 883712
        %v748 = vsel %vm747, %v740, %v742
        %v749 = vsel %vm747, %v742, %v744
        %v750 = vsel %vm747, %v744, %v746
        %v752 = vsel %vm214, %v738, 0
        %v755 = vsel %vm218, %v748, 0
        %v758 = vsel %vm218, %v749, 0
        %v761 = vsel %vm218, %v750, 0
        %763 = vmatprep.subr.bf16.mxu0 0
        %764 = vmatpush1.bf16.msra.mxu0 0
        %765 = vmatprep.subr.bf16.mxu0 0
        %766 = vmatpush1.bf16.msra.mxu0 0
        %767 = vmatprep.subr.bf16.mxu0 0
        %768 = vmatpush1.bf16.msra.mxu0 0
        %769 = vmatprep.subr.bf16.mxu0 0
        %770 = vmatpush1.bf16.msra.mxu0 0
        %771 = vmatprep.subr.bf16.mxu0 0
        %772 = vmatpush1.bf16.msra.mxu0 0
        %773 = vmatprep.subr.bf16.mxu0 0
        %774 = vmatpush1.bf16.msra.mxu0 0
        %775 = vmatprep.subr.bf16.mxu0 0
        %776 = vmatpush1.bf16.msra.mxu0 0
        %777 = vmatprep.subr.bf16.mxu0 %v758
        %778 = vmatpush1.bf16.msra.mxu0 %v755
        %779 = vmatprep.subr.bf16.mxu0 0
        %780 = vmatpush2.bf16.msra.mxu0 0
        %781 = vmatprep.subr.bf16.mxu0 0
        %782 = vmatpush2.bf16.msra.mxu0 0
        %783 = vmatprep.subr.bf16.mxu0 0
        %784 = vmatpush2.bf16.msra.mxu0 0
        %785 = vmatprep.subr.bf16.mxu0 0
        %786 = vmatpush2.bf16.msra.mxu0 0
        %787 = vmatprep.subr.bf16.mxu0 0
        %788 = vmatpush2.bf16.msra.mxu0 0
        %789 = vmatprep.subr.bf16.mxu0 0
        %790 = vmatpush2.bf16.msra.mxu0 0
        %791 = vmatprep.subr.bf16.mxu0 0
        %792 = vmatpush2.bf16.msra.mxu0 0
        %793 = vmatprep.subr.bf16.mxu0 0
        %794 = vmatpush2.bf16.msra.mxu0 0
        %795 = vmatprep.mubr.bf16.mxu0 0
        %796 = vmatmul.mubr.bf16.gmra.mxu0 %v752
        %v797 = vpop.f32.mrf.mxu0
        %v798 = vadd.f32 0.0, %v797
        %v799 = vpop.f32.mrf.mxu0
        %v800 = vadd.f32 0.0, %v799
        %v801 = vpop.f32.mrf.mxu0
        %v802 = vpop.f32.mrf.mxu0
        %803 = vdwg.mxu0
        %804 = vmatprep.subr.bf16.mxu0 0
        %805 = vmatpush1.bf16.msra.mxu0 0
        %806 = vmatprep.subr.bf16.mxu0 0
        %807 = vmatpush1.bf16.msra.mxu0 0
        %808 = vmatprep.subr.bf16.mxu0 0
        %809 = vmatpush1.bf16.msra.mxu0 0
        %810 = vmatprep.subr.bf16.mxu0 0
        %811 = vmatpush1.bf16.msra.mxu0 0
        %812 = vmatprep.subr.bf16.mxu0 0
        %813 = vmatpush1.bf16.msra.mxu0 0
        %814 = vmatprep.subr.bf16.mxu0 0
        %815 = vmatpush1.bf16.msra.mxu0 0
        %816 = vmatprep.subr.bf16.mxu0 0
        %817 = vmatpush1.bf16.msra.mxu0 0
        %818 = vmatprep.subr.bf16.mxu0 0
        %819 = vmatpush1.bf16.msra.mxu0 %v761
        %820 = vmatprep.subr.bf16.mxu0 0
        %821 = vmatpush2.bf16.msra.mxu0 0
        %822 = vmatprep.subr.bf16.mxu0 0
        %823 = vmatpush2.bf16.msra.mxu0 0
        %824 = vmatprep.subr.bf16.mxu0 0
        %825 = vmatpush2.bf16.msra.mxu0 0
        %826 = vmatprep.subr.bf16.mxu0 0
        %827 = vmatpush2.bf16.msra.mxu0 0
        %828 = vmatprep.subr.bf16.mxu0 0
        %829 = vmatpush2.bf16.msra.mxu0 0
        %830 = vmatprep.subr.bf16.mxu0 0
        %831 = vmatpush2.bf16.msra.mxu0 0
        %832 = vmatprep.subr.bf16.mxu0 0
        %833 = vmatpush2.bf16.msra.mxu0 0
        %834 = vmatprep.subr.bf16.mxu0 0
        %835 = vmatpush2.bf16.msra.mxu0 0
        %836 = vmatprep.mubr.bf16.mxu0 0
        %837 = vmatmul.mubr.bf16.gmra.mxu0 %v752
        %v838 = vpop.f32.mrf.mxu0
        %v839 = vadd.f32 0.0, %v838
        %v840 = vpop.f32.mrf.mxu0
        %v841 = vpop.f32.mrf.mxu0
        %v842 = vpop.f32.mrf.mxu0
        %843 = vdwg.mxu0
        %v844 = vadd.f32 %v734, %v798
        %v845 = vadd.f32 %v735, %v800
        %v846 = vadd.f32 %v736, %v839
        %s847 = scalar_lea.vmem [#allocation4], 24
        %v848 = vld [vmem:[%s847] sm:$0xf]
        %849 = vrot.lane.b32.xlu0 %v198, 92
        %v850 = vpop.permute.xlu0 %849
        %851 = vrot.lane.b32.xlu0 %v199, 92
        %v852 = vpop.permute.xlu0 %851
        %853 = vrot.lane.b32.xlu0 %v200, 92
        %v854 = vpop.permute.xlu0 %853
        %855 = vrot.lane.b32.xlu0 %v201, 92
        %v856 = vpop.permute.xlu0 %855
        %vm857 = vcmask 752640
        %v858 = vsel %vm857, %v850, %v852
        %v859 = vsel %vm857, %v852, %v854
        %v860 = vsel %vm857, %v854, %v856
        %v862 = vsel %vm214, %v848, 0
        %v865 = vsel %vm218, %v858, 0
        %v868 = vsel %vm218, %v859, 0
        %v871 = vsel %vm218, %v860, 0
        %873 = vmatprep.subr.bf16.mxu0 0
        %874 = vmatpush1.bf16.msra.mxu0 0
        %875 = vmatprep.subr.bf16.mxu0 0
        %876 = vmatpush1.bf16.msra.mxu0 0
        %877 = vmatprep.subr.bf16.mxu0 0
        %878 = vmatpush1.bf16.msra.mxu0 0
        %879 = vmatprep.subr.bf16.mxu0 0
        %880 = vmatpush1.bf16.msra.mxu0 0
        %881 = vmatprep.subr.bf16.mxu0 0
        %882 = vmatpush1.bf16.msra.mxu0 0
        %883 = vmatprep.subr.bf16.mxu0 0
        %884 = vmatpush1.bf16.msra.mxu0 0
        %885 = vmatprep.subr.bf16.mxu0 0
        %886 = vmatpush1.bf16.msra.mxu0 0
        %887 = vmatprep.subr.bf16.mxu0 %v868
        %888 = vmatpush1.bf16.msra.mxu0 %v865
        %889 = vmatprep.subr.bf16.mxu0 0
        %890 = vmatpush2.bf16.msra.mxu0 0
        %891 = vmatprep.subr.bf16.mxu0 0
        %892 = vmatpush2.bf16.msra.mxu0 0
        %893 = vmatprep.subr.bf16.mxu0 0
        %894 = vmatpush2.bf16.msra.mxu0 0
        %895 = vmatprep.subr.bf16.mxu0 0
        %896 = vmatpush2.bf16.msra.mxu0 0
        %897 = vmatprep.subr.bf16.mxu0 0
        %898 = vmatpush2.bf16.msra.mxu0 0
        %899 = vmatprep.subr.bf16.mxu0 0
        %900 = vmatpush2.bf16.msra.mxu0 0
        %901 = vmatprep.subr.bf16.mxu0 0
        %902 = vmatpush2.bf16.msra.mxu0 0
        %903 = vmatprep.subr.bf16.mxu0 0
        %904 = vmatpush2.bf16.msra.mxu0 0
        %905 = vmatprep.mubr.bf16.mxu0 0
        %906 = vmatmul.mubr.bf16.gmra.mxu0 %v862
        %v907 = vpop.f32.mrf.mxu0
        %v908 = vadd.f32 0.0, %v907
        %v909 = vpop.f32.mrf.mxu0
        %v910 = vadd.f32 0.0, %v909
        %v911 = vpop.f32.mrf.mxu0
        %v912 = vpop.f32.mrf.mxu0
        %913 = vdwg.mxu0
        %914 = vmatprep.subr.bf16.mxu0 0
        %915 = vmatpush1.bf16.msra.mxu0 0
        %916 = vmatprep.subr.bf16.mxu0 0
        %917 = vmatpush1.bf16.msra.mxu0 0
        %918 = vmatprep.subr.bf16.mxu0 0
        %919 = vmatpush1.bf16.msra.mxu0 0
        %920 = vmatprep.subr.bf16.mxu0 0
        %921 = vmatpush1.bf16.msra.mxu0 0
        %922 = vmatprep.subr.bf16.mxu0 0
        %923 = vmatpush1.bf16.msra.mxu0 0
        %924 = vmatprep.subr.bf16.mxu0 0
        %925 = vmatpush1.bf16.msra.mxu0 0
        %926 = vmatprep.subr.bf16.mxu0 0
        %927 = vmatpush1.bf16.msra.mxu0 0
        %928 = vmatprep.subr.bf16.mxu0 0
        %929 = vmatpush1.bf16.msra.mxu0 %v871
        %930 = vmatprep.subr.bf16.mxu0 0
        %931 = vmatpush2.bf16.msra.mxu0 0
        %932 = vmatprep.subr.bf16.mxu0 0
        %933 = vmatpush2.bf16.msra.mxu0 0
        %934 = vmatprep.subr.bf16.mxu0 0
        %935 = vmatpush2.bf16.msra.mxu0 0
        %936 = vmatprep.subr.bf16.mxu0 0
        %937 = vmatpush2.bf16.msra.mxu0 0
        %938 = vmatprep.subr.bf16.mxu0 0
        %939 = vmatpush2.bf16.msra.mxu0 0
        %940 = vmatprep.subr.bf16.mxu0 0
        %941 = vmatpush2.bf16.msra.mxu0 0
        %942 = vmatprep.subr.bf16.mxu0 0
        %943 = vmatpush2.bf16.msra.mxu0 0
        %944 = vmatprep.subr.bf16.mxu0 0
        %945 = vmatpush2.bf16.msra.mxu0 0
        %946 = vmatprep.mubr.bf16.mxu0 0
        %947 = vmatmul.mubr.bf16.gmra.mxu0 %v862
        %v948 = vpop.f32.mrf.mxu0
        %v949 = vadd.f32 0.0, %v948
        %v950 = vpop.f32.mrf.mxu0
        %v951 = vpop.f32.mrf.mxu0
        %v952 = vpop.f32.mrf.mxu0
        %953 = vdwg.mxu0
        %v954 = vadd.f32 %v844, %v908
        %v955 = vadd.f32 %v845, %v910
        %v956 = vadd.f32 %v846, %v949
        %s957 = scalar_lea.vmem [#allocation4], 28
        %v958 = vld [vmem:[%s957] sm:$0xf]
        %959 = vrot.lane.b32.xlu0 %v198, 91
        %v960 = vpop.permute.xlu0 %959
        %961 = vrot.lane.b32.xlu0 %v199, 91
        %v962 = vpop.permute.xlu0 %961
        %963 = vrot.lane.b32.xlu0 %v200, 91
        %v964 = vpop.permute.xlu0 %963
        %965 = vrot.lane.b32.xlu0 %v201, 91
        %v966 = vpop.permute.xlu0 %965
        %vm967 = vcmask 744448
        %v968 = vsel %vm967, %v960, %v962
        %v969 = vsel %vm967, %v962, %v964
        %v970 = vsel %vm967, %v964, %v966
        %v972 = vsel %vm214, %v958, 0
        %v975 = vsel %vm218, %v968, 0
        %v978 = vsel %vm218, %v969, 0
        %v981 = vsel %vm218, %v970, 0
        %983 = vmatprep.subr.bf16.mxu0 0
        %984 = vmatpush1.bf16.msra.mxu0 0
        %985 = vmatprep.subr.bf16.mxu0 0
        %986 = vmatpush1.bf16.msra.mxu0 0
        %987 = vmatprep.subr.bf16.mxu0 0
        %988 = vmatpush1.bf16.msra.mxu0 0
        %989 = vmatprep.subr.bf16.mxu0 0
        %990 = vmatpush1.bf16.msra.mxu0 0
        %991 = vmatprep.subr.bf16.mxu0 0
        %992 = vmatpush1.bf16.msra.mxu0 0
        %993 = vmatprep.subr.bf16.mxu0 0
        %994 = vmatpush1.bf16.msra.mxu0 0
        %995 = vmatprep.subr.bf16.mxu0 0
        %996 = vmatpush1.bf16.msra.mxu0 0
        %997 = vmatprep.subr.bf16.mxu0 %v978
        %998 = vmatpush1.bf16.msra.mxu0 %v975
        %999 = vmatprep.subr.bf16.mxu0 0
        %1000 = vmatpush2.bf16.msra.mxu0 0
        %1001 = vmatprep.subr.bf16.mxu0 0
        %1002 = vmatpush2.bf16.msra.mxu0 0
        %1003 = vmatprep.subr.bf16.mxu0 0
        %1004 = vmatpush2.bf16.msra.mxu0 0
        %1005 = vmatprep.subr.bf16.mxu0 0
        %1006 = vmatpush2.bf16.msra.mxu0 0
        %1007 = vmatprep.subr.bf16.mxu0 0
        %1008 = vmatpush2.bf16.msra.mxu0 0
        %1009 = vmatprep.subr.bf16.mxu0 0
        %1010 = vmatpush2.bf16.msra.mxu0 0
        %1011 = vmatprep.subr.bf16.mxu0 0
        %1012 = vmatpush2.bf16.msra.mxu0 0
        %1013 = vmatprep.subr.bf16.mxu0 0
        %1014 = vmatpush2.bf16.msra.mxu0 0
        %1015 = vmatprep.mubr.bf16.mxu0 0
        %1016 = vmatmul.mubr.bf16.gmra.mxu0 %v972
        %v1017 = vpop.f32.mrf.mxu0
        %v1018 = vadd.f32 0.0, %v1017
        %v1019 = vpop.f32.mrf.mxu0
        %v1020 = vadd.f32 0.0, %v1019
        %v1021 = vpop.f32.mrf.mxu0
        %v1022 = vpop.f32.mrf.mxu0
        %1023 = vdwg.mxu0
        %1024 = vmatprep.subr.bf16.mxu0 0
        %1025 = vmatpush1.bf16.msra.mxu0 0
        %1026 = vmatprep.subr.bf16.mxu0 0
        %1027 = vmatpush1.bf16.msra.mxu0 0
        %1028 = vmatprep.subr.bf16.mxu0 0
        %1029 = vmatpush1.bf16.msra.mxu0 0
        %1030 = vmatprep.subr.bf16.mxu0 0
        %1031 = vmatpush1.bf16.msra.mxu0 0
        %1032 = vmatprep.subr.bf16.mxu0 0
        %1033 = vmatpush1.bf16.msra.mxu0 0
        %1034 = vmatprep.subr.bf16.mxu0 0
        %1035 = vmatpush1.bf16.msra.mxu0 0
        %1036 = vmatprep.subr.bf16.mxu0 0
        %1037 = vmatpush1.bf16.msra.mxu0 0
        %1038 = vmatprep.subr.bf16.mxu0 0
        %1039 = vmatpush1.bf16.msra.mxu0 %v981
        %1040 = vmatprep.subr.bf16.mxu0 0
        %1041 = vmatpush2.bf16.msra.mxu0 0
        %1042 = vmatprep.subr.bf16.mxu0 0
        %1043 = vmatpush2.bf16.msra.mxu0 0
        %1044 = vmatprep.subr.bf16.mxu0 0
        %1045 = vmatpush2.bf16.msra.mxu0 0
        %1046 = vmatprep.subr.bf16.mxu0 0
        %1047 = vmatpush2.bf16.msra.mxu0 0
        %1048 = vmatprep.subr.bf16.mxu0 0
        %1049 = vmatpush2.bf16.msra.mxu0 0
        %1050 = vmatprep.subr.bf16.mxu0 0
        %1051 = vmatpush2.bf16.msra.mxu0 0
        %1052 = vmatprep.subr.bf16.mxu0 0
        %1053 = vmatpush2.bf16.msra.mxu0 0
        %1054 = vmatprep.subr.bf16.mxu0 0
        %1055 = vmatpush2.bf16.msra.mxu0 0
        %1056 = vmatprep.mubr.bf16.mxu0 0
        %1057 = vmatmul.mubr.bf16.gmra.mxu0 %v972
        %v1058 = vpop.f32.mrf.mxu0
        %v1059 = vadd.f32 0.0, %v1058
        %v1060 = vpop.f32.mrf.mxu0
        %v1061 = vpop.f32.mrf.mxu0
        %v1062 = vpop.f32.mrf.mxu0
        %1063 = vdwg.mxu0
        %v1064 = vadd.f32 %v954, %v1018
        %v1065 = vadd.f32 %v955, %v1020
        %v1066 = vadd.f32 %v956, %v1059
        %s1067 = scalar_lea.vmem [#allocation4], 32
        %v1068 = vld [vmem:[%s1067] sm:$0xf]
        %1069 = vrot.lane.b32.xlu0 %v198, 90
        %v1070 = vpop.permute.xlu0 %1069
        %1071 = vrot.lane.b32.xlu0 %v199, 90
        %v1072 = vpop.permute.xlu0 %1071
        %1073 = vrot.lane.b32.xlu0 %v200, 90
        %v1074 = vpop.permute.xlu0 %1073
        %1075 = vrot.lane.b32.xlu0 %v201, 90
        %v1076 = vpop.permute.xlu0 %1075
        %vm1077 = vcmask 736256
        %v1078 = vsel %vm1077, %v1070, %v1072
        %v1079 = vsel %vm1077, %v1072, %v1074
        %v1080 = vsel %vm1077, %v1074, %v1076
        %v1082 = vsel %vm214, %v1068, 0
        %v1085 = vsel %vm218, %v1078, 0
        %v1088 = vsel %vm218, %v1079, 0
        %v1091 = vsel %vm218, %v1080, 0
        %1093 = vmatprep.subr.bf16.mxu0 0
        %1094 = vmatpush1.bf16.msra.mxu0 0
        %1095 = vmatprep.subr.bf16.mxu0 0
        %1096 = vmatpush1.bf16.msra.mxu0 0
        %1097 = vmatprep.subr.bf16.mxu0 0
        %1098 = vmatpush1.bf16.msra.mxu0 0
        %1099 = vmatprep.subr.bf16.mxu0 0
        %1100 = vmatpush1.bf16.msra.mxu0 0
        %1101 = vmatprep.subr.bf16.mxu0 0
        %1102 = vmatpush1.bf16.msra.mxu0 0
        %1103 = vmatprep.subr.bf16.mxu0 0
        %1104 = vmatpush1.bf16.msra.mxu0 0
        %1105 = vmatprep.subr.bf16.mxu0 0
        %1106 = vmatpush1.bf16.msra.mxu0 0
        %1107 = vmatprep.subr.bf16.mxu0 %v1088
        %1108 = vmatpush1.bf16.msra.mxu0 %v1085
        %1109 = vmatprep.subr.bf16.mxu0 0
        %1110 = vmatpush2.bf16.msra.mxu0 0
        %1111 = vmatprep.subr.bf16.mxu0 0
        %1112 = vmatpush2.bf16.msra.mxu0 0
        %1113 = vmatprep.subr.bf16.mxu0 0
        %1114 = vmatpush2.bf16.msra.mxu0 0
        %1115 = vmatprep.subr.bf16.mxu0 0
        %1116 = vmatpush2.bf16.msra.mxu0 0
        %1117 = vmatprep.subr.bf16.mxu0 0
        %1118 = vmatpush2.bf16.msra.mxu0 0
        %1119 = vmatprep.subr.bf16.mxu0 0
        %1120 = vmatpush2.bf16.msra.mxu0 0
        %1121 = vmatprep.subr.bf16.mxu0 0
        %1122 = vmatpush2.bf16.msra.mxu0 0
        %1123 = vmatprep.subr.bf16.mxu0 0
        %1124 = vmatpush2.bf16.msra.mxu0 0
        %1125 = vmatprep.mubr.bf16.mxu0 0
        %1126 = vmatmul.mubr.bf16.gmra.mxu0 %v1082
        %v1127 = vpop.f32.mrf.mxu0
        %v1128 = vadd.f32 0.0, %v1127
        %v1129 = vpop.f32.mrf.mxu0
        %v1130 = vadd.f32 0.0, %v1129
        %v1131 = vpop.f32.mrf.mxu0
        %v1132 = vpop.f32.mrf.mxu0
        %1133 = vdwg.mxu0
        %1134 = vmatprep.subr.bf16.mxu0 0
        %1135 = vmatpush1.bf16.msra.mxu0 0
        %1136 = vmatprep.subr.bf16.mxu0 0
        %1137 = vmatpush1.bf16.msra.mxu0 0
        %1138 = vmatprep.subr.bf16.mxu0 0
        %1139 = vmatpush1.bf16.msra.mxu0 0
        %1140 = vmatprep.subr.bf16.mxu0 0
        %1141 = vmatpush1.bf16.msra.mxu0 0
        %1142 = vmatprep.subr.bf16.mxu0 0
        %1143 = vmatpush1.bf16.msra.mxu0 0
        %1144 = vmatprep.subr.bf16.mxu0 0
        %1145 = vmatpush1.bf16.msra.mxu0 0
        %1146 = vmatprep.subr.bf16.mxu0 0
        %1147 = vmatpush1.bf16.msra.mxu0 0
        %1148 = vmatprep.subr.bf16.mxu0 0
        %1149 = vmatpush1.bf16.msra.mxu0 %v1091
        %1150 = vmatprep.subr.bf16.mxu0 0
        %1151 = vmatpush2.bf16.msra.mxu0 0
        %1152 = vmatprep.subr.bf16.mxu0 0
        %1153 = vmatpush2.bf16.msra.mxu0 0
        %1154 = vmatprep.subr.bf16.mxu0 0
        %1155 = vmatpush2.bf16.msra.mxu0 0
        %1156 = vmatprep.subr.bf16.mxu0 0
        %1157 = vmatpush2.bf16.msra.mxu0 0
        %1158 = vmatprep.subr.bf16.mxu0 0
        %1159 = vmatpush2.bf16.msra.mxu0 0
        %1160 = vmatprep.subr.bf16.mxu0 0
        %1161 = vmatpush2.bf16.msra.mxu0 0
        %1162 = vmatprep.subr.bf16.mxu0 0
        %1163 = vmatpush2.bf16.msra.mxu0 0
        %1164 = vmatprep.subr.bf16.mxu0 0
        %1165 = vmatpush2.bf16.msra.mxu0 0
        %1166 = vmatprep.mubr.bf16.mxu0 0
        %1167 = vmatmul.mubr.bf16.gmra.mxu0 %v1082
        %v1168 = vpop.f32.mrf.mxu0
        %v1169 = vadd.f32 0.0, %v1168
        %v1170 = vpop.f32.mrf.mxu0
        %v1171 = vpop.f32.mrf.mxu0
        %v1172 = vpop.f32.mrf.mxu0
        %1173 = vdwg.mxu0
        %v1174 = vadd.f32 %v1064, %v1128
        %v1175 = vadd.f32 %v1065, %v1130
        %v1176 = vadd.f32 %v1066, %v1169
        %v1177 = vld [vmem:[%s2] sm:$0xff]
        %1179 = vset.pattern.permute.xlu0 0
        %1180 = vperm.xlu0 %1179, %v1177
        %v1181 = vpop.permute.xlu0 %1180
        %v1183 = vadd.f32 %v1174, %v1181
        %v1184 = vadd.f32 %v1175, %v1181
        %v1185 = vadd.f32 %v1176, %v1181
        %v1186 = vmax.f32 %v1183, 0.0
        %v1187 = vmax.f32 %v1184, 0.0
        %v1188 = vmax.f32 %v1185, 0.0
        %1189 = vst [vmem:[%s151] sm:$0xff] %v1186
        %1190 = vst [vmem:[%s151 + $0x8] sm:$0xff] %v1187
        %1191 = vst [vmem:[%s151 + $0x10] sm:$0xff] %v1188
        %v1192 = vld [vmem:[#allocation2] sm:$0xcc]
        %v1193 = vld [vmem:[#allocation2 + $0x8] sm:$0xc]
        %v1194 = vld [vmem:[#allocation2 + $0x10] sm:$0xff]
        %v1195 = vld [vmem:[#allocation2 + $0x18] sm:$0xf]
        %v1196 = vld [vmem:[#allocation4] sm:$0xf]
        %v1197 = vld [vmem:[#allocation2 + $0x8] sm:$0xcc]
        %v1198 = vld [vmem:[#allocation2 + $0x18] sm:$0xff]
        %v1199 = vld [vmem:[%s184] sm:$0xf]
        %v1204 = vunpack.c.l.b16 %v1192
        %v1205 = vunpack.c.h.b16 %v1192
        %v1206 = vunpack.c.l.b16 %v1197
        %v1207 = vunpack.c.h.b16 %v1197
        %v1208 = vunpack.c.l.b16 %v1194
        %v1209 = vunpack.c.h.b16 %v1194
        %v1210 = vunpack.c.l.b16 %v1198
        %v1211 = vunpack.c.h.b16 %v1198
        %v1212 = vpack.c.b16 %v1208, %v1204
        %v1213 = vpack.c.b16 %v1209, %v1205
        %v1214 = vpack.c.b16 %v1210, %v1206
        %v1215 = vpack.c.b16 %v1211, %v1207
        %v1216 = vrot.slane %v1212, 2
        %v1217 = vrot.slane %v1213, 2
        %v1218 = vrot.slane %v1214, 2
        %v1219 = vrot.slane %v1215, 2
        %1220 = vrot.lane.b32.xlu0 %v1216, 127
        %v1221 = vpop.permute.xlu0 %1220
        %1222 = vrot.lane.b32.xlu0 %v1217, 127
        %v1223 = vpop.permute.xlu0 %1222
        %1224 = vrot.lane.b32.xlu0 %v1218, 127
        %v1225 = vpop.permute.xlu0 %1224
        %1226 = vrot.lane.b32.xlu0 %v1219, 127
        %v1227 = vpop.permute.xlu0 %1226
        %v1228 = vsel %vm210, %v1221, %v1223
        %v1229 = vsel %vm210, %v1223, %v1225
        %v1230 = vsel %vm210, %v1225, %v1227
        %v1232 = vsel %vm214, %v1199, 0
        %v1235 = vsel %vm218, %v1228, 0
        %v1238 = vsel %vm218, %v1229, 0
        %v1241 = vsel %vm218, %v1230, 0
        %1243 = vmatprep.subr.bf16.mxu0 0
        %1244 = vmatpush1.bf16.msra.mxu0 0
        %1245 = vmatprep.subr.bf16.mxu0 0
        %1246 = vmatpush1.bf16.msra.mxu0 0
        %1247 = vmatprep.subr.bf16.mxu0 0
        %1248 = vmatpush1.bf16.msra.mxu0 0
        %1249 = vmatprep.subr.bf16.mxu0 0
        %1250 = vmatpush1.bf16.msra.mxu0 0
        %1251 = vmatprep.subr.bf16.mxu0 0
        %1252 = vmatpush1.bf16.msra.mxu0 0
        %1253 = vmatprep.subr.bf16.mxu0 0
        %1254 = vmatpush1.bf16.msra.mxu0 0
        %1255 = vmatprep.subr.bf16.mxu0 0
        %1256 = vmatpush1.bf16.msra.mxu0 0
        %1257 = vmatprep.subr.bf16.mxu0 %v1238
        %1258 = vmatpush1.bf16.msra.mxu0 %v1235
        %1259 = vmatprep.subr.bf16.mxu0 0
        %1260 = vmatpush2.bf16.msra.mxu0 0
        %1261 = vmatprep.subr.bf16.mxu0 0
        %1262 = vmatpush2.bf16.msra.mxu0 0
        %1263 = vmatprep.subr.bf16.mxu0 0
        %1264 = vmatpush2.bf16.msra.mxu0 0
        %1265 = vmatprep.subr.bf16.mxu0 0
        %1266 = vmatpush2.bf16.msra.mxu0 0
        %1267 = vmatprep.subr.bf16.mxu0 0
        %1268 = vmatpush2.bf16.msra.mxu0 0
        %1269 = vmatprep.subr.bf16.mxu0 0
        %1270 = vmatpush2.bf16.msra.mxu0 0
        %1271 = vmatprep.subr.bf16.mxu0 0
        %1272 = vmatpush2.bf16.msra.mxu0 0
        %1273 = vmatprep.subr.bf16.mxu0 0
        %1274 = vmatpush2.bf16.msra.mxu0 0
        %1275 = vmatprep.mubr.bf16.mxu0 0
        %1276 = vmatmul.mubr.bf16.gmra.mxu0 %v1232
        %v1277 = vpop.f32.mrf.mxu0
        %v1278 = vadd.f32 0.0, %v1277
        %v1279 = vpop.f32.mrf.mxu0
        %v1280 = vadd.f32 0.0, %v1279
        %v1281 = vpop.f32.mrf.mxu0
        %v1282 = vpop.f32.mrf.mxu0
        %1283 = vdwg.mxu0
        %1284 = vmatprep.subr.bf16.mxu0 0
        %1285 = vmatpush1.bf16.msra.mxu0 0
        %1286 = vmatprep.subr.bf16.mxu0 0
        %1287 = vmatpush1.bf16.msra.mxu0 0
        %1288 = vmatprep.subr.bf16.mxu0 0
        %1289 = vmatpush1.bf16.msra.mxu0 0
        %1290 = vmatprep.subr.bf16.mxu0 0
        %1291 = vmatpush1.bf16.msra.mxu0 0
        %1292 = vmatprep.subr.bf16.mxu0 0
        %1293 = vmatpush1.bf16.msra.mxu0 0
        %1294 = vmatprep.subr.bf16.mxu0 0
        %1295 = vmatpush1.bf16.msra.mxu0 0
        %1296 = vmatprep.subr.bf16.mxu0 0
        %1297 = vmatpush1.bf16.msra.mxu0 0
        %1298 = vmatprep.subr.bf16.mxu0 0
        %1299 = vmatpush1.bf16.msra.mxu0 %v1241
        %1300 = vmatprep.subr.bf16.mxu0 0
        %1301 = vmatpush2.bf16.msra.mxu0 0
        %1302 = vmatprep.subr.bf16.mxu0 0
        %1303 = vmatpush2.bf16.msra.mxu0 0
        %1304 = vmatprep.subr.bf16.mxu0 0
        %1305 = vmatpush2.bf16.msra.mxu0 0
        %1306 = vmatprep.subr.bf16.mxu0 0
        %1307 = vmatpush2.bf16.msra.mxu0 0
        %1308 = vmatprep.subr.bf16.mxu0 0
        %1309 = vmatpush2.bf16.msra.mxu0 0
        %1310 = vmatprep.subr.bf16.mxu0 0
        %1311 = vmatpush2.bf16.msra.mxu0 0
        %1312 = vmatprep.subr.bf16.mxu0 0
        %1313 = vmatpush2.bf16.msra.mxu0 0
        %1314 = vmatprep.subr.bf16.mxu0 0
        %1315 = vmatpush2.bf16.msra.mxu0 0
        %1316 = vmatprep.mubr.bf16.mxu0 0
        %1317 = vmatmul.mubr.bf16.gmra.mxu0 %v1232
        %v1318 = vpop.f32.mrf.mxu0
        %v1319 = vadd.f32 0.0, %v1318
        %v1320 = vpop.f32.mrf.mxu0
        %v1321 = vpop.f32.mrf.mxu0
        %v1322 = vpop.f32.mrf.mxu0
        %1323 = vdwg.mxu0
        %v1326 = vunpack.c.l.b16 %v1193
        %v1327 = vunpack.c.l.b16 %v1195
        %v1328 = vpack.c.b16 %v1327, %v1326
        %v1329 = vrot.slane %v1328, 2
        %v1331 = vsel %vm214, %v1196, 0
        %v1334 = vsel %vm218, %v1216, 0
        %v1337 = vsel %vm218, %v1217, 0
        %v1340 = vsel %vm218, %v1329, 0
        %1342 = vmatprep.subr.bf16.mxu0 0
        %1343 = vmatpush1.bf16.msra.mxu0 0
        %1344 = vmatprep.subr.bf16.mxu0 0
        %1345 = vmatpush1.bf16.msra.mxu0 0
        %1346 = vmatprep.subr.bf16.mxu0 0
        %1347 = vmatpush1.bf16.msra.mxu0 0
        %1348 = vmatprep.subr.bf16.mxu0 0
        %1349 = vmatpush1.bf16.msra.mxu0 0
        %1350 = vmatprep.subr.bf16.mxu0 0
        %1351 = vmatpush1.bf16.msra.mxu0 0
        %1352 = vmatprep.subr.bf16.mxu0 0
        %1353 = vmatpush1.bf16.msra.mxu0 0
        %1354 = vmatprep.subr.bf16.mxu0 0
        %1355 = vmatpush1.bf16.msra.mxu0 0
        %1356 = vmatprep.subr.bf16.mxu0 %v1337
        %1357 = vmatpush1.bf16.msra.mxu0 %v1334
        %1358 = vmatprep.subr.bf16.mxu0 0
        %1359 = vmatpush2.bf16.msra.mxu0 0
        %1360 = vmatprep.subr.bf16.mxu0 0
        %1361 = vmatpush2.bf16.msra.mxu0 0
        %1362 = vmatprep.subr.bf16.mxu0 0
        %1363 = vmatpush2.bf16.msra.mxu0 0
        %1364 = vmatprep.subr.bf16.mxu0 0
        %1365 = vmatpush2.bf16.msra.mxu0 0
        %1366 = vmatprep.subr.bf16.mxu0 0
        %1367 = vmatpush2.bf16.msra.mxu0 0
        %1368 = vmatprep.subr.bf16.mxu0 0
        %1369 = vmatpush2.bf16.msra.mxu0 0
        %1370 = vmatprep.subr.bf16.mxu0 0
        %1371 = vmatpush2.bf16.msra.mxu0 0
        %1372 = vmatprep.subr.bf16.mxu0 0
        %1373 = vmatpush2.bf16.msra.mxu0 0
        %1374 = vmatprep.mubr.bf16.mxu0 0
        %1375 = vmatmul.mubr.bf16.gmra.mxu0 %v1331
        %v1376 = vpop.f32.mrf.mxu0
        %v1377 = vadd.f32 %v1278, %v1376
        %v1378 = vpop.f32.mrf.mxu0
        %v1379 = vadd.f32 %v1280, %v1378
        %v1380 = vpop.f32.mrf.mxu0
        %v1381 = vpop.f32.mrf.mxu0
        %1382 = vdwg.mxu0
        %1383 = vmatprep.subr.bf16.mxu0 0
        %1384 = vmatpush1.bf16.msra.mxu0 0
        %1385 = vmatprep.subr.bf16.mxu0 0
        %1386 = vmatpush1.bf16.msra.mxu0 0
        %1387 = vmatprep.subr.bf16.mxu0 0
        %1388 = vmatpush1.bf16.msra.mxu0 0
        %1389 = vmatprep.subr.bf16.mxu0 0
        %1390 = vmatpush1.bf16.msra.mxu0 0
        %1391 = vmatprep.subr.bf16.mxu0 0
        %1392 = vmatpush1.bf16.msra.mxu0 0
        %1393 = vmatprep.subr.bf16.mxu0 0
        %1394 = vmatpush1.bf16.msra.mxu0 0
        %1395 = vmatprep.subr.bf16.mxu0 0
        %1396 = vmatpush1.bf16.msra.mxu0 0
        %1397 = vmatprep.subr.bf16.mxu0 0
        %1398 = vmatpush1.bf16.msra.mxu0 %v1340
        %1399 = vmatprep.subr.bf16.mxu0 0
        %1400 = vmatpush2.bf16.msra.mxu0 0
        %1401 = vmatprep.subr.bf16.mxu0 0
        %1402 = vmatpush2.bf16.msra.mxu0 0
        %1403 = vmatprep.subr.bf16.mxu0 0
        %1404 = vmatpush2.bf16.msra.mxu0 0
        %1405 = vmatprep.subr.bf16.mxu0 0
        %1406 = vmatpush2.bf16.msra.mxu0 0
        %1407 = vmatprep.subr.bf16.mxu0 0
        %1408 = vmatpush2.bf16.msra.mxu0 0
        %1409 = vmatprep.subr.bf16.mxu0 0
        %1410 = vmatpush2.bf16.msra.mxu0 0
        %1411 = vmatprep.subr.bf16.mxu0 0
        %1412 = vmatpush2.bf16.msra.mxu0 0
        %1413 = vmatprep.subr.bf16.mxu0 0
        %1414 = vmatpush2.bf16.msra.mxu0 0
        %1415 = vmatprep.mubr.bf16.mxu0 0
        %1416 = vmatmul.mubr.bf16.gmra.mxu0 %v1331
        %v1417 = vpop.f32.mrf.mxu0
        %v1418 = vadd.f32 %v1319, %v1417
        %v1419 = vpop.f32.mrf.mxu0
        %v1420 = vpop.f32.mrf.mxu0
        %v1421 = vpop.f32.mrf.mxu0
        %1422 = vdwg.mxu0
        %v1423 = vld [vmem:[%s407] sm:$0xf]
        %1424 = vrot.lane.b32.xlu0 %v1216, 126
        %v1425 = vpop.permute.xlu0 %1424
        %1426 = vrot.lane.b32.xlu0 %v1217, 126
        %v1427 = vpop.permute.xlu0 %1426
        %1428 = vrot.lane.b32.xlu0 %v1218, 126
        %v1429 = vpop.permute.xlu0 %1428
        %1430 = vrot.lane.b32.xlu0 %v1219, 126
        %v1431 = vpop.permute.xlu0 %1430
        %v1432 = vsel %vm417, %v1425, %v1427
        %v1433 = vsel %vm417, %v1427, %v1429
        %v1434 = vsel %vm417, %v1429, %v1431
        %v1436 = vsel %vm214, %v1423, 0
        %v1439 = vsel %vm218, %v1432, 0
        %v1442 = vsel %vm218, %v1433, 0
        %v1445 = vsel %vm218, %v1434, 0
        %1447 = vmatprep.subr.bf16.mxu0 0
        %1448 = vmatpush1.bf16.msra.mxu0 0
        %1449 = vmatprep.subr.bf16.mxu0 0
        %1450 = vmatpush1.bf16.msra.mxu0 0
        %1451 = vmatprep.subr.bf16.mxu0 0
        %1452 = vmatpush1.bf16.msra.mxu0 0
        %1453 = vmatprep.subr.bf16.mxu0 0
        %1454 = vmatpush1.bf16.msra.mxu0 0
        %1455 = vmatprep.subr.bf16.mxu0 0
        %1456 = vmatpush1.bf16.msra.mxu0 0
        %1457 = vmatprep.subr.bf16.mxu0 0
        %1458 = vmatpush1.bf16.msra.mxu0 0
        %1459 = vmatprep.subr.bf16.mxu0 0
        %1460 = vmatpush1.bf16.msra.mxu0 0
        %1461 = vmatprep.subr.bf16.mxu0 %v1442
        %1462 = vmatpush1.bf16.msra.mxu0 %v1439
        %1463 = vmatprep.subr.bf16.mxu0 0
        %1464 = vmatpush2.bf16.msra.mxu0 0
        %1465 = vmatprep.subr.bf16.mxu0 0
        %1466 = vmatpush2.bf16.msra.mxu0 0
        %1467 = vmatprep.subr.bf16.mxu0 0
        %1468 = vmatpush2.bf16.msra.mxu0 0
        %1469 = vmatprep.subr.bf16.mxu0 0
        %1470 = vmatpush2.bf16.msra.mxu0 0
        %1471 = vmatprep.subr.bf16.mxu0 0
        %1472 = vmatpush2.bf16.msra.mxu0 0
        %1473 = vmatprep.subr.bf16.mxu0 0
        %1474 = vmatpush2.bf16.msra.mxu0 0
        %1475 = vmatprep.subr.bf16.mxu0 0
        %1476 = vmatpush2.bf16.msra.mxu0 0
        %1477 = vmatprep.subr.bf16.mxu0 0
        %1478 = vmatpush2.bf16.msra.mxu0 0
        %1479 = vmatprep.mubr.bf16.mxu0 0
        %1480 = vmatmul.mubr.bf16.gmra.mxu0 %v1436
        %v1481 = vpop.f32.mrf.mxu0
        %v1482 = vadd.f32 0.0, %v1481
        %v1483 = vpop.f32.mrf.mxu0
        %v1484 = vadd.f32 0.0, %v1483
        %v1485 = vpop.f32.mrf.mxu0
        %v1486 = vpop.f32.mrf.mxu0
        %1487 = vdwg.mxu0
        %1488 = vmatprep.subr.bf16.mxu0 0
        %1489 = vmatpush1.bf16.msra.mxu0 0
        %1490 = vmatprep.subr.bf16.mxu0 0
        %1491 = vmatpush1.bf16.msra.mxu0 0
        %1492 = vmatprep.subr.bf16.mxu0 0
        %1493 = vmatpush1.bf16.msra.mxu0 0
        %1494 = vmatprep.subr.bf16.mxu0 0
        %1495 = vmatpush1.bf16.msra.mxu0 0
        %1496 = vmatprep.subr.bf16.mxu0 0
        %1497 = vmatpush1.bf16.msra.mxu0 0
        %1498 = vmatprep.subr.bf16.mxu0 0
        %1499 = vmatpush1.bf16.msra.mxu0 0
        %1500 = vmatprep.subr.bf16.mxu0 0
        %1501 = vmatpush1.bf16.msra.mxu0 0
        %1502 = vmatprep.subr.bf16.mxu0 0
        %1503 = vmatpush1.bf16.msra.mxu0 %v1445
        %1504 = vmatprep.subr.bf16.mxu0 0
        %1505 = vmatpush2.bf16.msra.mxu0 0
        %1506 = vmatprep.subr.bf16.mxu0 0
        %1507 = vmatpush2.bf16.msra.mxu0 0
        %1508 = vmatprep.subr.bf16.mxu0 0
        %1509 = vmatpush2.bf16.msra.mxu0 0
        %1510 = vmatprep.subr.bf16.mxu0 0
        %1511 = vmatpush2.bf16.msra.mxu0 0
        %1512 = vmatprep.subr.bf16.mxu0 0
        %1513 = vmatpush2.bf16.msra.mxu0 0
        %1514 = vmatprep.subr.bf16.mxu0 0
        %1515 = vmatpush2.bf16.msra.mxu0 0
        %1516 = vmatprep.subr.bf16.mxu0 0
        %1517 = vmatpush2.bf16.msra.mxu0 0
        %1518 = vmatprep.subr.bf16.mxu0 0
        %1519 = vmatpush2.bf16.msra.mxu0 0
        %1520 = vmatprep.mubr.bf16.mxu0 0
        %1521 = vmatmul.mubr.bf16.gmra.mxu0 %v1436
        %v1522 = vpop.f32.mrf.mxu0
        %v1523 = vadd.f32 0.0, %v1522
        %v1524 = vpop.f32.mrf.mxu0
        %v1525 = vpop.f32.mrf.mxu0
        %v1526 = vpop.f32.mrf.mxu0
        %1527 = vdwg.mxu0
        %v1528 = vadd.f32 %v1377, %v1482
        %v1529 = vadd.f32 %v1379, %v1484
        %v1530 = vadd.f32 %v1418, %v1523
        %v1531 = vld [vmem:[%s517] sm:$0xf]
        %1532 = vrot.lane.b32.xlu0 %v1216, 110
        %v1533 = vpop.permute.xlu0 %1532
        %1534 = vrot.lane.b32.xlu0 %v1217, 110
        %v1535 = vpop.permute.xlu0 %1534
        %1536 = vrot.lane.b32.xlu0 %v1218, 110
        %v1537 = vpop.permute.xlu0 %1536
        %1538 = vrot.lane.b32.xlu0 %v1219, 110
        %v1539 = vpop.permute.xlu0 %1538
        %v1540 = vsel %vm527, %v1533, %v1535
        %v1541 = vsel %vm527, %v1535, %v1537
        %v1542 = vsel %vm527, %v1537, %v1539
        %v1544 = vsel %vm214, %v1531, 0
        %v1547 = vsel %vm218, %v1540, 0
        %v1550 = vsel %vm218, %v1541, 0
        %v1553 = vsel %vm218, %v1542, 0
        %1555 = vmatprep.subr.bf16.mxu0 0
        %1556 = vmatpush1.bf16.msra.mxu0 0
        %1557 = vmatprep.subr.bf16.mxu0 0
        %1558 = vmatpush1.bf16.msra.mxu0 0
        %1559 = vmatprep.subr.bf16.mxu0 0
        %1560 = vmatpush1.bf16.msra.mxu0 0
        %1561 = vmatprep.subr.bf16.mxu0 0
        %1562 = vmatpush1.bf16.msra.mxu0 0
        %1563 = vmatprep.subr.bf16.mxu0 0
        %1564 = vmatpush1.bf16.msra.mxu0 0
        %1565 = vmatprep.subr.bf16.mxu0 0
        %1566 = vmatpush1.bf16.msra.mxu0 0
        %1567 = vmatprep.subr.bf16.mxu0 0
        %1568 = vmatpush1.bf16.msra.mxu0 0
        %1569 = vmatprep.subr.bf16.mxu0 %v1550
        %1570 = vmatpush1.bf16.msra.mxu0 %v1547
        %1571 = vmatprep.subr.bf16.mxu0 0
        %1572 = vmatpush2.bf16.msra.mxu0 0
        %1573 = vmatprep.subr.bf16.mxu0 0
        %1574 = vmatpush2.bf16.msra.mxu0 0
        %1575 = vmatprep.subr.bf16.mxu0 0
        %1576 = vmatpush2.bf16.msra.mxu0 0
        %1577 = vmatprep.subr.bf16.mxu0 0
        %1578 = vmatpush2.bf16.msra.mxu0 0
        %1579 = vmatprep.subr.bf16.mxu0 0
        %1580 = vmatpush2.bf16.msra.mxu0 0
        %1581 = vmatprep.subr.bf16.mxu0 0
        %1582 = vmatpush2.bf16.msra.mxu0 0
        %1583 = vmatprep.subr.bf16.mxu0 0
        %1584 = vmatpush2.bf16.msra.mxu0 0
        %1585 = vmatprep.subr.bf16.mxu0 0
        %1586 = vmatpush2.bf16.msra.mxu0 0
        %1587 = vmatprep.mubr.bf16.mxu0 0
        %1588 = vmatmul.mubr.bf16.gmra.mxu0 %v1544
        %v1589 = vpop.f32.mrf.mxu0
        %v1590 = vadd.f32 0.0, %v1589
        %v1591 = vpop.f32.mrf.mxu0
        %v1592 = vadd.f32 0.0, %v1591
        %v1593 = vpop.f32.mrf.mxu0
        %v1594 = vpop.f32.mrf.mxu0
        %1595 = vdwg.mxu0
        %1596 = vmatprep.subr.bf16.mxu0 0
        %1597 = vmatpush1.bf16.msra.mxu0 0
        %1598 = vmatprep.subr.bf16.mxu0 0
        %1599 = vmatpush1.bf16.msra.mxu0 0
        %1600 = vmatprep.subr.bf16.mxu0 0
        %1601 = vmatpush1.bf16.msra.mxu0 0
        %1602 = vmatprep.subr.bf16.mxu0 0
        %1603 = vmatpush1.bf16.msra.mxu0 0
        %1604 = vmatprep.subr.bf16.mxu0 0
        %1605 = vmatpush1.bf16.msra.mxu0 0
        %1606 = vmatprep.subr.bf16.mxu0 0
        %1607 = vmatpush1.bf16.msra.mxu0 0
        %1608 = vmatprep.subr.bf16.mxu0 0
        %1609 = vmatpush1.bf16.msra.mxu0 0
        %1610 = vmatprep.subr.bf16.mxu0 0
        %1611 = vmatpush1.bf16.msra.mxu0 %v1553
        %1612 = vmatprep.subr.bf16.mxu0 0
        %1613 = vmatpush2.bf16.msra.mxu0 0
        %1614 = vmatprep.subr.bf16.mxu0 0
        %1615 = vmatpush2.bf16.msra.mxu0 0
        %1616 = vmatprep.subr.bf16.mxu0 0
        %1617 = vmatpush2.bf16.msra.mxu0 0
        %1618 = vmatprep.subr.bf16.mxu0 0
        %1619 = vmatpush2.bf16.msra.mxu0 0
        %1620 = vmatprep.subr.bf16.mxu0 0
        %1621 = vmatpush2.bf16.msra.mxu0 0
        %1622 = vmatprep.subr.bf16.mxu0 0
        %1623 = vmatpush2.bf16.msra.mxu0 0
        %1624 = vmatprep.subr.bf16.mxu0 0
        %1625 = vmatpush2.bf16.msra.mxu0 0
        %1626 = vmatprep.subr.bf16.mxu0 0
        %1627 = vmatpush2.bf16.msra.mxu0 0
        %1628 = vmatprep.mubr.bf16.mxu0 0
        %1629 = vmatmul.mubr.bf16.gmra.mxu0 %v1544
        %v1630 = vpop.f32.mrf.mxu0
        %v1631 = vadd.f32 0.0, %v1630
        %v1632 = vpop.f32.mrf.mxu0
        %v1633 = vpop.f32.mrf.mxu0
        %v1634 = vpop.f32.mrf.mxu0
        %1635 = vdwg.mxu0
        %v1636 = vadd.f32 %v1528, %v1590
        %v1637 = vadd.f32 %v1529, %v1592
        %v1638 = vadd.f32 %v1530, %v1631
        %v1639 = vld [vmem:[%s627] sm:$0xf]
        %1640 = vrot.lane.b32.xlu0 %v1216, 109
        %v1641 = vpop.permute.xlu0 %1640
        %1642 = vrot.lane.b32.xlu0 %v1217, 109
        %v1643 = vpop.permute.xlu0 %1642
        %1644 = vrot.lane.b32.xlu0 %v1218, 109
        %v1645 = vpop.permute.xlu0 %1644
        %1646 = vrot.lane.b32.xlu0 %v1219, 109
        %v1647 = vpop.permute.xlu0 %1646
        %v1648 = vsel %vm637, %v1641, %v1643
        %v1649 = vsel %vm637, %v1643, %v1645
        %v1650 = vsel %vm637, %v1645, %v1647
        %v1652 = vsel %vm214, %v1639, 0
        %v1655 = vsel %vm218, %v1648, 0
        %v1658 = vsel %vm218, %v1649, 0
        %v1661 = vsel %vm218, %v1650, 0
        %1663 = vmatprep.subr.bf16.mxu0 0
        %1664 = vmatpush1.bf16.msra.mxu0 0
        %1665 = vmatprep.subr.bf16.mxu0 0
        %1666 = vmatpush1.bf16.msra.mxu0 0
        %1667 = vmatprep.subr.bf16.mxu0 0
        %1668 = vmatpush1.bf16.msra.mxu0 0
        %1669 = vmatprep.subr.bf16.mxu0 0
        %1670 = vmatpush1.bf16.msra.mxu0 0
        %1671 = vmatprep.subr.bf16.mxu0 0
        %1672 = vmatpush1.bf16.msra.mxu0 0
        %1673 = vmatprep.subr.bf16.mxu0 0
        %1674 = vmatpush1.bf16.msra.mxu0 0
        %1675 = vmatprep.subr.bf16.mxu0 0
        %1676 = vmatpush1.bf16.msra.mxu0 0
        %1677 = vmatprep.subr.bf16.mxu0 %v1658
        %1678 = vmatpush1.bf16.msra.mxu0 %v1655
        %1679 = vmatprep.subr.bf16.mxu0 0
        %1680 = vmatpush2.bf16.msra.mxu0 0
        %1681 = vmatprep.subr.bf16.mxu0 0
        %1682 = vmatpush2.bf16.msra.mxu0 0
        %1683 = vmatprep.subr.bf16.mxu0 0
        %1684 = vmatpush2.bf16.msra.mxu0 0
        %1685 = vmatprep.subr.bf16.mxu0 0
        %1686 = vmatpush2.bf16.msra.mxu0 0
        %1687 = vmatprep.subr.bf16.mxu0 0
        %1688 = vmatpush2.bf16.msra.mxu0 0
        %1689 = vmatprep.subr.bf16.mxu0 0
        %1690 = vmatpush2.bf16.msra.mxu0 0
        %1691 = vmatprep.subr.bf16.mxu0 0
        %1692 = vmatpush2.bf16.msra.mxu0 0
        %1693 = vmatprep.subr.bf16.mxu0 0
        %1694 = vmatpush2.bf16.msra.mxu0 0
        %1695 = vmatprep.mubr.bf16.mxu0 0
        %1696 = vmatmul.mubr.bf16.gmra.mxu0 %v1652
        %v1697 = vpop.f32.mrf.mxu0
        %v1698 = vadd.f32 0.0, %v1697
        %v1699 = vpop.f32.mrf.mxu0
        %v1700 = vadd.f32 0.0, %v1699
        %v1701 = vpop.f32.mrf.mxu0
        %v1702 = vpop.f32.mrf.mxu0
        %1703 = vdwg.mxu0
        %1704 = vmatprep.subr.bf16.mxu0 0
        %1705 = vmatpush1.bf16.msra.mxu0 0
        %1706 = vmatprep.subr.bf16.mxu0 0
        %1707 = vmatpush1.bf16.msra.mxu0 0
        %1708 = vmatprep.subr.bf16.mxu0 0
        %1709 = vmatpush1.bf16.msra.mxu0 0
        %1710 = vmatprep.subr.bf16.mxu0 0
        %1711 = vmatpush1.bf16.msra.mxu0 0
        %1712 = vmatprep.subr.bf16.mxu0 0
        %1713 = vmatpush1.bf16.msra.mxu0 0
        %1714 = vmatprep.subr.bf16.mxu0 0
        %1715 = vmatpush1.bf16.msra.mxu0 0
        %1716 = vmatprep.subr.bf16.mxu0 0
        %1717 = vmatpush1.bf16.msra.mxu0 0
        %1718 = vmatprep.subr.bf16.mxu0 0
        %1719 = vmatpush1.bf16.msra.mxu0 %v1661
        %1720 = vmatprep.subr.bf16.mxu0 0
        %1721 = vmatpush2.bf16.msra.mxu0 0
        %1722 = vmatprep.subr.bf16.mxu0 0
        %1723 = vmatpush2.bf16.msra.mxu0 0
        %1724 = vmatprep.subr.bf16.mxu0 0
        %1725 = vmatpush2.bf16.msra.mxu0 0
        %1726 = vmatprep.subr.bf16.mxu0 0
        %1727 = vmatpush2.bf16.msra.mxu0 0
        %1728 = vmatprep.subr.bf16.mxu0 0
        %1729 = vmatpush2.bf16.msra.mxu0 0
        %1730 = vmatprep.subr.bf16.mxu0 0
        %1731 = vmatpush2.bf16.msra.mxu0 0
        %1732 = vmatprep.subr.bf16.mxu0 0
        %1733 = vmatpush2.bf16.msra.mxu0 0
        %1734 = vmatprep.subr.bf16.mxu0 0
        %1735 = vmatpush2.bf16.msra.mxu0 0
        %1736 = vmatprep.mubr.bf16.mxu0 0
        %1737 = vmatmul.mubr.bf16.gmra.mxu0 %v1652
        %v1738 = vpop.f32.mrf.mxu0
        %v1739 = vadd.f32 0.0, %v1738
        %v1740 = vpop.f32.mrf.mxu0
        %v1741 = vpop.f32.mrf.mxu0
        %v1742 = vpop.f32.mrf.mxu0
        %1743 = vdwg.mxu0
        %v1744 = vadd.f32 %v1636, %v1698
        %v1745 = vadd.f32 %v1637, %v1700
        %v1746 = vadd.f32 %v1638, %v1739
        %v1747 = vld [vmem:[%s737] sm:$0xf]
        %1748 = vrot.lane.b32.xlu0 %v1216, 108
        %v1749 = vpop.permute.xlu0 %1748
        %1750 = vrot.lane.b32.xlu0 %v1217, 108
        %v1751 = vpop.permute.xlu0 %1750
        %1752 = vrot.lane.b32.xlu0 %v1218, 108
        %v1753 = vpop.permute.xlu0 %1752
        %1754 = vrot.lane.b32.xlu0 %v1219, 108
        %v1755 = vpop.permute.xlu0 %1754
        %v1756 = vsel %vm747, %v1749, %v1751
        %v1757 = vsel %vm747, %v1751, %v1753
        %v1758 = vsel %vm747, %v1753, %v1755
        %v1760 = vsel %vm214, %v1747, 0
        %v1763 = vsel %vm218, %v1756, 0
        %v1766 = vsel %vm218, %v1757, 0
        %v1769 = vsel %vm218, %v1758, 0
        %1771 = vmatprep.subr.bf16.mxu0 0
        %1772 = vmatpush1.bf16.msra.mxu0 0
        %1773 = vmatprep.subr.bf16.mxu0 0
        %1774 = vmatpush1.bf16.msra.mxu0 0
        %1775 = vmatprep.subr.bf16.mxu0 0
        %1776 = vmatpush1.bf16.msra.mxu0 0
        %1777 = vmatprep.subr.bf16.mxu0 0
        %1778 = vmatpush1.bf16.msra.mxu0 0
        %1779 = vmatprep.subr.bf16.mxu0 0
        %1780 = vmatpush1.bf16.msra.mxu0 0
        %1781 = vmatprep.subr.bf16.mxu0 0
        %1782 = vmatpush1.bf16.msra.mxu0 0
        %1783 = vmatprep.subr.bf16.mxu0 0
        %1784 = vmatpush1.bf16.msra.mxu0 0
        %1785 = vmatprep.subr.bf16.mxu0 %v1766
        %1786 = vmatpush1.bf16.msra.mxu0 %v1763
        %1787 = vmatprep.subr.bf16.mxu0 0
        %1788 = vmatpush2.bf16.msra.mxu0 0
        %1789 = vmatprep.subr.bf16.mxu0 0
        %1790 = vmatpush2.bf16.msra.mxu0 0
        %1791 = vmatprep.subr.bf16.mxu0 0
        %1792 = vmatpush2.bf16.msra.mxu0 0
        %1793 = vmatprep.subr.bf16.mxu0 0
        %1794 = vmatpush2.bf16.msra.mxu0 0
        %1795 = vmatprep.subr.bf16.mxu0 0
        %1796 = vmatpush2.bf16.msra.mxu0 0
        %1797 = vmatprep.subr.bf16.mxu0 0
        %1798 = vmatpush2.bf16.msra.mxu0 0
        %1799 = vmatprep.subr.bf16.mxu0 0
        %1800 = vmatpush2.bf16.msra.mxu0 0
        %1801 = vmatprep.subr.bf16.mxu0 0
        %1802 = vmatpush2.bf16.msra.mxu0 0
        %1803 = vmatprep.mubr.bf16.mxu0 0
        %1804 = vmatmul.mubr.bf16.gmra.mxu0 %v1760
        %v1805 = vpop.f32.mrf.mxu0
        %v1806 = vadd.f32 0.0, %v1805
        %v1807 = vpop.f32.mrf.mxu0
        %v1808 = vadd.f32 0.0, %v1807
        %v1809 = vpop.f32.mrf.mxu0
        %v1810 = vpop.f32.mrf.mxu0
        %1811 = vdwg.mxu0
        %1812 = vmatprep.subr.bf16.mxu0 0
        %1813 = vmatpush1.bf16.msra.mxu0 0
        %1814 = vmatprep.subr.bf16.mxu0 0
        %1815 = vmatpush1.bf16.msra.mxu0 0
        %1816 = vmatprep.subr.bf16.mxu0 0
        %1817 = vmatpush1.bf16.msra.mxu0 0
        %1818 = vmatprep.subr.bf16.mxu0 0
        %1819 = vmatpush1.bf16.msra.mxu0 0
        %1820 = vmatprep.subr.bf16.mxu0 0
        %1821 = vmatpush1.bf16.msra.mxu0 0
        %1822 = vmatprep.subr.bf16.mxu0 0
        %1823 = vmatpush1.bf16.msra.mxu0 0
        %1824 = vmatprep.subr.bf16.mxu0 0
        %1825 = vmatpush1.bf16.msra.mxu0 0
        %1826 = vmatprep.subr.bf16.mxu0 0
        %1827 = vmatpush1.bf16.msra.mxu0 %v1769
        %1828 = vmatprep.subr.bf16.mxu0 0
        %1829 = vmatpush2.bf16.msra.mxu0 0
        %1830 = vmatprep.subr.bf16.mxu0 0
        %1831 = vmatpush2.bf16.msra.mxu0 0
        %1832 = vmatprep.subr.bf16.mxu0 0
        %1833 = vmatpush2.bf16.msra.mxu0 0
        %1834 = vmatprep.subr.bf16.mxu0 0
        %1835 = vmatpush2.bf16.msra.mxu0 0
        %1836 = vmatprep.subr.bf16.mxu0 0
        %1837 = vmatpush2.bf16.msra.mxu0 0
        %1838 = vmatprep.subr.bf16.mxu0 0
        %1839 = vmatpush2.bf16.msra.mxu0 0
        %1840 = vmatprep.subr.bf16.mxu0 0
        %1841 = vmatpush2.bf16.msra.mxu0 0
        %1842 = vmatprep.subr.bf16.mxu0 0
        %1843 = vmatpush2.bf16.msra.mxu0 0
        %1844 = vmatprep.mubr.bf16.mxu0 0
        %1845 = vmatmul.mubr.bf16.gmra.mxu0 %v1760
        %v1846 = vpop.f32.mrf.mxu0
        %v1847 = vadd.f32 0.0, %v1846
        %v1848 = vpop.f32.mrf.mxu0
        %v1849 = vpop.f32.mrf.mxu0
        %v1850 = vpop.f32.mrf.mxu0
        %1851 = vdwg.mxu0
        %v1852 = vadd.f32 %v1744, %v1806
        %v1853 = vadd.f32 %v1745, %v1808
        %v1854 = vadd.f32 %v1746, %v1847
        %v1855 = vld [vmem:[%s847] sm:$0xf]
        %1856 = vrot.lane.b32.xlu0 %v1216, 92
        %v1857 = vpop.permute.xlu0 %1856
        %1858 = vrot.lane.b32.xlu0 %v1217, 92
        %v1859 = vpop.permute.xlu0 %1858
        %1860 = vrot.lane.b32.xlu0 %v1218, 92
        %v1861 = vpop.permute.xlu0 %1860
        %1862 = vrot.lane.b32.xlu0 %v1219, 92
        %v1863 = vpop.permute.xlu0 %1862
        %v1864 = vsel %vm857, %v1857, %v1859
        %v1865 = vsel %vm857, %v1859, %v1861
        %v1866 = vsel %vm857, %v1861, %v1863
        %v1868 = vsel %vm214, %v1855, 0
        %v1871 = vsel %vm218, %v1864, 0
        %v1874 = vsel %vm218, %v1865, 0
        %v1877 = vsel %vm218, %v1866, 0
        %1879 = vmatprep.subr.bf16.mxu0 0
        %1880 = vmatpush1.bf16.msra.mxu0 0
        %1881 = vmatprep.subr.bf16.mxu0 0
        %1882 = vmatpush1.bf16.msra.mxu0 0
        %1883 = vmatprep.subr.bf16.mxu0 0
        %1884 = vmatpush1.bf16.msra.mxu0 0
        %1885 = vmatprep.subr.bf16.mxu0 0
        %1886 = vmatpush1.bf16.msra.mxu0 0
        %1887 = vmatprep.subr.bf16.mxu0 0
        %1888 = vmatpush1.bf16.msra.mxu0 0
        %1889 = vmatprep.subr.bf16.mxu0 0
        %1890 = vmatpush1.bf16.msra.mxu0 0
        %1891 = vmatprep.subr.bf16.mxu0 0
        %1892 = vmatpush1.bf16.msra.mxu0 0
        %1893 = vmatprep.subr.bf16.mxu0 %v1874
        %1894 = vmatpush1.bf16.msra.mxu0 %v1871
        %1895 = vmatprep.subr.bf16.mxu0 0
        %1896 = vmatpush2.bf16.msra.mxu0 0
        %1897 = vmatprep.subr.bf16.mxu0 0
        %1898 = vmatpush2.bf16.msra.mxu0 0
        %1899 = vmatprep.subr.bf16.mxu0 0
        %1900 = vmatpush2.bf16.msra.mxu0 0
        %1901 = vmatprep.subr.bf16.mxu0 0
        %1902 = vmatpush2.bf16.msra.mxu0 0
        %1903 = vmatprep.subr.bf16.mxu0 0
        %1904 = vmatpush2.bf16.msra.mxu0 0
        %1905 = vmatprep.subr.bf16.mxu0 0
        %1906 = vmatpush2.bf16.msra.mxu0 0
        %1907 = vmatprep.subr.bf16.mxu0 0
        %1908 = vmatpush2.bf16.msra.mxu0 0
        %1909 = vmatprep.subr.bf16.mxu0 0
        %1910 = vmatpush2.bf16.msra.mxu0 0
        %1911 = vmatprep.mubr.bf16.mxu0 0
        %1912 = vmatmul.mubr.bf16.gmra.mxu0 %v1868
        %v1913 = vpop.f32.mrf.mxu0
        %v1914 = vadd.f32 0.0, %v1913
        %v1915 = vpop.f32.mrf.mxu0
        %v1916 = vadd.f32 0.0, %v1915
        %v1917 = vpop.f32.mrf.mxu0
        %v1918 = vpop.f32.mrf.mxu0
        %1919 = vdwg.mxu0
        %1920 = vmatprep.subr.bf16.mxu0 0
        %1921 = vmatpush1.bf16.msra.mxu0 0
        %1922 = vmatprep.subr.bf16.mxu0 0
        %1923 = vmatpush1.bf16.msra.mxu0 0
        %1924 = vmatprep.subr.bf16.mxu0 0
        %1925 = vmatpush1.bf16.msra.mxu0 0
        %1926 = vmatprep.subr.bf16.mxu0 0
        %1927 = vmatpush1.bf16.msra.mxu0 0
        %1928 = vmatprep.subr.bf16.mxu0 0
        %1929 = vmatpush1.bf16.msra.mxu0 0
        %1930 = vmatprep.subr.bf16.mxu0 0
        %1931 = vmatpush1.bf16.msra.mxu0 0
        %1932 = vmatprep.subr.bf16.mxu0 0
        %1933 = vmatpush1.bf16.msra.mxu0 0
        %1934 = vmatprep.subr.bf16.mxu0 0
        %1935 = vmatpush1.bf16.msra.mxu0 %v1877
        %1936 = vmatprep.subr.bf16.mxu0 0
        %1937 = vmatpush2.bf16.msra.mxu0 0
        %1938 = vmatprep.subr.bf16.mxu0 0
        %1939 = vmatpush2.bf16.msra.mxu0 0
        %1940 = vmatprep.subr.bf16.mxu0 0
        %1941 = vmatpush2.bf16.msra.mxu0 0
        %1942 = vmatprep.subr.bf16.mxu0 0
        %1943 = vmatpush2.bf16.msra.mxu0 0
        %1944 = vmatprep.subr.bf16.mxu0 0
        %1945 = vmatpush2.bf16.msra.mxu0 0
        %1946 = vmatprep.subr.bf16.mxu0 0
        %1947 = vmatpush2.bf16.msra.mxu0 0
        %1948 = vmatprep.subr.bf16.mxu0 0
        %1949 = vmatpush2.bf16.msra.mxu0 0
        %1950 = vmatprep.subr.bf16.mxu0 0
        %1951 = vmatpush2.bf16.msra.mxu0 0
        %1952 = vmatprep.mubr.bf16.mxu0 0
        %1953 = vmatmul.mubr.bf16.gmra.mxu0 %v1868
        %v1954 = vpop.f32.mrf.mxu0
        %v1955 = vadd.f32 0.0, %v1954
        %v1956 = vpop.f32.mrf.mxu0
        %v1957 = vpop.f32.mrf.mxu0
        %v1958 = vpop.f32.mrf.mxu0
        %1959 = vdwg.mxu0
        %v1960 = vadd.f32 %v1852, %v1914
        %v1961 = vadd.f32 %v1853, %v1916
        %v1962 = vadd.f32 %v1854, %v1955
        %v1963 = vld [vmem:[%s957] sm:$0xf]
        %1964 = vrot.lane.b32.xlu0 %v1216, 91
        %v1965 = vpop.permute.xlu0 %1964
        %1966 = vrot.lane.b32.xlu0 %v1217, 91
        %v1967 = vpop.permute.xlu0 %1966
        %1968 = vrot.lane.b32.xlu0 %v1218, 91
        %v1969 = vpop.permute.xlu0 %1968
        %1970 = vrot.lane.b32.xlu0 %v1219, 91
        %v1971 = vpop.permute.xlu0 %1970
        %v1972 = vsel %vm967, %v1965, %v1967
        %v1973 = vsel %vm967, %v1967, %v1969
        %v1974 = vsel %vm967, %v1969, %v1971
        %v1976 = vsel %vm214, %v1963, 0
        %v1979 = vsel %vm218, %v1972, 0
        %v1982 = vsel %vm218, %v1973, 0
        %v1985 = vsel %vm218, %v1974, 0
        %1987 = vmatprep.subr.bf16.mxu0 0
        %1988 = vmatpush1.bf16.msra.mxu0 0
        %1989 = vmatprep.subr.bf16.mxu0 0
        %1990 = vmatpush1.bf16.msra.mxu0 0
        %1991 = vmatprep.subr.bf16.mxu0 0
        %1992 = vmatpush1.bf16.msra.mxu0 0
        %1993 = vmatprep.subr.bf16.mxu0 0
        %1994 = vmatpush1.bf16.msra.mxu0 0
        %1995 = vmatprep.subr.bf16.mxu0 0
        %1996 = vmatpush1.bf16.msra.mxu0 0
        %1997 = vmatprep.subr.bf16.mxu0 0
        %1998 = vmatpush1.bf16.msra.mxu0 0
        %1999 = vmatprep.subr.bf16.mxu0 0
        %2000 = vmatpush1.bf16.msra.mxu0 0
        %2001 = vmatprep.subr.bf16.mxu0 %v1982
        %2002 = vmatpush1.bf16.msra.mxu0 %v1979
        %2003 = vmatprep.subr.bf16.mxu0 0
        %2004 = vmatpush2.bf16.msra.mxu0 0
        %2005 = vmatprep.subr.bf16.mxu0 0
        %2006 = vmatpush2.bf16.msra.mxu0 0
        %2007 = vmatprep.subr.bf16.mxu0 0
        %2008 = vmatpush2.bf16.msra.mxu0 0
        %2009 = vmatprep.subr.bf16.mxu0 0
        %2010 = vmatpush2.bf16.msra.mxu0 0
        %2011 = vmatprep.subr.bf16.mxu0 0
        %2012 = vmatpush2.bf16.msra.mxu0 0
        %2013 = vmatprep.subr.bf16.mxu0 0
        %2014 = vmatpush2.bf16.msra.mxu0 0
        %2015 = vmatprep.subr.bf16.mxu0 0
        %2016 = vmatpush2.bf16.msra.mxu0 0
        %2017 = vmatprep.subr.bf16.mxu0 0
        %2018 = vmatpush2.bf16.msra.mxu0 0
        %2019 = vmatprep.mubr.bf16.mxu0 0
        %2020 = vmatmul.mubr.bf16.gmra.mxu0 %v1976
        %v2021 = vpop.f32.mrf.mxu0
        %v2022 = vadd.f32 0.0, %v2021
        %v2023 = vpop.f32.mrf.mxu0
        %v2024 = vadd.f32 0.0, %v2023
        %v2025 = vpop.f32.mrf.mxu0
        %v2026 = vpop.f32.mrf.mxu0
        %2027 = vdwg.mxu0
        %2028 = vmatprep.subr.bf16.mxu0 0
        %2029 = vmatpush1.bf16.msra.mxu0 0
        %2030 = vmatprep.subr.bf16.mxu0 0
        %2031 = vmatpush1.bf16.msra.mxu0 0
        %2032 = vmatprep.subr.bf16.mxu0 0
        %2033 = vmatpush1.bf16.msra.mxu0 0
        %2034 = vmatprep.subr.bf16.mxu0 0
        %2035 = vmatpush1.bf16.msra.mxu0 0
        %2036 = vmatprep.subr.bf16.mxu0 0
        %2037 = vmatpush1.bf16.msra.mxu0 0
        %2038 = vmatprep.subr.bf16.mxu0 0
        %2039 = vmatpush1.bf16.msra.mxu0 0
        %2040 = vmatprep.subr.bf16.mxu0 0
        %2041 = vmatpush1.bf16.msra.mxu0 0
        %2042 = vmatprep.subr.bf16.mxu0 0
        %2043 = vmatpush1.bf16.msra.mxu0 %v1985
        %2044 = vmatprep.subr.bf16.mxu0 0
        %2045 = vmatpush2.bf16.msra.mxu0 0
        %2046 = vmatprep.subr.bf16.mxu0 0
        %2047 = vmatpush2.bf16.msra.mxu0 0
        %2048 = vmatprep.subr.bf16.mxu0 0
        %2049 = vmatpush2.bf16.msra.mxu0 0
        %2050 = vmatprep.subr.bf16.mxu0 0
        %2051 = vmatpush2.bf16.msra.mxu0 0
        %2052 = vmatprep.subr.bf16.mxu0 0
        %2053 = vmatpush2.bf16.msra.mxu0 0
        %2054 = vmatprep.subr.bf16.mxu0 0
        %2055 = vmatpush2.bf16.msra.mxu0 0
        %2056 = vmatprep.subr.bf16.mxu0 0
        %2057 = vmatpush2.bf16.msra.mxu0 0
        %2058 = vmatprep.subr.bf16.mxu0 0
        %2059 = vmatpush2.bf16.msra.mxu0 0
        %2060 = vmatprep.mubr.bf16.mxu0 0
        %2061 = vmatmul.mubr.bf16.gmra.mxu0 %v1976
        %v2062 = vpop.f32.mrf.mxu0
        %v2063 = vadd.f32 0.0, %v2062
        %v2064 = vpop.f32.mrf.mxu0
        %v2065 = vpop.f32.mrf.mxu0
        %v2066 = vpop.f32.mrf.mxu0
        %2067 = vdwg.mxu0
        %v2068 = vadd.f32 %v1960, %v2022
        %v2069 = vadd.f32 %v1961, %v2024
        %v2070 = vadd.f32 %v1962, %v2063
        %v2071 = vld [vmem:[%s1067] sm:$0xf]
        %2072 = vrot.lane.b32.xlu0 %v1216, 90
        %v2073 = vpop.permute.xlu0 %2072
        %2074 = vrot.lane.b32.xlu0 %v1217, 90
        %v2075 = vpop.permute.xlu0 %2074
        %2076 = vrot.lane.b32.xlu0 %v1218, 90
        %v2077 = vpop.permute.xlu0 %2076
        %2078 = vrot.lane.b32.xlu0 %v1219, 90
        %v2079 = vpop.permute.xlu0 %2078
        %v2080 = vsel %vm1077, %v2073, %v2075
        %v2081 = vsel %vm1077, %v2075, %v2077
        %v2082 = vsel %vm1077, %v2077, %v2079
        %v2084 = vsel %vm214, %v2071, 0
        %v2087 = vsel %vm218, %v2080, 0
        %v2090 = vsel %vm218, %v2081, 0
        %v2093 = vsel %vm218, %v2082, 0
        %2095 = vmatprep.subr.bf16.mxu0 0
        %2096 = vmatpush1.bf16.msra.mxu0 0
        %2097 = vmatprep.subr.bf16.mxu0 0
        %2098 = vmatpush1.bf16.msra.mxu0 0
        %2099 = vmatprep.subr.bf16.mxu0 0
        %2100 = vmatpush1.bf16.msra.mxu0 0
        %2101 = vmatprep.subr.bf16.mxu0 0
        %2102 = vmatpush1.bf16.msra.mxu0 0
        %2103 = vmatprep.subr.bf16.mxu0 0
        %2104 = vmatpush1.bf16.msra.mxu0 0
        %2105 = vmatprep.subr.bf16.mxu0 0
        %2106 = vmatpush1.bf16.msra.mxu0 0
        %2107 = vmatprep.subr.bf16.mxu0 0
        %2108 = vmatpush1.bf16.msra.mxu0 0
        %2109 = vmatprep.subr.bf16.mxu0 %v2090
        %2110 = vmatpush1.bf16.msra.mxu0 %v2087
        %2111 = vmatprep.subr.bf16.mxu0 0
        %2112 = vmatpush2.bf16.msra.mxu0 0
        %2113 = vmatprep.subr.bf16.mxu0 0
        %2114 = vmatpush2.bf16.msra.mxu0 0
        %2115 = vmatprep.subr.bf16.mxu0 0
        %2116 = vmatpush2.bf16.msra.mxu0 0
        %2117 = vmatprep.subr.bf16.mxu0 0
        %2118 = vmatpush2.bf16.msra.mxu0 0
        %2119 = vmatprep.subr.bf16.mxu0 0
        %2120 = vmatpush2.bf16.msra.mxu0 0
        %2121 = vmatprep.subr.bf16.mxu0 0
        %2122 = vmatpush2.bf16.msra.mxu0 0
        %2123 = vmatprep.subr.bf16.mxu0 0
        %2124 = vmatpush2.bf16.msra.mxu0 0
        %2125 = vmatprep.subr.bf16.mxu0 0
        %2126 = vmatpush2.bf16.msra.mxu0 0
        %2127 = vmatprep.mubr.bf16.mxu0 0
        %2128 = vmatmul.mubr.bf16.gmra.mxu0 %v2084
        %v2129 = vpop.f32.mrf.mxu0
        %v2130 = vadd.f32 0.0, %v2129
        %v2131 = vpop.f32.mrf.mxu0
        %v2132 = vadd.f32 0.0, %v2131
        %v2133 = vpop.f32.mrf.mxu0
        %v2134 = vpop.f32.mrf.mxu0
        %2135 = vdwg.mxu0
        %2136 = vmatprep.subr.bf16.mxu0 0
        %2137 = vmatpush1.bf16.msra.mxu0 0
        %2138 = vmatprep.subr.bf16.mxu0 0
        %2139 = vmatpush1.bf16.msra.mxu0 0
        %2140 = vmatprep.subr.bf16.mxu0 0
        %2141 = vmatpush1.bf16.msra.mxu0 0
        %2142 = vmatprep.subr.bf16.mxu0 0
        %2143 = vmatpush1.bf16.msra.mxu0 0
        %2144 = vmatprep.subr.bf16.mxu0 0
        %2145 = vmatpush1.bf16.msra.mxu0 0
        %2146 = vmatprep.subr.bf16.mxu0 0
        %2147 = vmatpush1.bf16.msra.mxu0 0
        %2148 = vmatprep.subr.bf16.mxu0 0
        %2149 = vmatpush1.bf16.msra.mxu0 0
        %2150 = vmatprep.subr.bf16.mxu0 0
        %2151 = vmatpush1.bf16.msra.mxu0 %v2093
        %2152 = vmatprep.subr.bf16.mxu0 0
        %2153 = vmatpush2.bf16.msra.mxu0 0
        %2154 = vmatprep.subr.bf16.mxu0 0
        %2155 = vmatpush2.bf16.msra.mxu0 0
        %2156 = vmatprep.subr.bf16.mxu0 0
        %2157 = vmatpush2.bf16.msra.mxu0 0
        %2158 = vmatprep.subr.bf16.mxu0 0
        %2159 = vmatpush2.bf16.msra.mxu0 0
        %2160 = vmatprep.subr.bf16.mxu0 0
        %2161 = vmatpush2.bf16.msra.mxu0 0
        %2162 = vmatprep.subr.bf16.mxu0 0
        %2163 = vmatpush2.bf16.msra.mxu0 0
        %2164 = vmatprep.subr.bf16.mxu0 0
        %2165 = vmatpush2.bf16.msra.mxu0 0
        %2166 = vmatprep.subr.bf16.mxu0 0
        %2167 = vmatpush2.bf16.msra.mxu0 0
        %2168 = vmatprep.mubr.bf16.mxu0 0
        %2169 = vmatmul.mubr.bf16.gmra.mxu0 %v2084
        %v2170 = vpop.f32.mrf.mxu0
        %v2171 = vadd.f32 0.0, %v2170
        %v2172 = vpop.f32.mrf.mxu0
        %v2173 = vpop.f32.mrf.mxu0
        %v2174 = vpop.f32.mrf.mxu0
        %2175 = vdwg.mxu0
        %v2176 = vadd.f32 %v2068, %v2130
        %v2177 = vadd.f32 %v2069, %v2132
        %v2178 = vadd.f32 %v2070, %v2171
        %v2179 = vld [vmem:[%s2] sm:$0xff]
        %2181 = vset.pattern.permute.xlu0 0
        %2182 = vperm.xlu0 %2181, %v2179
        %v2183 = vpop.permute.xlu0 %2182
        %v2185 = vadd.f32 %v2176, %v2183
        %v2186 = vadd.f32 %v2177, %v2183
        %v2187 = vadd.f32 %v2178, %v2183
        %v2188 = vmax.f32 %v2185, 0.0
        %v2189 = vmax.f32 %v2186, 0.0
        %v2190 = vmax.f32 %v2187, 0.0
        %2191 = vst [vmem:[%s151 + $0x18] sm:$0xff] %v2188
        %2192 = vst [vmem:[%s151 + $0x20] sm:$0xff] %v2189
        %2193 = vst [vmem:[%s151 + $0x28] sm:$0xff] %v2190
        %v2194 = vld [vmem:[#allocation2 + $0x10] sm:$0xff]
        %v2195 = vld [vmem:[#allocation2 + $0x18] sm:$0xf]
        %v2196 = vld [vmem:[#allocation2 + $0x20] sm:$0x33]
        %v2197 = vld [vmem:[#allocation2 + $0x28] sm:$0x3]
        %v2198 = vld [vmem:[#allocation4] sm:$0xf]
        %v2199 = vld [vmem:[#allocation2 + $0x18] sm:$0xff]
        %v2200 = vld [vmem:[#allocation2 + $0x28] sm:$0x33]
        %v2201 = vld [vmem:[%s184] sm:$0xf]
        %v2206 = vunpack.c.l.b16 %v2194
        %v2207 = vunpack.c.h.b16 %v2194
        %v2208 = vunpack.c.l.b16 %v2199
        %v2209 = vunpack.c.h.b16 %v2199
        %v2210 = vunpack.c.l.b16 %v2196
        %v2211 = vunpack.c.h.b16 %v2196
        %v2212 = vunpack.c.l.b16 %v2200
        %v2213 = vunpack.c.h.b16 %v2200
        %v2214 = vpack.c.b16 %v2210, %v2206
        %v2215 = vpack.c.b16 %v2211, %v2207
        %v2216 = vpack.c.b16 %v2212, %v2208
        %v2217 = vpack.c.b16 %v2213, %v2209
        %2218 = vrot.lane.b32.xlu0 %v2214, 127
        %v2219 = vpop.permute.xlu0 %2218
        %2220 = vrot.lane.b32.xlu0 %v2215, 127
        %v2221 = vpop.permute.xlu0 %2220
        %2222 = vrot.lane.b32.xlu0 %v2216, 127
        %v2223 = vpop.permute.xlu0 %2222
        %2224 = vrot.lane.b32.xlu0 %v2217, 127
        %v2225 = vpop.permute.xlu0 %2224
        %v2226 = vsel %vm210, %v2219, %v2221
        %v2227 = vsel %vm210, %v2221, %v2223
        %v2228 = vsel %vm210, %v2223, %v2225
        %v2230 = vsel %vm214, %v2201, 0
        %v2233 = vsel %vm218, %v2226, 0
        %v2236 = vsel %vm218, %v2227, 0
        %v2239 = vsel %vm218, %v2228, 0
        %2241 = vmatprep.subr.bf16.mxu0 0
        %2242 = vmatpush1.bf16.msra.mxu0 0
        %2243 = vmatprep.subr.bf16.mxu0 0
        %2244 = vmatpush1.bf16.msra.mxu0 0
        %2245 = vmatprep.subr.bf16.mxu0 0
        %2246 = vmatpush1.bf16.msra.mxu0 0
        %2247 = vmatprep.subr.bf16.mxu0 0
        %2248 = vmatpush1.bf16.msra.mxu0 0
        %2249 = vmatprep.subr.bf16.mxu0 0
        %2250 = vmatpush1.bf16.msra.mxu0 0
        %2251 = vmatprep.subr.bf16.mxu0 0
        %2252 = vmatpush1.bf16.msra.mxu0 0
        %2253 = vmatprep.subr.bf16.mxu0 0
        %2254 = vmatpush1.bf16.msra.mxu0 0
        %2255 = vmatprep.subr.bf16.mxu0 %v2236
        %2256 = vmatpush1.bf16.msra.mxu0 %v2233
        %2257 = vmatprep.subr.bf16.mxu0 0
        %2258 = vmatpush2.bf16.msra.mxu0 0
        %2259 = vmatprep.subr.bf16.mxu0 0
        %2260 = vmatpush2.bf16.msra.mxu0 0
        %2261 = vmatprep.subr.bf16.mxu0 0
        %2262 = vmatpush2.bf16.msra.mxu0 0
        %2263 = vmatprep.subr.bf16.mxu0 0
        %2264 = vmatpush2.bf16.msra.mxu0 0
        %2265 = vmatprep.subr.bf16.mxu0 0
        %2266 = vmatpush2.bf16.msra.mxu0 0
        %2267 = vmatprep.subr.bf16.mxu0 0
        %2268 = vmatpush2.bf16.msra.mxu0 0
        %2269 = vmatprep.subr.bf16.mxu0 0
        %2270 = vmatpush2.bf16.msra.mxu0 0
        %2271 = vmatprep.subr.bf16.mxu0 0
        %2272 = vmatpush2.bf16.msra.mxu0 0
        %2273 = vmatprep.mubr.bf16.mxu0 0
        %2274 = vmatmul.mubr.bf16.gmra.mxu0 %v2230
        %v2275 = vpop.f32.mrf.mxu0
        %v2276 = vadd.f32 0.0, %v2275
        %v2277 = vpop.f32.mrf.mxu0
        %v2278 = vadd.f32 0.0, %v2277
        %v2279 = vpop.f32.mrf.mxu0
        %v2280 = vpop.f32.mrf.mxu0
        %2281 = vdwg.mxu0
        %2282 = vmatprep.subr.bf16.mxu0 0
        %2283 = vmatpush1.bf16.msra.mxu0 0
        %2284 = vmatprep.subr.bf16.mxu0 0
        %2285 = vmatpush1.bf16.msra.mxu0 0
        %2286 = vmatprep.subr.bf16.mxu0 0
        %2287 = vmatpush1.bf16.msra.mxu0 0
        %2288 = vmatprep.subr.bf16.mxu0 0
        %2289 = vmatpush1.bf16.msra.mxu0 0
        %2290 = vmatprep.subr.bf16.mxu0 0
        %2291 = vmatpush1.bf16.msra.mxu0 0
        %2292 = vmatprep.subr.bf16.mxu0 0
        %2293 = vmatpush1.bf16.msra.mxu0 0
        %2294 = vmatprep.subr.bf16.mxu0 0
        %2295 = vmatpush1.bf16.msra.mxu0 0
        %2296 = vmatprep.subr.bf16.mxu0 0
        %2297 = vmatpush1.bf16.msra.mxu0 %v2239
        %2298 = vmatprep.subr.bf16.mxu0 0
        %2299 = vmatpush2.bf16.msra.mxu0 0
        %2300 = vmatprep.subr.bf16.mxu0 0
        %2301 = vmatpush2.bf16.msra.mxu0 0
        %2302 = vmatprep.subr.bf16.mxu0 0
        %2303 = vmatpush2.bf16.msra.mxu0 0
        %2304 = vmatprep.subr.bf16.mxu0 0
        %2305 = vmatpush2.bf16.msra.mxu0 0
        %2306 = vmatprep.subr.bf16.mxu0 0
        %2307 = vmatpush2.bf16.msra.mxu0 0
        %2308 = vmatprep.subr.bf16.mxu0 0
        %2309 = vmatpush2.bf16.msra.mxu0 0
        %2310 = vmatprep.subr.bf16.mxu0 0
        %2311 = vmatpush2.bf16.msra.mxu0 0
        %2312 = vmatprep.subr.bf16.mxu0 0
        %2313 = vmatpush2.bf16.msra.mxu0 0
        %2314 = vmatprep.mubr.bf16.mxu0 0
        %2315 = vmatmul.mubr.bf16.gmra.mxu0 %v2230
        %v2316 = vpop.f32.mrf.mxu0
        %v2317 = vadd.f32 0.0, %v2316
        %v2318 = vpop.f32.mrf.mxu0
        %v2319 = vpop.f32.mrf.mxu0
        %v2320 = vpop.f32.mrf.mxu0
        %2321 = vdwg.mxu0
        %v2324 = vunpack.c.l.b16 %v2195
        %v2325 = vunpack.c.l.b16 %v2197
        %v2326 = vpack.c.b16 %v2325, %v2324
        %v2328 = vsel %vm214, %v2198, 0
        %v2331 = vsel %vm218, %v2214, 0
        %v2334 = vsel %vm218, %v2215, 0
        %v2337 = vsel %vm218, %v2326, 0
        %2339 = vmatprep.subr.bf16.mxu0 0
        %2340 = vmatpush1.bf16.msra.mxu0 0
        %2341 = vmatprep.subr.bf16.mxu0 0
        %2342 = vmatpush1.bf16.msra.mxu0 0
        %2343 = vmatprep.subr.bf16.mxu0 0
        %2344 = vmatpush1.bf16.msra.mxu0 0
        %2345 = vmatprep.subr.bf16.mxu0 0
        %2346 = vmatpush1.bf16.msra.mxu0 0
        %2347 = vmatprep.subr.bf16.mxu0 0
        %2348 = vmatpush1.bf16.msra.mxu0 0
        %2349 = vmatprep.subr.bf16.mxu0 0
        %2350 = vmatpush1.bf16.msra.mxu0 0
        %2351 = vmatprep.subr.bf16.mxu0 0
        %2352 = vmatpush1.bf16.msra.mxu0 0
        %2353 = vmatprep.subr.bf16.mxu0 %v2334
        %2354 = vmatpush1.bf16.msra.mxu0 %v2331
        %2355 = vmatprep.subr.bf16.mxu0 0
        %2356 = vmatpush2.bf16.msra.mxu0 0
        %2357 = vmatprep.subr.bf16.mxu0 0
        %2358 = vmatpush2.bf16.msra.mxu0 0
        %2359 = vmatprep.subr.bf16.mxu0 0
        %2360 = vmatpush2.bf16.msra.mxu0 0
        %2361 = vmatprep.subr.bf16.mxu0 0
        %2362 = vmatpush2.bf16.msra.mxu0 0
        %2363 = vmatprep.subr.bf16.mxu0 0
        %2364 = vmatpush2.bf16.msra.mxu0 0
        %2365 = vmatprep.subr.bf16.mxu0 0
        %2366 = vmatpush2.bf16.msra.mxu0 0
        %2367 = vmatprep.subr.bf16.mxu0 0
        %2368 = vmatpush2.bf16.msra.mxu0 0
        %2369 = vmatprep.subr.bf16.mxu0 0
        %2370 = vmatpush2.bf16.msra.mxu0 0
        %2371 = vmatprep.mubr.bf16.mxu0 0
        %2372 = vmatmul.mubr.bf16.gmra.mxu0 %v2328
        %v2373 = vpop.f32.mrf.mxu0
        %v2374 = vadd.f32 %v2276, %v2373
        %v2375 = vpop.f32.mrf.mxu0
        %v2376 = vadd.f32 %v2278, %v2375
        %v2377 = vpop.f32.mrf.mxu0
        %v2378 = vpop.f32.mrf.mxu0
        %2379 = vdwg.mxu0
        %2380 = vmatprep.subr.bf16.mxu0 0
        %2381 = vmatpush1.bf16.msra.mxu0 0
        %2382 = vmatprep.subr.bf16.mxu0 0
        %2383 = vmatpush1.bf16.msra.mxu0 0
        %2384 = vmatprep.subr.bf16.mxu0 0
        %2385 = vmatpush1.bf16.msra.mxu0 0
        %2386 = vmatprep.subr.bf16.mxu0 0
        %2387 = vmatpush1.bf16.msra.mxu0 0
        %2388 = vmatprep.subr.bf16.mxu0 0
        %2389 = vmatpush1.bf16.msra.mxu0 0
        %2390 = vmatprep.subr.bf16.mxu0 0
        %2391 = vmatpush1.bf16.msra.mxu0 0
        %2392 = vmatprep.subr.bf16.mxu0 0
        %2393 = vmatpush1.bf16.msra.mxu0 0
        %2394 = vmatprep.subr.bf16.mxu0 0
        %2395 = vmatpush1.bf16.msra.mxu0 %v2337
        %2396 = vmatprep.subr.bf16.mxu0 0
        %2397 = vmatpush2.bf16.msra.mxu0 0
        %2398 = vmatprep.subr.bf16.mxu0 0
        %2399 = vmatpush2.bf16.msra.mxu0 0
        %2400 = vmatprep.subr.bf16.mxu0 0
        %2401 = vmatpush2.bf16.msra.mxu0 0
        %2402 = vmatprep.subr.bf16.mxu0 0
        %2403 = vmatpush2.bf16.msra.mxu0 0
        %2404 = vmatprep.subr.bf16.mxu0 0
        %2405 = vmatpush2.bf16.msra.mxu0 0
        %2406 = vmatprep.subr.bf16.mxu0 0
        %2407 = vmatpush2.bf16.msra.mxu0 0
        %2408 = vmatprep.subr.bf16.mxu0 0
        %2409 = vmatpush2.bf16.msra.mxu0 0
        %2410 = vmatprep.subr.bf16.mxu0 0
        %2411 = vmatpush2.bf16.msra.mxu0 0
        %2412 = vmatprep.mubr.bf16.mxu0 0
        %2413 = vmatmul.mubr.bf16.gmra.mxu0 %v2328
        %v2414 = vpop.f32.mrf.mxu0
        %v2415 = vadd.f32 %v2317, %v2414
        %v2416 = vpop.f32.mrf.mxu0
        %v2417 = vpop.f32.mrf.mxu0
        %v2418 = vpop.f32.mrf.mxu0
        %2419 = vdwg.mxu0
        %v2420 = vld [vmem:[%s407] sm:$0xf]
        %2421 = vrot.lane.b32.xlu0 %v2214, 126
        %v2422 = vpop.permute.xlu0 %2421
        %2423 = vrot.lane.b32.xlu0 %v2215, 126
        %v2424 = vpop.permute.xlu0 %2423
        %2425 = vrot.lane.b32.xlu0 %v2216, 126
        %v2426 = vpop.permute.xlu0 %2425
        %2427 = vrot.lane.b32.xlu0 %v2217, 126
        %v2428 = vpop.permute.xlu0 %2427
        %v2429 = vsel %vm417, %v2422, %v2424
        %v2430 = vsel %vm417, %v2424, %v2426
        %v2431 = vsel %vm417, %v2426, %v2428
        %v2433 = vsel %vm214, %v2420, 0
        %v2436 = vsel %vm218, %v2429, 0
        %v2439 = vsel %vm218, %v2430, 0
        %v2442 = vsel %vm218, %v2431, 0
        %2444 = vmatprep.subr.bf16.mxu0 0
        %2445 = vmatpush1.bf16.msra.mxu0 0
        %2446 = vmatprep.subr.bf16.mxu0 0
        %2447 = vmatpush1.bf16.msra.mxu0 0
        %2448 = vmatprep.subr.bf16.mxu0 0
        %2449 = vmatpush1.bf16.msra.mxu0 0
        %2450 = vmatprep.subr.bf16.mxu0 0
        %2451 = vmatpush1.bf16.msra.mxu0 0
        %2452 = vmatprep.subr.bf16.mxu0 0
        %2453 = vmatpush1.bf16.msra.mxu0 0
        %2454 = vmatprep.subr.bf16.mxu0 0
        %2455 = vmatpush1.bf16.msra.mxu0 0
        %2456 = vmatprep.subr.bf16.mxu0 0
        %2457 = vmatpush1.bf16.msra.mxu0 0
        %2458 = vmatprep.subr.bf16.mxu0 %v2439
        %2459 = vmatpush1.bf16.msra.mxu0 %v2436
        %2460 = vmatprep.subr.bf16.mxu0 0
        %2461 = vmatpush2.bf16.msra.mxu0 0
        %2462 = vmatprep.subr.bf16.mxu0 0
        %2463 = vmatpush2.bf16.msra.mxu0 0
        %2464 = vmatprep.subr.bf16.mxu0 0
        %2465 = vmatpush2.bf16.msra.mxu0 0
        %2466 = vmatprep.subr.bf16.mxu0 0
        %2467 = vmatpush2.bf16.msra.mxu0 0
        %2468 = vmatprep.subr.bf16.mxu0 0
        %2469 = vmatpush2.bf16.msra.mxu0 0
        %2470 = vmatprep.subr.bf16.mxu0 0
        %2471 = vmatpush2.bf16.msra.mxu0 0
        %2472 = vmatprep.subr.bf16.mxu0 0
        %2473 = vmatpush2.bf16.msra.mxu0 0
        %2474 = vmatprep.subr.bf16.mxu0 0
        %2475 = vmatpush2.bf16.msra.mxu0 0
        %2476 = vmatprep.mubr.bf16.mxu0 0
        %2477 = vmatmul.mubr.bf16.gmra.mxu0 %v2433
        %v2478 = vpop.f32.mrf.mxu0
        %v2479 = vadd.f32 0.0, %v2478
        %v2480 = vpop.f32.mrf.mxu0
        %v2481 = vadd.f32 0.0, %v2480
        %v2482 = vpop.f32.mrf.mxu0
        %v2483 = vpop.f32.mrf.mxu0
        %2484 = vdwg.mxu0
        %2485 = vmatprep.subr.bf16.mxu0 0
        %2486 = vmatpush1.bf16.msra.mxu0 0
        %2487 = vmatprep.subr.bf16.mxu0 0
        %2488 = vmatpush1.bf16.msra.mxu0 0
        %2489 = vmatprep.subr.bf16.mxu0 0
        %2490 = vmatpush1.bf16.msra.mxu0 0
        %2491 = vmatprep.subr.bf16.mxu0 0
        %2492 = vmatpush1.bf16.msra.mxu0 0
        %2493 = vmatprep.subr.bf16.mxu0 0
        %2494 = vmatpush1.bf16.msra.mxu0 0
        %2495 = vmatprep.subr.bf16.mxu0 0
        %2496 = vmatpush1.bf16.msra.mxu0 0
        %2497 = vmatprep.subr.bf16.mxu0 0
        %2498 = vmatpush1.bf16.msra.mxu0 0
        %2499 = vmatprep.subr.bf16.mxu0 0
        %2500 = vmatpush1.bf16.msra.mxu0 %v2442
        %2501 = vmatprep.subr.bf16.mxu0 0
        %2502 = vmatpush2.bf16.msra.mxu0 0
        %2503 = vmatprep.subr.bf16.mxu0 0
        %2504 = vmatpush2.bf16.msra.mxu0 0
        %2505 = vmatprep.subr.bf16.mxu0 0
        %2506 = vmatpush2.bf16.msra.mxu0 0
        %2507 = vmatprep.subr.bf16.mxu0 0
        %2508 = vmatpush2.bf16.msra.mxu0 0
        %2509 = vmatprep.subr.bf16.mxu0 0
        %2510 = vmatpush2.bf16.msra.mxu0 0
        %2511 = vmatprep.subr.bf16.mxu0 0
        %2512 = vmatpush2.bf16.msra.mxu0 0
        %2513 = vmatprep.subr.bf16.mxu0 0
        %2514 = vmatpush2.bf16.msra.mxu0 0
        %2515 = vmatprep.subr.bf16.mxu0 0
        %2516 = vmatpush2.bf16.msra.mxu0 0
        %2517 = vmatprep.mubr.bf16.mxu0 0
        %2518 = vmatmul.mubr.bf16.gmra.mxu0 %v2433
        %v2519 = vpop.f32.mrf.mxu0
        %v2520 = vadd.f32 0.0, %v2519
        %v2521 = vpop.f32.mrf.mxu0
        %v2522 = vpop.f32.mrf.mxu0
        %v2523 = vpop.f32.mrf.mxu0
        %2524 = vdwg.mxu0
        %v2525 = vadd.f32 %v2374, %v2479
        %v2526 = vadd.f32 %v2376, %v2481
        %v2527 = vadd.f32 %v2415, %v2520
        %v2528 = vld [vmem:[%s517] sm:$0xf]
        %2529 = vrot.lane.b32.xlu0 %v2214, 110
        %v2530 = vpop.permute.xlu0 %2529
        %2531 = vrot.lane.b32.xlu0 %v2215, 110
        %v2532 = vpop.permute.xlu0 %2531
        %2533 = vrot.lane.b32.xlu0 %v2216, 110
        %v2534 = vpop.permute.xlu0 %2533
        %2535 = vrot.lane.b32.xlu0 %v2217, 110
        %v2536 = vpop.permute.xlu0 %2535
        %v2537 = vsel %vm527, %v2530, %v2532
        %v2538 = vsel %vm527, %v2532, %v2534
        %v2539 = vsel %vm527, %v2534, %v2536
        %v2541 = vsel %vm214, %v2528, 0
        %v2544 = vsel %vm218, %v2537, 0
        %v2547 = vsel %vm218, %v2538, 0
        %v2550 = vsel %vm218, %v2539, 0
        %2552 = vmatprep.subr.bf16.mxu0 0
        %2553 = vmatpush1.bf16.msra.mxu0 0
        %2554 = vmatprep.subr.bf16.mxu0 0
        %2555 = vmatpush1.bf16.msra.mxu0 0
        %2556 = vmatprep.subr.bf16.mxu0 0
        %2557 = vmatpush1.bf16.msra.mxu0 0
        %2558 = vmatprep.subr.bf16.mxu0 0
        %2559 = vmatpush1.bf16.msra.mxu0 0
        %2560 = vmatprep.subr.bf16.mxu0 0
        %2561 = vmatpush1.bf16.msra.mxu0 0
        %2562 = vmatprep.subr.bf16.mxu0 0
        %2563 = vmatpush1.bf16.msra.mxu0 0
        %2564 = vmatprep.subr.bf16.mxu0 0
        %2565 = vmatpush1.bf16.msra.mxu0 0
        %2566 = vmatprep.subr.bf16.mxu0 %v2547
        %2567 = vmatpush1.bf16.msra.mxu0 %v2544
        %2568 = vmatprep.subr.bf16.mxu0 0
        %2569 = vmatpush2.bf16.msra.mxu0 0
        %2570 = vmatprep.subr.bf16.mxu0 0
        %2571 = vmatpush2.bf16.msra.mxu0 0
        %2572 = vmatprep.subr.bf16.mxu0 0
        %2573 = vmatpush2.bf16.msra.mxu0 0
        %2574 = vmatprep.subr.bf16.mxu0 0
        %2575 = vmatpush2.bf16.msra.mxu0 0
        %2576 = vmatprep.subr.bf16.mxu0 0
        %2577 = vmatpush2.bf16.msra.mxu0 0
        %2578 = vmatprep.subr.bf16.mxu0 0
        %2579 = vmatpush2.bf16.msra.mxu0 0
        %2580 = vmatprep.subr.bf16.mxu0 0
        %2581 = vmatpush2.bf16.msra.mxu0 0
        %2582 = vmatprep.subr.bf16.mxu0 0
        %2583 = vmatpush2.bf16.msra.mxu0 0
        %2584 = vmatprep.mubr.bf16.mxu0 0
        %2585 = vmatmul.mubr.bf16.gmra.mxu0 %v2541
        %v2586 = vpop.f32.mrf.mxu0
        %v2587 = vadd.f32 0.0, %v2586
        %v2588 = vpop.f32.mrf.mxu0
        %v2589 = vadd.f32 0.0, %v2588
        %v2590 = vpop.f32.mrf.mxu0
        %v2591 = vpop.f32.mrf.mxu0
        %2592 = vdwg.mxu0
        %2593 = vmatprep.subr.bf16.mxu0 0
        %2594 = vmatpush1.bf16.msra.mxu0 0
        %2595 = vmatprep.subr.bf16.mxu0 0
        %2596 = vmatpush1.bf16.msra.mxu0 0
        %2597 = vmatprep.subr.bf16.mxu0 0
        %2598 = vmatpush1.bf16.msra.mxu0 0
        %2599 = vmatprep.subr.bf16.mxu0 0
        %2600 = vmatpush1.bf16.msra.mxu0 0
        %2601 = vmatprep.subr.bf16.mxu0 0
        %2602 = vmatpush1.bf16.msra.mxu0 0
        %2603 = vmatprep.subr.bf16.mxu0 0
        %2604 = vmatpush1.bf16.msra.mxu0 0
        %2605 = vmatprep.subr.bf16.mxu0 0
        %2606 = vmatpush1.bf16.msra.mxu0 0
        %2607 = vmatprep.subr.bf16.mxu0 0
        %2608 = vmatpush1.bf16.msra.mxu0 %v2550
        %2609 = vmatprep.subr.bf16.mxu0 0
        %2610 = vmatpush2.bf16.msra.mxu0 0
        %2611 = vmatprep.subr.bf16.mxu0 0
        %2612 = vmatpush2.bf16.msra.mxu0 0
        %2613 = vmatprep.subr.bf16.mxu0 0
        %2614 = vmatpush2.bf16.msra.mxu0 0
        %2615 = vmatprep.subr.bf16.mxu0 0
        %2616 = vmatpush2.bf16.msra.mxu0 0
        %2617 = vmatprep.subr.bf16.mxu0 0
        %2618 = vmatpush2.bf16.msra.mxu0 0
        %2619 = vmatprep.subr.bf16.mxu0 0
        %2620 = vmatpush2.bf16.msra.mxu0 0
        %2621 = vmatprep.subr.bf16.mxu0 0
        %2622 = vmatpush2.bf16.msra.mxu0 0
        %2623 = vmatprep.subr.bf16.mxu0 0
        %2624 = vmatpush2.bf16.msra.mxu0 0
        %2625 = vmatprep.mubr.bf16.mxu0 0
        %2626 = vmatmul.mubr.bf16.gmra.mxu0 %v2541
        %v2627 = vpop.f32.mrf.mxu0
        %v2628 = vadd.f32 0.0, %v2627
        %v2629 = vpop.f32.mrf.mxu0
        %v2630 = vpop.f32.mrf.mxu0
        %v2631 = vpop.f32.mrf.mxu0
        %2632 = vdwg.mxu0
        %v2633 = vadd.f32 %v2525, %v2587
        %v2634 = vadd.f32 %v2526, %v2589
        %v2635 = vadd.f32 %v2527, %v2628
        %v2636 = vld [vmem:[%s627] sm:$0xf]
        %2637 = vrot.lane.b32.xlu0 %v2214, 109
        %v2638 = vpop.permute.xlu0 %2637
        %2639 = vrot.lane.b32.xlu0 %v2215, 109
        %v2640 = vpop.permute.xlu0 %2639
        %2641 = vrot.lane.b32.xlu0 %v2216, 109
        %v2642 = vpop.permute.xlu0 %2641
        %2643 = vrot.lane.b32.xlu0 %v2217, 109
        %v2644 = vpop.permute.xlu0 %2643
        %v2645 = vsel %vm637, %v2638, %v2640
        %v2646 = vsel %vm637, %v2640, %v2642
        %v2647 = vsel %vm637, %v2642, %v2644
        %v2649 = vsel %vm214, %v2636, 0
        %v2652 = vsel %vm218, %v2645, 0
        %v2655 = vsel %vm218, %v2646, 0
        %v2658 = vsel %vm218, %v2647, 0
        %2660 = vmatprep.subr.bf16.mxu0 0
        %2661 = vmatpush1.bf16.msra.mxu0 0
        %2662 = vmatprep.subr.bf16.mxu0 0
        %2663 = vmatpush1.bf16.msra.mxu0 0
        %2664 = vmatprep.subr.bf16.mxu0 0
        %2665 = vmatpush1.bf16.msra.mxu0 0
        %2666 = vmatprep.subr.bf16.mxu0 0
        %2667 = vmatpush1.bf16.msra.mxu0 0
        %2668 = vmatprep.subr.bf16.mxu0 0
        %2669 = vmatpush1.bf16.msra.mxu0 0
        %2670 = vmatprep.subr.bf16.mxu0 0
        %2671 = vmatpush1.bf16.msra.mxu0 0
        %2672 = vmatprep.subr.bf16.mxu0 0
        %2673 = vmatpush1.bf16.msra.mxu0 0
        %2674 = vmatprep.subr.bf16.mxu0 %v2655
        %2675 = vmatpush1.bf16.msra.mxu0 %v2652
        %2676 = vmatprep.subr.bf16.mxu0 0
        %2677 = vmatpush2.bf16.msra.mxu0 0
        %2678 = vmatprep.subr.bf16.mxu0 0
        %2679 = vmatpush2.bf16.msra.mxu0 0
        %2680 = vmatprep.subr.bf16.mxu0 0
        %2681 = vmatpush2.bf16.msra.mxu0 0
        %2682 = vmatprep.subr.bf16.mxu0 0
        %2683 = vmatpush2.bf16.msra.mxu0 0
        %2684 = vmatprep.subr.bf16.mxu0 0
        %2685 = vmatpush2.bf16.msra.mxu0 0
        %2686 = vmatprep.subr.bf16.mxu0 0
        %2687 = vmatpush2.bf16.msra.mxu0 0
        %2688 = vmatprep.subr.bf16.mxu0 0
        %2689 = vmatpush2.bf16.msra.mxu0 0
        %2690 = vmatprep.subr.bf16.mxu0 0
        %2691 = vmatpush2.bf16.msra.mxu0 0
        %2692 = vmatprep.mubr.bf16.mxu0 0
        %2693 = vmatmul.mubr.bf16.gmra.mxu0 %v2649
        %v2694 = vpop.f32.mrf.mxu0
        %v2695 = vadd.f32 0.0, %v2694
        %v2696 = vpop.f32.mrf.mxu0
        %v2697 = vadd.f32 0.0, %v2696
        %v2698 = vpop.f32.mrf.mxu0
        %v2699 = vpop.f32.mrf.mxu0
        %2700 = vdwg.mxu0
        %2701 = vmatprep.subr.bf16.mxu0 0
        %2702 = vmatpush1.bf16.msra.mxu0 0
        %2703 = vmatprep.subr.bf16.mxu0 0
        %2704 = vmatpush1.bf16.msra.mxu0 0
        %2705 = vmatprep.subr.bf16.mxu0 0
        %2706 = vmatpush1.bf16.msra.mxu0 0
        %2707 = vmatprep.subr.bf16.mxu0 0
        %2708 = vmatpush1.bf16.msra.mxu0 0
        %2709 = vmatprep.subr.bf16.mxu0 0
        %2710 = vmatpush1.bf16.msra.mxu0 0
        %2711 = vmatprep.subr.bf16.mxu0 0
        %2712 = vmatpush1.bf16.msra.mxu0 0
        %2713 = vmatprep.subr.bf16.mxu0 0
        %2714 = vmatpush1.bf16.msra.mxu0 0
        %2715 = vmatprep.subr.bf16.mxu0 0
        %2716 = vmatpush1.bf16.msra.mxu0 %v2658
        %2717 = vmatprep.subr.bf16.mxu0 0
        %2718 = vmatpush2.bf16.msra.mxu0 0
        %2719 = vmatprep.subr.bf16.mxu0 0
        %2720 = vmatpush2.bf16.msra.mxu0 0
        %2721 = vmatprep.subr.bf16.mxu0 0
        %2722 = vmatpush2.bf16.msra.mxu0 0
        %2723 = vmatprep.subr.bf16.mxu0 0
        %2724 = vmatpush2.bf16.msra.mxu0 0
        %2725 = vmatprep.subr.bf16.mxu0 0
        %2726 = vmatpush2.bf16.msra.mxu0 0
        %2727 = vmatprep.subr.bf16.mxu0 0
        %2728 = vmatpush2.bf16.msra.mxu0 0
        %2729 = vmatprep.subr.bf16.mxu0 0
        %2730 = vmatpush2.bf16.msra.mxu0 0
        %2731 = vmatprep.subr.bf16.mxu0 0
        %2732 = vmatpush2.bf16.msra.mxu0 0
        %2733 = vmatprep.mubr.bf16.mxu0 0
        %2734 = vmatmul.mubr.bf16.gmra.mxu0 %v2649
        %v2735 = vpop.f32.mrf.mxu0
        %v2736 = vadd.f32 0.0, %v2735
        %v2737 = vpop.f32.mrf.mxu0
        %v2738 = vpop.f32.mrf.mxu0
        %v2739 = vpop.f32.mrf.mxu0
        %2740 = vdwg.mxu0
        %v2741 = vadd.f32 %v2633, %v2695
        %v2742 = vadd.f32 %v2634, %v2697
        %v2743 = vadd.f32 %v2635, %v2736
        %v2744 = vld [vmem:[%s737] sm:$0xf]
        %2745 = vrot.lane.b32.xlu0 %v2214, 108
        %v2746 = vpop.permute.xlu0 %2745
        %2747 = vrot.lane.b32.xlu0 %v2215, 108
        %v2748 = vpop.permute.xlu0 %2747
        %2749 = vrot.lane.b32.xlu0 %v2216, 108
        %v2750 = vpop.permute.xlu0 %2749
        %2751 = vrot.lane.b32.xlu0 %v2217, 108
        %v2752 = vpop.permute.xlu0 %2751
        %v2753 = vsel %vm747, %v2746, %v2748
        %v2754 = vsel %vm747, %v2748, %v2750
        %v2755 = vsel %vm747, %v2750, %v2752
        %v2757 = vsel %vm214, %v2744, 0
        %v2760 = vsel %vm218, %v2753, 0
        %v2763 = vsel %vm218, %v2754, 0
        %v2766 = vsel %vm218, %v2755, 0
        %2768 = vmatprep.subr.bf16.mxu0 0
        %2769 = vmatpush1.bf16.msra.mxu0 0
        %2770 = vmatprep.subr.bf16.mxu0 0
        %2771 = vmatpush1.bf16.msra.mxu0 0
        %2772 = vmatprep.subr.bf16.mxu0 0
        %2773 = vmatpush1.bf16.msra.mxu0 0
        %2774 = vmatprep.subr.bf16.mxu0 0
        %2775 = vmatpush1.bf16.msra.mxu0 0
        %2776 = vmatprep.subr.bf16.mxu0 0
        %2777 = vmatpush1.bf16.msra.mxu0 0
        %2778 = vmatprep.subr.bf16.mxu0 0
        %2779 = vmatpush1.bf16.msra.mxu0 0
        %2780 = vmatprep.subr.bf16.mxu0 0
        %2781 = vmatpush1.bf16.msra.mxu0 0
        %2782 = vmatprep.subr.bf16.mxu0 %v2763
        %2783 = vmatpush1.bf16.msra.mxu0 %v2760
        %2784 = vmatprep.subr.bf16.mxu0 0
        %2785 = vmatpush2.bf16.msra.mxu0 0
        %2786 = vmatprep.subr.bf16.mxu0 0
        %2787 = vmatpush2.bf16.msra.mxu0 0
        %2788 = vmatprep.subr.bf16.mxu0 0
        %2789 = vmatpush2.bf16.msra.mxu0 0
        %2790 = vmatprep.subr.bf16.mxu0 0
        %2791 = vmatpush2.bf16.msra.mxu0 0
        %2792 = vmatprep.subr.bf16.mxu0 0
        %2793 = vmatpush2.bf16.msra.mxu0 0
        %2794 = vmatprep.subr.bf16.mxu0 0
        %2795 = vmatpush2.bf16.msra.mxu0 0
        %2796 = vmatprep.subr.bf16.mxu0 0
        %2797 = vmatpush2.bf16.msra.mxu0 0
        %2798 = vmatprep.subr.bf16.mxu0 0
        %2799 = vmatpush2.bf16.msra.mxu0 0
        %2800 = vmatprep.mubr.bf16.mxu0 0
        %2801 = vmatmul.mubr.bf16.gmra.mxu0 %v2757
        %v2802 = vpop.f32.mrf.mxu0
        %v2803 = vadd.f32 0.0, %v2802
        %v2804 = vpop.f32.mrf.mxu0
        %v2805 = vadd.f32 0.0, %v2804
        %v2806 = vpop.f32.mrf.mxu0
        %v2807 = vpop.f32.mrf.mxu0
        %2808 = vdwg.mxu0
        %2809 = vmatprep.subr.bf16.mxu0 0
        %2810 = vmatpush1.bf16.msra.mxu0 0
        %2811 = vmatprep.subr.bf16.mxu0 0
        %2812 = vmatpush1.bf16.msra.mxu0 0
        %2813 = vmatprep.subr.bf16.mxu0 0
        %2814 = vmatpush1.bf16.msra.mxu0 0
        %2815 = vmatprep.subr.bf16.mxu0 0
        %2816 = vmatpush1.bf16.msra.mxu0 0
        %2817 = vmatprep.subr.bf16.mxu0 0
        %2818 = vmatpush1.bf16.msra.mxu0 0
        %2819 = vmatprep.subr.bf16.mxu0 0
        %2820 = vmatpush1.bf16.msra.mxu0 0
        %2821 = vmatprep.subr.bf16.mxu0 0
        %2822 = vmatpush1.bf16.msra.mxu0 0
        %2823 = vmatprep.subr.bf16.mxu0 0
        %2824 = vmatpush1.bf16.msra.mxu0 %v2766
        %2825 = vmatprep.subr.bf16.mxu0 0
        %2826 = vmatpush2.bf16.msra.mxu0 0
        %2827 = vmatprep.subr.bf16.mxu0 0
        %2828 = vmatpush2.bf16.msra.mxu0 0
        %2829 = vmatprep.subr.bf16.mxu0 0
        %2830 = vmatpush2.bf16.msra.mxu0 0
        %2831 = vmatprep.subr.bf16.mxu0 0
        %2832 = vmatpush2.bf16.msra.mxu0 0
        %2833 = vmatprep.subr.bf16.mxu0 0
        %2834 = vmatpush2.bf16.msra.mxu0 0
        %2835 = vmatprep.subr.bf16.mxu0 0
        %2836 = vmatpush2.bf16.msra.mxu0 0
        %2837 = vmatprep.subr.bf16.mxu0 0
        %2838 = vmatpush2.bf16.msra.mxu0 0
        %2839 = vmatprep.subr.bf16.mxu0 0
        %2840 = vmatpush2.bf16.msra.mxu0 0
        %2841 = vmatprep.mubr.bf16.mxu0 0
        %2842 = vmatmul.mubr.bf16.gmra.mxu0 %v2757
        %v2843 = vpop.f32.mrf.mxu0
        %v2844 = vadd.f32 0.0, %v2843
        %v2845 = vpop.f32.mrf.mxu0
        %v2846 = vpop.f32.mrf.mxu0
        %v2847 = vpop.f32.mrf.mxu0
        %2848 = vdwg.mxu0
        %v2849 = vadd.f32 %v2741, %v2803
        %v2850 = vadd.f32 %v2742, %v2805
        %v2851 = vadd.f32 %v2743, %v2844
        %v2852 = vld [vmem:[%s847] sm:$0xf]
        %2853 = vrot.lane.b32.xlu0 %v2214, 92
        %v2854 = vpop.permute.xlu0 %2853
        %2855 = vrot.lane.b32.xlu0 %v2215, 92
        %v2856 = vpop.permute.xlu0 %2855
        %2857 = vrot.lane.b32.xlu0 %v2216, 92
        %v2858 = vpop.permute.xlu0 %2857
        %2859 = vrot.lane.b32.xlu0 %v2217, 92
        %v2860 = vpop.permute.xlu0 %2859
        %v2861 = vsel %vm857, %v2854, %v2856
        %v2862 = vsel %vm857, %v2856, %v2858
        %v2863 = vsel %vm857, %v2858, %v2860
        %v2865 = vsel %vm214, %v2852, 0
        %v2868 = vsel %vm218, %v2861, 0
        %v2871 = vsel %vm218, %v2862, 0
        %v2874 = vsel %vm218, %v2863, 0
        %2876 = vmatprep.subr.bf16.mxu0 0
        %2877 = vmatpush1.bf16.msra.mxu0 0
        %2878 = vmatprep.subr.bf16.mxu0 0
        %2879 = vmatpush1.bf16.msra.mxu0 0
        %2880 = vmatprep.subr.bf16.mxu0 0
        %2881 = vmatpush1.bf16.msra.mxu0 0
        %2882 = vmatprep.subr.bf16.mxu0 0
        %2883 = vmatpush1.bf16.msra.mxu0 0
        %2884 = vmatprep.subr.bf16.mxu0 0
        %2885 = vmatpush1.bf16.msra.mxu0 0
        %2886 = vmatprep.subr.bf16.mxu0 0
        %2887 = vmatpush1.bf16.msra.mxu0 0
        %2888 = vmatprep.subr.bf16.mxu0 0
        %2889 = vmatpush1.bf16.msra.mxu0 0
        %2890 = vmatprep.subr.bf16.mxu0 %v2871
        %2891 = vmatpush1.bf16.msra.mxu0 %v2868
        %2892 = vmatprep.subr.bf16.mxu0 0
        %2893 = vmatpush2.bf16.msra.mxu0 0
        %2894 = vmatprep.subr.bf16.mxu0 0
        %2895 = vmatpush2.bf16.msra.mxu0 0
        %2896 = vmatprep.subr.bf16.mxu0 0
        %2897 = vmatpush2.bf16.msra.mxu0 0
        %2898 = vmatprep.subr.bf16.mxu0 0
        %2899 = vmatpush2.bf16.msra.mxu0 0
        %2900 = vmatprep.subr.bf16.mxu0 0
        %2901 = vmatpush2.bf16.msra.mxu0 0
        %2902 = vmatprep.subr.bf16.mxu0 0
        %2903 = vmatpush2.bf16.msra.mxu0 0
        %2904 = vmatprep.subr.bf16.mxu0 0
        %2905 = vmatpush2.bf16.msra.mxu0 0
        %2906 = vmatprep.subr.bf16.mxu0 0
        %2907 = vmatpush2.bf16.msra.mxu0 0
        %2908 = vmatprep.mubr.bf16.mxu0 0
        %2909 = vmatmul.mubr.bf16.gmra.mxu0 %v2865
        %v2910 = vpop.f32.mrf.mxu0
        %v2911 = vadd.f32 0.0, %v2910
        %v2912 = vpop.f32.mrf.mxu0
        %v2913 = vadd.f32 0.0, %v2912
        %v2914 = vpop.f32.mrf.mxu0
        %v2915 = vpop.f32.mrf.mxu0
        %2916 = vdwg.mxu0
        %2917 = vmatprep.subr.bf16.mxu0 0
        %2918 = vmatpush1.bf16.msra.mxu0 0
        %2919 = vmatprep.subr.bf16.mxu0 0
        %2920 = vmatpush1.bf16.msra.mxu0 0
        %2921 = vmatprep.subr.bf16.mxu0 0
        %2922 = vmatpush1.bf16.msra.mxu0 0
        %2923 = vmatprep.subr.bf16.mxu0 0
        %2924 = vmatpush1.bf16.msra.mxu0 0
        %2925 = vmatprep.subr.bf16.mxu0 0
        %2926 = vmatpush1.bf16.msra.mxu0 0
        %2927 = vmatprep.subr.bf16.mxu0 0
        %2928 = vmatpush1.bf16.msra.mxu0 0
        %2929 = vmatprep.subr.bf16.mxu0 0
        %2930 = vmatpush1.bf16.msra.mxu0 0
        %2931 = vmatprep.subr.bf16.mxu0 0
        %2932 = vmatpush1.bf16.msra.mxu0 %v2874
        %2933 = vmatprep.subr.bf16.mxu0 0
        %2934 = vmatpush2.bf16.msra.mxu0 0
        %2935 = vmatprep.subr.bf16.mxu0 0
        %2936 = vmatpush2.bf16.msra.mxu0 0
        %2937 = vmatprep.subr.bf16.mxu0 0
        %2938 = vmatpush2.bf16.msra.mxu0 0
        %2939 = vmatprep.subr.bf16.mxu0 0
        %2940 = vmatpush2.bf16.msra.mxu0 0
        %2941 = vmatprep.subr.bf16.mxu0 0
        %2942 = vmatpush2.bf16.msra.mxu0 0
        %2943 = vmatprep.subr.bf16.mxu0 0
        %2944 = vmatpush2.bf16.msra.mxu0 0
        %2945 = vmatprep.subr.bf16.mxu0 0
        %2946 = vmatpush2.bf16.msra.mxu0 0
        %2947 = vmatprep.subr.bf16.mxu0 0
        %2948 = vmatpush2.bf16.msra.mxu0 0
        %2949 = vmatprep.mubr.bf16.mxu0 0
        %2950 = vmatmul.mubr.bf16.gmra.mxu0 %v2865
        %v2951 = vpop.f32.mrf.mxu0
        %v2952 = vadd.f32 0.0, %v2951
        %v2953 = vpop.f32.mrf.mxu0
        %v2954 = vpop.f32.mrf.mxu0
        %v2955 = vpop.f32.mrf.mxu0
        %2956 = vdwg.mxu0
        %v2957 = vadd.f32 %v2849, %v2911
        %v2958 = vadd.f32 %v2850, %v2913
        %v2959 = vadd.f32 %v2851, %v2952
        %v2960 = vld [vmem:[%s957] sm:$0xf]
        %2961 = vrot.lane.b32.xlu0 %v2214, 91
        %v2962 = vpop.permute.xlu0 %2961
        %2963 = vrot.lane.b32.xlu0 %v2215, 91
        %v2964 = vpop.permute.xlu0 %2963
        %2965 = vrot.lane.b32.xlu0 %v2216, 91
        %v2966 = vpop.permute.xlu0 %2965
        %2967 = vrot.lane.b32.xlu0 %v2217, 91
        %v2968 = vpop.permute.xlu0 %2967
        %v2969 = vsel %vm967, %v2962, %v2964
        %v2970 = vsel %vm967, %v2964, %v2966
        %v2971 = vsel %vm967, %v2966, %v2968
        %v2973 = vsel %vm214, %v2960, 0
        %v2976 = vsel %vm218, %v2969, 0
        %v2979 = vsel %vm218, %v2970, 0
        %v2982 = vsel %vm218, %v2971, 0
        %2984 = vmatprep.subr.bf16.mxu0 0
        %2985 = vmatpush1.bf16.msra.mxu0 0
        %2986 = vmatprep.subr.bf16.mxu0 0
        %2987 = vmatpush1.bf16.msra.mxu0 0
        %2988 = vmatprep.subr.bf16.mxu0 0
        %2989 = vmatpush1.bf16.msra.mxu0 0
        %2990 = vmatprep.subr.bf16.mxu0 0
        %2991 = vmatpush1.bf16.msra.mxu0 0
        %2992 = vmatprep.subr.bf16.mxu0 0
        %2993 = vmatpush1.bf16.msra.mxu0 0
        %2994 = vmatprep.subr.bf16.mxu0 0
        %2995 = vmatpush1.bf16.msra.mxu0 0
        %2996 = vmatprep.subr.bf16.mxu0 0
        %2997 = vmatpush1.bf16.msra.mxu0 0
        %2998 = vmatprep.subr.bf16.mxu0 %v2979
        %2999 = vmatpush1.bf16.msra.mxu0 %v2976
        %3000 = vmatprep.subr.bf16.mxu0 0
        %3001 = vmatpush2.bf16.msra.mxu0 0
        %3002 = vmatprep.subr.bf16.mxu0 0
        %3003 = vmatpush2.bf16.msra.mxu0 0
        %3004 = vmatprep.subr.bf16.mxu0 0
        %3005 = vmatpush2.bf16.msra.mxu0 0
        %3006 = vmatprep.subr.bf16.mxu0 0
        %3007 = vmatpush2.bf16.msra.mxu0 0
        %3008 = vmatprep.subr.bf16.mxu0 0
        %3009 = vmatpush2.bf16.msra.mxu0 0
        %3010 = vmatprep.subr.bf16.mxu0 0
        %3011 = vmatpush2.bf16.msra.mxu0 0
        %3012 = vmatprep.subr.bf16.mxu0 0
        %3013 = vmatpush2.bf16.msra.mxu0 0
        %3014 = vmatprep.subr.bf16.mxu0 0
        %3015 = vmatpush2.bf16.msra.mxu0 0
        %3016 = vmatprep.mubr.bf16.mxu0 0
        %3017 = vmatmul.mubr.bf16.gmra.mxu0 %v2973
        %v3018 = vpop.f32.mrf.mxu0
        %v3019 = vadd.f32 0.0, %v3018
        %v3020 = vpop.f32.mrf.mxu0
        %v3021 = vadd.f32 0.0, %v3020
        %v3022 = vpop.f32.mrf.mxu0
        %v3023 = vpop.f32.mrf.mxu0
        %3024 = vdwg.mxu0
        %3025 = vmatprep.subr.bf16.mxu0 0
        %3026 = vmatpush1.bf16.msra.mxu0 0
        %3027 = vmatprep.subr.bf16.mxu0 0
        %3028 = vmatpush1.bf16.msra.mxu0 0
        %3029 = vmatprep.subr.bf16.mxu0 0
        %3030 = vmatpush1.bf16.msra.mxu0 0
        %3031 = vmatprep.subr.bf16.mxu0 0
        %3032 = vmatpush1.bf16.msra.mxu0 0
        %3033 = vmatprep.subr.bf16.mxu0 0
        %3034 = vmatpush1.bf16.msra.mxu0 0
        %3035 = vmatprep.subr.bf16.mxu0 0
        %3036 = vmatpush1.bf16.msra.mxu0 0
        %3037 = vmatprep.subr.bf16.mxu0 0
        %3038 = vmatpush1.bf16.msra.mxu0 0
        %3039 = vmatprep.subr.bf16.mxu0 0
        %3040 = vmatpush1.bf16.msra.mxu0 %v2982
        %3041 = vmatprep.subr.bf16.mxu0 0
        %3042 = vmatpush2.bf16.msra.mxu0 0
        %3043 = vmatprep.subr.bf16.mxu0 0
        %3044 = vmatpush2.bf16.msra.mxu0 0
        %3045 = vmatprep.subr.bf16.mxu0 0
        %3046 = vmatpush2.bf16.msra.mxu0 0
        %3047 = vmatprep.subr.bf16.mxu0 0
        %3048 = vmatpush2.bf16.msra.mxu0 0
        %3049 = vmatprep.subr.bf16.mxu0 0
        %3050 = vmatpush2.bf16.msra.mxu0 0
        %3051 = vmatprep.subr.bf16.mxu0 0
        %3052 = vmatpush2.bf16.msra.mxu0 0
        %3053 = vmatprep.subr.bf16.mxu0 0
        %3054 = vmatpush2.bf16.msra.mxu0 0
        %3055 = vmatprep.subr.bf16.mxu0 0
        %3056 = vmatpush2.bf16.msra.mxu0 0
        %3057 = vmatprep.mubr.bf16.mxu0 0
        %3058 = vmatmul.mubr.bf16.gmra.mxu0 %v2973
        %v3059 = vpop.f32.mrf.mxu0
        %v3060 = vadd.f32 0.0, %v3059
        %v3061 = vpop.f32.mrf.mxu0
        %v3062 = vpop.f32.mrf.mxu0
        %v3063 = vpop.f32.mrf.mxu0
        %3064 = vdwg.mxu0
        %v3065 = vadd.f32 %v2957, %v3019
        %v3066 = vadd.f32 %v2958, %v3021
        %v3067 = vadd.f32 %v2959, %v3060
        %v3068 = vld [vmem:[%s1067] sm:$0xf]
        %3069 = vrot.lane.b32.xlu0 %v2214, 90
        %v3070 = vpop.permute.xlu0 %3069
        %3071 = vrot.lane.b32.xlu0 %v2215, 90
        %v3072 = vpop.permute.xlu0 %3071
        %3073 = vrot.lane.b32.xlu0 %v2216, 90
        %v3074 = vpop.permute.xlu0 %3073
        %3075 = vrot.lane.b32.xlu0 %v2217, 90
        %v3076 = vpop.permute.xlu0 %3075
        %v3077 = vsel %vm1077, %v3070, %v3072
        %v3078 = vsel %vm1077, %v3072, %v3074
        %v3079 = vsel %vm1077, %v3074, %v3076
        %v3081 = vsel %vm214, %v3068, 0
        %v3084 = vsel %vm218, %v3077, 0
        %v3087 = vsel %vm218, %v3078, 0
        %v3090 = vsel %vm218, %v3079, 0
        %3092 = vmatprep.subr.bf16.mxu0 0
        %3093 = vmatpush1.bf16.msra.mxu0 0
        %3094 = vmatprep.subr.bf16.mxu0 0
        %3095 = vmatpush1.bf16.msra.mxu0 0
        %3096 = vmatprep.subr.bf16.mxu0 0
        %3097 = vmatpush1.bf16.msra.mxu0 0
        %3098 = vmatprep.subr.bf16.mxu0 0
        %3099 = vmatpush1.bf16.msra.mxu0 0
        %3100 = vmatprep.subr.bf16.mxu0 0
        %3101 = vmatpush1.bf16.msra.mxu0 0
        %3102 = vmatprep.subr.bf16.mxu0 0
        %3103 = vmatpush1.bf16.msra.mxu0 0
        %3104 = vmatprep.subr.bf16.mxu0 0
        %3105 = vmatpush1.bf16.msra.mxu0 0
        %3106 = vmatprep.subr.bf16.mxu0 %v3087
        %3107 = vmatpush1.bf16.msra.mxu0 %v3084
        %3108 = vmatprep.subr.bf16.mxu0 0
        %3109 = vmatpush2.bf16.msra.mxu0 0
        %3110 = vmatprep.subr.bf16.mxu0 0
        %3111 = vmatpush2.bf16.msra.mxu0 0
        %3112 = vmatprep.subr.bf16.mxu0 0
        %3113 = vmatpush2.bf16.msra.mxu0 0
        %3114 = vmatprep.subr.bf16.mxu0 0
        %3115 = vmatpush2.bf16.msra.mxu0 0
        %3116 = vmatprep.subr.bf16.mxu0 0
        %3117 = vmatpush2.bf16.msra.mxu0 0
        %3118 = vmatprep.subr.bf16.mxu0 0
        %3119 = vmatpush2.bf16.msra.mxu0 0
        %3120 = vmatprep.subr.bf16.mxu0 0
        %3121 = vmatpush2.bf16.msra.mxu0 0
        %3122 = vmatprep.subr.bf16.mxu0 0
        %3123 = vmatpush2.bf16.msra.mxu0 0
        %3124 = vmatprep.mubr.bf16.mxu0 0
        %3125 = vmatmul.mubr.bf16.gmra.mxu0 %v3081
        %v3126 = vpop.f32.mrf.mxu0
        %v3127 = vadd.f32 0.0, %v3126
        %v3128 = vpop.f32.mrf.mxu0
        %v3129 = vadd.f32 0.0, %v3128
        %v3130 = vpop.f32.mrf.mxu0
        %v3131 = vpop.f32.mrf.mxu0
        %3132 = vdwg.mxu0
        %3133 = vmatprep.subr.bf16.mxu0 0
        %3134 = vmatpush1.bf16.msra.mxu0 0
        %3135 = vmatprep.subr.bf16.mxu0 0
        %3136 = vmatpush1.bf16.msra.mxu0 0
        %3137 = vmatprep.subr.bf16.mxu0 0
        %3138 = vmatpush1.bf16.msra.mxu0 0
        %3139 = vmatprep.subr.bf16.mxu0 0
        %3140 = vmatpush1.bf16.msra.mxu0 0
        %3141 = vmatprep.subr.bf16.mxu0 0
        %3142 = vmatpush1.bf16.msra.mxu0 0
        %3143 = vmatprep.subr.bf16.mxu0 0
        %3144 = vmatpush1.bf16.msra.mxu0 0
        %3145 = vmatprep.subr.bf16.mxu0 0
        %3146 = vmatpush1.bf16.msra.mxu0 0
        %3147 = vmatprep.subr.bf16.mxu0 0
        %3148 = vmatpush1.bf16.msra.mxu0 %v3090
        %3149 = vmatprep.subr.bf16.mxu0 0
        %3150 = vmatpush2.bf16.msra.mxu0 0
        %3151 = vmatprep.subr.bf16.mxu0 0
        %3152 = vmatpush2.bf16.msra.mxu0 0
        %3153 = vmatprep.subr.bf16.mxu0 0
        %3154 = vmatpush2.bf16.msra.mxu0 0
        %3155 = vmatprep.subr.bf16.mxu0 0
        %3156 = vmatpush2.bf16.msra.mxu0 0
        %3157 = vmatprep.subr.bf16.mxu0 0
        %3158 = vmatpush2.bf16.msra.mxu0 0
        %3159 = vmatprep.subr.bf16.mxu0 0
        %3160 = vmatpush2.bf16.msra.mxu0 0
        %3161 = vmatprep.subr.bf16.mxu0 0
        %3162 = vmatpush2.bf16.msra.mxu0 0
        %3163 = vmatprep.subr.bf16.mxu0 0
        %3164 = vmatpush2.bf16.msra.mxu0 0
        %3165 = vmatprep.mubr.bf16.mxu0 0
        %3166 = vmatmul.mubr.bf16.gmra.mxu0 %v3081
        %v3167 = vpop.f32.mrf.mxu0
        %v3168 = vadd.f32 0.0, %v3167
        %v3169 = vpop.f32.mrf.mxu0
        %v3170 = vpop.f32.mrf.mxu0
        %v3171 = vpop.f32.mrf.mxu0
        %3172 = vdwg.mxu0
        %v3173 = vadd.f32 %v3065, %v3127
        %v3174 = vadd.f32 %v3066, %v3129
        %v3175 = vadd.f32 %v3067, %v3168
        %v3176 = vld [vmem:[%s2] sm:$0xff]
        %3178 = vset.pattern.permute.xlu0 0
        %3179 = vperm.xlu0 %3178, %v3176
        %v3180 = vpop.permute.xlu0 %3179
        %v3182 = vadd.f32 %v3173, %v3180
        %v3183 = vadd.f32 %v3174, %v3180
        %v3184 = vadd.f32 %v3175, %v3180
        %v3185 = vmax.f32 %v3182, 0.0
        %v3186 = vmax.f32 %v3183, 0.0
        %v3187 = vmax.f32 %v3184, 0.0
        %3188 = vst [vmem:[%s151 + $0x30] sm:$0xff] %v3185
        %3189 = vst [vmem:[%s151 + $0x38] sm:$0xff] %v3186
        %3190 = vst [vmem:[%s151 + $0x40] sm:$0xff] %v3187
        %v3191 = vld [vmem:[#allocation2 + $0x10] sm:$0xcc]
        %v3192 = vld [vmem:[#allocation2 + $0x18] sm:$0xc]
        %v3193 = vld [vmem:[#allocation2 + $0x20] sm:$0xff]
        %v3194 = vld [vmem:[#allocation2 + $0x28] sm:$0xf]
        %v3195 = vld [vmem:[#allocation4] sm:$0xf]
        %v3196 = vld [vmem:[#allocation2 + $0x18] sm:$0xcc]
        %v3197 = vld [vmem:[#allocation2 + $0x28] sm:$0xff]
        %v3198 = vld [vmem:[%s184] sm:$0xf]
        %v3203 = vunpack.c.l.b16 %v3191
        %v3204 = vunpack.c.h.b16 %v3191
        %v3205 = vunpack.c.l.b16 %v3196
        %v3206 = vunpack.c.h.b16 %v3196
        %v3207 = vunpack.c.l.b16 %v3193
        %v3208 = vunpack.c.h.b16 %v3193
        %v3209 = vunpack.c.l.b16 %v3197
        %v3210 = vunpack.c.h.b16 %v3197
        %v3211 = vpack.c.b16 %v3207, %v3203
        %v3212 = vpack.c.b16 %v3208, %v3204
        %v3213 = vpack.c.b16 %v3209, %v3205
        %v3214 = vpack.c.b16 %v3210, %v3206
        %v3215 = vrot.slane %v3211, 2
        %v3216 = vrot.slane %v3212, 2
        %v3217 = vrot.slane %v3213, 2
        %v3218 = vrot.slane %v3214, 2
        %3219 = vrot.lane.b32.xlu0 %v3215, 127
        %v3220 = vpop.permute.xlu0 %3219
        %3221 = vrot.lane.b32.xlu0 %v3216, 127
        %v3222 = vpop.permute.xlu0 %3221
        %3223 = vrot.lane.b32.xlu0 %v3217, 127
        %v3224 = vpop.permute.xlu0 %3223
        %3225 = vrot.lane.b32.xlu0 %v3218, 127
        %v3226 = vpop.permute.xlu0 %3225
        %v3227 = vsel %vm210, %v3220, %v3222
        %v3228 = vsel %vm210, %v3222, %v3224
        %v3229 = vsel %vm210, %v3224, %v3226
        %v3231 = vsel %vm214, %v3198, 0
        %v3234 = vsel %vm218, %v3227, 0
        %v3237 = vsel %vm218, %v3228, 0
        %v3240 = vsel %vm218, %v3229, 0
        %3242 = vmatprep.subr.bf16.mxu0 0
        %3243 = vmatpush1.bf16.msra.mxu0 0
        %3244 = vmatprep.subr.bf16.mxu0 0
        %3245 = vmatpush1.bf16.msra.mxu0 0
        %3246 = vmatprep.subr.bf16.mxu0 0
        %3247 = vmatpush1.bf16.msra.mxu0 0
        %3248 = vmatprep.subr.bf16.mxu0 0
        %3249 = vmatpush1.bf16.msra.mxu0 0
        %3250 = vmatprep.subr.bf16.mxu0 0
        %3251 = vmatpush1.bf16.msra.mxu0 0
        %3252 = vmatprep.subr.bf16.mxu0 0
        %3253 = vmatpush1.bf16.msra.mxu0 0
        %3254 = vmatprep.subr.bf16.mxu0 0
        %3255 = vmatpush1.bf16.msra.mxu0 0
        %3256 = vmatprep.subr.bf16.mxu0 %v3237
        %3257 = vmatpush1.bf16.msra.mxu0 %v3234
        %3258 = vmatprep.subr.bf16.mxu0 0
        %3259 = vmatpush2.bf16.msra.mxu0 0
        %3260 = vmatprep.subr.bf16.mxu0 0
        %3261 = vmatpush2.bf16.msra.mxu0 0
        %3262 = vmatprep.subr.bf16.mxu0 0
        %3263 = vmatpush2.bf16.msra.mxu0 0
        %3264 = vmatprep.subr.bf16.mxu0 0
        %3265 = vmatpush2.bf16.msra.mxu0 0
        %3266 = vmatprep.subr.bf16.mxu0 0
        %3267 = vmatpush2.bf16.msra.mxu0 0
        %3268 = vmatprep.subr.bf16.mxu0 0
        %3269 = vmatpush2.bf16.msra.mxu0 0
        %3270 = vmatprep.subr.bf16.mxu0 0
        %3271 = vmatpush2.bf16.msra.mxu0 0
        %3272 = vmatprep.subr.bf16.mxu0 0
        %3273 = vmatpush2.bf16.msra.mxu0 0
        %3274 = vmatprep.mubr.bf16.mxu0 0
        %3275 = vmatmul.mubr.bf16.gmra.mxu0 %v3231
        %v3276 = vpop.f32.mrf.mxu0
        %v3277 = vadd.f32 0.0, %v3276
        %v3278 = vpop.f32.mrf.mxu0
        %v3279 = vadd.f32 0.0, %v3278
        %v3280 = vpop.f32.mrf.mxu0
        %v3281 = vpop.f32.mrf.mxu0
        %3282 = vdwg.mxu0
        %3283 = vmatprep.subr.bf16.mxu0 0
        %3284 = vmatpush1.bf16.msra.mxu0 0
        %3285 = vmatprep.subr.bf16.mxu0 0
        %3286 = vmatpush1.bf16.msra.mxu0 0
        %3287 = vmatprep.subr.bf16.mxu0 0
        %3288 = vmatpush1.bf16.msra.mxu0 0
        %3289 = vmatprep.subr.bf16.mxu0 0
        %3290 = vmatpush1.bf16.msra.mxu0 0
        %3291 = vmatprep.subr.bf16.mxu0 0
        %3292 = vmatpush1.bf16.msra.mxu0 0
        %3293 = vmatprep.subr.bf16.mxu0 0
        %3294 = vmatpush1.bf16.msra.mxu0 0
        %3295 = vmatprep.subr.bf16.mxu0 0
        %3296 = vmatpush1.bf16.msra.mxu0 0
        %3297 = vmatprep.subr.bf16.mxu0 0
        %3298 = vmatpush1.bf16.msra.mxu0 %v3240
        %3299 = vmatprep.subr.bf16.mxu0 0
        %3300 = vmatpush2.bf16.msra.mxu0 0
        %3301 = vmatprep.subr.bf16.mxu0 0
        %3302 = vmatpush2.bf16.msra.mxu0 0
        %3303 = vmatprep.subr.bf16.mxu0 0
        %3304 = vmatpush2.bf16.msra.mxu0 0
        %3305 = vmatprep.subr.bf16.mxu0 0
        %3306 = vmatpush2.bf16.msra.mxu0 0
        %3307 = vmatprep.subr.bf16.mxu0 0
        %3308 = vmatpush2.bf16.msra.mxu0 0
        %3309 = vmatprep.subr.bf16.mxu0 0
        %3310 = vmatpush2.bf16.msra.mxu0 0
        %3311 = vmatprep.subr.bf16.mxu0 0
        %3312 = vmatpush2.bf16.msra.mxu0 0
        %3313 = vmatprep.subr.bf16.mxu0 0
        %3314 = vmatpush2.bf16.msra.mxu0 0
        %3315 = vmatprep.mubr.bf16.mxu0 0
        %3316 = vmatmul.mubr.bf16.gmra.mxu0 %v3231
        %v3317 = vpop.f32.mrf.mxu0
        %v3318 = vadd.f32 0.0, %v3317
        %v3319 = vpop.f32.mrf.mxu0
        %v3320 = vpop.f32.mrf.mxu0
        %v3321 = vpop.f32.mrf.mxu0
        %3322 = vdwg.mxu0
        %v3325 = vunpack.c.l.b16 %v3192
        %v3326 = vunpack.c.l.b16 %v3194
        %v3327 = vpack.c.b16 %v3326, %v3325
        %v3328 = vrot.slane %v3327, 2
        %v3330 = vsel %vm214, %v3195, 0
        %v3333 = vsel %vm218, %v3215, 0
        %v3336 = vsel %vm218, %v3216, 0
        %v3339 = vsel %vm218, %v3328, 0
        %3341 = vmatprep.subr.bf16.mxu0 0
        %3342 = vmatpush1.bf16.msra.mxu0 0
        %3343 = vmatprep.subr.bf16.mxu0 0
        %3344 = vmatpush1.bf16.msra.mxu0 0
        %3345 = vmatprep.subr.bf16.mxu0 0
        %3346 = vmatpush1.bf16.msra.mxu0 0
        %3347 = vmatprep.subr.bf16.mxu0 0
        %3348 = vmatpush1.bf16.msra.mxu0 0
        %3349 = vmatprep.subr.bf16.mxu0 0
        %3350 = vmatpush1.bf16.msra.mxu0 0
        %3351 = vmatprep.subr.bf16.mxu0 0
        %3352 = vmatpush1.bf16.msra.mxu0 0
        %3353 = vmatprep.subr.bf16.mxu0 0
        %3354 = vmatpush1.bf16.msra.mxu0 0
        %3355 = vmatprep.subr.bf16.mxu0 %v3336
        %3356 = vmatpush1.bf16.msra.mxu0 %v3333
        %3357 = vmatprep.subr.bf16.mxu0 0
        %3358 = vmatpush2.bf16.msra.mxu0 0
        %3359 = vmatprep.subr.bf16.mxu0 0
        %3360 = vmatpush2.bf16.msra.mxu0 0
        %3361 = vmatprep.subr.bf16.mxu0 0
        %3362 = vmatpush2.bf16.msra.mxu0 0
        %3363 = vmatprep.subr.bf16.mxu0 0
        %3364 = vmatpush2.bf16.msra.mxu0 0
        %3365 = vmatprep.subr.bf16.mxu0 0
        %3366 = vmatpush2.bf16.msra.mxu0 0
        %3367 = vmatprep.subr.bf16.mxu0 0
        %3368 = vmatpush2.bf16.msra.mxu0 0
        %3369 = vmatprep.subr.bf16.mxu0 0
        %3370 = vmatpush2.bf16.msra.mxu0 0
        %3371 = vmatprep.subr.bf16.mxu0 0
        %3372 = vmatpush2.bf16.msra.mxu0 0
        %3373 = vmatprep.mubr.bf16.mxu0 0
        %3374 = vmatmul.mubr.bf16.gmra.mxu0 %v3330
        %v3375 = vpop.f32.mrf.mxu0
        %v3376 = vadd.f32 %v3277, %v3375
        %v3377 = vpop.f32.mrf.mxu0
        %v3378 = vadd.f32 %v3279, %v3377
        %v3379 = vpop.f32.mrf.mxu0
        %v3380 = vpop.f32.mrf.mxu0
        %3381 = vdwg.mxu0
        %3382 = vmatprep.subr.bf16.mxu0 0
        %3383 = vmatpush1.bf16.msra.mxu0 0
        %3384 = vmatprep.subr.bf16.mxu0 0
        %3385 = vmatpush1.bf16.msra.mxu0 0
        %3386 = vmatprep.subr.bf16.mxu0 0
        %3387 = vmatpush1.bf16.msra.mxu0 0
        %3388 = vmatprep.subr.bf16.mxu0 0
        %3389 = vmatpush1.bf16.msra.mxu0 0
        %3390 = vmatprep.subr.bf16.mxu0 0
        %3391 = vmatpush1.bf16.msra.mxu0 0
        %3392 = vmatprep.subr.bf16.mxu0 0
        %3393 = vmatpush1.bf16.msra.mxu0 0
        %3394 = vmatprep.subr.bf16.mxu0 0
        %3395 = vmatpush1.bf16.msra.mxu0 0
        %3396 = vmatprep.subr.bf16.mxu0 0
        %3397 = vmatpush1.bf16.msra.mxu0 %v3339
        %3398 = vmatprep.subr.bf16.mxu0 0
        %3399 = vmatpush2.bf16.msra.mxu0 0
        %3400 = vmatprep.subr.bf16.mxu0 0
        %3401 = vmatpush2.bf16.msra.mxu0 0
        %3402 = vmatprep.subr.bf16.mxu0 0
        %3403 = vmatpush2.bf16.msra.mxu0 0
        %3404 = vmatprep.subr.bf16.mxu0 0
        %3405 = vmatpush2.bf16.msra.mxu0 0
        %3406 = vmatprep.subr.bf16.mxu0 0
        %3407 = vmatpush2.bf16.msra.mxu0 0
        %3408 = vmatprep.subr.bf16.mxu0 0
        %3409 = vmatpush2.bf16.msra.mxu0 0
        %3410 = vmatprep.subr.bf16.mxu0 0
        %3411 = vmatpush2.bf16.msra.mxu0 0
        %3412 = vmatprep.subr.bf16.mxu0 0
        %3413 = vmatpush2.bf16.msra.mxu0 0
        %3414 = vmatprep.mubr.bf16.mxu0 0
        %3415 = vmatmul.mubr.bf16.gmra.mxu0 %v3330
        %v3416 = vpop.f32.mrf.mxu0
        %v3417 = vadd.f32 %v3318, %v3416
        %v3418 = vpop.f32.mrf.mxu0
        %v3419 = vpop.f32.mrf.mxu0
        %v3420 = vpop.f32.mrf.mxu0
        %3421 = vdwg.mxu0
        %v3422 = vld [vmem:[%s407] sm:$0xf]
        %3423 = vrot.lane.b32.xlu0 %v3215, 126
        %v3424 = vpop.permute.xlu0 %3423
        %3425 = vrot.lane.b32.xlu0 %v3216, 126
        %v3426 = vpop.permute.xlu0 %3425
        %3427 = vrot.lane.b32.xlu0 %v3217, 126
        %v3428 = vpop.permute.xlu0 %3427
        %3429 = vrot.lane.b32.xlu0 %v3218, 126
        %v3430 = vpop.permute.xlu0 %3429
        %v3431 = vsel %vm417, %v3424, %v3426
        %v3432 = vsel %vm417, %v3426, %v3428
        %v3433 = vsel %vm417, %v3428, %v3430
        %v3435 = vsel %vm214, %v3422, 0
        %v3438 = vsel %vm218, %v3431, 0
        %v3441 = vsel %vm218, %v3432, 0
        %v3444 = vsel %vm218, %v3433, 0
        %3446 = vmatprep.subr.bf16.mxu0 0
        %3447 = vmatpush1.bf16.msra.mxu0 0
        %3448 = vmatprep.subr.bf16.mxu0 0
        %3449 = vmatpush1.bf16.msra.mxu0 0
        %3450 = vmatprep.subr.bf16.mxu0 0
        %3451 = vmatpush1.bf16.msra.mxu0 0
        %3452 = vmatprep.subr.bf16.mxu0 0
        %3453 = vmatpush1.bf16.msra.mxu0 0
        %3454 = vmatprep.subr.bf16.mxu0 0
        %3455 = vmatpush1.bf16.msra.mxu0 0
        %3456 = vmatprep.subr.bf16.mxu0 0
        %3457 = vmatpush1.bf16.msra.mxu0 0
        %3458 = vmatprep.subr.bf16.mxu0 0
        %3459 = vmatpush1.bf16.msra.mxu0 0
        %3460 = vmatprep.subr.bf16.mxu0 %v3441
        %3461 = vmatpush1.bf16.msra.mxu0 %v3438
        %3462 = vmatprep.subr.bf16.mxu0 0
        %3463 = vmatpush2.bf16.msra.mxu0 0
        %3464 = vmatprep.subr.bf16.mxu0 0
        %3465 = vmatpush2.bf16.msra.mxu0 0
        %3466 = vmatprep.subr.bf16.mxu0 0
        %3467 = vmatpush2.bf16.msra.mxu0 0
        %3468 = vmatprep.subr.bf16.mxu0 0
        %3469 = vmatpush2.bf16.msra.mxu0 0
        %3470 = vmatprep.subr.bf16.mxu0 0
        %3471 = vmatpush2.bf16.msra.mxu0 0
        %3472 = vmatprep.subr.bf16.mxu0 0
        %3473 = vmatpush2.bf16.msra.mxu0 0
        %3474 = vmatprep.subr.bf16.mxu0 0
        %3475 = vmatpush2.bf16.msra.mxu0 0
        %3476 = vmatprep.subr.bf16.mxu0 0
        %3477 = vmatpush2.bf16.msra.mxu0 0
        %3478 = vmatprep.mubr.bf16.mxu0 0
        %3479 = vmatmul.mubr.bf16.gmra.mxu0 %v3435
        %v3480 = vpop.f32.mrf.mxu0
        %v3481 = vadd.f32 0.0, %v3480
        %v3482 = vpop.f32.mrf.mxu0
        %v3483 = vadd.f32 0.0, %v3482
        %v3484 = vpop.f32.mrf.mxu0
        %v3485 = vpop.f32.mrf.mxu0
        %3486 = vdwg.mxu0
        %3487 = vmatprep.subr.bf16.mxu0 0
        %3488 = vmatpush1.bf16.msra.mxu0 0
        %3489 = vmatprep.subr.bf16.mxu0 0
        %3490 = vmatpush1.bf16.msra.mxu0 0
        %3491 = vmatprep.subr.bf16.mxu0 0
        %3492 = vmatpush1.bf16.msra.mxu0 0
        %3493 = vmatprep.subr.bf16.mxu0 0
        %3494 = vmatpush1.bf16.msra.mxu0 0
        %3495 = vmatprep.subr.bf16.mxu0 0
        %3496 = vmatpush1.bf16.msra.mxu0 0
        %3497 = vmatprep.subr.bf16.mxu0 0
        %3498 = vmatpush1.bf16.msra.mxu0 0
        %3499 = vmatprep.subr.bf16.mxu0 0
        %3500 = vmatpush1.bf16.msra.mxu0 0
        %3501 = vmatprep.subr.bf16.mxu0 0
        %3502 = vmatpush1.bf16.msra.mxu0 %v3444
        %3503 = vmatprep.subr.bf16.mxu0 0
        %3504 = vmatpush2.bf16.msra.mxu0 0
        %3505 = vmatprep.subr.bf16.mxu0 0
        %3506 = vmatpush2.bf16.msra.mxu0 0
        %3507 = vmatprep.subr.bf16.mxu0 0
        %3508 = vmatpush2.bf16.msra.mxu0 0
        %3509 = vmatprep.subr.bf16.mxu0 0
        %3510 = vmatpush2.bf16.msra.mxu0 0
        %3511 = vmatprep.subr.bf16.mxu0 0
        %3512 = vmatpush2.bf16.msra.mxu0 0
        %3513 = vmatprep.subr.bf16.mxu0 0
        %3514 = vmatpush2.bf16.msra.mxu0 0
        %3515 = vmatprep.subr.bf16.mxu0 0
        %3516 = vmatpush2.bf16.msra.mxu0 0
        %3517 = vmatprep.subr.bf16.mxu0 0
        %3518 = vmatpush2.bf16.msra.mxu0 0
        %3519 = vmatprep.mubr.bf16.mxu0 0
        %3520 = vmatmul.mubr.bf16.gmra.mxu0 %v3435
        %v3521 = vpop.f32.mrf.mxu0
        %v3522 = vadd.f32 0.0, %v3521
        %v3523 = vpop.f32.mrf.mxu0
        %v3524 = vpop.f32.mrf.mxu0
        %v3525 = vpop.f32.mrf.mxu0
        %3526 = vdwg.mxu0
        %v3527 = vadd.f32 %v3376, %v3481
        %v3528 = vadd.f32 %v3378, %v3483
        %v3529 = vadd.f32 %v3417, %v3522
        %v3530 = vld [vmem:[%s517] sm:$0xf]
        %3531 = vrot.lane.b32.xlu0 %v3215, 110
        %v3532 = vpop.permute.xlu0 %3531
        %3533 = vrot.lane.b32.xlu0 %v3216, 110
        %v3534 = vpop.permute.xlu0 %3533
        %3535 = vrot.lane.b32.xlu0 %v3217, 110
        %v3536 = vpop.permute.xlu0 %3535
        %3537 = vrot.lane.b32.xlu0 %v3218, 110
        %v3538 = vpop.permute.xlu0 %3537
        %v3539 = vsel %vm527, %v3532, %v3534
        %v3540 = vsel %vm527, %v3534, %v3536
        %v3541 = vsel %vm527, %v3536, %v3538
        %v3543 = vsel %vm214, %v3530, 0
        %v3546 = vsel %vm218, %v3539, 0
        %v3549 = vsel %vm218, %v3540, 0
        %v3552 = vsel %vm218, %v3541, 0
        %3554 = vmatprep.subr.bf16.mxu0 0
        %3555 = vmatpush1.bf16.msra.mxu0 0
        %3556 = vmatprep.subr.bf16.mxu0 0
        %3557 = vmatpush1.bf16.msra.mxu0 0
        %3558 = vmatprep.subr.bf16.mxu0 0
        %3559 = vmatpush1.bf16.msra.mxu0 0
        %3560 = vmatprep.subr.bf16.mxu0 0
        %3561 = vmatpush1.bf16.msra.mxu0 0
        %3562 = vmatprep.subr.bf16.mxu0 0
        %3563 = vmatpush1.bf16.msra.mxu0 0
        %3564 = vmatprep.subr.bf16.mxu0 0
        %3565 = vmatpush1.bf16.msra.mxu0 0
        %3566 = vmatprep.subr.bf16.mxu0 0
        %3567 = vmatpush1.bf16.msra.mxu0 0
        %3568 = vmatprep.subr.bf16.mxu0 %v3549
        %3569 = vmatpush1.bf16.msra.mxu0 %v3546
        %3570 = vmatprep.subr.bf16.mxu0 0
        %3571 = vmatpush2.bf16.msra.mxu0 0
        %3572 = vmatprep.subr.bf16.mxu0 0
        %3573 = vmatpush2.bf16.msra.mxu0 0
        %3574 = vmatprep.subr.bf16.mxu0 0
        %3575 = vmatpush2.bf16.msra.mxu0 0
        %3576 = vmatprep.subr.bf16.mxu0 0
        %3577 = vmatpush2.bf16.msra.mxu0 0
        %3578 = vmatprep.subr.bf16.mxu0 0
        %3579 = vmatpush2.bf16.msra.mxu0 0
        %3580 = vmatprep.subr.bf16.mxu0 0
        %3581 = vmatpush2.bf16.msra.mxu0 0
        %3582 = vmatprep.subr.bf16.mxu0 0
        %3583 = vmatpush2.bf16.msra.mxu0 0
        %3584 = vmatprep.subr.bf16.mxu0 0
        %3585 = vmatpush2.bf16.msra.mxu0 0
        %3586 = vmatprep.mubr.bf16.mxu0 0
        %3587 = vmatmul.mubr.bf16.gmra.mxu0 %v3543
        %v3588 = vpop.f32.mrf.mxu0
        %v3589 = vadd.f32 0.0, %v3588
        %v3590 = vpop.f32.mrf.mxu0
        %v3591 = vadd.f32 0.0, %v3590
        %v3592 = vpop.f32.mrf.mxu0
        %v3593 = vpop.f32.mrf.mxu0
        %3594 = vdwg.mxu0
        %3595 = vmatprep.subr.bf16.mxu0 0
        %3596 = vmatpush1.bf16.msra.mxu0 0
        %3597 = vmatprep.subr.bf16.mxu0 0
        %3598 = vmatpush1.bf16.msra.mxu0 0
        %3599 = vmatprep.subr.bf16.mxu0 0
        %3600 = vmatpush1.bf16.msra.mxu0 0
        %3601 = vmatprep.subr.bf16.mxu0 0
        %3602 = vmatpush1.bf16.msra.mxu0 0
        %3603 = vmatprep.subr.bf16.mxu0 0
        %3604 = vmatpush1.bf16.msra.mxu0 0
        %3605 = vmatprep.subr.bf16.mxu0 0
        %3606 = vmatpush1.bf16.msra.mxu0 0
        %3607 = vmatprep.subr.bf16.mxu0 0
        %3608 = vmatpush1.bf16.msra.mxu0 0
        %3609 = vmatprep.subr.bf16.mxu0 0
        %3610 = vmatpush1.bf16.msra.mxu0 %v3552
        %3611 = vmatprep.subr.bf16.mxu0 0
        %3612 = vmatpush2.bf16.msra.mxu0 0
        %3613 = vmatprep.subr.bf16.mxu0 0
        %3614 = vmatpush2.bf16.msra.mxu0 0
        %3615 = vmatprep.subr.bf16.mxu0 0
        %3616 = vmatpush2.bf16.msra.mxu0 0
        %3617 = vmatprep.subr.bf16.mxu0 0
        %3618 = vmatpush2.bf16.msra.mxu0 0
        %3619 = vmatprep.subr.bf16.mxu0 0
        %3620 = vmatpush2.bf16.msra.mxu0 0
        %3621 = vmatprep.subr.bf16.mxu0 0
        %3622 = vmatpush2.bf16.msra.mxu0 0
        %3623 = vmatprep.subr.bf16.mxu0 0
        %3624 = vmatpush2.bf16.msra.mxu0 0
        %3625 = vmatprep.subr.bf16.mxu0 0
        %3626 = vmatpush2.bf16.msra.mxu0 0
        %3627 = vmatprep.mubr.bf16.mxu0 0
        %3628 = vmatmul.mubr.bf16.gmra.mxu0 %v3543
        %v3629 = vpop.f32.mrf.mxu0
        %v3630 = vadd.f32 0.0, %v3629
        %v3631 = vpop.f32.mrf.mxu0
        %v3632 = vpop.f32.mrf.mxu0
        %v3633 = vpop.f32.mrf.mxu0
        %3634 = vdwg.mxu0
        %v3635 = vadd.f32 %v3527, %v3589
        %v3636 = vadd.f32 %v3528, %v3591
        %v3637 = vadd.f32 %v3529, %v3630
        %v3638 = vld [vmem:[%s627] sm:$0xf]
        %3639 = vrot.lane.b32.xlu0 %v3215, 109
        %v3640 = vpop.permute.xlu0 %3639
        %3641 = vrot.lane.b32.xlu0 %v3216, 109
        %v3642 = vpop.permute.xlu0 %3641
        %3643 = vrot.lane.b32.xlu0 %v3217, 109
        %v3644 = vpop.permute.xlu0 %3643
        %3645 = vrot.lane.b32.xlu0 %v3218, 109
        %v3646 = vpop.permute.xlu0 %3645
        %v3647 = vsel %vm637, %v3640, %v3642
        %v3648 = vsel %vm637, %v3642, %v3644
        %v3649 = vsel %vm637, %v3644, %v3646
        %v3651 = vsel %vm214, %v3638, 0
        %v3654 = vsel %vm218, %v3647, 0
        %v3657 = vsel %vm218, %v3648, 0
        %v3660 = vsel %vm218, %v3649, 0
        %3662 = vmatprep.subr.bf16.mxu0 0
        %3663 = vmatpush1.bf16.msra.mxu0 0
        %3664 = vmatprep.subr.bf16.mxu0 0
        %3665 = vmatpush1.bf16.msra.mxu0 0
        %3666 = vmatprep.subr.bf16.mxu0 0
        %3667 = vmatpush1.bf16.msra.mxu0 0
        %3668 = vmatprep.subr.bf16.mxu0 0
        %3669 = vmatpush1.bf16.msra.mxu0 0
        %3670 = vmatprep.subr.bf16.mxu0 0
        %3671 = vmatpush1.bf16.msra.mxu0 0
        %3672 = vmatprep.subr.bf16.mxu0 0
        %3673 = vmatpush1.bf16.msra.mxu0 0
        %3674 = vmatprep.subr.bf16.mxu0 0
        %3675 = vmatpush1.bf16.msra.mxu0 0
        %3676 = vmatprep.subr.bf16.mxu0 %v3657
        %3677 = vmatpush1.bf16.msra.mxu0 %v3654
        %3678 = vmatprep.subr.bf16.mxu0 0
        %3679 = vmatpush2.bf16.msra.mxu0 0
        %3680 = vmatprep.subr.bf16.mxu0 0
        %3681 = vmatpush2.bf16.msra.mxu0 0
        %3682 = vmatprep.subr.bf16.mxu0 0
        %3683 = vmatpush2.bf16.msra.mxu0 0
        %3684 = vmatprep.subr.bf16.mxu0 0
        %3685 = vmatpush2.bf16.msra.mxu0 0
        %3686 = vmatprep.subr.bf16.mxu0 0
        %3687 = vmatpush2.bf16.msra.mxu0 0
        %3688 = vmatprep.subr.bf16.mxu0 0
        %3689 = vmatpush2.bf16.msra.mxu0 0
        %3690 = vmatprep.subr.bf16.mxu0 0
        %3691 = vmatpush2.bf16.msra.mxu0 0
        %3692 = vmatprep.subr.bf16.mxu0 0
        %3693 = vmatpush2.bf16.msra.mxu0 0
        %3694 = vmatprep.mubr.bf16.mxu0 0
        %3695 = vmatmul.mubr.bf16.gmra.mxu0 %v3651
        %v3696 = vpop.f32.mrf.mxu0
        %v3697 = vadd.f32 0.0, %v3696
        %v3698 = vpop.f32.mrf.mxu0
        %v3699 = vadd.f32 0.0, %v3698
        %v3700 = vpop.f32.mrf.mxu0
        %v3701 = vpop.f32.mrf.mxu0
        %3702 = vdwg.mxu0
        %3703 = vmatprep.subr.bf16.mxu0 0
        %3704 = vmatpush1.bf16.msra.mxu0 0
        %3705 = vmatprep.subr.bf16.mxu0 0
        %3706 = vmatpush1.bf16.msra.mxu0 0
        %3707 = vmatprep.subr.bf16.mxu0 0
        %3708 = vmatpush1.bf16.msra.mxu0 0
        %3709 = vmatprep.subr.bf16.mxu0 0
        %3710 = vmatpush1.bf16.msra.mxu0 0
        %3711 = vmatprep.subr.bf16.mxu0 0
        %3712 = vmatpush1.bf16.msra.mxu0 0
        %3713 = vmatprep.subr.bf16.mxu0 0
        %3714 = vmatpush1.bf16.msra.mxu0 0
        %3715 = vmatprep.subr.bf16.mxu0 0
        %3716 = vmatpush1.bf16.msra.mxu0 0
        %3717 = vmatprep.subr.bf16.mxu0 0
        %3718 = vmatpush1.bf16.msra.mxu0 %v3660
        %3719 = vmatprep.subr.bf16.mxu0 0
        %3720 = vmatpush2.bf16.msra.mxu0 0
        %3721 = vmatprep.subr.bf16.mxu0 0
        %3722 = vmatpush2.bf16.msra.mxu0 0
        %3723 = vmatprep.subr.bf16.mxu0 0
        %3724 = vmatpush2.bf16.msra.mxu0 0
        %3725 = vmatprep.subr.bf16.mxu0 0
        %3726 = vmatpush2.bf16.msra.mxu0 0
        %3727 = vmatprep.subr.bf16.mxu0 0
        %3728 = vmatpush2.bf16.msra.mxu0 0
        %3729 = vmatprep.subr.bf16.mxu0 0
        %3730 = vmatpush2.bf16.msra.mxu0 0
        %3731 = vmatprep.subr.bf16.mxu0 0
        %3732 = vmatpush2.bf16.msra.mxu0 0
        %3733 = vmatprep.subr.bf16.mxu0 0
        %3734 = vmatpush2.bf16.msra.mxu0 0
        %3735 = vmatprep.mubr.bf16.mxu0 0
        %3736 = vmatmul.mubr.bf16.gmra.mxu0 %v3651
        %v3737 = vpop.f32.mrf.mxu0
        %v3738 = vadd.f32 0.0, %v3737
        %v3739 = vpop.f32.mrf.mxu0
        %v3740 = vpop.f32.mrf.mxu0
        %v3741 = vpop.f32.mrf.mxu0
        %3742 = vdwg.mxu0
        %v3743 = vadd.f32 %v3635, %v3697
        %v3744 = vadd.f32 %v3636, %v3699
        %v3745 = vadd.f32 %v3637, %v3738
        %v3746 = vld [vmem:[%s737] sm:$0xf]
        %3747 = vrot.lane.b32.xlu0 %v3215, 108
        %v3748 = vpop.permute.xlu0 %3747
        %3749 = vrot.lane.b32.xlu0 %v3216, 108
        %v3750 = vpop.permute.xlu0 %3749
        %3751 = vrot.lane.b32.xlu0 %v3217, 108
        %v3752 = vpop.permute.xlu0 %3751
        %3753 = vrot.lane.b32.xlu0 %v3218, 108
        %v3754 = vpop.permute.xlu0 %3753
        %v3755 = vsel %vm747, %v3748, %v3750
        %v3756 = vsel %vm747, %v3750, %v3752
        %v3757 = vsel %vm747, %v3752, %v3754
        %v3759 = vsel %vm214, %v3746, 0
        %v3762 = vsel %vm218, %v3755, 0
        %v3765 = vsel %vm218, %v3756, 0
        %v3768 = vsel %vm218, %v3757, 0
        %3770 = vmatprep.subr.bf16.mxu0 0
        %3771 = vmatpush1.bf16.msra.mxu0 0
        %3772 = vmatprep.subr.bf16.mxu0 0
        %3773 = vmatpush1.bf16.msra.mxu0 0
        %3774 = vmatprep.subr.bf16.mxu0 0
        %3775 = vmatpush1.bf16.msra.mxu0 0
        %3776 = vmatprep.subr.bf16.mxu0 0
        %3777 = vmatpush1.bf16.msra.mxu0 0
        %3778 = vmatprep.subr.bf16.mxu0 0
        %3779 = vmatpush1.bf16.msra.mxu0 0
        %3780 = vmatprep.subr.bf16.mxu0 0
        %3781 = vmatpush1.bf16.msra.mxu0 0
        %3782 = vmatprep.subr.bf16.mxu0 0
        %3783 = vmatpush1.bf16.msra.mxu0 0
        %3784 = vmatprep.subr.bf16.mxu0 %v3765
        %3785 = vmatpush1.bf16.msra.mxu0 %v3762
        %3786 = vmatprep.subr.bf16.mxu0 0
        %3787 = vmatpush2.bf16.msra.mxu0 0
        %3788 = vmatprep.subr.bf16.mxu0 0
        %3789 = vmatpush2.bf16.msra.mxu0 0
        %3790 = vmatprep.subr.bf16.mxu0 0
        %3791 = vmatpush2.bf16.msra.mxu0 0
        %3792 = vmatprep.subr.bf16.mxu0 0
        %3793 = vmatpush2.bf16.msra.mxu0 0
        %3794 = vmatprep.subr.bf16.mxu0 0
        %3795 = vmatpush2.bf16.msra.mxu0 0
        %3796 = vmatprep.subr.bf16.mxu0 0
        %3797 = vmatpush2.bf16.msra.mxu0 0
        %3798 = vmatprep.subr.bf16.mxu0 0
        %3799 = vmatpush2.bf16.msra.mxu0 0
        %3800 = vmatprep.subr.bf16.mxu0 0
        %3801 = vmatpush2.bf16.msra.mxu0 0
        %3802 = vmatprep.mubr.bf16.mxu0 0
        %3803 = vmatmul.mubr.bf16.gmra.mxu0 %v3759
        %v3804 = vpop.f32.mrf.mxu0
        %v3805 = vadd.f32 0.0, %v3804
        %v3806 = vpop.f32.mrf.mxu0
        %v3807 = vadd.f32 0.0, %v3806
        %v3808 = vpop.f32.mrf.mxu0
        %v3809 = vpop.f32.mrf.mxu0
        %3810 = vdwg.mxu0
        %3811 = vmatprep.subr.bf16.mxu0 0
        %3812 = vmatpush1.bf16.msra.mxu0 0
        %3813 = vmatprep.subr.bf16.mxu0 0
        %3814 = vmatpush1.bf16.msra.mxu0 0
        %3815 = vmatprep.subr.bf16.mxu0 0
        %3816 = vmatpush1.bf16.msra.mxu0 0
        %3817 = vmatprep.subr.bf16.mxu0 0
        %3818 = vmatpush1.bf16.msra.mxu0 0
        %3819 = vmatprep.subr.bf16.mxu0 0
        %3820 = vmatpush1.bf16.msra.mxu0 0
        %3821 = vmatprep.subr.bf16.mxu0 0
        %3822 = vmatpush1.bf16.msra.mxu0 0
        %3823 = vmatprep.subr.bf16.mxu0 0
        %3824 = vmatpush1.bf16.msra.mxu0 0
        %3825 = vmatprep.subr.bf16.mxu0 0
        %3826 = vmatpush1.bf16.msra.mxu0 %v3768
        %3827 = vmatprep.subr.bf16.mxu0 0
        %3828 = vmatpush2.bf16.msra.mxu0 0
        %3829 = vmatprep.subr.bf16.mxu0 0
        %3830 = vmatpush2.bf16.msra.mxu0 0
        %3831 = vmatprep.subr.bf16.mxu0 0
        %3832 = vmatpush2.bf16.msra.mxu0 0
        %3833 = vmatprep.subr.bf16.mxu0 0
        %3834 = vmatpush2.bf16.msra.mxu0 0
        %3835 = vmatprep.subr.bf16.mxu0 0
        %3836 = vmatpush2.bf16.msra.mxu0 0
        %3837 = vmatprep.subr.bf16.mxu0 0
        %3838 = vmatpush2.bf16.msra.mxu0 0
        %3839 = vmatprep.subr.bf16.mxu0 0
        %3840 = vmatpush2.bf16.msra.mxu0 0
        %3841 = vmatprep.subr.bf16.mxu0 0
        %3842 = vmatpush2.bf16.msra.mxu0 0
        %3843 = vmatprep.mubr.bf16.mxu0 0
        %3844 = vmatmul.mubr.bf16.gmra.mxu0 %v3759
        %v3845 = vpop.f32.mrf.mxu0
        %v3846 = vadd.f32 0.0, %v3845
        %v3847 = vpop.f32.mrf.mxu0
        %v3848 = vpop.f32.mrf.mxu0
        %v3849 = vpop.f32.mrf.mxu0
        %3850 = vdwg.mxu0
        %v3851 = vadd.f32 %v3743, %v3805
        %v3852 = vadd.f32 %v3744, %v3807
        %v3853 = vadd.f32 %v3745, %v3846
        %v3854 = vld [vmem:[%s847] sm:$0xf]
        %3855 = vrot.lane.b32.xlu0 %v3215, 92
        %v3856 = vpop.permute.xlu0 %3855
        %3857 = vrot.lane.b32.xlu0 %v3216, 92
        %v3858 = vpop.permute.xlu0 %3857
        %3859 = vrot.lane.b32.xlu0 %v3217, 92
        %v3860 = vpop.permute.xlu0 %3859
        %3861 = vrot.lane.b32.xlu0 %v3218, 92
        %v3862 = vpop.permute.xlu0 %3861
        %v3863 = vsel %vm857, %v3856, %v3858
        %v3864 = vsel %vm857, %v3858, %v3860
        %v3865 = vsel %vm857, %v3860, %v3862
        %v3867 = vsel %vm214, %v3854, 0
        %v3870 = vsel %vm218, %v3863, 0
        %v3873 = vsel %vm218, %v3864, 0
        %v3876 = vsel %vm218, %v3865, 0
        %3878 = vmatprep.subr.bf16.mxu0 0
        %3879 = vmatpush1.bf16.msra.mxu0 0
        %3880 = vmatprep.subr.bf16.mxu0 0
        %3881 = vmatpush1.bf16.msra.mxu0 0
        %3882 = vmatprep.subr.bf16.mxu0 0
        %3883 = vmatpush1.bf16.msra.mxu0 0
        %3884 = vmatprep.subr.bf16.mxu0 0
        %3885 = vmatpush1.bf16.msra.mxu0 0
        %3886 = vmatprep.subr.bf16.mxu0 0
        %3887 = vmatpush1.bf16.msra.mxu0 0
        %3888 = vmatprep.subr.bf16.mxu0 0
        %3889 = vmatpush1.bf16.msra.mxu0 0
        %3890 = vmatprep.subr.bf16.mxu0 0
        %3891 = vmatpush1.bf16.msra.mxu0 0
        %3892 = vmatprep.subr.bf16.mxu0 %v3873
        %3893 = vmatpush1.bf16.msra.mxu0 %v3870
        %3894 = vmatprep.subr.bf16.mxu0 0
        %3895 = vmatpush2.bf16.msra.mxu0 0
        %3896 = vmatprep.subr.bf16.mxu0 0
        %3897 = vmatpush2.bf16.msra.mxu0 0
        %3898 = vmatprep.subr.bf16.mxu0 0
        %3899 = vmatpush2.bf16.msra.mxu0 0
        %3900 = vmatprep.subr.bf16.mxu0 0
        %3901 = vmatpush2.bf16.msra.mxu0 0
        %3902 = vmatprep.subr.bf16.mxu0 0
        %3903 = vmatpush2.bf16.msra.mxu0 0
        %3904 = vmatprep.subr.bf16.mxu0 0
        %3905 = vmatpush2.bf16.msra.mxu0 0
        %3906 = vmatprep.subr.bf16.mxu0 0
        %3907 = vmatpush2.bf16.msra.mxu0 0
        %3908 = vmatprep.subr.bf16.mxu0 0
        %3909 = vmatpush2.bf16.msra.mxu0 0
        %3910 = vmatprep.mubr.bf16.mxu0 0
        %3911 = vmatmul.mubr.bf16.gmra.mxu0 %v3867
        %v3912 = vpop.f32.mrf.mxu0
        %v3913 = vadd.f32 0.0, %v3912
        %v3914 = vpop.f32.mrf.mxu0
        %v3915 = vadd.f32 0.0, %v3914
        %v3916 = vpop.f32.mrf.mxu0
        %v3917 = vpop.f32.mrf.mxu0
        %3918 = vdwg.mxu0
        %3919 = vmatprep.subr.bf16.mxu0 0
        %3920 = vmatpush1.bf16.msra.mxu0 0
        %3921 = vmatprep.subr.bf16.mxu0 0
        %3922 = vmatpush1.bf16.msra.mxu0 0
        %3923 = vmatprep.subr.bf16.mxu0 0
        %3924 = vmatpush1.bf16.msra.mxu0 0
        %3925 = vmatprep.subr.bf16.mxu0 0
        %3926 = vmatpush1.bf16.msra.mxu0 0
        %3927 = vmatprep.subr.bf16.mxu0 0
        %3928 = vmatpush1.bf16.msra.mxu0 0
        %3929 = vmatprep.subr.bf16.mxu0 0
        %3930 = vmatpush1.bf16.msra.mxu0 0
        %3931 = vmatprep.subr.bf16.mxu0 0
        %3932 = vmatpush1.bf16.msra.mxu0 0
        %3933 = vmatprep.subr.bf16.mxu0 0
        %3934 = vmatpush1.bf16.msra.mxu0 %v3876
        %3935 = vmatprep.subr.bf16.mxu0 0
        %3936 = vmatpush2.bf16.msra.mxu0 0
        %3937 = vmatprep.subr.bf16.mxu0 0
        %3938 = vmatpush2.bf16.msra.mxu0 0
        %3939 = vmatprep.subr.bf16.mxu0 0
        %3940 = vmatpush2.bf16.msra.mxu0 0
        %3941 = vmatprep.subr.bf16.mxu0 0
        %3942 = vmatpush2.bf16.msra.mxu0 0
        %3943 = vmatprep.subr.bf16.mxu0 0
        %3944 = vmatpush2.bf16.msra.mxu0 0
        %3945 = vmatprep.subr.bf16.mxu0 0
        %3946 = vmatpush2.bf16.msra.mxu0 0
        %3947 = vmatprep.subr.bf16.mxu0 0
        %3948 = vmatpush2.bf16.msra.mxu0 0
        %3949 = vmatprep.subr.bf16.mxu0 0
        %3950 = vmatpush2.bf16.msra.mxu0 0
        %3951 = vmatprep.mubr.bf16.mxu0 0
        %3952 = vmatmul.mubr.bf16.gmra.mxu0 %v3867
        %v3953 = vpop.f32.mrf.mxu0
        %v3954 = vadd.f32 0.0, %v3953
        %v3955 = vpop.f32.mrf.mxu0
        %v3956 = vpop.f32.mrf.mxu0
        %v3957 = vpop.f32.mrf.mxu0
        %3958 = vdwg.mxu0
        %v3959 = vadd.f32 %v3851, %v3913
        %v3960 = vadd.f32 %v3852, %v3915
        %v3961 = vadd.f32 %v3853, %v3954
        %v3962 = vld [vmem:[%s957] sm:$0xf]
        %3963 = vrot.lane.b32.xlu0 %v3215, 91
        %v3964 = vpop.permute.xlu0 %3963
        %3965 = vrot.lane.b32.xlu0 %v3216, 91
        %v3966 = vpop.permute.xlu0 %3965
        %3967 = vrot.lane.b32.xlu0 %v3217, 91
        %v3968 = vpop.permute.xlu0 %3967
        %3969 = vrot.lane.b32.xlu0 %v3218, 91
        %v3970 = vpop.permute.xlu0 %3969
        %v3971 = vsel %vm967, %v3964, %v3966
        %v3972 = vsel %vm967, %v3966, %v3968
        %v3973 = vsel %vm967, %v3968, %v3970
        %v3975 = vsel %vm214, %v3962, 0
        %v3978 = vsel %vm218, %v3971, 0
        %v3981 = vsel %vm218, %v3972, 0
        %v3984 = vsel %vm218, %v3973, 0
        %3986 = vmatprep.subr.bf16.mxu0 0
        %3987 = vmatpush1.bf16.msra.mxu0 0
        %3988 = vmatprep.subr.bf16.mxu0 0
        %3989 = vmatpush1.bf16.msra.mxu0 0
        %3990 = vmatprep.subr.bf16.mxu0 0
        %3991 = vmatpush1.bf16.msra.mxu0 0
        %3992 = vmatprep.subr.bf16.mxu0 0
        %3993 = vmatpush1.bf16.msra.mxu0 0
        %3994 = vmatprep.subr.bf16.mxu0 0
        %3995 = vmatpush1.bf16.msra.mxu0 0
        %3996 = vmatprep.subr.bf16.mxu0 0
        %3997 = vmatpush1.bf16.msra.mxu0 0
        %3998 = vmatprep.subr.bf16.mxu0 0
        %3999 = vmatpush1.bf16.msra.mxu0 0
        %4000 = vmatprep.subr.bf16.mxu0 %v3981
        %4001 = vmatpush1.bf16.msra.mxu0 %v3978
        %4002 = vmatprep.subr.bf16.mxu0 0
        %4003 = vmatpush2.bf16.msra.mxu0 0
        %4004 = vmatprep.subr.bf16.mxu0 0
        %4005 = vmatpush2.bf16.msra.mxu0 0
        %4006 = vmatprep.subr.bf16.mxu0 0
        %4007 = vmatpush2.bf16.msra.mxu0 0
        %4008 = vmatprep.subr.bf16.mxu0 0
        %4009 = vmatpush2.bf16.msra.mxu0 0
        %4010 = vmatprep.subr.bf16.mxu0 0
        %4011 = vmatpush2.bf16.msra.mxu0 0
        %4012 = vmatprep.subr.bf16.mxu0 0
        %4013 = vmatpush2.bf16.msra.mxu0 0
        %4014 = vmatprep.subr.bf16.mxu0 0
        %4015 = vmatpush2.bf16.msra.mxu0 0
        %4016 = vmatprep.subr.bf16.mxu0 0
        %4017 = vmatpush2.bf16.msra.mxu0 0
        %4018 = vmatprep.mubr.bf16.mxu0 0
        %4019 = vmatmul.mubr.bf16.gmra.mxu0 %v3975
        %v4020 = vpop.f32.mrf.mxu0
        %v4021 = vadd.f32 0.0, %v4020
        %v4022 = vpop.f32.mrf.mxu0
        %v4023 = vadd.f32 0.0, %v4022
        %v4024 = vpop.f32.mrf.mxu0
        %v4025 = vpop.f32.mrf.mxu0
        %4026 = vdwg.mxu0
        %4027 = vmatprep.subr.bf16.mxu0 0
        %4028 = vmatpush1.bf16.msra.mxu0 0
        %4029 = vmatprep.subr.bf16.mxu0 0
        %4030 = vmatpush1.bf16.msra.mxu0 0
        %4031 = vmatprep.subr.bf16.mxu0 0
        %4032 = vmatpush1.bf16.msra.mxu0 0
        %4033 = vmatprep.subr.bf16.mxu0 0
        %4034 = vmatpush1.bf16.msra.mxu0 0
        %4035 = vmatprep.subr.bf16.mxu0 0
        %4036 = vmatpush1.bf16.msra.mxu0 0
        %4037 = vmatprep.subr.bf16.mxu0 0
        %4038 = vmatpush1.bf16.msra.mxu0 0
        %4039 = vmatprep.subr.bf16.mxu0 0
        %4040 = vmatpush1.bf16.msra.mxu0 0
        %4041 = vmatprep.subr.bf16.mxu0 0
        %4042 = vmatpush1.bf16.msra.mxu0 %v3984
        %4043 = vmatprep.subr.bf16.mxu0 0
        %4044 = vmatpush2.bf16.msra.mxu0 0
        %4045 = vmatprep.subr.bf16.mxu0 0
        %4046 = vmatpush2.bf16.msra.mxu0 0
        %4047 = vmatprep.subr.bf16.mxu0 0
        %4048 = vmatpush2.bf16.msra.mxu0 0
        %4049 = vmatprep.subr.bf16.mxu0 0
        %4050 = vmatpush2.bf16.msra.mxu0 0
        %4051 = vmatprep.subr.bf16.mxu0 0
        %4052 = vmatpush2.bf16.msra.mxu0 0
        %4053 = vmatprep.subr.bf16.mxu0 0
        %4054 = vmatpush2.bf16.msra.mxu0 0
        %4055 = vmatprep.subr.bf16.mxu0 0
        %4056 = vmatpush2.bf16.msra.mxu0 0
        %4057 = vmatprep.subr.bf16.mxu0 0
        %4058 = vmatpush2.bf16.msra.mxu0 0
        %4059 = vmatprep.mubr.bf16.mxu0 0
        %4060 = vmatmul.mubr.bf16.gmra.mxu0 %v3975
        %v4061 = vpop.f32.mrf.mxu0
        %v4062 = vadd.f32 0.0, %v4061
        %v4063 = vpop.f32.mrf.mxu0
        %v4064 = vpop.f32.mrf.mxu0
        %v4065 = vpop.f32.mrf.mxu0
        %4066 = vdwg.mxu0
        %v4067 = vadd.f32 %v3959, %v4021
        %v4068 = vadd.f32 %v3960, %v4023
        %v4069 = vadd.f32 %v3961, %v4062
        %v4070 = vld [vmem:[%s1067] sm:$0xf]
        %4071 = vrot.lane.b32.xlu0 %v3215, 90
        %v4072 = vpop.permute.xlu0 %4071
        %4073 = vrot.lane.b32.xlu0 %v3216, 90
        %v4074 = vpop.permute.xlu0 %4073
        %4075 = vrot.lane.b32.xlu0 %v3217, 90
        %v4076 = vpop.permute.xlu0 %4075
        %4077 = vrot.lane.b32.xlu0 %v3218, 90
        %v4078 = vpop.permute.xlu0 %4077
        %v4079 = vsel %vm1077, %v4072, %v4074
        %v4080 = vsel %vm1077, %v4074, %v4076
        %v4081 = vsel %vm1077, %v4076, %v4078
        %v4083 = vsel %vm214, %v4070, 0
        %v4086 = vsel %vm218, %v4079, 0
        %v4089 = vsel %vm218, %v4080, 0
        %v4092 = vsel %vm218, %v4081, 0
        %4094 = vmatprep.subr.bf16.mxu0 0
        %4095 = vmatpush1.bf16.msra.mxu0 0
        %4096 = vmatprep.subr.bf16.mxu0 0
        %4097 = vmatpush1.bf16.msra.mxu0 0
        %4098 = vmatprep.subr.bf16.mxu0 0
        %4099 = vmatpush1.bf16.msra.mxu0 0
        %4100 = vmatprep.subr.bf16.mxu0 0
        %4101 = vmatpush1.bf16.msra.mxu0 0
        %4102 = vmatprep.subr.bf16.mxu0 0
        %4103 = vmatpush1.bf16.msra.mxu0 0
        %4104 = vmatprep.subr.bf16.mxu0 0
        %4105 = vmatpush1.bf16.msra.mxu0 0
        %4106 = vmatprep.subr.bf16.mxu0 0
        %4107 = vmatpush1.bf16.msra.mxu0 0
        %4108 = vmatprep.subr.bf16.mxu0 %v4089
        %4109 = vmatpush1.bf16.msra.mxu0 %v4086
        %4110 = vmatprep.subr.bf16.mxu0 0
        %4111 = vmatpush2.bf16.msra.mxu0 0
        %4112 = vmatprep.subr.bf16.mxu0 0
        %4113 = vmatpush2.bf16.msra.mxu0 0
        %4114 = vmatprep.subr.bf16.mxu0 0
        %4115 = vmatpush2.bf16.msra.mxu0 0
        %4116 = vmatprep.subr.bf16.mxu0 0
        %4117 = vmatpush2.bf16.msra.mxu0 0
        %4118 = vmatprep.subr.bf16.mxu0 0
        %4119 = vmatpush2.bf16.msra.mxu0 0
        %4120 = vmatprep.subr.bf16.mxu0 0
        %4121 = vmatpush2.bf16.msra.mxu0 0
        %4122 = vmatprep.subr.bf16.mxu0 0
        %4123 = vmatpush2.bf16.msra.mxu0 0
        %4124 = vmatprep.subr.bf16.mxu0 0
        %4125 = vmatpush2.bf16.msra.mxu0 0
        %4126 = vmatprep.mubr.bf16.mxu0 0
        %4127 = vmatmul.mubr.bf16.gmra.mxu0 %v4083
        %v4128 = vpop.f32.mrf.mxu0
        %v4129 = vadd.f32 0.0, %v4128
        %v4130 = vpop.f32.mrf.mxu0
        %v4131 = vadd.f32 0.0, %v4130
        %v4132 = vpop.f32.mrf.mxu0
        %v4133 = vpop.f32.mrf.mxu0
        %4134 = vdwg.mxu0
        %4135 = vmatprep.subr.bf16.mxu0 0
        %4136 = vmatpush1.bf16.msra.mxu0 0
        %4137 = vmatprep.subr.bf16.mxu0 0
        %4138 = vmatpush1.bf16.msra.mxu0 0
        %4139 = vmatprep.subr.bf16.mxu0 0
        %4140 = vmatpush1.bf16.msra.mxu0 0
        %4141 = vmatprep.subr.bf16.mxu0 0
        %4142 = vmatpush1.bf16.msra.mxu0 0
        %4143 = vmatprep.subr.bf16.mxu0 0
        %4144 = vmatpush1.bf16.msra.mxu0 0
        %4145 = vmatprep.subr.bf16.mxu0 0
        %4146 = vmatpush1.bf16.msra.mxu0 0
        %4147 = vmatprep.subr.bf16.mxu0 0
        %4148 = vmatpush1.bf16.msra.mxu0 0
        %4149 = vmatprep.subr.bf16.mxu0 0
        %4150 = vmatpush1.bf16.msra.mxu0 %v4092
        %4151 = vmatprep.subr.bf16.mxu0 0
        %4152 = vmatpush2.bf16.msra.mxu0 0
        %4153 = vmatprep.subr.bf16.mxu0 0
        %4154 = vmatpush2.bf16.msra.mxu0 0
        %4155 = vmatprep.subr.bf16.mxu0 0
        %4156 = vmatpush2.bf16.msra.mxu0 0
        %4157 = vmatprep.subr.bf16.mxu0 0
        %4158 = vmatpush2.bf16.msra.mxu0 0
        %4159 = vmatprep.subr.bf16.mxu0 0
        %4160 = vmatpush2.bf16.msra.mxu0 0
        %4161 = vmatprep.subr.bf16.mxu0 0
        %4162 = vmatpush2.bf16.msra.mxu0 0
        %4163 = vmatprep.subr.bf16.mxu0 0
        %4164 = vmatpush2.bf16.msra.mxu0 0
        %4165 = vmatprep.subr.bf16.mxu0 0
        %4166 = vmatpush2.bf16.msra.mxu0 0
        %4167 = vmatprep.mubr.bf16.mxu0 0
        %4168 = vmatmul.mubr.bf16.gmra.mxu0 %v4083
        %v4169 = vpop.f32.mrf.mxu0
        %v4170 = vadd.f32 0.0, %v4169
        %v4171 = vpop.f32.mrf.mxu0
        %v4172 = vpop.f32.mrf.mxu0
        %v4173 = vpop.f32.mrf.mxu0
        %4174 = vdwg.mxu0
        %v4175 = vadd.f32 %v4067, %v4129
        %v4176 = vadd.f32 %v4068, %v4131
        %v4177 = vadd.f32 %v4069, %v4170
        %v4178 = vld [vmem:[%s2] sm:$0xff]
        %4180 = vset.pattern.permute.xlu0 0
        %4181 = vperm.xlu0 %4180, %v4178
        %v4182 = vpop.permute.xlu0 %4181
        %v4184 = vadd.f32 %v4175, %v4182
        %v4185 = vadd.f32 %v4176, %v4182
        %v4186 = vadd.f32 %v4177, %v4182
        %v4187 = vmax.f32 %v4184, 0.0
        %v4188 = vmax.f32 %v4185, 0.0
        %v4189 = vmax.f32 %v4186, 0.0
        %4190 = vst [vmem:[%s151 + $0x48] sm:$0xff] %v4187
        %4191 = vst [vmem:[%s151 + $0x50] sm:$0xff] %v4188
        %4192 = vst [vmem:[%s151 + $0x58] sm:$0xff] %v4189
        %v4193 = vld [vmem:[#allocation2 + $0x20] sm:$0xff]
        %v4194 = vld [vmem:[#allocation2 + $0x28] sm:$0xf]
        %v4195 = vld [vmem:[#allocation2 + $0x30] sm:$0x33]
        %v4196 = vld [vmem:[#allocation2 + $0x38] sm:$0x3]
        %v4197 = vld [vmem:[#allocation4] sm:$0xf]
        %v4198 = vld [vmem:[#allocation2 + $0x28] sm:$0xff]
        %v4199 = vld [vmem:[#allocation2 + $0x38] sm:$0x33]
        %v4200 = vld [vmem:[%s184] sm:$0xf]
        %v4205 = vunpack.c.l.b16 %v4193
        %v4206 = vunpack.c.h.b16 %v4193
        %v4207 = vunpack.c.l.b16 %v4198
        %v4208 = vunpack.c.h.b16 %v4198
        %v4209 = vunpack.c.l.b16 %v4195
        %v4210 = vunpack.c.h.b16 %v4195
        %v4211 = vunpack.c.l.b16 %v4199
        %v4212 = vunpack.c.h.b16 %v4199
        %v4213 = vpack.c.b16 %v4209, %v4205
        %v4214 = vpack.c.b16 %v4210, %v4206
        %v4215 = vpack.c.b16 %v4211, %v4207
        %v4216 = vpack.c.b16 %v4212, %v4208
        %4217 = vrot.lane.b32.xlu0 %v4213, 127
        %v4218 = vpop.permute.xlu0 %4217
        %4219 = vrot.lane.b32.xlu0 %v4214, 127
        %v4220 = vpop.permute.xlu0 %4219
        %4221 = vrot.lane.b32.xlu0 %v4215, 127
        %v4222 = vpop.permute.xlu0 %4221
        %4223 = vrot.lane.b32.xlu0 %v4216, 127
        %v4224 = vpop.permute.xlu0 %4223
        %v4225 = vsel %vm210, %v4218, %v4220
        %v4226 = vsel %vm210, %v4220, %v4222
        %v4227 = vsel %vm210, %v4222, %v4224
        %v4229 = vsel %vm214, %v4200, 0
        %v4232 = vsel %vm218, %v4225, 0
        %v4235 = vsel %vm218, %v4226, 0
        %v4238 = vsel %vm218, %v4227, 0
        %4240 = vmatprep.subr.bf16.mxu0 0
        %4241 = vmatpush1.bf16.msra.mxu0 0
        %4242 = vmatprep.subr.bf16.mxu0 0
        %4243 = vmatpush1.bf16.msra.mxu0 0
        %4244 = vmatprep.subr.bf16.mxu0 0
        %4245 = vmatpush1.bf16.msra.mxu0 0
        %4246 = vmatprep.subr.bf16.mxu0 0
        %4247 = vmatpush1.bf16.msra.mxu0 0
        %4248 = vmatprep.subr.bf16.mxu0 0
        %4249 = vmatpush1.bf16.msra.mxu0 0
        %4250 = vmatprep.subr.bf16.mxu0 0
        %4251 = vmatpush1.bf16.msra.mxu0 0
        %4252 = vmatprep.subr.bf16.mxu0 0
        %4253 = vmatpush1.bf16.msra.mxu0 0
        %4254 = vmatprep.subr.bf16.mxu0 %v4235
        %4255 = vmatpush1.bf16.msra.mxu0 %v4232
        %4256 = vmatprep.subr.bf16.mxu0 0
        %4257 = vmatpush2.bf16.msra.mxu0 0
        %4258 = vmatprep.subr.bf16.mxu0 0
        %4259 = vmatpush2.bf16.msra.mxu0 0
        %4260 = vmatprep.subr.bf16.mxu0 0
        %4261 = vmatpush2.bf16.msra.mxu0 0
        %4262 = vmatprep.subr.bf16.mxu0 0
        %4263 = vmatpush2.bf16.msra.mxu0 0
        %4264 = vmatprep.subr.bf16.mxu0 0
        %4265 = vmatpush2.bf16.msra.mxu0 0
        %4266 = vmatprep.subr.bf16.mxu0 0
        %4267 = vmatpush2.bf16.msra.mxu0 0
        %4268 = vmatprep.subr.bf16.mxu0 0
        %4269 = vmatpush2.bf16.msra.mxu0 0
        %4270 = vmatprep.subr.bf16.mxu0 0
        %4271 = vmatpush2.bf16.msra.mxu0 0
        %4272 = vmatprep.mubr.bf16.mxu0 0
        %4273 = vmatmul.mubr.bf16.gmra.mxu0 %v4229
        %v4274 = vpop.f32.mrf.mxu0
        %v4275 = vadd.f32 0.0, %v4274
        %v4276 = vpop.f32.mrf.mxu0
        %v4277 = vadd.f32 0.0, %v4276
        %v4278 = vpop.f32.mrf.mxu0
        %v4279 = vpop.f32.mrf.mxu0
        %4280 = vdwg.mxu0
        %4281 = vmatprep.subr.bf16.mxu0 0
        %4282 = vmatpush1.bf16.msra.mxu0 0
        %4283 = vmatprep.subr.bf16.mxu0 0
        %4284 = vmatpush1.bf16.msra.mxu0 0
        %4285 = vmatprep.subr.bf16.mxu0 0
        %4286 = vmatpush1.bf16.msra.mxu0 0
        %4287 = vmatprep.subr.bf16.mxu0 0
        %4288 = vmatpush1.bf16.msra.mxu0 0
        %4289 = vmatprep.subr.bf16.mxu0 0
        %4290 = vmatpush1.bf16.msra.mxu0 0
        %4291 = vmatprep.subr.bf16.mxu0 0
        %4292 = vmatpush1.bf16.msra.mxu0 0
        %4293 = vmatprep.subr.bf16.mxu0 0
        %4294 = vmatpush1.bf16.msra.mxu0 0
        %4295 = vmatprep.subr.bf16.mxu0 0
        %4296 = vmatpush1.bf16.msra.mxu0 %v4238
        %4297 = vmatprep.subr.bf16.mxu0 0
        %4298 = vmatpush2.bf16.msra.mxu0 0
        %4299 = vmatprep.subr.bf16.mxu0 0
        %4300 = vmatpush2.bf16.msra.mxu0 0
        %4301 = vmatprep.subr.bf16.mxu0 0
        %4302 = vmatpush2.bf16.msra.mxu0 0
        %4303 = vmatprep.subr.bf16.mxu0 0
        %4304 = vmatpush2.bf16.msra.mxu0 0
        %4305 = vmatprep.subr.bf16.mxu0 0
        %4306 = vmatpush2.bf16.msra.mxu0 0
        %4307 = vmatprep.subr.bf16.mxu0 0
        %4308 = vmatpush2.bf16.msra.mxu0 0
        %4309 = vmatprep.subr.bf16.mxu0 0
        %4310 = vmatpush2.bf16.msra.mxu0 0
        %4311 = vmatprep.subr.bf16.mxu0 0
        %4312 = vmatpush2.bf16.msra.mxu0 0
        %4313 = vmatprep.mubr.bf16.mxu0 0
        %4314 = vmatmul.mubr.bf16.gmra.mxu0 %v4229
        %v4315 = vpop.f32.mrf.mxu0
        %v4316 = vadd.f32 0.0, %v4315
        %v4317 = vpop.f32.mrf.mxu0
        %v4318 = vpop.f32.mrf.mxu0
        %v4319 = vpop.f32.mrf.mxu0
        %4320 = vdwg.mxu0
        %v4323 = vunpack.c.l.b16 %v4194
        %v4324 = vunpack.c.l.b16 %v4196
        %v4325 = vpack.c.b16 %v4324, %v4323
        %v4327 = vsel %vm214, %v4197, 0
        %v4330 = vsel %vm218, %v4213, 0
        %v4333 = vsel %vm218, %v4214, 0
        %v4336 = vsel %vm218, %v4325, 0
        %4338 = vmatprep.subr.bf16.mxu0 0
        %4339 = vmatpush1.bf16.msra.mxu0 0
        %4340 = vmatprep.subr.bf16.mxu0 0
        %4341 = vmatpush1.bf16.msra.mxu0 0
        %4342 = vmatprep.subr.bf16.mxu0 0
        %4343 = vmatpush1.bf16.msra.mxu0 0
        %4344 = vmatprep.subr.bf16.mxu0 0
        %4345 = vmatpush1.bf16.msra.mxu0 0
        %4346 = vmatprep.subr.bf16.mxu0 0
        %4347 = vmatpush1.bf16.msra.mxu0 0
        %4348 = vmatprep.subr.bf16.mxu0 0
        %4349 = vmatpush1.bf16.msra.mxu0 0
        %4350 = vmatprep.subr.bf16.mxu0 0
        %4351 = vmatpush1.bf16.msra.mxu0 0
        %4352 = vmatprep.subr.bf16.mxu0 %v4333
        %4353 = vmatpush1.bf16.msra.mxu0 %v4330
        %4354 = vmatprep.subr.bf16.mxu0 0
        %4355 = vmatpush2.bf16.msra.mxu0 0
        %4356 = vmatprep.subr.bf16.mxu0 0
        %4357 = vmatpush2.bf16.msra.mxu0 0
        %4358 = vmatprep.subr.bf16.mxu0 0
        %4359 = vmatpush2.bf16.msra.mxu0 0
        %4360 = vmatprep.subr.bf16.mxu0 0
        %4361 = vmatpush2.bf16.msra.mxu0 0
        %4362 = vmatprep.subr.bf16.mxu0 0
        %4363 = vmatpush2.bf16.msra.mxu0 0
        %4364 = vmatprep.subr.bf16.mxu0 0
        %4365 = vmatpush2.bf16.msra.mxu0 0
        %4366 = vmatprep.subr.bf16.mxu0 0
        %4367 = vmatpush2.bf16.msra.mxu0 0
        %4368 = vmatprep.subr.bf16.mxu0 0
        %4369 = vmatpush2.bf16.msra.mxu0 0
        %4370 = vmatprep.mubr.bf16.mxu0 0
        %4371 = vmatmul.mubr.bf16.gmra.mxu0 %v4327
        %v4372 = vpop.f32.mrf.mxu0
        %v4373 = vadd.f32 %v4275, %v4372
        %v4374 = vpop.f32.mrf.mxu0
        %v4375 = vadd.f32 %v4277, %v4374
        %v4376 = vpop.f32.mrf.mxu0
        %v4377 = vpop.f32.mrf.mxu0
        %4378 = vdwg.mxu0
        %4379 = vmatprep.subr.bf16.mxu0 0
        %4380 = vmatpush1.bf16.msra.mxu0 0
        %4381 = vmatprep.subr.bf16.mxu0 0
        %4382 = vmatpush1.bf16.msra.mxu0 0
        %4383 = vmatprep.subr.bf16.mxu0 0
        %4384 = vmatpush1.bf16.msra.mxu0 0
        %4385 = vmatprep.subr.bf16.mxu0 0
        %4386 = vmatpush1.bf16.msra.mxu0 0
        %4387 = vmatprep.subr.bf16.mxu0 0
        %4388 = vmatpush1.bf16.msra.mxu0 0
        %4389 = vmatprep.subr.bf16.mxu0 0
        %4390 = vmatpush1.bf16.msra.mxu0 0
        %4391 = vmatprep.subr.bf16.mxu0 0
        %4392 = vmatpush1.bf16.msra.mxu0 0
        %4393 = vmatprep.subr.bf16.mxu0 0
        %4394 = vmatpush1.bf16.msra.mxu0 %v4336
        %4395 = vmatprep.subr.bf16.mxu0 0
        %4396 = vmatpush2.bf16.msra.mxu0 0
        %4397 = vmatprep.subr.bf16.mxu0 0
        %4398 = vmatpush2.bf16.msra.mxu0 0
        %4399 = vmatprep.subr.bf16.mxu0 0
        %4400 = vmatpush2.bf16.msra.mxu0 0
        %4401 = vmatprep.subr.bf16.mxu0 0
        %4402 = vmatpush2.bf16.msra.mxu0 0
        %4403 = vmatprep.subr.bf16.mxu0 0
        %4404 = vmatpush2.bf16.msra.mxu0 0
        %4405 = vmatprep.subr.bf16.mxu0 0
        %4406 = vmatpush2.bf16.msra.mxu0 0
        %4407 = vmatprep.subr.bf16.mxu0 0
        %4408 = vmatpush2.bf16.msra.mxu0 0
        %4409 = vmatprep.subr.bf16.mxu0 0
        %4410 = vmatpush2.bf16.msra.mxu0 0
        %4411 = vmatprep.mubr.bf16.mxu0 0
        %4412 = vmatmul.mubr.bf16.gmra.mxu0 %v4327
        %v4413 = vpop.f32.mrf.mxu0
        %v4414 = vadd.f32 %v4316, %v4413
        %v4415 = vpop.f32.mrf.mxu0
        %v4416 = vpop.f32.mrf.mxu0
        %v4417 = vpop.f32.mrf.mxu0
        %4418 = vdwg.mxu0
        %v4419 = vld [vmem:[%s407] sm:$0xf]
        %4420 = vrot.lane.b32.xlu0 %v4213, 126
        %v4421 = vpop.permute.xlu0 %4420
        %4422 = vrot.lane.b32.xlu0 %v4214, 126
        %v4423 = vpop.permute.xlu0 %4422
        %4424 = vrot.lane.b32.xlu0 %v4215, 126
        %v4425 = vpop.permute.xlu0 %4424
        %4426 = vrot.lane.b32.xlu0 %v4216, 126
        %v4427 = vpop.permute.xlu0 %4426
        %v4428 = vsel %vm417, %v4421, %v4423
        %v4429 = vsel %vm417, %v4423, %v4425
        %v4430 = vsel %vm417, %v4425, %v4427
        %v4432 = vsel %vm214, %v4419, 0
        %v4435 = vsel %vm218, %v4428, 0
        %v4438 = vsel %vm218, %v4429, 0
        %v4441 = vsel %vm218, %v4430, 0
        %4443 = vmatprep.subr.bf16.mxu0 0
        %4444 = vmatpush1.bf16.msra.mxu0 0
        %4445 = vmatprep.subr.bf16.mxu0 0
        %4446 = vmatpush1.bf16.msra.mxu0 0
        %4447 = vmatprep.subr.bf16.mxu0 0
        %4448 = vmatpush1.bf16.msra.mxu0 0
        %4449 = vmatprep.subr.bf16.mxu0 0
        %4450 = vmatpush1.bf16.msra.mxu0 0
        %4451 = vmatprep.subr.bf16.mxu0 0
        %4452 = vmatpush1.bf16.msra.mxu0 0
        %4453 = vmatprep.subr.bf16.mxu0 0
        %4454 = vmatpush1.bf16.msra.mxu0 0
        %4455 = vmatprep.subr.bf16.mxu0 0
        %4456 = vmatpush1.bf16.msra.mxu0 0
        %4457 = vmatprep.subr.bf16.mxu0 %v4438
        %4458 = vmatpush1.bf16.msra.mxu0 %v4435
        %4459 = vmatprep.subr.bf16.mxu0 0
        %4460 = vmatpush2.bf16.msra.mxu0 0
        %4461 = vmatprep.subr.bf16.mxu0 0
        %4462 = vmatpush2.bf16.msra.mxu0 0
        %4463 = vmatprep.subr.bf16.mxu0 0
        %4464 = vmatpush2.bf16.msra.mxu0 0
        %4465 = vmatprep.subr.bf16.mxu0 0
        %4466 = vmatpush2.bf16.msra.mxu0 0
        %4467 = vmatprep.subr.bf16.mxu0 0
        %4468 = vmatpush2.bf16.msra.mxu0 0
        %4469 = vmatprep.subr.bf16.mxu0 0
        %4470 = vmatpush2.bf16.msra.mxu0 0
        %4471 = vmatprep.subr.bf16.mxu0 0
        %4472 = vmatpush2.bf16.msra.mxu0 0
        %4473 = vmatprep.subr.bf16.mxu0 0
        %4474 = vmatpush2.bf16.msra.mxu0 0
        %4475 = vmatprep.mubr.bf16.mxu0 0
        %4476 = vmatmul.mubr.bf16.gmra.mxu0 %v4432
        %v4477 = vpop.f32.mrf.mxu0
        %v4478 = vadd.f32 0.0, %v4477
        %v4479 = vpop.f32.mrf.mxu0
        %v4480 = vadd.f32 0.0, %v4479
        %v4481 = vpop.f32.mrf.mxu0
        %v4482 = vpop.f32.mrf.mxu0
        %4483 = vdwg.mxu0
        %4484 = vmatprep.subr.bf16.mxu0 0
        %4485 = vmatpush1.bf16.msra.mxu0 0
        %4486 = vmatprep.subr.bf16.mxu0 0
        %4487 = vmatpush1.bf16.msra.mxu0 0
        %4488 = vmatprep.subr.bf16.mxu0 0
        %4489 = vmatpush1.bf16.msra.mxu0 0
        %4490 = vmatprep.subr.bf16.mxu0 0
        %4491 = vmatpush1.bf16.msra.mxu0 0
        %4492 = vmatprep.subr.bf16.mxu0 0
        %4493 = vmatpush1.bf16.msra.mxu0 0
        %4494 = vmatprep.subr.bf16.mxu0 0
        %4495 = vmatpush1.bf16.msra.mxu0 0
        %4496 = vmatprep.subr.bf16.mxu0 0
        %4497 = vmatpush1.bf16.msra.mxu0 0
        %4498 = vmatprep.subr.bf16.mxu0 0
        %4499 = vmatpush1.bf16.msra.mxu0 %v4441
        %4500 = vmatprep.subr.bf16.mxu0 0
        %4501 = vmatpush2.bf16.msra.mxu0 0
        %4502 = vmatprep.subr.bf16.mxu0 0
        %4503 = vmatpush2.bf16.msra.mxu0 0
        %4504 = vmatprep.subr.bf16.mxu0 0
        %4505 = vmatpush2.bf16.msra.mxu0 0
        %4506 = vmatprep.subr.bf16.mxu0 0
        %4507 = vmatpush2.bf16.msra.mxu0 0
        %4508 = vmatprep.subr.bf16.mxu0 0
        %4509 = vmatpush2.bf16.msra.mxu0 0
        %4510 = vmatprep.subr.bf16.mxu0 0
        %4511 = vmatpush2.bf16.msra.mxu0 0
        %4512 = vmatprep.subr.bf16.mxu0 0
        %4513 = vmatpush2.bf16.msra.mxu0 0
        %4514 = vmatprep.subr.bf16.mxu0 0
        %4515 = vmatpush2.bf16.msra.mxu0 0
        %4516 = vmatprep.mubr.bf16.mxu0 0
        %4517 = vmatmul.mubr.bf16.gmra.mxu0 %v4432
        %v4518 = vpop.f32.mrf.mxu0
        %v4519 = vadd.f32 0.0, %v4518
        %v4520 = vpop.f32.mrf.mxu0
        %v4521 = vpop.f32.mrf.mxu0
        %v4522 = vpop.f32.mrf.mxu0
        %4523 = vdwg.mxu0
        %v4524 = vadd.f32 %v4373, %v4478
        %v4525 = vadd.f32 %v4375, %v4480
        %v4526 = vadd.f32 %v4414, %v4519
        %v4527 = vld [vmem:[%s517] sm:$0xf]
        %4528 = vrot.lane.b32.xlu0 %v4213, 110
        %v4529 = vpop.permute.xlu0 %4528
        %4530 = vrot.lane.b32.xlu0 %v4214, 110
        %v4531 = vpop.permute.xlu0 %4530
        %4532 = vrot.lane.b32.xlu0 %v4215, 110
        %v4533 = vpop.permute.xlu0 %4532
        %4534 = vrot.lane.b32.xlu0 %v4216, 110
        %v4535 = vpop.permute.xlu0 %4534
        %v4536 = vsel %vm527, %v4529, %v4531
        %v4537 = vsel %vm527, %v4531, %v4533
        %v4538 = vsel %vm527, %v4533, %v4535
        %v4540 = vsel %vm214, %v4527, 0
        %v4543 = vsel %vm218, %v4536, 0
        %v4546 = vsel %vm218, %v4537, 0
        %v4549 = vsel %vm218, %v4538, 0
        %4551 = vmatprep.subr.bf16.mxu0 0
        %4552 = vmatpush1.bf16.msra.mxu0 0
        %4553 = vmatprep.subr.bf16.mxu0 0
        %4554 = vmatpush1.bf16.msra.mxu0 0
        %4555 = vmatprep.subr.bf16.mxu0 0
        %4556 = vmatpush1.bf16.msra.mxu0 0
        %4557 = vmatprep.subr.bf16.mxu0 0
        %4558 = vmatpush1.bf16.msra.mxu0 0
        %4559 = vmatprep.subr.bf16.mxu0 0
        %4560 = vmatpush1.bf16.msra.mxu0 0
        %4561 = vmatprep.subr.bf16.mxu0 0
        %4562 = vmatpush1.bf16.msra.mxu0 0
        %4563 = vmatprep.subr.bf16.mxu0 0
        %4564 = vmatpush1.bf16.msra.mxu0 0
        %4565 = vmatprep.subr.bf16.mxu0 %v4546
        %4566 = vmatpush1.bf16.msra.mxu0 %v4543
        %4567 = vmatprep.subr.bf16.mxu0 0
        %4568 = vmatpush2.bf16.msra.mxu0 0
        %4569 = vmatprep.subr.bf16.mxu0 0
        %4570 = vmatpush2.bf16.msra.mxu0 0
        %4571 = vmatprep.subr.bf16.mxu0 0
        %4572 = vmatpush2.bf16.msra.mxu0 0
        %4573 = vmatprep.subr.bf16.mxu0 0
        %4574 = vmatpush2.bf16.msra.mxu0 0
        %4575 = vmatprep.subr.bf16.mxu0 0
        %4576 = vmatpush2.bf16.msra.mxu0 0
        %4577 = vmatprep.subr.bf16.mxu0 0
        %4578 = vmatpush2.bf16.msra.mxu0 0
        %4579 = vmatprep.subr.bf16.mxu0 0
        %4580 = vmatpush2.bf16.msra.mxu0 0
        %4581 = vmatprep.subr.bf16.mxu0 0
        %4582 = vmatpush2.bf16.msra.mxu0 0
        %4583 = vmatprep.mubr.bf16.mxu0 0
        %4584 = vmatmul.mubr.bf16.gmra.mxu0 %v4540
        %v4585 = vpop.f32.mrf.mxu0
        %v4586 = vadd.f32 0.0, %v4585
        %v4587 = vpop.f32.mrf.mxu0
        %v4588 = vadd.f32 0.0, %v4587
        %v4589 = vpop.f32.mrf.mxu0
        %v4590 = vpop.f32.mrf.mxu0
        %4591 = vdwg.mxu0
        %4592 = vmatprep.subr.bf16.mxu0 0
        %4593 = vmatpush1.bf16.msra.mxu0 0
        %4594 = vmatprep.subr.bf16.mxu0 0
        %4595 = vmatpush1.bf16.msra.mxu0 0
        %4596 = vmatprep.subr.bf16.mxu0 0
        %4597 = vmatpush1.bf16.msra.mxu0 0
        %4598 = vmatprep.subr.bf16.mxu0 0
        %4599 = vmatpush1.bf16.msra.mxu0 0
        %4600 = vmatprep.subr.bf16.mxu0 0
        %4601 = vmatpush1.bf16.msra.mxu0 0
        %4602 = vmatprep.subr.bf16.mxu0 0
        %4603 = vmatpush1.bf16.msra.mxu0 0
        %4604 = vmatprep.subr.bf16.mxu0 0
        %4605 = vmatpush1.bf16.msra.mxu0 0
        %4606 = vmatprep.subr.bf16.mxu0 0
        %4607 = vmatpush1.bf16.msra.mxu0 %v4549
        %4608 = vmatprep.subr.bf16.mxu0 0
        %4609 = vmatpush2.bf16.msra.mxu0 0
        %4610 = vmatprep.subr.bf16.mxu0 0
        %4611 = vmatpush2.bf16.msra.mxu0 0
        %4612 = vmatprep.subr.bf16.mxu0 0
        %4613 = vmatpush2.bf16.msra.mxu0 0
        %4614 = vmatprep.subr.bf16.mxu0 0
        %4615 = vmatpush2.bf16.msra.mxu0 0
        %4616 = vmatprep.subr.bf16.mxu0 0
        %4617 = vmatpush2.bf16.msra.mxu0 0
        %4618 = vmatprep.subr.bf16.mxu0 0
        %4619 = vmatpush2.bf16.msra.mxu0 0
        %4620 = vmatprep.subr.bf16.mxu0 0
        %4621 = vmatpush2.bf16.msra.mxu0 0
        %4622 = vmatprep.subr.bf16.mxu0 0
        %4623 = vmatpush2.bf16.msra.mxu0 0
        %4624 = vmatprep.mubr.bf16.mxu0 0
        %4625 = vmatmul.mubr.bf16.gmra.mxu0 %v4540
        %v4626 = vpop.f32.mrf.mxu0
        %v4627 = vadd.f32 0.0, %v4626
        %v4628 = vpop.f32.mrf.mxu0
        %v4629 = vpop.f32.mrf.mxu0
        %v4630 = vpop.f32.mrf.mxu0
        %4631 = vdwg.mxu0
        %v4632 = vadd.f32 %v4524, %v4586
        %v4633 = vadd.f32 %v4525, %v4588
        %v4634 = vadd.f32 %v4526, %v4627
        %v4635 = vld [vmem:[%s627] sm:$0xf]
        %4636 = vrot.lane.b32.xlu0 %v4213, 109
        %v4637 = vpop.permute.xlu0 %4636
        %4638 = vrot.lane.b32.xlu0 %v4214, 109
        %v4639 = vpop.permute.xlu0 %4638
        %4640 = vrot.lane.b32.xlu0 %v4215, 109
        %v4641 = vpop.permute.xlu0 %4640
        %4642 = vrot.lane.b32.xlu0 %v4216, 109
        %v4643 = vpop.permute.xlu0 %4642
        %v4644 = vsel %vm637, %v4637, %v4639
        %v4645 = vsel %vm637, %v4639, %v4641
        %v4646 = vsel %vm637, %v4641, %v4643
        %v4648 = vsel %vm214, %v4635, 0
        %v4651 = vsel %vm218, %v4644, 0
        %v4654 = vsel %vm218, %v4645, 0
        %v4657 = vsel %vm218, %v4646, 0
        %4659 = vmatprep.subr.bf16.mxu0 0
        %4660 = vmatpush1.bf16.msra.mxu0 0
        %4661 = vmatprep.subr.bf16.mxu0 0
        %4662 = vmatpush1.bf16.msra.mxu0 0
        %4663 = vmatprep.subr.bf16.mxu0 0
        %4664 = vmatpush1.bf16.msra.mxu0 0
        %4665 = vmatprep.subr.bf16.mxu0 0
        %4666 = vmatpush1.bf16.msra.mxu0 0
        %4667 = vmatprep.subr.bf16.mxu0 0
        %4668 = vmatpush1.bf16.msra.mxu0 0
        %4669 = vmatprep.subr.bf16.mxu0 0
        %4670 = vmatpush1.bf16.msra.mxu0 0
        %4671 = vmatprep.subr.bf16.mxu0 0
        %4672 = vmatpush1.bf16.msra.mxu0 0
        %4673 = vmatprep.subr.bf16.mxu0 %v4654
        %4674 = vmatpush1.bf16.msra.mxu0 %v4651
        %4675 = vmatprep.subr.bf16.mxu0 0
        %4676 = vmatpush2.bf16.msra.mxu0 0
        %4677 = vmatprep.subr.bf16.mxu0 0
        %4678 = vmatpush2.bf16.msra.mxu0 0
        %4679 = vmatprep.subr.bf16.mxu0 0
        %4680 = vmatpush2.bf16.msra.mxu0 0
        %4681 = vmatprep.subr.bf16.mxu0 0
        %4682 = vmatpush2.bf16.msra.mxu0 0
        %4683 = vmatprep.subr.bf16.mxu0 0
        %4684 = vmatpush2.bf16.msra.mxu0 0
        %4685 = vmatprep.subr.bf16.mxu0 0
        %4686 = vmatpush2.bf16.msra.mxu0 0
        %4687 = vmatprep.subr.bf16.mxu0 0
        %4688 = vmatpush2.bf16.msra.mxu0 0
        %4689 = vmatprep.subr.bf16.mxu0 0
        %4690 = vmatpush2.bf16.msra.mxu0 0
        %4691 = vmatprep.mubr.bf16.mxu0 0
        %4692 = vmatmul.mubr.bf16.gmra.mxu0 %v4648
        %v4693 = vpop.f32.mrf.mxu0
        %v4694 = vadd.f32 0.0, %v4693
        %v4695 = vpop.f32.mrf.mxu0
        %v4696 = vadd.f32 0.0, %v4695
        %v4697 = vpop.f32.mrf.mxu0
        %v4698 = vpop.f32.mrf.mxu0
        %4699 = vdwg.mxu0
        %4700 = vmatprep.subr.bf16.mxu0 0
        %4701 = vmatpush1.bf16.msra.mxu0 0
        %4702 = vmatprep.subr.bf16.mxu0 0
        %4703 = vmatpush1.bf16.msra.mxu0 0
        %4704 = vmatprep.subr.bf16.mxu0 0
        %4705 = vmatpush1.bf16.msra.mxu0 0
        %4706 = vmatprep.subr.bf16.mxu0 0
        %4707 = vmatpush1.bf16.msra.mxu0 0
        %4708 = vmatprep.subr.bf16.mxu0 0
        %4709 = vmatpush1.bf16.msra.mxu0 0
        %4710 = vmatprep.subr.bf16.mxu0 0
        %4711 = vmatpush1.bf16.msra.mxu0 0
        %4712 = vmatprep.subr.bf16.mxu0 0
        %4713 = vmatpush1.bf16.msra.mxu0 0
        %4714 = vmatprep.subr.bf16.mxu0 0
        %4715 = vmatpush1.bf16.msra.mxu0 %v4657
        %4716 = vmatprep.subr.bf16.mxu0 0
        %4717 = vmatpush2.bf16.msra.mxu0 0
        %4718 = vmatprep.subr.bf16.mxu0 0
        %4719 = vmatpush2.bf16.msra.mxu0 0
        %4720 = vmatprep.subr.bf16.mxu0 0
        %4721 = vmatpush2.bf16.msra.mxu0 0
        %4722 = vmatprep.subr.bf16.mxu0 0
        %4723 = vmatpush2.bf16.msra.mxu0 0
        %4724 = vmatprep.subr.bf16.mxu0 0
        %4725 = vmatpush2.bf16.msra.mxu0 0
        %4726 = vmatprep.subr.bf16.mxu0 0
        %4727 = vmatpush2.bf16.msra.mxu0 0
        %4728 = vmatprep.subr.bf16.mxu0 0
        %4729 = vmatpush2.bf16.msra.mxu0 0
        %4730 = vmatprep.subr.bf16.mxu0 0
        %4731 = vmatpush2.bf16.msra.mxu0 0
        %4732 = vmatprep.mubr.bf16.mxu0 0
        %4733 = vmatmul.mubr.bf16.gmra.mxu0 %v4648
        %v4734 = vpop.f32.mrf.mxu0
        %v4735 = vadd.f32 0.0, %v4734
        %v4736 = vpop.f32.mrf.mxu0
        %v4737 = vpop.f32.mrf.mxu0
        %v4738 = vpop.f32.mrf.mxu0
        %4739 = vdwg.mxu0
        %v4740 = vadd.f32 %v4632, %v4694
        %v4741 = vadd.f32 %v4633, %v4696
        %v4742 = vadd.f32 %v4634, %v4735
        %v4743 = vld [vmem:[%s737] sm:$0xf]
        %4744 = vrot.lane.b32.xlu0 %v4213, 108
        %v4745 = vpop.permute.xlu0 %4744
        %4746 = vrot.lane.b32.xlu0 %v4214, 108
        %v4747 = vpop.permute.xlu0 %4746
        %4748 = vrot.lane.b32.xlu0 %v4215, 108
        %v4749 = vpop.permute.xlu0 %4748
        %4750 = vrot.lane.b32.xlu0 %v4216, 108
        %v4751 = vpop.permute.xlu0 %4750
        %v4752 = vsel %vm747, %v4745, %v4747
        %v4753 = vsel %vm747, %v4747, %v4749
        %v4754 = vsel %vm747, %v4749, %v4751
        %v4756 = vsel %vm214, %v4743, 0
        %v4759 = vsel %vm218, %v4752, 0
        %v4762 = vsel %vm218, %v4753, 0
        %v4765 = vsel %vm218, %v4754, 0
        %4767 = vmatprep.subr.bf16.mxu0 0
        %4768 = vmatpush1.bf16.msra.mxu0 0
        %4769 = vmatprep.subr.bf16.mxu0 0
        %4770 = vmatpush1.bf16.msra.mxu0 0
        %4771 = vmatprep.subr.bf16.mxu0 0
        %4772 = vmatpush1.bf16.msra.mxu0 0
        %4773 = vmatprep.subr.bf16.mxu0 0
        %4774 = vmatpush1.bf16.msra.mxu0 0
        %4775 = vmatprep.subr.bf16.mxu0 0
        %4776 = vmatpush1.bf16.msra.mxu0 0
        %4777 = vmatprep.subr.bf16.mxu0 0
        %4778 = vmatpush1.bf16.msra.mxu0 0
        %4779 = vmatprep.subr.bf16.mxu0 0
        %4780 = vmatpush1.bf16.msra.mxu0 0
        %4781 = vmatprep.subr.bf16.mxu0 %v4762
        %4782 = vmatpush1.bf16.msra.mxu0 %v4759
        %4783 = vmatprep.subr.bf16.mxu0 0
        %4784 = vmatpush2.bf16.msra.mxu0 0
        %4785 = vmatprep.subr.bf16.mxu0 0
        %4786 = vmatpush2.bf16.msra.mxu0 0
        %4787 = vmatprep.subr.bf16.mxu0 0
        %4788 = vmatpush2.bf16.msra.mxu0 0
        %4789 = vmatprep.subr.bf16.mxu0 0
        %4790 = vmatpush2.bf16.msra.mxu0 0
        %4791 = vmatprep.subr.bf16.mxu0 0
        %4792 = vmatpush2.bf16.msra.mxu0 0
        %4793 = vmatprep.subr.bf16.mxu0 0
        %4794 = vmatpush2.bf16.msra.mxu0 0
        %4795 = vmatprep.subr.bf16.mxu0 0
        %4796 = vmatpush2.bf16.msra.mxu0 0
        %4797 = vmatprep.subr.bf16.mxu0 0
        %4798 = vmatpush2.bf16.msra.mxu0 0
        %4799 = vmatprep.mubr.bf16.mxu0 0
        %4800 = vmatmul.mubr.bf16.gmra.mxu0 %v4756
        %v4801 = vpop.f32.mrf.mxu0
        %v4802 = vadd.f32 0.0, %v4801
        %v4803 = vpop.f32.mrf.mxu0
        %v4804 = vadd.f32 0.0, %v4803
        %v4805 = vpop.f32.mrf.mxu0
        %v4806 = vpop.f32.mrf.mxu0
        %4807 = vdwg.mxu0
        %4808 = vmatprep.subr.bf16.mxu0 0
        %4809 = vmatpush1.bf16.msra.mxu0 0
        %4810 = vmatprep.subr.bf16.mxu0 0
        %4811 = vmatpush1.bf16.msra.mxu0 0
        %4812 = vmatprep.subr.bf16.mxu0 0
        %4813 = vmatpush1.bf16.msra.mxu0 0
        %4814 = vmatprep.subr.bf16.mxu0 0
        %4815 = vmatpush1.bf16.msra.mxu0 0
        %4816 = vmatprep.subr.bf16.mxu0 0
        %4817 = vmatpush1.bf16.msra.mxu0 0
        %4818 = vmatprep.subr.bf16.mxu0 0
        %4819 = vmatpush1.bf16.msra.mxu0 0
        %4820 = vmatprep.subr.bf16.mxu0 0
        %4821 = vmatpush1.bf16.msra.mxu0 0
        %4822 = vmatprep.subr.bf16.mxu0 0
        %4823 = vmatpush1.bf16.msra.mxu0 %v4765
        %4824 = vmatprep.subr.bf16.mxu0 0
        %4825 = vmatpush2.bf16.msra.mxu0 0
        %4826 = vmatprep.subr.bf16.mxu0 0
        %4827 = vmatpush2.bf16.msra.mxu0 0
        %4828 = vmatprep.subr.bf16.mxu0 0
        %4829 = vmatpush2.bf16.msra.mxu0 0
        %4830 = vmatprep.subr.bf16.mxu0 0
        %4831 = vmatpush2.bf16.msra.mxu0 0
        %4832 = vmatprep.subr.bf16.mxu0 0
        %4833 = vmatpush2.bf16.msra.mxu0 0
        %4834 = vmatprep.subr.bf16.mxu0 0
        %4835 = vmatpush2.bf16.msra.mxu0 0
        %4836 = vmatprep.subr.bf16.mxu0 0
        %4837 = vmatpush2.bf16.msra.mxu0 0
        %4838 = vmatprep.subr.bf16.mxu0 0
        %4839 = vmatpush2.bf16.msra.mxu0 0
        %4840 = vmatprep.mubr.bf16.mxu0 0
        %4841 = vmatmul.mubr.bf16.gmra.mxu0 %v4756
        %v4842 = vpop.f32.mrf.mxu0
        %v4843 = vadd.f32 0.0, %v4842
        %v4844 = vpop.f32.mrf.mxu0
        %v4845 = vpop.f32.mrf.mxu0
        %v4846 = vpop.f32.mrf.mxu0
        %4847 = vdwg.mxu0
        %v4848 = vadd.f32 %v4740, %v4802
        %v4849 = vadd.f32 %v4741, %v4804
        %v4850 = vadd.f32 %v4742, %v4843
        %v4851 = vld [vmem:[%s847] sm:$0xf]
        %4852 = vrot.lane.b32.xlu0 %v4213, 92
        %v4853 = vpop.permute.xlu0 %4852
        %4854 = vrot.lane.b32.xlu0 %v4214, 92
        %v4855 = vpop.permute.xlu0 %4854
        %4856 = vrot.lane.b32.xlu0 %v4215, 92
        %v4857 = vpop.permute.xlu0 %4856
        %4858 = vrot.lane.b32.xlu0 %v4216, 92
        %v4859 = vpop.permute.xlu0 %4858
        %v4860 = vsel %vm857, %v4853, %v4855
        %v4861 = vsel %vm857, %v4855, %v4857
        %v4862 = vsel %vm857, %v4857, %v4859
        %v4864 = vsel %vm214, %v4851, 0
        %v4867 = vsel %vm218, %v4860, 0
        %v4870 = vsel %vm218, %v4861, 0
        %v4873 = vsel %vm218, %v4862, 0
        %4875 = vmatprep.subr.bf16.mxu0 0
        %4876 = vmatpush1.bf16.msra.mxu0 0
        %4877 = vmatprep.subr.bf16.mxu0 0
        %4878 = vmatpush1.bf16.msra.mxu0 0
        %4879 = vmatprep.subr.bf16.mxu0 0
        %4880 = vmatpush1.bf16.msra.mxu0 0
        %4881 = vmatprep.subr.bf16.mxu0 0
        %4882 = vmatpush1.bf16.msra.mxu0 0
        %4883 = vmatprep.subr.bf16.mxu0 0
        %4884 = vmatpush1.bf16.msra.mxu0 0
        %4885 = vmatprep.subr.bf16.mxu0 0
        %4886 = vmatpush1.bf16.msra.mxu0 0
        %4887 = vmatprep.subr.bf16.mxu0 0
        %4888 = vmatpush1.bf16.msra.mxu0 0
        %4889 = vmatprep.subr.bf16.mxu0 %v4870
        %4890 = vmatpush1.bf16.msra.mxu0 %v4867
        %4891 = vmatprep.subr.bf16.mxu0 0
        %4892 = vmatpush2.bf16.msra.mxu0 0
        %4893 = vmatprep.subr.bf16.mxu0 0
        %4894 = vmatpush2.bf16.msra.mxu0 0
        %4895 = vmatprep.subr.bf16.mxu0 0
        %4896 = vmatpush2.bf16.msra.mxu0 0
        %4897 = vmatprep.subr.bf16.mxu0 0
        %4898 = vmatpush2.bf16.msra.mxu0 0
        %4899 = vmatprep.subr.bf16.mxu0 0
        %4900 = vmatpush2.bf16.msra.mxu0 0
        %4901 = vmatprep.subr.bf16.mxu0 0
        %4902 = vmatpush2.bf16.msra.mxu0 0
        %4903 = vmatprep.subr.bf16.mxu0 0
        %4904 = vmatpush2.bf16.msra.mxu0 0
        %4905 = vmatprep.subr.bf16.mxu0 0
        %4906 = vmatpush2.bf16.msra.mxu0 0
        %4907 = vmatprep.mubr.bf16.mxu0 0
        %4908 = vmatmul.mubr.bf16.gmra.mxu0 %v4864
        %v4909 = vpop.f32.mrf.mxu0
        %v4910 = vadd.f32 0.0, %v4909
        %v4911 = vpop.f32.mrf.mxu0
        %v4912 = vadd.f32 0.0, %v4911
        %v4913 = vpop.f32.mrf.mxu0
        %v4914 = vpop.f32.mrf.mxu0
        %4915 = vdwg.mxu0
        %4916 = vmatprep.subr.bf16.mxu0 0
        %4917 = vmatpush1.bf16.msra.mxu0 0
        %4918 = vmatprep.subr.bf16.mxu0 0
        %4919 = vmatpush1.bf16.msra.mxu0 0
        %4920 = vmatprep.subr.bf16.mxu0 0
        %4921 = vmatpush1.bf16.msra.mxu0 0
        %4922 = vmatprep.subr.bf16.mxu0 0
        %4923 = vmatpush1.bf16.msra.mxu0 0
        %4924 = vmatprep.subr.bf16.mxu0 0
        %4925 = vmatpush1.bf16.msra.mxu0 0
        %4926 = vmatprep.subr.bf16.mxu0 0
        %4927 = vmatpush1.bf16.msra.mxu0 0
        %4928 = vmatprep.subr.bf16.mxu0 0
        %4929 = vmatpush1.bf16.msra.mxu0 0
        %4930 = vmatprep.subr.bf16.mxu0 0
        %4931 = vmatpush1.bf16.msra.mxu0 %v4873
        %4932 = vmatprep.subr.bf16.mxu0 0
        %4933 = vmatpush2.bf16.msra.mxu0 0
        %4934 = vmatprep.subr.bf16.mxu0 0
        %4935 = vmatpush2.bf16.msra.mxu0 0
        %4936 = vmatprep.subr.bf16.mxu0 0
        %4937 = vmatpush2.bf16.msra.mxu0 0
        %4938 = vmatprep.subr.bf16.mxu0 0
        %4939 = vmatpush2.bf16.msra.mxu0 0
        %4940 = vmatprep.subr.bf16.mxu0 0
        %4941 = vmatpush2.bf16.msra.mxu0 0
        %4942 = vmatprep.subr.bf16.mxu0 0
        %4943 = vmatpush2.bf16.msra.mxu0 0
        %4944 = vmatprep.subr.bf16.mxu0 0
        %4945 = vmatpush2.bf16.msra.mxu0 0
        %4946 = vmatprep.subr.bf16.mxu0 0
        %4947 = vmatpush2.bf16.msra.mxu0 0
        %4948 = vmatprep.mubr.bf16.mxu0 0
        %4949 = vmatmul.mubr.bf16.gmra.mxu0 %v4864
        %v4950 = vpop.f32.mrf.mxu0
        %v4951 = vadd.f32 0.0, %v4950
        %v4952 = vpop.f32.mrf.mxu0
        %v4953 = vpop.f32.mrf.mxu0
        %v4954 = vpop.f32.mrf.mxu0
        %4955 = vdwg.mxu0
        %v4956 = vadd.f32 %v4848, %v4910
        %v4957 = vadd.f32 %v4849, %v4912
        %v4958 = vadd.f32 %v4850, %v4951
        %v4959 = vld [vmem:[%s957] sm:$0xf]
        %4960 = vrot.lane.b32.xlu0 %v4213, 91
        %v4961 = vpop.permute.xlu0 %4960
        %4962 = vrot.lane.b32.xlu0 %v4214, 91
        %v4963 = vpop.permute.xlu0 %4962
        %4964 = vrot.lane.b32.xlu0 %v4215, 91
        %v4965 = vpop.permute.xlu0 %4964
        %4966 = vrot.lane.b32.xlu0 %v4216, 91
        %v4967 = vpop.permute.xlu0 %4966
        %v4968 = vsel %vm967, %v4961, %v4963
        %v4969 = vsel %vm967, %v4963, %v4965
        %v4970 = vsel %vm967, %v4965, %v4967
        %v4972 = vsel %vm214, %v4959, 0
        %v4975 = vsel %vm218, %v4968, 0
        %v4978 = vsel %vm218, %v4969, 0
        %v4981 = vsel %vm218, %v4970, 0
        %4983 = vmatprep.subr.bf16.mxu0 0
        %4984 = vmatpush1.bf16.msra.mxu0 0
        %4985 = vmatprep.subr.bf16.mxu0 0
        %4986 = vmatpush1.bf16.msra.mxu0 0
        %4987 = vmatprep.subr.bf16.mxu0 0
        %4988 = vmatpush1.bf16.msra.mxu0 0
        %4989 = vmatprep.subr.bf16.mxu0 0
        %4990 = vmatpush1.bf16.msra.mxu0 0
        %4991 = vmatprep.subr.bf16.mxu0 0
        %4992 = vmatpush1.bf16.msra.mxu0 0
        %4993 = vmatprep.subr.bf16.mxu0 0
        %4994 = vmatpush1.bf16.msra.mxu0 0
        %4995 = vmatprep.subr.bf16.mxu0 0
        %4996 = vmatpush1.bf16.msra.mxu0 0
        %4997 = vmatprep.subr.bf16.mxu0 %v4978
        %4998 = vmatpush1.bf16.msra.mxu0 %v4975
        %4999 = vmatprep.subr.bf16.mxu0 0
        %5000 = vmatpush2.bf16.msra.mxu0 0
        %5001 = vmatprep.subr.bf16.mxu0 0
        %5002 = vmatpush2.bf16.msra.mxu0 0
        %5003 = vmatprep.subr.bf16.mxu0 0
        %5004 = vmatpush2.bf16.msra.mxu0 0
        %5005 = vmatprep.subr.bf16.mxu0 0
        %5006 = vmatpush2.bf16.msra.mxu0 0
        %5007 = vmatprep.subr.bf16.mxu0 0
        %5008 = vmatpush2.bf16.msra.mxu0 0
        %5009 = vmatprep.subr.bf16.mxu0 0
        %5010 = vmatpush2.bf16.msra.mxu0 0
        %5011 = vmatprep.subr.bf16.mxu0 0
        %5012 = vmatpush2.bf16.msra.mxu0 0
        %5013 = vmatprep.subr.bf16.mxu0 0
        %5014 = vmatpush2.bf16.msra.mxu0 0
        %5015 = vmatprep.mubr.bf16.mxu0 0
        %5016 = vmatmul.mubr.bf16.gmra.mxu0 %v4972
        %v5017 = vpop.f32.mrf.mxu0
        %v5018 = vadd.f32 0.0, %v5017
        %v5019 = vpop.f32.mrf.mxu0
        %v5020 = vadd.f32 0.0, %v5019
        %v5021 = vpop.f32.mrf.mxu0
        %v5022 = vpop.f32.mrf.mxu0
        %5023 = vdwg.mxu0
        %5024 = vmatprep.subr.bf16.mxu0 0
        %5025 = vmatpush1.bf16.msra.mxu0 0
        %5026 = vmatprep.subr.bf16.mxu0 0
        %5027 = vmatpush1.bf16.msra.mxu0 0
        %5028 = vmatprep.subr.bf16.mxu0 0
        %5029 = vmatpush1.bf16.msra.mxu0 0
        %5030 = vmatprep.subr.bf16.mxu0 0
        %5031 = vmatpush1.bf16.msra.mxu0 0
        %5032 = vmatprep.subr.bf16.mxu0 0
        %5033 = vmatpush1.bf16.msra.mxu0 0
        %5034 = vmatprep.subr.bf16.mxu0 0
        %5035 = vmatpush1.bf16.msra.mxu0 0
        %5036 = vmatprep.subr.bf16.mxu0 0
        %5037 = vmatpush1.bf16.msra.mxu0 0
        %5038 = vmatprep.subr.bf16.mxu0 0
        %5039 = vmatpush1.bf16.msra.mxu0 %v4981
        %5040 = vmatprep.subr.bf16.mxu0 0
        %5041 = vmatpush2.bf16.msra.mxu0 0
        %5042 = vmatprep.subr.bf16.mxu0 0
        %5043 = vmatpush2.bf16.msra.mxu0 0
        %5044 = vmatprep.subr.bf16.mxu0 0
        %5045 = vmatpush2.bf16.msra.mxu0 0
        %5046 = vmatprep.subr.bf16.mxu0 0
        %5047 = vmatpush2.bf16.msra.mxu0 0
        %5048 = vmatprep.subr.bf16.mxu0 0
        %5049 = vmatpush2.bf16.msra.mxu0 0
        %5050 = vmatprep.subr.bf16.mxu0 0
        %5051 = vmatpush2.bf16.msra.mxu0 0
        %5052 = vmatprep.subr.bf16.mxu0 0
        %5053 = vmatpush2.bf16.msra.mxu0 0
        %5054 = vmatprep.subr.bf16.mxu0 0
        %5055 = vmatpush2.bf16.msra.mxu0 0
        %5056 = vmatprep.mubr.bf16.mxu0 0
        %5057 = vmatmul.mubr.bf16.gmra.mxu0 %v4972
        %v5058 = vpop.f32.mrf.mxu0
        %v5059 = vadd.f32 0.0, %v5058
        %v5060 = vpop.f32.mrf.mxu0
        %v5061 = vpop.f32.mrf.mxu0
        %v5062 = vpop.f32.mrf.mxu0
        %5063 = vdwg.mxu0
        %v5064 = vadd.f32 %v4956, %v5018
        %v5065 = vadd.f32 %v4957, %v5020
        %v5066 = vadd.f32 %v4958, %v5059
        %v5067 = vld [vmem:[%s1067] sm:$0xf]
        %5068 = vrot.lane.b32.xlu0 %v4213, 90
        %v5069 = vpop.permute.xlu0 %5068
        %5070 = vrot.lane.b32.xlu0 %v4214, 90
        %v5071 = vpop.permute.xlu0 %5070
        %5072 = vrot.lane.b32.xlu0 %v4215, 90
        %v5073 = vpop.permute.xlu0 %5072
        %5074 = vrot.lane.b32.xlu0 %v4216, 90
        %v5075 = vpop.permute.xlu0 %5074
        %v5076 = vsel %vm1077, %v5069, %v5071
        %v5077 = vsel %vm1077, %v5071, %v5073
        %v5078 = vsel %vm1077, %v5073, %v5075
        %v5080 = vsel %vm214, %v5067, 0
        %v5083 = vsel %vm218, %v5076, 0
        %v5086 = vsel %vm218, %v5077, 0
        %v5089 = vsel %vm218, %v5078, 0
        %5091 = vmatprep.subr.bf16.mxu0 0
        %5092 = vmatpush1.bf16.msra.mxu0 0
        %5093 = vmatprep.subr.bf16.mxu0 0
        %5094 = vmatpush1.bf16.msra.mxu0 0
        %5095 = vmatprep.subr.bf16.mxu0 0
        %5096 = vmatpush1.bf16.msra.mxu0 0
        %5097 = vmatprep.subr.bf16.mxu0 0
        %5098 = vmatpush1.bf16.msra.mxu0 0
        %5099 = vmatprep.subr.bf16.mxu0 0
        %5100 = vmatpush1.bf16.msra.mxu0 0
        %5101 = vmatprep.subr.bf16.mxu0 0
        %5102 = vmatpush1.bf16.msra.mxu0 0
        %5103 = vmatprep.subr.bf16.mxu0 0
        %5104 = vmatpush1.bf16.msra.mxu0 0
        %5105 = vmatprep.subr.bf16.mxu0 %v5086
        %5106 = vmatpush1.bf16.msra.mxu0 %v5083
        %5107 = vmatprep.subr.bf16.mxu0 0
        %5108 = vmatpush2.bf16.msra.mxu0 0
        %5109 = vmatprep.subr.bf16.mxu0 0
        %5110 = vmatpush2.bf16.msra.mxu0 0
        %5111 = vmatprep.subr.bf16.mxu0 0
        %5112 = vmatpush2.bf16.msra.mxu0 0
        %5113 = vmatprep.subr.bf16.mxu0 0
        %5114 = vmatpush2.bf16.msra.mxu0 0
        %5115 = vmatprep.subr.bf16.mxu0 0
        %5116 = vmatpush2.bf16.msra.mxu0 0
        %5117 = vmatprep.subr.bf16.mxu0 0
        %5118 = vmatpush2.bf16.msra.mxu0 0
        %5119 = vmatprep.subr.bf16.mxu0 0
        %5120 = vmatpush2.bf16.msra.mxu0 0
        %5121 = vmatprep.subr.bf16.mxu0 0
        %5122 = vmatpush2.bf16.msra.mxu0 0
        %5123 = vmatprep.mubr.bf16.mxu0 0
        %5124 = vmatmul.mubr.bf16.gmra.mxu0 %v5080
        %v5125 = vpop.f32.mrf.mxu0
        %v5126 = vadd.f32 0.0, %v5125
        %v5127 = vpop.f32.mrf.mxu0
        %v5128 = vadd.f32 0.0, %v5127
        %v5129 = vpop.f32.mrf.mxu0
        %v5130 = vpop.f32.mrf.mxu0
        %5131 = vdwg.mxu0
        %5132 = vmatprep.subr.bf16.mxu0 0
        %5133 = vmatpush1.bf16.msra.mxu0 0
        %5134 = vmatprep.subr.bf16.mxu0 0
        %5135 = vmatpush1.bf16.msra.mxu0 0
        %5136 = vmatprep.subr.bf16.mxu0 0
        %5137 = vmatpush1.bf16.msra.mxu0 0
        %5138 = vmatprep.subr.bf16.mxu0 0
        %5139 = vmatpush1.bf16.msra.mxu0 0
        %5140 = vmatprep.subr.bf16.mxu0 0
        %5141 = vmatpush1.bf16.msra.mxu0 0
        %5142 = vmatprep.subr.bf16.mxu0 0
        %5143 = vmatpush1.bf16.msra.mxu0 0
        %5144 = vmatprep.subr.bf16.mxu0 0
        %5145 = vmatpush1.bf16.msra.mxu0 0
        %5146 = vmatprep.subr.bf16.mxu0 0
        %5147 = vmatpush1.bf16.msra.mxu0 %v5089
        %5148 = vmatprep.subr.bf16.mxu0 0
        %5149 = vmatpush2.bf16.msra.mxu0 0
        %5150 = vmatprep.subr.bf16.mxu0 0
        %5151 = vmatpush2.bf16.msra.mxu0 0
        %5152 = vmatprep.subr.bf16.mxu0 0
        %5153 = vmatpush2.bf16.msra.mxu0 0
        %5154 = vmatprep.subr.bf16.mxu0 0
        %5155 = vmatpush2.bf16.msra.mxu0 0
        %5156 = vmatprep.subr.bf16.mxu0 0
        %5157 = vmatpush2.bf16.msra.mxu0 0
        %5158 = vmatprep.subr.bf16.mxu0 0
        %5159 = vmatpush2.bf16.msra.mxu0 0
        %5160 = vmatprep.subr.bf16.mxu0 0
        %5161 = vmatpush2.bf16.msra.mxu0 0
        %5162 = vmatprep.subr.bf16.mxu0 0
        %5163 = vmatpush2.bf16.msra.mxu0 0
        %5164 = vmatprep.mubr.bf16.mxu0 0
        %5165 = vmatmul.mubr.bf16.gmra.mxu0 %v5080
        %v5166 = vpop.f32.mrf.mxu0
        %v5167 = vadd.f32 0.0, %v5166
        %v5168 = vpop.f32.mrf.mxu0
        %v5169 = vpop.f32.mrf.mxu0
        %v5170 = vpop.f32.mrf.mxu0
        %5171 = vdwg.mxu0
        %v5172 = vadd.f32 %v5064, %v5126
        %v5173 = vadd.f32 %v5065, %v5128
        %v5174 = vadd.f32 %v5066, %v5167
        %v5175 = vld [vmem:[%s2] sm:$0xff]
        %5177 = vset.pattern.permute.xlu0 0
        %5178 = vperm.xlu0 %5177, %v5175
        %v5179 = vpop.permute.xlu0 %5178
        %v5181 = vadd.f32 %v5172, %v5179
        %v5182 = vadd.f32 %v5173, %v5179
        %v5183 = vadd.f32 %v5174, %v5179
        %v5184 = vmax.f32 %v5181, 0.0
        %v5185 = vmax.f32 %v5182, 0.0
        %v5186 = vmax.f32 %v5183, 0.0
        %5187 = vst [vmem:[%s151 + $0x60] sm:$0xff] %v5184
        %5188 = vst [vmem:[%s151 + $0x68] sm:$0xff] %v5185
        %5189 = vst [vmem:[%s151 + $0x70] sm:$0xff] %v5186
        %v5190 = vld [vmem:[#allocation2 + $0x20] sm:$0xcc]
        %v5191 = vld [vmem:[#allocation2 + $0x28] sm:$0xc]
        %v5192 = vld [vmem:[#allocation2 + $0x30] sm:$0xff]
        %v5193 = vld [vmem:[#allocation2 + $0x38] sm:$0xf]
        %v5194 = vld [vmem:[#allocation4] sm:$0xf]
        %v5195 = vld [vmem:[#allocation2 + $0x28] sm:$0xcc]
        %v5196 = vld [vmem:[#allocation2 + $0x38] sm:$0xff]
        %v5197 = vld [vmem:[%s184] sm:$0xf]
        %v5202 = vunpack.c.l.b16 %v5190
        %v5203 = vunpack.c.h.b16 %v5190
        %v5204 = vunpack.c.l.b16 %v5195
        %v5205 = vunpack.c.h.b16 %v5195
        %v5206 = vunpack.c.l.b16 %v5192
        %v5207 = vunpack.c.h.b16 %v5192
        %v5208 = vunpack.c.l.b16 %v5196
        %v5209 = vunpack.c.h.b16 %v5196
        %v5210 = vpack.c.b16 %v5206, %v5202
        %v5211 = vpack.c.b16 %v5207, %v5203
        %v5212 = vpack.c.b16 %v5208, %v5204
        %v5213 = vpack.c.b16 %v5209, %v5205
        %v5214 = vrot.slane %v5210, 2
        %v5215 = vrot.slane %v5211, 2
        %v5216 = vrot.slane %v5212, 2
        %v5217 = vrot.slane %v5213, 2
        %5218 = vrot.lane.b32.xlu0 %v5214, 127
        %v5219 = vpop.permute.xlu0 %5218
        %5220 = vrot.lane.b32.xlu0 %v5215, 127
        %v5221 = vpop.permute.xlu0 %5220
        %5222 = vrot.lane.b32.xlu0 %v5216, 127
        %v5223 = vpop.permute.xlu0 %5222
        %5224 = vrot.lane.b32.xlu0 %v5217, 127
        %v5225 = vpop.permute.xlu0 %5224
        %v5226 = vsel %vm210, %v5219, %v5221
        %v5227 = vsel %vm210, %v5221, %v5223
        %v5228 = vsel %vm210, %v5223, %v5225
        %v5230 = vsel %vm214, %v5197, 0
        %v5233 = vsel %vm218, %v5226, 0
        %v5236 = vsel %vm218, %v5227, 0
        %v5239 = vsel %vm218, %v5228, 0
        %5241 = vmatprep.subr.bf16.mxu0 0
        %5242 = vmatpush1.bf16.msra.mxu0 0
        %5243 = vmatprep.subr.bf16.mxu0 0
        %5244 = vmatpush1.bf16.msra.mxu0 0
        %5245 = vmatprep.subr.bf16.mxu0 0
        %5246 = vmatpush1.bf16.msra.mxu0 0
        %5247 = vmatprep.subr.bf16.mxu0 0
        %5248 = vmatpush1.bf16.msra.mxu0 0
        %5249 = vmatprep.subr.bf16.mxu0 0
        %5250 = vmatpush1.bf16.msra.mxu0 0
        %5251 = vmatprep.subr.bf16.mxu0 0
        %5252 = vmatpush1.bf16.msra.mxu0 0
        %5253 = vmatprep.subr.bf16.mxu0 0
        %5254 = vmatpush1.bf16.msra.mxu0 0
        %5255 = vmatprep.subr.bf16.mxu0 %v5236
        %5256 = vmatpush1.bf16.msra.mxu0 %v5233
        %5257 = vmatprep.subr.bf16.mxu0 0
        %5258 = vmatpush2.bf16.msra.mxu0 0
        %5259 = vmatprep.subr.bf16.mxu0 0
        %5260 = vmatpush2.bf16.msra.mxu0 0
        %5261 = vmatprep.subr.bf16.mxu0 0
        %5262 = vmatpush2.bf16.msra.mxu0 0
        %5263 = vmatprep.subr.bf16.mxu0 0
        %5264 = vmatpush2.bf16.msra.mxu0 0
        %5265 = vmatprep.subr.bf16.mxu0 0
        %5266 = vmatpush2.bf16.msra.mxu0 0
        %5267 = vmatprep.subr.bf16.mxu0 0
        %5268 = vmatpush2.bf16.msra.mxu0 0
        %5269 = vmatprep.subr.bf16.mxu0 0
        %5270 = vmatpush2.bf16.msra.mxu0 0
        %5271 = vmatprep.subr.bf16.mxu0 0
        %5272 = vmatpush2.bf16.msra.mxu0 0
        %5273 = vmatprep.mubr.bf16.mxu0 0
        %5274 = vmatmul.mubr.bf16.gmra.mxu0 %v5230
        %v5275 = vpop.f32.mrf.mxu0
        %v5276 = vadd.f32 0.0, %v5275
        %v5277 = vpop.f32.mrf.mxu0
        %v5278 = vadd.f32 0.0, %v5277
        %v5279 = vpop.f32.mrf.mxu0
        %v5280 = vpop.f32.mrf.mxu0
        %5281 = vdwg.mxu0
        %5282 = vmatprep.subr.bf16.mxu0 0
        %5283 = vmatpush1.bf16.msra.mxu0 0
        %5284 = vmatprep.subr.bf16.mxu0 0
        %5285 = vmatpush1.bf16.msra.mxu0 0
        %5286 = vmatprep.subr.bf16.mxu0 0
        %5287 = vmatpush1.bf16.msra.mxu0 0
        %5288 = vmatprep.subr.bf16.mxu0 0
        %5289 = vmatpush1.bf16.msra.mxu0 0
        %5290 = vmatprep.subr.bf16.mxu0 0
        %5291 = vmatpush1.bf16.msra.mxu0 0
        %5292 = vmatprep.subr.bf16.mxu0 0
        %5293 = vmatpush1.bf16.msra.mxu0 0
        %5294 = vmatprep.subr.bf16.mxu0 0
        %5295 = vmatpush1.bf16.msra.mxu0 0
        %5296 = vmatprep.subr.bf16.mxu0 0
        %5297 = vmatpush1.bf16.msra.mxu0 %v5239
        %5298 = vmatprep.subr.bf16.mxu0 0
        %5299 = vmatpush2.bf16.msra.mxu0 0
        %5300 = vmatprep.subr.bf16.mxu0 0
        %5301 = vmatpush2.bf16.msra.mxu0 0
        %5302 = vmatprep.subr.bf16.mxu0 0
        %5303 = vmatpush2.bf16.msra.mxu0 0
        %5304 = vmatprep.subr.bf16.mxu0 0
        %5305 = vmatpush2.bf16.msra.mxu0 0
        %5306 = vmatprep.subr.bf16.mxu0 0
        %5307 = vmatpush2.bf16.msra.mxu0 0
        %5308 = vmatprep.subr.bf16.mxu0 0
        %5309 = vmatpush2.bf16.msra.mxu0 0
        %5310 = vmatprep.subr.bf16.mxu0 0
        %5311 = vmatpush2.bf16.msra.mxu0 0
        %5312 = vmatprep.subr.bf16.mxu0 0
        %5313 = vmatpush2.bf16.msra.mxu0 0
        %5314 = vmatprep.mubr.bf16.mxu0 0
        %5315 = vmatmul.mubr.bf16.gmra.mxu0 %v5230
        %v5316 = vpop.f32.mrf.mxu0
        %v5317 = vadd.f32 0.0, %v5316
        %v5318 = vpop.f32.mrf.mxu0
        %v5319 = vpop.f32.mrf.mxu0
        %v5320 = vpop.f32.mrf.mxu0
        %5321 = vdwg.mxu0
        %v5324 = vunpack.c.l.b16 %v5191
        %v5325 = vunpack.c.l.b16 %v5193
        %v5326 = vpack.c.b16 %v5325, %v5324
        %v5327 = vrot.slane %v5326, 2
        %v5329 = vsel %vm214, %v5194, 0
        %v5332 = vsel %vm218, %v5214, 0
        %v5335 = vsel %vm218, %v5215, 0
        %v5338 = vsel %vm218, %v5327, 0
        %5340 = vmatprep.subr.bf16.mxu0 0
        %5341 = vmatpush1.bf16.msra.mxu0 0
        %5342 = vmatprep.subr.bf16.mxu0 0
        %5343 = vmatpush1.bf16.msra.mxu0 0
        %5344 = vmatprep.subr.bf16.mxu0 0
        %5345 = vmatpush1.bf16.msra.mxu0 0
        %5346 = vmatprep.subr.bf16.mxu0 0
        %5347 = vmatpush1.bf16.msra.mxu0 0
        %5348 = vmatprep.subr.bf16.mxu0 0
        %5349 = vmatpush1.bf16.msra.mxu0 0
        %5350 = vmatprep.subr.bf16.mxu0 0
        %5351 = vmatpush1.bf16.msra.mxu0 0
        %5352 = vmatprep.subr.bf16.mxu0 0
        %5353 = vmatpush1.bf16.msra.mxu0 0
        %5354 = vmatprep.subr.bf16.mxu0 %v5335
        %5355 = vmatpush1.bf16.msra.mxu0 %v5332
        %5356 = vmatprep.subr.bf16.mxu0 0
        %5357 = vmatpush2.bf16.msra.mxu0 0
        %5358 = vmatprep.subr.bf16.mxu0 0
        %5359 = vmatpush2.bf16.msra.mxu0 0
        %5360 = vmatprep.subr.bf16.mxu0 0
        %5361 = vmatpush2.bf16.msra.mxu0 0
        %5362 = vmatprep.subr.bf16.mxu0 0
        %5363 = vmatpush2.bf16.msra.mxu0 0
        %5364 = vmatprep.subr.bf16.mxu0 0
        %5365 = vmatpush2.bf16.msra.mxu0 0
        %5366 = vmatprep.subr.bf16.mxu0 0
        %5367 = vmatpush2.bf16.msra.mxu0 0
        %5368 = vmatprep.subr.bf16.mxu0 0
        %5369 = vmatpush2.bf16.msra.mxu0 0
        %5370 = vmatprep.subr.bf16.mxu0 0
        %5371 = vmatpush2.bf16.msra.mxu0 0
        %5372 = vmatprep.mubr.bf16.mxu0 0
        %5373 = vmatmul.mubr.bf16.gmra.mxu0 %v5329
        %v5374 = vpop.f32.mrf.mxu0
        %v5375 = vadd.f32 %v5276, %v5374
        %v5376 = vpop.f32.mrf.mxu0
        %v5377 = vadd.f32 %v5278, %v5376
        %v5378 = vpop.f32.mrf.mxu0
        %v5379 = vpop.f32.mrf.mxu0
        %5380 = vdwg.mxu0
        %5381 = vmatprep.subr.bf16.mxu0 0
        %5382 = vmatpush1.bf16.msra.mxu0 0
        %5383 = vmatprep.subr.bf16.mxu0 0
        %5384 = vmatpush1.bf16.msra.mxu0 0
        %5385 = vmatprep.subr.bf16.mxu0 0
        %5386 = vmatpush1.bf16.msra.mxu0 0
        %5387 = vmatprep.subr.bf16.mxu0 0
        %5388 = vmatpush1.bf16.msra.mxu0 0
        %5389 = vmatprep.subr.bf16.mxu0 0
        %5390 = vmatpush1.bf16.msra.mxu0 0
        %5391 = vmatprep.subr.bf16.mxu0 0
        %5392 = vmatpush1.bf16.msra.mxu0 0
        %5393 = vmatprep.subr.bf16.mxu0 0
        %5394 = vmatpush1.bf16.msra.mxu0 0
        %5395 = vmatprep.subr.bf16.mxu0 0
        %5396 = vmatpush1.bf16.msra.mxu0 %v5338
        %5397 = vmatprep.subr.bf16.mxu0 0
        %5398 = vmatpush2.bf16.msra.mxu0 0
        %5399 = vmatprep.subr.bf16.mxu0 0
        %5400 = vmatpush2.bf16.msra.mxu0 0
        %5401 = vmatprep.subr.bf16.mxu0 0
        %5402 = vmatpush2.bf16.msra.mxu0 0
        %5403 = vmatprep.subr.bf16.mxu0 0
        %5404 = vmatpush2.bf16.msra.mxu0 0
        %5405 = vmatprep.subr.bf16.mxu0 0
        %5406 = vmatpush2.bf16.msra.mxu0 0
        %5407 = vmatprep.subr.bf16.mxu0 0
        %5408 = vmatpush2.bf16.msra.mxu0 0
        %5409 = vmatprep.subr.bf16.mxu0 0
        %5410 = vmatpush2.bf16.msra.mxu0 0
        %5411 = vmatprep.subr.bf16.mxu0 0
        %5412 = vmatpush2.bf16.msra.mxu0 0
        %5413 = vmatprep.mubr.bf16.mxu0 0
        %5414 = vmatmul.mubr.bf16.gmra.mxu0 %v5329
        %v5415 = vpop.f32.mrf.mxu0
        %v5416 = vadd.f32 %v5317, %v5415
        %v5417 = vpop.f32.mrf.mxu0
        %v5418 = vpop.f32.mrf.mxu0
        %v5419 = vpop.f32.mrf.mxu0
        %5420 = vdwg.mxu0
        %v5421 = vld [vmem:[%s407] sm:$0xf]
        %5422 = vrot.lane.b32.xlu0 %v5214, 126
        %v5423 = vpop.permute.xlu0 %5422
        %5424 = vrot.lane.b32.xlu0 %v5215, 126
        %v5425 = vpop.permute.xlu0 %5424
        %5426 = vrot.lane.b32.xlu0 %v5216, 126
        %v5427 = vpop.permute.xlu0 %5426
        %5428 = vrot.lane.b32.xlu0 %v5217, 126
        %v5429 = vpop.permute.xlu0 %5428
        %v5430 = vsel %vm417, %v5423, %v5425
        %v5431 = vsel %vm417, %v5425, %v5427
        %v5432 = vsel %vm417, %v5427, %v5429
        %v5434 = vsel %vm214, %v5421, 0
        %v5437 = vsel %vm218, %v5430, 0
        %v5440 = vsel %vm218, %v5431, 0
        %v5443 = vsel %vm218, %v5432, 0
        %5445 = vmatprep.subr.bf16.mxu0 0
        %5446 = vmatpush1.bf16.msra.mxu0 0
        %5447 = vmatprep.subr.bf16.mxu0 0
        %5448 = vmatpush1.bf16.msra.mxu0 0
        %5449 = vmatprep.subr.bf16.mxu0 0
        %5450 = vmatpush1.bf16.msra.mxu0 0
        %5451 = vmatprep.subr.bf16.mxu0 0
        %5452 = vmatpush1.bf16.msra.mxu0 0
        %5453 = vmatprep.subr.bf16.mxu0 0
        %5454 = vmatpush1.bf16.msra.mxu0 0
        %5455 = vmatprep.subr.bf16.mxu0 0
        %5456 = vmatpush1.bf16.msra.mxu0 0
        %5457 = vmatprep.subr.bf16.mxu0 0
        %5458 = vmatpush1.bf16.msra.mxu0 0
        %5459 = vmatprep.subr.bf16.mxu0 %v5440
        %5460 = vmatpush1.bf16.msra.mxu0 %v5437
        %5461 = vmatprep.subr.bf16.mxu0 0
        %5462 = vmatpush2.bf16.msra.mxu0 0
        %5463 = vmatprep.subr.bf16.mxu0 0
        %5464 = vmatpush2.bf16.msra.mxu0 0
        %5465 = vmatprep.subr.bf16.mxu0 0
        %5466 = vmatpush2.bf16.msra.mxu0 0
        %5467 = vmatprep.subr.bf16.mxu0 0
        %5468 = vmatpush2.bf16.msra.mxu0 0
        %5469 = vmatprep.subr.bf16.mxu0 0
        %5470 = vmatpush2.bf16.msra.mxu0 0
        %5471 = vmatprep.subr.bf16.mxu0 0
        %5472 = vmatpush2.bf16.msra.mxu0 0
        %5473 = vmatprep.subr.bf16.mxu0 0
        %5474 = vmatpush2.bf16.msra.mxu0 0
        %5475 = vmatprep.subr.bf16.mxu0 0
        %5476 = vmatpush2.bf16.msra.mxu0 0
        %5477 = vmatprep.mubr.bf16.mxu0 0
        %5478 = vmatmul.mubr.bf16.gmra.mxu0 %v5434
        %v5479 = vpop.f32.mrf.mxu0
        %v5480 = vadd.f32 0.0, %v5479
        %v5481 = vpop.f32.mrf.mxu0
        %v5482 = vadd.f32 0.0, %v5481
        %v5483 = vpop.f32.mrf.mxu0
        %v5484 = vpop.f32.mrf.mxu0
        %5485 = vdwg.mxu0
        %5486 = vmatprep.subr.bf16.mxu0 0
        %5487 = vmatpush1.bf16.msra.mxu0 0
        %5488 = vmatprep.subr.bf16.mxu0 0
        %5489 = vmatpush1.bf16.msra.mxu0 0
        %5490 = vmatprep.subr.bf16.mxu0 0
        %5491 = vmatpush1.bf16.msra.mxu0 0
        %5492 = vmatprep.subr.bf16.mxu0 0
        %5493 = vmatpush1.bf16.msra.mxu0 0
        %5494 = vmatprep.subr.bf16.mxu0 0
        %5495 = vmatpush1.bf16.msra.mxu0 0
        %5496 = vmatprep.subr.bf16.mxu0 0
        %5497 = vmatpush1.bf16.msra.mxu0 0
        %5498 = vmatprep.subr.bf16.mxu0 0
        %5499 = vmatpush1.bf16.msra.mxu0 0
        %5500 = vmatprep.subr.bf16.mxu0 0
        %5501 = vmatpush1.bf16.msra.mxu0 %v5443
        %5502 = vmatprep.subr.bf16.mxu0 0
        %5503 = vmatpush2.bf16.msra.mxu0 0
        %5504 = vmatprep.subr.bf16.mxu0 0
        %5505 = vmatpush2.bf16.msra.mxu0 0
        %5506 = vmatprep.subr.bf16.mxu0 0
        %5507 = vmatpush2.bf16.msra.mxu0 0
        %5508 = vmatprep.subr.bf16.mxu0 0
        %5509 = vmatpush2.bf16.msra.mxu0 0
        %5510 = vmatprep.subr.bf16.mxu0 0
        %5511 = vmatpush2.bf16.msra.mxu0 0
        %5512 = vmatprep.subr.bf16.mxu0 0
        %5513 = vmatpush2.bf16.msra.mxu0 0
        %5514 = vmatprep.subr.bf16.mxu0 0
        %5515 = vmatpush2.bf16.msra.mxu0 0
        %5516 = vmatprep.subr.bf16.mxu0 0
        %5517 = vmatpush2.bf16.msra.mxu0 0
        %5518 = vmatprep.mubr.bf16.mxu0 0
        %5519 = vmatmul.mubr.bf16.gmra.mxu0 %v5434
        %v5520 = vpop.f32.mrf.mxu0
        %v5521 = vadd.f32 0.0, %v5520
        %v5522 = vpop.f32.mrf.mxu0
        %v5523 = vpop.f32.mrf.mxu0
        %v5524 = vpop.f32.mrf.mxu0
        %5525 = vdwg.mxu0
        %v5526 = vadd.f32 %v5375, %v5480
        %v5527 = vadd.f32 %v5377, %v5482
        %v5528 = vadd.f32 %v5416, %v5521
        %v5529 = vld [vmem:[%s517] sm:$0xf]
        %5530 = vrot.lane.b32.xlu0 %v5214, 110
        %v5531 = vpop.permute.xlu0 %5530
        %5532 = vrot.lane.b32.xlu0 %v5215, 110
        %v5533 = vpop.permute.xlu0 %5532
        %5534 = vrot.lane.b32.xlu0 %v5216, 110
        %v5535 = vpop.permute.xlu0 %5534
        %5536 = vrot.lane.b32.xlu0 %v5217, 110
        %v5537 = vpop.permute.xlu0 %5536
        %v5538 = vsel %vm527, %v5531, %v5533
        %v5539 = vsel %vm527, %v5533, %v5535
        %v5540 = vsel %vm527, %v5535, %v5537
        %v5542 = vsel %vm214, %v5529, 0
        %v5545 = vsel %vm218, %v5538, 0
        %v5548 = vsel %vm218, %v5539, 0
        %v5551 = vsel %vm218, %v5540, 0
        %5553 = vmatprep.subr.bf16.mxu0 0
        %5554 = vmatpush1.bf16.msra.mxu0 0
        %5555 = vmatprep.subr.bf16.mxu0 0
        %5556 = vmatpush1.bf16.msra.mxu0 0
        %5557 = vmatprep.subr.bf16.mxu0 0
        %5558 = vmatpush1.bf16.msra.mxu0 0
        %5559 = vmatprep.subr.bf16.mxu0 0
        %5560 = vmatpush1.bf16.msra.mxu0 0
        %5561 = vmatprep.subr.bf16.mxu0 0
        %5562 = vmatpush1.bf16.msra.mxu0 0
        %5563 = vmatprep.subr.bf16.mxu0 0
        %5564 = vmatpush1.bf16.msra.mxu0 0
        %5565 = vmatprep.subr.bf16.mxu0 0
        %5566 = vmatpush1.bf16.msra.mxu0 0
        %5567 = vmatprep.subr.bf16.mxu0 %v5548
        %5568 = vmatpush1.bf16.msra.mxu0 %v5545
        %5569 = vmatprep.subr.bf16.mxu0 0
        %5570 = vmatpush2.bf16.msra.mxu0 0
        %5571 = vmatprep.subr.bf16.mxu0 0
        %5572 = vmatpush2.bf16.msra.mxu0 0
        %5573 = vmatprep.subr.bf16.mxu0 0
        %5574 = vmatpush2.bf16.msra.mxu0 0
        %5575 = vmatprep.subr.bf16.mxu0 0
        %5576 = vmatpush2.bf16.msra.mxu0 0
        %5577 = vmatprep.subr.bf16.mxu0 0
        %5578 = vmatpush2.bf16.msra.mxu0 0
        %5579 = vmatprep.subr.bf16.mxu0 0
        %5580 = vmatpush2.bf16.msra.mxu0 0
        %5581 = vmatprep.subr.bf16.mxu0 0
        %5582 = vmatpush2.bf16.msra.mxu0 0
        %5583 = vmatprep.subr.bf16.mxu0 0
        %5584 = vmatpush2.bf16.msra.mxu0 0
        %5585 = vmatprep.mubr.bf16.mxu0 0
        %5586 = vmatmul.mubr.bf16.gmra.mxu0 %v5542
        %v5587 = vpop.f32.mrf.mxu0
        %v5588 = vadd.f32 0.0, %v5587
        %v5589 = vpop.f32.mrf.mxu0
        %v5590 = vadd.f32 0.0, %v5589
        %v5591 = vpop.f32.mrf.mxu0
        %v5592 = vpop.f32.mrf.mxu0
        %5593 = vdwg.mxu0
        %5594 = vmatprep.subr.bf16.mxu0 0
        %5595 = vmatpush1.bf16.msra.mxu0 0
        %5596 = vmatprep.subr.bf16.mxu0 0
        %5597 = vmatpush1.bf16.msra.mxu0 0
        %5598 = vmatprep.subr.bf16.mxu0 0
        %5599 = vmatpush1.bf16.msra.mxu0 0
        %5600 = vmatprep.subr.bf16.mxu0 0
        %5601 = vmatpush1.bf16.msra.mxu0 0
        %5602 = vmatprep.subr.bf16.mxu0 0
        %5603 = vmatpush1.bf16.msra.mxu0 0
        %5604 = vmatprep.subr.bf16.mxu0 0
        %5605 = vmatpush1.bf16.msra.mxu0 0
        %5606 = vmatprep.subr.bf16.mxu0 0
        %5607 = vmatpush1.bf16.msra.mxu0 0
        %5608 = vmatprep.subr.bf16.mxu0 0
        %5609 = vmatpush1.bf16.msra.mxu0 %v5551
        %5610 = vmatprep.subr.bf16.mxu0 0
        %5611 = vmatpush2.bf16.msra.mxu0 0
        %5612 = vmatprep.subr.bf16.mxu0 0
        %5613 = vmatpush2.bf16.msra.mxu0 0
        %5614 = vmatprep.subr.bf16.mxu0 0
        %5615 = vmatpush2.bf16.msra.mxu0 0
        %5616 = vmatprep.subr.bf16.mxu0 0
        %5617 = vmatpush2.bf16.msra.mxu0 0
        %5618 = vmatprep.subr.bf16.mxu0 0
        %5619 = vmatpush2.bf16.msra.mxu0 0
        %5620 = vmatprep.subr.bf16.mxu0 0
        %5621 = vmatpush2.bf16.msra.mxu0 0
        %5622 = vmatprep.subr.bf16.mxu0 0
        %5623 = vmatpush2.bf16.msra.mxu0 0
        %5624 = vmatprep.subr.bf16.mxu0 0
        %5625 = vmatpush2.bf16.msra.mxu0 0
        %5626 = vmatprep.mubr.bf16.mxu0 0
        %5627 = vmatmul.mubr.bf16.gmra.mxu0 %v5542
        %v5628 = vpop.f32.mrf.mxu0
        %v5629 = vadd.f32 0.0, %v5628
        %v5630 = vpop.f32.mrf.mxu0
        %v5631 = vpop.f32.mrf.mxu0
        %v5632 = vpop.f32.mrf.mxu0
        %5633 = vdwg.mxu0
        %v5634 = vadd.f32 %v5526, %v5588
        %v5635 = vadd.f32 %v5527, %v5590
        %v5636 = vadd.f32 %v5528, %v5629
        %v5637 = vld [vmem:[%s627] sm:$0xf]
        %5638 = vrot.lane.b32.xlu0 %v5214, 109
        %v5639 = vpop.permute.xlu0 %5638
        %5640 = vrot.lane.b32.xlu0 %v5215, 109
        %v5641 = vpop.permute.xlu0 %5640
        %5642 = vrot.lane.b32.xlu0 %v5216, 109
        %v5643 = vpop.permute.xlu0 %5642
        %5644 = vrot.lane.b32.xlu0 %v5217, 109
        %v5645 = vpop.permute.xlu0 %5644
        %v5646 = vsel %vm637, %v5639, %v5641
        %v5647 = vsel %vm637, %v5641, %v5643
        %v5648 = vsel %vm637, %v5643, %v5645
        %v5650 = vsel %vm214, %v5637, 0
        %v5653 = vsel %vm218, %v5646, 0
        %v5656 = vsel %vm218, %v5647, 0
        %v5659 = vsel %vm218, %v5648, 0
        %5661 = vmatprep.subr.bf16.mxu0 0
        %5662 = vmatpush1.bf16.msra.mxu0 0
        %5663 = vmatprep.subr.bf16.mxu0 0
        %5664 = vmatpush1.bf16.msra.mxu0 0
        %5665 = vmatprep.subr.bf16.mxu0 0
        %5666 = vmatpush1.bf16.msra.mxu0 0
        %5667 = vmatprep.subr.bf16.mxu0 0
        %5668 = vmatpush1.bf16.msra.mxu0 0
        %5669 = vmatprep.subr.bf16.mxu0 0
        %5670 = vmatpush1.bf16.msra.mxu0 0
        %5671 = vmatprep.subr.bf16.mxu0 0
        %5672 = vmatpush1.bf16.msra.mxu0 0
        %5673 = vmatprep.subr.bf16.mxu0 0
        %5674 = vmatpush1.bf16.msra.mxu0 0
        %5675 = vmatprep.subr.bf16.mxu0 %v5656
        %5676 = vmatpush1.bf16.msra.mxu0 %v5653
        %5677 = vmatprep.subr.bf16.mxu0 0
        %5678 = vmatpush2.bf16.msra.mxu0 0
        %5679 = vmatprep.subr.bf16.mxu0 0
        %5680 = vmatpush2.bf16.msra.mxu0 0
        %5681 = vmatprep.subr.bf16.mxu0 0
        %5682 = vmatpush2.bf16.msra.mxu0 0
        %5683 = vmatprep.subr.bf16.mxu0 0
        %5684 = vmatpush2.bf16.msra.mxu0 0
        %5685 = vmatprep.subr.bf16.mxu0 0
        %5686 = vmatpush2.bf16.msra.mxu0 0
        %5687 = vmatprep.subr.bf16.mxu0 0
        %5688 = vmatpush2.bf16.msra.mxu0 0
        %5689 = vmatprep.subr.bf16.mxu0 0
        %5690 = vmatpush2.bf16.msra.mxu0 0
        %5691 = vmatprep.subr.bf16.mxu0 0
        %5692 = vmatpush2.bf16.msra.mxu0 0
        %5693 = vmatprep.mubr.bf16.mxu0 0
        %5694 = vmatmul.mubr.bf16.gmra.mxu0 %v5650
        %v5695 = vpop.f32.mrf.mxu0
        %v5696 = vadd.f32 0.0, %v5695
        %v5697 = vpop.f32.mrf.mxu0
        %v5698 = vadd.f32 0.0, %v5697
        %v5699 = vpop.f32.mrf.mxu0
        %v5700 = vpop.f32.mrf.mxu0
        %5701 = vdwg.mxu0
        %5702 = vmatprep.subr.bf16.mxu0 0
        %5703 = vmatpush1.bf16.msra.mxu0 0
        %5704 = vmatprep.subr.bf16.mxu0 0
        %5705 = vmatpush1.bf16.msra.mxu0 0
        %5706 = vmatprep.subr.bf16.mxu0 0
        %5707 = vmatpush1.bf16.msra.mxu0 0
        %5708 = vmatprep.subr.bf16.mxu0 0
        %5709 = vmatpush1.bf16.msra.mxu0 0
        %5710 = vmatprep.subr.bf16.mxu0 0
        %5711 = vmatpush1.bf16.msra.mxu0 0
        %5712 = vmatprep.subr.bf16.mxu0 0
        %5713 = vmatpush1.bf16.msra.mxu0 0
        %5714 = vmatprep.subr.bf16.mxu0 0
        %5715 = vmatpush1.bf16.msra.mxu0 0
        %5716 = vmatprep.subr.bf16.mxu0 0
        %5717 = vmatpush1.bf16.msra.mxu0 %v5659
        %5718 = vmatprep.subr.bf16.mxu0 0
        %5719 = vmatpush2.bf16.msra.mxu0 0
        %5720 = vmatprep.subr.bf16.mxu0 0
        %5721 = vmatpush2.bf16.msra.mxu0 0
        %5722 = vmatprep.subr.bf16.mxu0 0
        %5723 = vmatpush2.bf16.msra.mxu0 0
        %5724 = vmatprep.subr.bf16.mxu0 0
        %5725 = vmatpush2.bf16.msra.mxu0 0
        %5726 = vmatprep.subr.bf16.mxu0 0
        %5727 = vmatpush2.bf16.msra.mxu0 0
        %5728 = vmatprep.subr.bf16.mxu0 0
        %5729 = vmatpush2.bf16.msra.mxu0 0
        %5730 = vmatprep.subr.bf16.mxu0 0
        %5731 = vmatpush2.bf16.msra.mxu0 0
        %5732 = vmatprep.subr.bf16.mxu0 0
        %5733 = vmatpush2.bf16.msra.mxu0 0
        %5734 = vmatprep.mubr.bf16.mxu0 0
        %5735 = vmatmul.mubr.bf16.gmra.mxu0 %v5650
        %v5736 = vpop.f32.mrf.mxu0
        %v5737 = vadd.f32 0.0, %v5736
        %v5738 = vpop.f32.mrf.mxu0
        %v5739 = vpop.f32.mrf.mxu0
        %v5740 = vpop.f32.mrf.mxu0
        %5741 = vdwg.mxu0
        %v5742 = vadd.f32 %v5634, %v5696
        %v5743 = vadd.f32 %v5635, %v5698
        %v5744 = vadd.f32 %v5636, %v5737
        %v5745 = vld [vmem:[%s737] sm:$0xf]
        %5746 = vrot.lane.b32.xlu0 %v5214, 108
        %v5747 = vpop.permute.xlu0 %5746
        %5748 = vrot.lane.b32.xlu0 %v5215, 108
        %v5749 = vpop.permute.xlu0 %5748
        %5750 = vrot.lane.b32.xlu0 %v5216, 108
        %v5751 = vpop.permute.xlu0 %5750
        %5752 = vrot.lane.b32.xlu0 %v5217, 108
        %v5753 = vpop.permute.xlu0 %5752
        %v5754 = vsel %vm747, %v5747, %v5749
        %v5755 = vsel %vm747, %v5749, %v5751
        %v5756 = vsel %vm747, %v5751, %v5753
        %v5758 = vsel %vm214, %v5745, 0
        %v5761 = vsel %vm218, %v5754, 0
        %v5764 = vsel %vm218, %v5755, 0
        %v5767 = vsel %vm218, %v5756, 0
        %5769 = vmatprep.subr.bf16.mxu0 0
        %5770 = vmatpush1.bf16.msra.mxu0 0
        %5771 = vmatprep.subr.bf16.mxu0 0
        %5772 = vmatpush1.bf16.msra.mxu0 0
        %5773 = vmatprep.subr.bf16.mxu0 0
        %5774 = vmatpush1.bf16.msra.mxu0 0
        %5775 = vmatprep.subr.bf16.mxu0 0
        %5776 = vmatpush1.bf16.msra.mxu0 0
        %5777 = vmatprep.subr.bf16.mxu0 0
        %5778 = vmatpush1.bf16.msra.mxu0 0
        %5779 = vmatprep.subr.bf16.mxu0 0
        %5780 = vmatpush1.bf16.msra.mxu0 0
        %5781 = vmatprep.subr.bf16.mxu0 0
        %5782 = vmatpush1.bf16.msra.mxu0 0
        %5783 = vmatprep.subr.bf16.mxu0 %v5764
        %5784 = vmatpush1.bf16.msra.mxu0 %v5761
        %5785 = vmatprep.subr.bf16.mxu0 0
        %5786 = vmatpush2.bf16.msra.mxu0 0
        %5787 = vmatprep.subr.bf16.mxu0 0
        %5788 = vmatpush2.bf16.msra.mxu0 0
        %5789 = vmatprep.subr.bf16.mxu0 0
        %5790 = vmatpush2.bf16.msra.mxu0 0
        %5791 = vmatprep.subr.bf16.mxu0 0
        %5792 = vmatpush2.bf16.msra.mxu0 0
        %5793 = vmatprep.subr.bf16.mxu0 0
        %5794 = vmatpush2.bf16.msra.mxu0 0
        %5795 = vmatprep.subr.bf16.mxu0 0
        %5796 = vmatpush2.bf16.msra.mxu0 0
        %5797 = vmatprep.subr.bf16.mxu0 0
        %5798 = vmatpush2.bf16.msra.mxu0 0
        %5799 = vmatprep.subr.bf16.mxu0 0
        %5800 = vmatpush2.bf16.msra.mxu0 0
        %5801 = vmatprep.mubr.bf16.mxu0 0
        %5802 = vmatmul.mubr.bf16.gmra.mxu0 %v5758
        %v5803 = vpop.f32.mrf.mxu0
        %v5804 = vadd.f32 0.0, %v5803
        %v5805 = vpop.f32.mrf.mxu0
        %v5806 = vadd.f32 0.0, %v5805
        %v5807 = vpop.f32.mrf.mxu0
        %v5808 = vpop.f32.mrf.mxu0
        %5809 = vdwg.mxu0
        %5810 = vmatprep.subr.bf16.mxu0 0
        %5811 = vmatpush1.bf16.msra.mxu0 0
        %5812 = vmatprep.subr.bf16.mxu0 0
        %5813 = vmatpush1.bf16.msra.mxu0 0
        %5814 = vmatprep.subr.bf16.mxu0 0
        %5815 = vmatpush1.bf16.msra.mxu0 0
        %5816 = vmatprep.subr.bf16.mxu0 0
        %5817 = vmatpush1.bf16.msra.mxu0 0
        %5818 = vmatprep.subr.bf16.mxu0 0
        %5819 = vmatpush1.bf16.msra.mxu0 0
        %5820 = vmatprep.subr.bf16.mxu0 0
        %5821 = vmatpush1.bf16.msra.mxu0 0
        %5822 = vmatprep.subr.bf16.mxu0 0
        %5823 = vmatpush1.bf16.msra.mxu0 0
        %5824 = vmatprep.subr.bf16.mxu0 0
        %5825 = vmatpush1.bf16.msra.mxu0 %v5767
        %5826 = vmatprep.subr.bf16.mxu0 0
        %5827 = vmatpush2.bf16.msra.mxu0 0
        %5828 = vmatprep.subr.bf16.mxu0 0
        %5829 = vmatpush2.bf16.msra.mxu0 0
        %5830 = vmatprep.subr.bf16.mxu0 0
        %5831 = vmatpush2.bf16.msra.mxu0 0
        %5832 = vmatprep.subr.bf16.mxu0 0
        %5833 = vmatpush2.bf16.msra.mxu0 0
        %5834 = vmatprep.subr.bf16.mxu0 0
        %5835 = vmatpush2.bf16.msra.mxu0 0
        %5836 = vmatprep.subr.bf16.mxu0 0
        %5837 = vmatpush2.bf16.msra.mxu0 0
        %5838 = vmatprep.subr.bf16.mxu0 0
        %5839 = vmatpush2.bf16.msra.mxu0 0
        %5840 = vmatprep.subr.bf16.mxu0 0
        %5841 = vmatpush2.bf16.msra.mxu0 0
        %5842 = vmatprep.mubr.bf16.mxu0 0
        %5843 = vmatmul.mubr.bf16.gmra.mxu0 %v5758
        %v5844 = vpop.f32.mrf.mxu0
        %v5845 = vadd.f32 0.0, %v5844
        %v5846 = vpop.f32.mrf.mxu0
        %v5847 = vpop.f32.mrf.mxu0
        %v5848 = vpop.f32.mrf.mxu0
        %5849 = vdwg.mxu0
        %v5850 = vadd.f32 %v5742, %v5804
        %v5851 = vadd.f32 %v5743, %v5806
        %v5852 = vadd.f32 %v5744, %v5845
        %v5853 = vld [vmem:[%s847] sm:$0xf]
        %5854 = vrot.lane.b32.xlu0 %v5214, 92
        %v5855 = vpop.permute.xlu0 %5854
        %5856 = vrot.lane.b32.xlu0 %v5215, 92
        %v5857 = vpop.permute.xlu0 %5856
        %5858 = vrot.lane.b32.xlu0 %v5216, 92
        %v5859 = vpop.permute.xlu0 %5858
        %5860 = vrot.lane.b32.xlu0 %v5217, 92
        %v5861 = vpop.permute.xlu0 %5860
        %v5862 = vsel %vm857, %v5855, %v5857
        %v5863 = vsel %vm857, %v5857, %v5859
        %v5864 = vsel %vm857, %v5859, %v5861
        %v5866 = vsel %vm214, %v5853, 0
        %v5869 = vsel %vm218, %v5862, 0
        %v5872 = vsel %vm218, %v5863, 0
        %v5875 = vsel %vm218, %v5864, 0
        %5877 = vmatprep.subr.bf16.mxu0 0
        %5878 = vmatpush1.bf16.msra.mxu0 0
        %5879 = vmatprep.subr.bf16.mxu0 0
        %5880 = vmatpush1.bf16.msra.mxu0 0
        %5881 = vmatprep.subr.bf16.mxu0 0
        %5882 = vmatpush1.bf16.msra.mxu0 0
        %5883 = vmatprep.subr.bf16.mxu0 0
        %5884 = vmatpush1.bf16.msra.mxu0 0
        %5885 = vmatprep.subr.bf16.mxu0 0
        %5886 = vmatpush1.bf16.msra.mxu0 0
        %5887 = vmatprep.subr.bf16.mxu0 0
        %5888 = vmatpush1.bf16.msra.mxu0 0
        %5889 = vmatprep.subr.bf16.mxu0 0
        %5890 = vmatpush1.bf16.msra.mxu0 0
        %5891 = vmatprep.subr.bf16.mxu0 %v5872
        %5892 = vmatpush1.bf16.msra.mxu0 %v5869
        %5893 = vmatprep.subr.bf16.mxu0 0
        %5894 = vmatpush2.bf16.msra.mxu0 0
        %5895 = vmatprep.subr.bf16.mxu0 0
        %5896 = vmatpush2.bf16.msra.mxu0 0
        %5897 = vmatprep.subr.bf16.mxu0 0
        %5898 = vmatpush2.bf16.msra.mxu0 0
        %5899 = vmatprep.subr.bf16.mxu0 0
        %5900 = vmatpush2.bf16.msra.mxu0 0
        %5901 = vmatprep.subr.bf16.mxu0 0
        %5902 = vmatpush2.bf16.msra.mxu0 0
        %5903 = vmatprep.subr.bf16.mxu0 0
        %5904 = vmatpush2.bf16.msra.mxu0 0
        %5905 = vmatprep.subr.bf16.mxu0 0
        %5906 = vmatpush2.bf16.msra.mxu0 0
        %5907 = vmatprep.subr.bf16.mxu0 0
        %5908 = vmatpush2.bf16.msra.mxu0 0
        %5909 = vmatprep.mubr.bf16.mxu0 0
        %5910 = vmatmul.mubr.bf16.gmra.mxu0 %v5866
        %v5911 = vpop.f32.mrf.mxu0
        %v5912 = vadd.f32 0.0, %v5911
        %v5913 = vpop.f32.mrf.mxu0
        %v5914 = vadd.f32 0.0, %v5913
        %v5915 = vpop.f32.mrf.mxu0
        %v5916 = vpop.f32.mrf.mxu0
        %5917 = vdwg.mxu0
        %5918 = vmatprep.subr.bf16.mxu0 0
        %5919 = vmatpush1.bf16.msra.mxu0 0
        %5920 = vmatprep.subr.bf16.mxu0 0
        %5921 = vmatpush1.bf16.msra.mxu0 0
        %5922 = vmatprep.subr.bf16.mxu0 0
        %5923 = vmatpush1.bf16.msra.mxu0 0
        %5924 = vmatprep.subr.bf16.mxu0 0
        %5925 = vmatpush1.bf16.msra.mxu0 0
        %5926 = vmatprep.subr.bf16.mxu0 0
        %5927 = vmatpush1.bf16.msra.mxu0 0
        %5928 = vmatprep.subr.bf16.mxu0 0
        %5929 = vmatpush1.bf16.msra.mxu0 0
        %5930 = vmatprep.subr.bf16.mxu0 0
        %5931 = vmatpush1.bf16.msra.mxu0 0
        %5932 = vmatprep.subr.bf16.mxu0 0
        %5933 = vmatpush1.bf16.msra.mxu0 %v5875
        %5934 = vmatprep.subr.bf16.mxu0 0
        %5935 = vmatpush2.bf16.msra.mxu0 0
        %5936 = vmatprep.subr.bf16.mxu0 0
        %5937 = vmatpush2.bf16.msra.mxu0 0
        %5938 = vmatprep.subr.bf16.mxu0 0
        %5939 = vmatpush2.bf16.msra.mxu0 0
        %5940 = vmatprep.subr.bf16.mxu0 0
        %5941 = vmatpush2.bf16.msra.mxu0 0
        %5942 = vmatprep.subr.bf16.mxu0 0
        %5943 = vmatpush2.bf16.msra.mxu0 0
        %5944 = vmatprep.subr.bf16.mxu0 0
        %5945 = vmatpush2.bf16.msra.mxu0 0
        %5946 = vmatprep.subr.bf16.mxu0 0
        %5947 = vmatpush2.bf16.msra.mxu0 0
        %5948 = vmatprep.subr.bf16.mxu0 0
        %5949 = vmatpush2.bf16.msra.mxu0 0
        %5950 = vmatprep.mubr.bf16.mxu0 0
        %5951 = vmatmul.mubr.bf16.gmra.mxu0 %v5866
        %v5952 = vpop.f32.mrf.mxu0
        %v5953 = vadd.f32 0.0, %v5952
        %v5954 = vpop.f32.mrf.mxu0
        %v5955 = vpop.f32.mrf.mxu0
        %v5956 = vpop.f32.mrf.mxu0
        %5957 = vdwg.mxu0
        %v5958 = vadd.f32 %v5850, %v5912
        %v5959 = vadd.f32 %v5851, %v5914
        %v5960 = vadd.f32 %v5852, %v5953
        %v5961 = vld [vmem:[%s957] sm:$0xf]
        %5962 = vrot.lane.b32.xlu0 %v5214, 91
        %v5963 = vpop.permute.xlu0 %5962
        %5964 = vrot.lane.b32.xlu0 %v5215, 91
        %v5965 = vpop.permute.xlu0 %5964
        %5966 = vrot.lane.b32.xlu0 %v5216, 91
        %v5967 = vpop.permute.xlu0 %5966
        %5968 = vrot.lane.b32.xlu0 %v5217, 91
        %v5969 = vpop.permute.xlu0 %5968
        %v5970 = vsel %vm967, %v5963, %v5965
        %v5971 = vsel %vm967, %v5965, %v5967
        %v5972 = vsel %vm967, %v5967, %v5969
        %v5974 = vsel %vm214, %v5961, 0
        %v5977 = vsel %vm218, %v5970, 0
        %v5980 = vsel %vm218, %v5971, 0
        %v5983 = vsel %vm218, %v5972, 0
        %5985 = vmatprep.subr.bf16.mxu0 0
        %5986 = vmatpush1.bf16.msra.mxu0 0
        %5987 = vmatprep.subr.bf16.mxu0 0
        %5988 = vmatpush1.bf16.msra.mxu0 0
        %5989 = vmatprep.subr.bf16.mxu0 0
        %5990 = vmatpush1.bf16.msra.mxu0 0
        %5991 = vmatprep.subr.bf16.mxu0 0
        %5992 = vmatpush1.bf16.msra.mxu0 0
        %5993 = vmatprep.subr.bf16.mxu0 0
        %5994 = vmatpush1.bf16.msra.mxu0 0
        %5995 = vmatprep.subr.bf16.mxu0 0
        %5996 = vmatpush1.bf16.msra.mxu0 0
        %5997 = vmatprep.subr.bf16.mxu0 0
        %5998 = vmatpush1.bf16.msra.mxu0 0
        %5999 = vmatprep.subr.bf16.mxu0 %v5980
        %6000 = vmatpush1.bf16.msra.mxu0 %v5977
        %6001 = vmatprep.subr.bf16.mxu0 0
        %6002 = vmatpush2.bf16.msra.mxu0 0
        %6003 = vmatprep.subr.bf16.mxu0 0
        %6004 = vmatpush2.bf16.msra.mxu0 0
        %6005 = vmatprep.subr.bf16.mxu0 0
        %6006 = vmatpush2.bf16.msra.mxu0 0
        %6007 = vmatprep.subr.bf16.mxu0 0
        %6008 = vmatpush2.bf16.msra.mxu0 0
        %6009 = vmatprep.subr.bf16.mxu0 0
        %6010 = vmatpush2.bf16.msra.mxu0 0
        %6011 = vmatprep.subr.bf16.mxu0 0
        %6012 = vmatpush2.bf16.msra.mxu0 0
        %6013 = vmatprep.subr.bf16.mxu0 0
        %6014 = vmatpush2.bf16.msra.mxu0 0
        %6015 = vmatprep.subr.bf16.mxu0 0
        %6016 = vmatpush2.bf16.msra.mxu0 0
        %6017 = vmatprep.mubr.bf16.mxu0 0
        %6018 = vmatmul.mubr.bf16.gmra.mxu0 %v5974
        %v6019 = vpop.f32.mrf.mxu0
        %v6020 = vadd.f32 0.0, %v6019
        %v6021 = vpop.f32.mrf.mxu0
        %v6022 = vadd.f32 0.0, %v6021
        %v6023 = vpop.f32.mrf.mxu0
        %v6024 = vpop.f32.mrf.mxu0
        %6025 = vdwg.mxu0
        %6026 = vmatprep.subr.bf16.mxu0 0
        %6027 = vmatpush1.bf16.msra.mxu0 0
        %6028 = vmatprep.subr.bf16.mxu0 0
        %6029 = vmatpush1.bf16.msra.mxu0 0
        %6030 = vmatprep.subr.bf16.mxu0 0
        %6031 = vmatpush1.bf16.msra.mxu0 0
        %6032 = vmatprep.subr.bf16.mxu0 0
        %6033 = vmatpush1.bf16.msra.mxu0 0
        %6034 = vmatprep.subr.bf16.mxu0 0
        %6035 = vmatpush1.bf16.msra.mxu0 0
        %6036 = vmatprep.subr.bf16.mxu0 0
        %6037 = vmatpush1.bf16.msra.mxu0 0
        %6038 = vmatprep.subr.bf16.mxu0 0
        %6039 = vmatpush1.bf16.msra.mxu0 0
        %6040 = vmatprep.subr.bf16.mxu0 0
        %6041 = vmatpush1.bf16.msra.mxu0 %v5983
        %6042 = vmatprep.subr.bf16.mxu0 0
        %6043 = vmatpush2.bf16.msra.mxu0 0
        %6044 = vmatprep.subr.bf16.mxu0 0
        %6045 = vmatpush2.bf16.msra.mxu0 0
        %6046 = vmatprep.subr.bf16.mxu0 0
        %6047 = vmatpush2.bf16.msra.mxu0 0
        %6048 = vmatprep.subr.bf16.mxu0 0
        %6049 = vmatpush2.bf16.msra.mxu0 0
        %6050 = vmatprep.subr.bf16.mxu0 0
        %6051 = vmatpush2.bf16.msra.mxu0 0
        %6052 = vmatprep.subr.bf16.mxu0 0
        %6053 = vmatpush2.bf16.msra.mxu0 0
        %6054 = vmatprep.subr.bf16.mxu0 0
        %6055 = vmatpush2.bf16.msra.mxu0 0
        %6056 = vmatprep.subr.bf16.mxu0 0
        %6057 = vmatpush2.bf16.msra.mxu0 0
        %6058 = vmatprep.mubr.bf16.mxu0 0
        %6059 = vmatmul.mubr.bf16.gmra.mxu0 %v5974
        %v6060 = vpop.f32.mrf.mxu0
        %v6061 = vadd.f32 0.0, %v6060
        %v6062 = vpop.f32.mrf.mxu0
        %v6063 = vpop.f32.mrf.mxu0
        %v6064 = vpop.f32.mrf.mxu0
        %6065 = vdwg.mxu0
        %v6066 = vadd.f32 %v5958, %v6020
        %v6067 = vadd.f32 %v5959, %v6022
        %v6068 = vadd.f32 %v5960, %v6061
        %v6069 = vld [vmem:[%s1067] sm:$0xf]
        %6070 = vrot.lane.b32.xlu0 %v5214, 90
        %v6071 = vpop.permute.xlu0 %6070
        %6072 = vrot.lane.b32.xlu0 %v5215, 90
        %v6073 = vpop.permute.xlu0 %6072
        %6074 = vrot.lane.b32.xlu0 %v5216, 90
        %v6075 = vpop.permute.xlu0 %6074
        %6076 = vrot.lane.b32.xlu0 %v5217, 90
        %v6077 = vpop.permute.xlu0 %6076
        %v6078 = vsel %vm1077, %v6071, %v6073
        %v6079 = vsel %vm1077, %v6073, %v6075
        %v6080 = vsel %vm1077, %v6075, %v6077
        %v6082 = vsel %vm214, %v6069, 0
        %v6085 = vsel %vm218, %v6078, 0
        %v6088 = vsel %vm218, %v6079, 0
        %v6091 = vsel %vm218, %v6080, 0
        %6093 = vmatprep.subr.bf16.mxu0 0
        %6094 = vmatpush1.bf16.msra.mxu0 0
        %6095 = vmatprep.subr.bf16.mxu0 0
        %6096 = vmatpush1.bf16.msra.mxu0 0
        %6097 = vmatprep.subr.bf16.mxu0 0
        %6098 = vmatpush1.bf16.msra.mxu0 0
        %6099 = vmatprep.subr.bf16.mxu0 0
        %6100 = vmatpush1.bf16.msra.mxu0 0
        %6101 = vmatprep.subr.bf16.mxu0 0
        %6102 = vmatpush1.bf16.msra.mxu0 0
        %6103 = vmatprep.subr.bf16.mxu0 0
        %6104 = vmatpush1.bf16.msra.mxu0 0
        %6105 = vmatprep.subr.bf16.mxu0 0
        %6106 = vmatpush1.bf16.msra.mxu0 0
        %6107 = vmatprep.subr.bf16.mxu0 %v6088
        %6108 = vmatpush1.bf16.msra.mxu0 %v6085
        %6109 = vmatprep.subr.bf16.mxu0 0
        %6110 = vmatpush2.bf16.msra.mxu0 0
        %6111 = vmatprep.subr.bf16.mxu0 0
        %6112 = vmatpush2.bf16.msra.mxu0 0
        %6113 = vmatprep.subr.bf16.mxu0 0
        %6114 = vmatpush2.bf16.msra.mxu0 0
        %6115 = vmatprep.subr.bf16.mxu0 0
        %6116 = vmatpush2.bf16.msra.mxu0 0
        %6117 = vmatprep.subr.bf16.mxu0 0
        %6118 = vmatpush2.bf16.msra.mxu0 0
        %6119 = vmatprep.subr.bf16.mxu0 0
        %6120 = vmatpush2.bf16.msra.mxu0 0
        %6121 = vmatprep.subr.bf16.mxu0 0
        %6122 = vmatpush2.bf16.msra.mxu0 0
        %6123 = vmatprep.subr.bf16.mxu0 0
        %6124 = vmatpush2.bf16.msra.mxu0 0
        %6125 = vmatprep.mubr.bf16.mxu0 0
        %6126 = vmatmul.mubr.bf16.gmra.mxu0 %v6082
        %v6127 = vpop.f32.mrf.mxu0
        %v6128 = vadd.f32 0.0, %v6127
        %v6129 = vpop.f32.mrf.mxu0
        %v6130 = vadd.f32 0.0, %v6129
        %v6131 = vpop.f32.mrf.mxu0
        %v6132 = vpop.f32.mrf.mxu0
        %6133 = vdwg.mxu0
        %6134 = vmatprep.subr.bf16.mxu0 0
        %6135 = vmatpush1.bf16.msra.mxu0 0
        %6136 = vmatprep.subr.bf16.mxu0 0
        %6137 = vmatpush1.bf16.msra.mxu0 0
        %6138 = vmatprep.subr.bf16.mxu0 0
        %6139 = vmatpush1.bf16.msra.mxu0 0
        %6140 = vmatprep.subr.bf16.mxu0 0
        %6141 = vmatpush1.bf16.msra.mxu0 0
        %6142 = vmatprep.subr.bf16.mxu0 0
        %6143 = vmatpush1.bf16.msra.mxu0 0
        %6144 = vmatprep.subr.bf16.mxu0 0
        %6145 = vmatpush1.bf16.msra.mxu0 0
        %6146 = vmatprep.subr.bf16.mxu0 0
        %6147 = vmatpush1.bf16.msra.mxu0 0
        %6148 = vmatprep.subr.bf16.mxu0 0
        %6149 = vmatpush1.bf16.msra.mxu0 %v6091
        %6150 = vmatprep.subr.bf16.mxu0 0
        %6151 = vmatpush2.bf16.msra.mxu0 0
        %6152 = vmatprep.subr.bf16.mxu0 0
        %6153 = vmatpush2.bf16.msra.mxu0 0
        %6154 = vmatprep.subr.bf16.mxu0 0
        %6155 = vmatpush2.bf16.msra.mxu0 0
        %6156 = vmatprep.subr.bf16.mxu0 0
        %6157 = vmatpush2.bf16.msra.mxu0 0
        %6158 = vmatprep.subr.bf16.mxu0 0
        %6159 = vmatpush2.bf16.msra.mxu0 0
        %6160 = vmatprep.subr.bf16.mxu0 0
        %6161 = vmatpush2.bf16.msra.mxu0 0
        %6162 = vmatprep.subr.bf16.mxu0 0
        %6163 = vmatpush2.bf16.msra.mxu0 0
        %6164 = vmatprep.subr.bf16.mxu0 0
        %6165 = vmatpush2.bf16.msra.mxu0 0
        %6166 = vmatprep.mubr.bf16.mxu0 0
        %6167 = vmatmul.mubr.bf16.gmra.mxu0 %v6082
        %v6168 = vpop.f32.mrf.mxu0
        %v6169 = vadd.f32 0.0, %v6168
        %v6170 = vpop.f32.mrf.mxu0
        %v6171 = vpop.f32.mrf.mxu0
        %v6172 = vpop.f32.mrf.mxu0
        %6173 = vdwg.mxu0
        %v6174 = vadd.f32 %v6066, %v6128
        %v6175 = vadd.f32 %v6067, %v6130
        %v6176 = vadd.f32 %v6068, %v6169
        %v6177 = vld [vmem:[%s2] sm:$0xff]
        %6179 = vset.pattern.permute.xlu0 0
        %6180 = vperm.xlu0 %6179, %v6177
        %v6181 = vpop.permute.xlu0 %6180
        %v6183 = vadd.f32 %v6174, %v6181
        %v6184 = vadd.f32 %v6175, %v6181
        %v6185 = vadd.f32 %v6176, %v6181
        %v6186 = vmax.f32 %v6183, 0.0
        %v6187 = vmax.f32 %v6184, 0.0
        %v6188 = vmax.f32 %v6185, 0.0
        %6189 = vst [vmem:[%s151 + $0x78] sm:$0xff] %v6186
        %6190 = vst [vmem:[%s151 + $0x80] sm:$0xff] %v6187
        %6191 = vst [vmem:[%s151 + $0x88] sm:$0xff] %v6188
        %v6192 = vld [vmem:[#allocation2 + $0x30] sm:$0xff]
        %v6193 = vld [vmem:[#allocation2 + $0x38] sm:$0xf]
        %v6194 = vld [vmem:[#allocation2 + $0x40] sm:$0x33]
        %v6195 = vld [vmem:[#allocation2 + $0x48] sm:$0x3]
        %v6196 = vld [vmem:[#allocation4] sm:$0xf]
        %v6197 = vld [vmem:[#allocation2 + $0x30] sm:$0xff]
        %v6198 = vld [vmem:[#allocation2 + $0x38] sm:$0xff]
        %v6199 = vld [vmem:[#allocation2 + $0x40] sm:$0x33]
        %v6200 = vld [vmem:[#allocation2 + $0x48] sm:$0x33]
        %v6201 = vld [vmem:[%s184] sm:$0xf]
        %v6206 = vunpack.c.l.b16 %v6197
        %v6207 = vunpack.c.h.b16 %v6197
        %v6208 = vunpack.c.l.b16 %v6198
        %v6209 = vunpack.c.h.b16 %v6198
        %v6210 = vunpack.c.l.b16 %v6199
        %v6211 = vunpack.c.h.b16 %v6199
        %v6212 = vunpack.c.l.b16 %v6200
        %v6213 = vunpack.c.h.b16 %v6200
        %v6214 = vpack.c.b16 %v6210, %v6206
        %v6215 = vpack.c.b16 %v6211, %v6207
        %v6216 = vpack.c.b16 %v6212, %v6208
        %v6217 = vpack.c.b16 %v6213, %v6209
        %6218 = vrot.lane.b32.xlu0 %v6214, 127
        %v6219 = vpop.permute.xlu0 %6218
        %6220 = vrot.lane.b32.xlu0 %v6215, 127
        %v6221 = vpop.permute.xlu0 %6220
        %6222 = vrot.lane.b32.xlu0 %v6216, 127
        %v6223 = vpop.permute.xlu0 %6222
        %6224 = vrot.lane.b32.xlu0 %v6217, 127
        %v6225 = vpop.permute.xlu0 %6224
        %v6226 = vsel %vm210, %v6219, %v6221
        %v6227 = vsel %vm210, %v6221, %v6223
        %v6228 = vsel %vm210, %v6223, %v6225
        %v6230 = vsel %vm214, %v6201, 0
        %v6233 = vsel %vm218, %v6226, 0
        %v6236 = vsel %vm218, %v6227, 0
        %v6239 = vsel %vm218, %v6228, 0
        %6241 = vmatprep.subr.bf16.mxu0 0
        %6242 = vmatpush1.bf16.msra.mxu0 0
        %6243 = vmatprep.subr.bf16.mxu0 0
        %6244 = vmatpush1.bf16.msra.mxu0 0
        %6245 = vmatprep.subr.bf16.mxu0 0
        %6246 = vmatpush1.bf16.msra.mxu0 0
        %6247 = vmatprep.subr.bf16.mxu0 0
        %6248 = vmatpush1.bf16.msra.mxu0 0
        %6249 = vmatprep.subr.bf16.mxu0 0
        %6250 = vmatpush1.bf16.msra.mxu0 0
        %6251 = vmatprep.subr.bf16.mxu0 0
        %6252 = vmatpush1.bf16.msra.mxu0 0
        %6253 = vmatprep.subr.bf16.mxu0 0
        %6254 = vmatpush1.bf16.msra.mxu0 0
        %6255 = vmatprep.subr.bf16.mxu0 %v6236
        %6256 = vmatpush1.bf16.msra.mxu0 %v6233
        %6257 = vmatprep.subr.bf16.mxu0 0
        %6258 = vmatpush2.bf16.msra.mxu0 0
        %6259 = vmatprep.subr.bf16.mxu0 0
        %6260 = vmatpush2.bf16.msra.mxu0 0
        %6261 = vmatprep.subr.bf16.mxu0 0
        %6262 = vmatpush2.bf16.msra.mxu0 0
        %6263 = vmatprep.subr.bf16.mxu0 0
        %6264 = vmatpush2.bf16.msra.mxu0 0
        %6265 = vmatprep.subr.bf16.mxu0 0
        %6266 = vmatpush2.bf16.msra.mxu0 0
        %6267 = vmatprep.subr.bf16.mxu0 0
        %6268 = vmatpush2.bf16.msra.mxu0 0
        %6269 = vmatprep.subr.bf16.mxu0 0
        %6270 = vmatpush2.bf16.msra.mxu0 0
        %6271 = vmatprep.subr.bf16.mxu0 0
        %6272 = vmatpush2.bf16.msra.mxu0 0
        %6273 = vmatprep.mubr.bf16.mxu0 0
        %6274 = vmatmul.mubr.bf16.gmra.mxu0 %v6230
        %v6275 = vpop.f32.mrf.mxu0
        %v6276 = vadd.f32 0.0, %v6275
        %v6277 = vpop.f32.mrf.mxu0
        %v6278 = vadd.f32 0.0, %v6277
        %v6279 = vpop.f32.mrf.mxu0
        %v6280 = vpop.f32.mrf.mxu0
        %6281 = vdwg.mxu0
        %6282 = vmatprep.subr.bf16.mxu0 0
        %6283 = vmatpush1.bf16.msra.mxu0 0
        %6284 = vmatprep.subr.bf16.mxu0 0
        %6285 = vmatpush1.bf16.msra.mxu0 0
        %6286 = vmatprep.subr.bf16.mxu0 0
        %6287 = vmatpush1.bf16.msra.mxu0 0
        %6288 = vmatprep.subr.bf16.mxu0 0
        %6289 = vmatpush1.bf16.msra.mxu0 0
        %6290 = vmatprep.subr.bf16.mxu0 0
        %6291 = vmatpush1.bf16.msra.mxu0 0
        %6292 = vmatprep.subr.bf16.mxu0 0
        %6293 = vmatpush1.bf16.msra.mxu0 0
        %6294 = vmatprep.subr.bf16.mxu0 0
        %6295 = vmatpush1.bf16.msra.mxu0 0
        %6296 = vmatprep.subr.bf16.mxu0 0
        %6297 = vmatpush1.bf16.msra.mxu0 %v6239
        %6298 = vmatprep.subr.bf16.mxu0 0
        %6299 = vmatpush2.bf16.msra.mxu0 0
        %6300 = vmatprep.subr.bf16.mxu0 0
        %6301 = vmatpush2.bf16.msra.mxu0 0
        %6302 = vmatprep.subr.bf16.mxu0 0
        %6303 = vmatpush2.bf16.msra.mxu0 0
        %6304 = vmatprep.subr.bf16.mxu0 0
        %6305 = vmatpush2.bf16.msra.mxu0 0
        %6306 = vmatprep.subr.bf16.mxu0 0
        %6307 = vmatpush2.bf16.msra.mxu0 0
        %6308 = vmatprep.subr.bf16.mxu0 0
        %6309 = vmatpush2.bf16.msra.mxu0 0
        %6310 = vmatprep.subr.bf16.mxu0 0
        %6311 = vmatpush2.bf16.msra.mxu0 0
        %6312 = vmatprep.subr.bf16.mxu0 0
        %6313 = vmatpush2.bf16.msra.mxu0 0
        %6314 = vmatprep.mubr.bf16.mxu0 0
        %6315 = vmatmul.mubr.bf16.gmra.mxu0 %v6230
        %v6316 = vpop.f32.mrf.mxu0
        %v6317 = vadd.f32 0.0, %v6316
        %v6318 = vpop.f32.mrf.mxu0
        %v6319 = vpop.f32.mrf.mxu0
        %v6320 = vpop.f32.mrf.mxu0
        %6321 = vdwg.mxu0
        %v6326 = vunpack.c.l.b16 %v6192
        %v6327 = vunpack.c.h.b16 %v6192
        %v6328 = vunpack.c.l.b16 %v6193
        %v6329 = vunpack.c.l.b16 %v6194
        %v6330 = vunpack.c.h.b16 %v6194
        %v6331 = vunpack.c.l.b16 %v6195
        %v6332 = vpack.c.b16 %v6329, %v6326
        %v6333 = vpack.c.b16 %v6330, %v6327
        %v6334 = vpack.c.b16 %v6331, %v6328
        %v6336 = vsel %vm214, %v6196, 0
        %v6339 = vsel %vm218, %v6332, 0
        %v6342 = vsel %vm218, %v6333, 0
        %v6345 = vsel %vm218, %v6334, 0
        %6347 = vmatprep.subr.bf16.mxu0 0
        %6348 = vmatpush1.bf16.msra.mxu0 0
        %6349 = vmatprep.subr.bf16.mxu0 0
        %6350 = vmatpush1.bf16.msra.mxu0 0
        %6351 = vmatprep.subr.bf16.mxu0 0
        %6352 = vmatpush1.bf16.msra.mxu0 0
        %6353 = vmatprep.subr.bf16.mxu0 0
        %6354 = vmatpush1.bf16.msra.mxu0 0
        %6355 = vmatprep.subr.bf16.mxu0 0
        %6356 = vmatpush1.bf16.msra.mxu0 0
        %6357 = vmatprep.subr.bf16.mxu0 0
        %6358 = vmatpush1.bf16.msra.mxu0 0
        %6359 = vmatprep.subr.bf16.mxu0 0
        %6360 = vmatpush1.bf16.msra.mxu0 0
        %6361 = vmatprep.subr.bf16.mxu0 %v6342
        %6362 = vmatpush1.bf16.msra.mxu0 %v6339
        %6363 = vmatprep.subr.bf16.mxu0 0
        %6364 = vmatpush2.bf16.msra.mxu0 0
        %6365 = vmatprep.subr.bf16.mxu0 0
        %6366 = vmatpush2.bf16.msra.mxu0 0
        %6367 = vmatprep.subr.bf16.mxu0 0
        %6368 = vmatpush2.bf16.msra.mxu0 0
        %6369 = vmatprep.subr.bf16.mxu0 0
        %6370 = vmatpush2.bf16.msra.mxu0 0
        %6371 = vmatprep.subr.bf16.mxu0 0
        %6372 = vmatpush2.bf16.msra.mxu0 0
        %6373 = vmatprep.subr.bf16.mxu0 0
        %6374 = vmatpush2.bf16.msra.mxu0 0
        %6375 = vmatprep.subr.bf16.mxu0 0
        %6376 = vmatpush2.bf16.msra.mxu0 0
        %6377 = vmatprep.subr.bf16.mxu0 0
        %6378 = vmatpush2.bf16.msra.mxu0 0
        %6379 = vmatprep.mubr.bf16.mxu0 0
        %6380 = vmatmul.mubr.bf16.gmra.mxu0 %v6336
        %v6381 = vpop.f32.mrf.mxu0
        %v6382 = vadd.f32 %v6276, %v6381
        %v6383 = vpop.f32.mrf.mxu0
        %v6384 = vadd.f32 %v6278, %v6383
        %v6385 = vpop.f32.mrf.mxu0
        %v6386 = vpop.f32.mrf.mxu0
        %6387 = vdwg.mxu0
        %6388 = vmatprep.subr.bf16.mxu0 0
        %6389 = vmatpush1.bf16.msra.mxu0 0
        %6390 = vmatprep.subr.bf16.mxu0 0
        %6391 = vmatpush1.bf16.msra.mxu0 0
        %6392 = vmatprep.subr.bf16.mxu0 0
        %6393 = vmatpush1.bf16.msra.mxu0 0
        %6394 = vmatprep.subr.bf16.mxu0 0
        %6395 = vmatpush1.bf16.msra.mxu0 0
        %6396 = vmatprep.subr.bf16.mxu0 0
        %6397 = vmatpush1.bf16.msra.mxu0 0
        %6398 = vmatprep.subr.bf16.mxu0 0
        %6399 = vmatpush1.bf16.msra.mxu0 0
        %6400 = vmatprep.subr.bf16.mxu0 0
        %6401 = vmatpush1.bf16.msra.mxu0 0
        %6402 = vmatprep.subr.bf16.mxu0 0
        %6403 = vmatpush1.bf16.msra.mxu0 %v6345
        %6404 = vmatprep.subr.bf16.mxu0 0
        %6405 = vmatpush2.bf16.msra.mxu0 0
        %6406 = vmatprep.subr.bf16.mxu0 0
        %6407 = vmatpush2.bf16.msra.mxu0 0
        %6408 = vmatprep.subr.bf16.mxu0 0
        %6409 = vmatpush2.bf16.msra.mxu0 0
        %6410 = vmatprep.subr.bf16.mxu0 0
        %6411 = vmatpush2.bf16.msra.mxu0 0
        %6412 = vmatprep.subr.bf16.mxu0 0
        %6413 = vmatpush2.bf16.msra.mxu0 0
        %6414 = vmatprep.subr.bf16.mxu0 0
        %6415 = vmatpush2.bf16.msra.mxu0 0
        %6416 = vmatprep.subr.bf16.mxu0 0
        %6417 = vmatpush2.bf16.msra.mxu0 0
        %6418 = vmatprep.subr.bf16.mxu0 0
        %6419 = vmatpush2.bf16.msra.mxu0 0
        %6420 = vmatprep.mubr.bf16.mxu0 0
        %6421 = vmatmul.mubr.bf16.gmra.mxu0 %v6336
        %v6422 = vpop.f32.mrf.mxu0
        %v6423 = vadd.f32 %v6317, %v6422
        %v6424 = vpop.f32.mrf.mxu0
        %v6425 = vpop.f32.mrf.mxu0
        %v6426 = vpop.f32.mrf.mxu0
        %6427 = vdwg.mxu0
        %v6428 = vld [vmem:[%s407] sm:$0xf]
        %6429 = vrot.lane.b32.xlu0 %v6214, 126
        %v6430 = vpop.permute.xlu0 %6429
        %6431 = vrot.lane.b32.xlu0 %v6215, 126
        %v6432 = vpop.permute.xlu0 %6431
        %6433 = vrot.lane.b32.xlu0 %v6216, 126
        %v6434 = vpop.permute.xlu0 %6433
        %6435 = vrot.lane.b32.xlu0 %v6217, 126
        %v6436 = vpop.permute.xlu0 %6435
        %v6437 = vsel %vm417, %v6430, %v6432
        %v6438 = vsel %vm417, %v6432, %v6434
        %v6439 = vsel %vm417, %v6434, %v6436
        %v6441 = vsel %vm214, %v6428, 0
        %v6444 = vsel %vm218, %v6437, 0
        %v6447 = vsel %vm218, %v6438, 0
        %v6450 = vsel %vm218, %v6439, 0
        %6452 = vmatprep.subr.bf16.mxu0 0
        %6453 = vmatpush1.bf16.msra.mxu0 0
        %6454 = vmatprep.subr.bf16.mxu0 0
        %6455 = vmatpush1.bf16.msra.mxu0 0
        %6456 = vmatprep.subr.bf16.mxu0 0
        %6457 = vmatpush1.bf16.msra.mxu0 0
        %6458 = vmatprep.subr.bf16.mxu0 0
        %6459 = vmatpush1.bf16.msra.mxu0 0
        %6460 = vmatprep.subr.bf16.mxu0 0
        %6461 = vmatpush1.bf16.msra.mxu0 0
        %6462 = vmatprep.subr.bf16.mxu0 0
        %6463 = vmatpush1.bf16.msra.mxu0 0
        %6464 = vmatprep.subr.bf16.mxu0 0
        %6465 = vmatpush1.bf16.msra.mxu0 0
        %6466 = vmatprep.subr.bf16.mxu0 %v6447
        %6467 = vmatpush1.bf16.msra.mxu0 %v6444
        %6468 = vmatprep.subr.bf16.mxu0 0
        %6469 = vmatpush2.bf16.msra.mxu0 0
        %6470 = vmatprep.subr.bf16.mxu0 0
        %6471 = vmatpush2.bf16.msra.mxu0 0
        %6472 = vmatprep.subr.bf16.mxu0 0
        %6473 = vmatpush2.bf16.msra.mxu0 0
        %6474 = vmatprep.subr.bf16.mxu0 0
        %6475 = vmatpush2.bf16.msra.mxu0 0
        %6476 = vmatprep.subr.bf16.mxu0 0
        %6477 = vmatpush2.bf16.msra.mxu0 0
        %6478 = vmatprep.subr.bf16.mxu0 0
        %6479 = vmatpush2.bf16.msra.mxu0 0
        %6480 = vmatprep.subr.bf16.mxu0 0
        %6481 = vmatpush2.bf16.msra.mxu0 0
        %6482 = vmatprep.subr.bf16.mxu0 0
        %6483 = vmatpush2.bf16.msra.mxu0 0
        %6484 = vmatprep.mubr.bf16.mxu0 0
        %6485 = vmatmul.mubr.bf16.gmra.mxu0 %v6441
        %v6486 = vpop.f32.mrf.mxu0
        %v6487 = vadd.f32 0.0, %v6486
        %v6488 = vpop.f32.mrf.mxu0
        %v6489 = vadd.f32 0.0, %v6488
        %v6490 = vpop.f32.mrf.mxu0
        %v6491 = vpop.f32.mrf.mxu0
        %6492 = vdwg.mxu0
        %6493 = vmatprep.subr.bf16.mxu0 0
        %6494 = vmatpush1.bf16.msra.mxu0 0
        %6495 = vmatprep.subr.bf16.mxu0 0
        %6496 = vmatpush1.bf16.msra.mxu0 0
        %6497 = vmatprep.subr.bf16.mxu0 0
        %6498 = vmatpush1.bf16.msra.mxu0 0
        %6499 = vmatprep.subr.bf16.mxu0 0
        %6500 = vmatpush1.bf16.msra.mxu0 0
        %6501 = vmatprep.subr.bf16.mxu0 0
        %6502 = vmatpush1.bf16.msra.mxu0 0
        %6503 = vmatprep.subr.bf16.mxu0 0
        %6504 = vmatpush1.bf16.msra.mxu0 0
        %6505 = vmatprep.subr.bf16.mxu0 0
        %6506 = vmatpush1.bf16.msra.mxu0 0
        %6507 = vmatprep.subr.bf16.mxu0 0
        %6508 = vmatpush1.bf16.msra.mxu0 %v6450
        %6509 = vmatprep.subr.bf16.mxu0 0
        %6510 = vmatpush2.bf16.msra.mxu0 0
        %6511 = vmatprep.subr.bf16.mxu0 0
        %6512 = vmatpush2.bf16.msra.mxu0 0
        %6513 = vmatprep.subr.bf16.mxu0 0
        %6514 = vmatpush2.bf16.msra.mxu0 0
        %6515 = vmatprep.subr.bf16.mxu0 0
        %6516 = vmatpush2.bf16.msra.mxu0 0
        %6517 = vmatprep.subr.bf16.mxu0 0
        %6518 = vmatpush2.bf16.msra.mxu0 0
        %6519 = vmatprep.subr.bf16.mxu0 0
        %6520 = vmatpush2.bf16.msra.mxu0 0
        %6521 = vmatprep.subr.bf16.mxu0 0
        %6522 = vmatpush2.bf16.msra.mxu0 0
        %6523 = vmatprep.subr.bf16.mxu0 0
        %6524 = vmatpush2.bf16.msra.mxu0 0
        %6525 = vmatprep.mubr.bf16.mxu0 0
        %6526 = vmatmul.mubr.bf16.gmra.mxu0 %v6441
        %v6527 = vpop.f32.mrf.mxu0
        %v6528 = vadd.f32 0.0, %v6527
        %v6529 = vpop.f32.mrf.mxu0
        %v6530 = vpop.f32.mrf.mxu0
        %v6531 = vpop.f32.mrf.mxu0
        %6532 = vdwg.mxu0
        %v6533 = vadd.f32 %v6382, %v6487
        %v6534 = vadd.f32 %v6384, %v6489
        %v6535 = vadd.f32 %v6423, %v6528
        %v6536 = vld [vmem:[%s517] sm:$0xf]
        %6537 = vrot.lane.b32.xlu0 %v6214, 110
        %v6538 = vpop.permute.xlu0 %6537
        %6539 = vrot.lane.b32.xlu0 %v6215, 110
        %v6540 = vpop.permute.xlu0 %6539
        %6541 = vrot.lane.b32.xlu0 %v6216, 110
        %v6542 = vpop.permute.xlu0 %6541
        %6543 = vrot.lane.b32.xlu0 %v6217, 110
        %v6544 = vpop.permute.xlu0 %6543
        %v6545 = vsel %vm527, %v6538, %v6540
        %v6546 = vsel %vm527, %v6540, %v6542
        %v6547 = vsel %vm527, %v6542, %v6544
        %v6549 = vsel %vm214, %v6536, 0
        %v6552 = vsel %vm218, %v6545, 0
        %v6555 = vsel %vm218, %v6546, 0
        %v6558 = vsel %vm218, %v6547, 0
        %6560 = vmatprep.subr.bf16.mxu0 0
        %6561 = vmatpush1.bf16.msra.mxu0 0
        %6562 = vmatprep.subr.bf16.mxu0 0
        %6563 = vmatpush1.bf16.msra.mxu0 0
        %6564 = vmatprep.subr.bf16.mxu0 0
        %6565 = vmatpush1.bf16.msra.mxu0 0
        %6566 = vmatprep.subr.bf16.mxu0 0
        %6567 = vmatpush1.bf16.msra.mxu0 0
        %6568 = vmatprep.subr.bf16.mxu0 0
        %6569 = vmatpush1.bf16.msra.mxu0 0
        %6570 = vmatprep.subr.bf16.mxu0 0
        %6571 = vmatpush1.bf16.msra.mxu0 0
        %6572 = vmatprep.subr.bf16.mxu0 0
        %6573 = vmatpush1.bf16.msra.mxu0 0
        %6574 = vmatprep.subr.bf16.mxu0 %v6555
        %6575 = vmatpush1.bf16.msra.mxu0 %v6552
        %6576 = vmatprep.subr.bf16.mxu0 0
        %6577 = vmatpush2.bf16.msra.mxu0 0
        %6578 = vmatprep.subr.bf16.mxu0 0
        %6579 = vmatpush2.bf16.msra.mxu0 0
        %6580 = vmatprep.subr.bf16.mxu0 0
        %6581 = vmatpush2.bf16.msra.mxu0 0
        %6582 = vmatprep.subr.bf16.mxu0 0
        %6583 = vmatpush2.bf16.msra.mxu0 0
        %6584 = vmatprep.subr.bf16.mxu0 0
        %6585 = vmatpush2.bf16.msra.mxu0 0
        %6586 = vmatprep.subr.bf16.mxu0 0
        %6587 = vmatpush2.bf16.msra.mxu0 0
        %6588 = vmatprep.subr.bf16.mxu0 0
        %6589 = vmatpush2.bf16.msra.mxu0 0
        %6590 = vmatprep.subr.bf16.mxu0 0
        %6591 = vmatpush2.bf16.msra.mxu0 0
        %6592 = vmatprep.mubr.bf16.mxu0 0
        %6593 = vmatmul.mubr.bf16.gmra.mxu0 %v6549
        %v6594 = vpop.f32.mrf.mxu0
        %v6595 = vadd.f32 0.0, %v6594
        %v6596 = vpop.f32.mrf.mxu0
        %v6597 = vadd.f32 0.0, %v6596
        %v6598 = vpop.f32.mrf.mxu0
        %v6599 = vpop.f32.mrf.mxu0
        %6600 = vdwg.mxu0
        %6601 = vmatprep.subr.bf16.mxu0 0
        %6602 = vmatpush1.bf16.msra.mxu0 0
        %6603 = vmatprep.subr.bf16.mxu0 0
        %6604 = vmatpush1.bf16.msra.mxu0 0
        %6605 = vmatprep.subr.bf16.mxu0 0
        %6606 = vmatpush1.bf16.msra.mxu0 0
        %6607 = vmatprep.subr.bf16.mxu0 0
        %6608 = vmatpush1.bf16.msra.mxu0 0
        %6609 = vmatprep.subr.bf16.mxu0 0
        %6610 = vmatpush1.bf16.msra.mxu0 0
        %6611 = vmatprep.subr.bf16.mxu0 0
        %6612 = vmatpush1.bf16.msra.mxu0 0
        %6613 = vmatprep.subr.bf16.mxu0 0
        %6614 = vmatpush1.bf16.msra.mxu0 0
        %6615 = vmatprep.subr.bf16.mxu0 0
        %6616 = vmatpush1.bf16.msra.mxu0 %v6558
        %6617 = vmatprep.subr.bf16.mxu0 0
        %6618 = vmatpush2.bf16.msra.mxu0 0
        %6619 = vmatprep.subr.bf16.mxu0 0
        %6620 = vmatpush2.bf16.msra.mxu0 0
        %6621 = vmatprep.subr.bf16.mxu0 0
        %6622 = vmatpush2.bf16.msra.mxu0 0
        %6623 = vmatprep.subr.bf16.mxu0 0
        %6624 = vmatpush2.bf16.msra.mxu0 0
        %6625 = vmatprep.subr.bf16.mxu0 0
        %6626 = vmatpush2.bf16.msra.mxu0 0
        %6627 = vmatprep.subr.bf16.mxu0 0
        %6628 = vmatpush2.bf16.msra.mxu0 0
        %6629 = vmatprep.subr.bf16.mxu0 0
        %6630 = vmatpush2.bf16.msra.mxu0 0
        %6631 = vmatprep.subr.bf16.mxu0 0
        %6632 = vmatpush2.bf16.msra.mxu0 0
        %6633 = vmatprep.mubr.bf16.mxu0 0
        %6634 = vmatmul.mubr.bf16.gmra.mxu0 %v6549
        %v6635 = vpop.f32.mrf.mxu0
        %v6636 = vadd.f32 0.0, %v6635
        %v6637 = vpop.f32.mrf.mxu0
        %v6638 = vpop.f32.mrf.mxu0
        %v6639 = vpop.f32.mrf.mxu0
        %6640 = vdwg.mxu0
        %v6641 = vadd.f32 %v6533, %v6595
        %v6642 = vadd.f32 %v6534, %v6597
        %v6643 = vadd.f32 %v6535, %v6636
        %v6644 = vld [vmem:[%s627] sm:$0xf]
        %6645 = vrot.lane.b32.xlu0 %v6214, 109
        %v6646 = vpop.permute.xlu0 %6645
        %6647 = vrot.lane.b32.xlu0 %v6215, 109
        %v6648 = vpop.permute.xlu0 %6647
        %6649 = vrot.lane.b32.xlu0 %v6216, 109
        %v6650 = vpop.permute.xlu0 %6649
        %6651 = vrot.lane.b32.xlu0 %v6217, 109
        %v6652 = vpop.permute.xlu0 %6651
        %v6653 = vsel %vm637, %v6646, %v6648
        %v6654 = vsel %vm637, %v6648, %v6650
        %v6655 = vsel %vm637, %v6650, %v6652
        %v6657 = vsel %vm214, %v6644, 0
        %v6660 = vsel %vm218, %v6653, 0
        %v6663 = vsel %vm218, %v6654, 0
        %v6666 = vsel %vm218, %v6655, 0
        %6668 = vmatprep.subr.bf16.mxu0 0
        %6669 = vmatpush1.bf16.msra.mxu0 0
        %6670 = vmatprep.subr.bf16.mxu0 0
        %6671 = vmatpush1.bf16.msra.mxu0 0
        %6672 = vmatprep.subr.bf16.mxu0 0
        %6673 = vmatpush1.bf16.msra.mxu0 0
        %6674 = vmatprep.subr.bf16.mxu0 0
        %6675 = vmatpush1.bf16.msra.mxu0 0
        %6676 = vmatprep.subr.bf16.mxu0 0
        %6677 = vmatpush1.bf16.msra.mxu0 0
        %6678 = vmatprep.subr.bf16.mxu0 0
        %6679 = vmatpush1.bf16.msra.mxu0 0
        %6680 = vmatprep.subr.bf16.mxu0 0
        %6681 = vmatpush1.bf16.msra.mxu0 0
        %6682 = vmatprep.subr.bf16.mxu0 %v6663
        %6683 = vmatpush1.bf16.msra.mxu0 %v6660
        %6684 = vmatprep.subr.bf16.mxu0 0
        %6685 = vmatpush2.bf16.msra.mxu0 0
        %6686 = vmatprep.subr.bf16.mxu0 0
        %6687 = vmatpush2.bf16.msra.mxu0 0
        %6688 = vmatprep.subr.bf16.mxu0 0
        %6689 = vmatpush2.bf16.msra.mxu0 0
        %6690 = vmatprep.subr.bf16.mxu0 0
        %6691 = vmatpush2.bf16.msra.mxu0 0
        %6692 = vmatprep.subr.bf16.mxu0 0
        %6693 = vmatpush2.bf16.msra.mxu0 0
        %6694 = vmatprep.subr.bf16.mxu0 0
        %6695 = vmatpush2.bf16.msra.mxu0 0
        %6696 = vmatprep.subr.bf16.mxu0 0
        %6697 = vmatpush2.bf16.msra.mxu0 0
        %6698 = vmatprep.subr.bf16.mxu0 0
        %6699 = vmatpush2.bf16.msra.mxu0 0
        %6700 = vmatprep.mubr.bf16.mxu0 0
        %6701 = vmatmul.mubr.bf16.gmra.mxu0 %v6657
        %v6702 = vpop.f32.mrf.mxu0
        %v6703 = vadd.f32 0.0, %v6702
        %v6704 = vpop.f32.mrf.mxu0
        %v6705 = vadd.f32 0.0, %v6704
        %v6706 = vpop.f32.mrf.mxu0
        %v6707 = vpop.f32.mrf.mxu0
        %6708 = vdwg.mxu0
        %6709 = vmatprep.subr.bf16.mxu0 0
        %6710 = vmatpush1.bf16.msra.mxu0 0
        %6711 = vmatprep.subr.bf16.mxu0 0
        %6712 = vmatpush1.bf16.msra.mxu0 0
        %6713 = vmatprep.subr.bf16.mxu0 0
        %6714 = vmatpush1.bf16.msra.mxu0 0
        %6715 = vmatprep.subr.bf16.mxu0 0
        %6716 = vmatpush1.bf16.msra.mxu0 0
        %6717 = vmatprep.subr.bf16.mxu0 0
        %6718 = vmatpush1.bf16.msra.mxu0 0
        %6719 = vmatprep.subr.bf16.mxu0 0
        %6720 = vmatpush1.bf16.msra.mxu0 0
        %6721 = vmatprep.subr.bf16.mxu0 0
        %6722 = vmatpush1.bf16.msra.mxu0 0
        %6723 = vmatprep.subr.bf16.mxu0 0
        %6724 = vmatpush1.bf16.msra.mxu0 %v6666
        %6725 = vmatprep.subr.bf16.mxu0 0
        %6726 = vmatpush2.bf16.msra.mxu0 0
        %6727 = vmatprep.subr.bf16.mxu0 0
        %6728 = vmatpush2.bf16.msra.mxu0 0
        %6729 = vmatprep.subr.bf16.mxu0 0
        %6730 = vmatpush2.bf16.msra.mxu0 0
        %6731 = vmatprep.subr.bf16.mxu0 0
        %6732 = vmatpush2.bf16.msra.mxu0 0
        %6733 = vmatprep.subr.bf16.mxu0 0
        %6734 = vmatpush2.bf16.msra.mxu0 0
        %6735 = vmatprep.subr.bf16.mxu0 0
        %6736 = vmatpush2.bf16.msra.mxu0 0
        %6737 = vmatprep.subr.bf16.mxu0 0
        %6738 = vmatpush2.bf16.msra.mxu0 0
        %6739 = vmatprep.subr.bf16.mxu0 0
        %6740 = vmatpush2.bf16.msra.mxu0 0
        %6741 = vmatprep.mubr.bf16.mxu0 0
        %6742 = vmatmul.mubr.bf16.gmra.mxu0 %v6657
        %v6743 = vpop.f32.mrf.mxu0
        %v6744 = vadd.f32 0.0, %v6743
        %v6745 = vpop.f32.mrf.mxu0
        %v6746 = vpop.f32.mrf.mxu0
        %v6747 = vpop.f32.mrf.mxu0
        %6748 = vdwg.mxu0
        %v6749 = vadd.f32 %v6641, %v6703
        %v6750 = vadd.f32 %v6642, %v6705
        %v6751 = vadd.f32 %v6643, %v6744
        %v6752 = vld [vmem:[%s737] sm:$0xf]
        %6753 = vrot.lane.b32.xlu0 %v6214, 108
        %v6754 = vpop.permute.xlu0 %6753
        %6755 = vrot.lane.b32.xlu0 %v6215, 108
        %v6756 = vpop.permute.xlu0 %6755
        %6757 = vrot.lane.b32.xlu0 %v6216, 108
        %v6758 = vpop.permute.xlu0 %6757
        %6759 = vrot.lane.b32.xlu0 %v6217, 108
        %v6760 = vpop.permute.xlu0 %6759
        %v6761 = vsel %vm747, %v6754, %v6756
        %v6762 = vsel %vm747, %v6756, %v6758
        %v6763 = vsel %vm747, %v6758, %v6760
        %v6765 = vsel %vm214, %v6752, 0
        %v6768 = vsel %vm218, %v6761, 0
        %v6771 = vsel %vm218, %v6762, 0
        %v6774 = vsel %vm218, %v6763, 0
        %6776 = vmatprep.subr.bf16.mxu0 0
        %6777 = vmatpush1.bf16.msra.mxu0 0
        %6778 = vmatprep.subr.bf16.mxu0 0
        %6779 = vmatpush1.bf16.msra.mxu0 0
        %6780 = vmatprep.subr.bf16.mxu0 0
        %6781 = vmatpush1.bf16.msra.mxu0 0
        %6782 = vmatprep.subr.bf16.mxu0 0
        %6783 = vmatpush1.bf16.msra.mxu0 0
        %6784 = vmatprep.subr.bf16.mxu0 0
        %6785 = vmatpush1.bf16.msra.mxu0 0
        %6786 = vmatprep.subr.bf16.mxu0 0
        %6787 = vmatpush1.bf16.msra.mxu0 0
        %6788 = vmatprep.subr.bf16.mxu0 0
        %6789 = vmatpush1.bf16.msra.mxu0 0
        %6790 = vmatprep.subr.bf16.mxu0 %v6771
        %6791 = vmatpush1.bf16.msra.mxu0 %v6768
        %6792 = vmatprep.subr.bf16.mxu0 0
        %6793 = vmatpush2.bf16.msra.mxu0 0
        %6794 = vmatprep.subr.bf16.mxu0 0
        %6795 = vmatpush2.bf16.msra.mxu0 0
        %6796 = vmatprep.subr.bf16.mxu0 0
        %6797 = vmatpush2.bf16.msra.mxu0 0
        %6798 = vmatprep.subr.bf16.mxu0 0
        %6799 = vmatpush2.bf16.msra.mxu0 0
        %6800 = vmatprep.subr.bf16.mxu0 0
        %6801 = vmatpush2.bf16.msra.mxu0 0
        %6802 = vmatprep.subr.bf16.mxu0 0
        %6803 = vmatpush2.bf16.msra.mxu0 0
        %6804 = vmatprep.subr.bf16.mxu0 0
        %6805 = vmatpush2.bf16.msra.mxu0 0
        %6806 = vmatprep.subr.bf16.mxu0 0
        %6807 = vmatpush2.bf16.msra.mxu0 0
        %6808 = vmatprep.mubr.bf16.mxu0 0
        %6809 = vmatmul.mubr.bf16.gmra.mxu0 %v6765
        %v6810 = vpop.f32.mrf.mxu0
        %v6811 = vadd.f32 0.0, %v6810
        %v6812 = vpop.f32.mrf.mxu0
        %v6813 = vadd.f32 0.0, %v6812
        %v6814 = vpop.f32.mrf.mxu0
        %v6815 = vpop.f32.mrf.mxu0
        %6816 = vdwg.mxu0
        %6817 = vmatprep.subr.bf16.mxu0 0
        %6818 = vmatpush1.bf16.msra.mxu0 0
        %6819 = vmatprep.subr.bf16.mxu0 0
        %6820 = vmatpush1.bf16.msra.mxu0 0
        %6821 = vmatprep.subr.bf16.mxu0 0
        %6822 = vmatpush1.bf16.msra.mxu0 0
        %6823 = vmatprep.subr.bf16.mxu0 0
        %6824 = vmatpush1.bf16.msra.mxu0 0
        %6825 = vmatprep.subr.bf16.mxu0 0
        %6826 = vmatpush1.bf16.msra.mxu0 0
        %6827 = vmatprep.subr.bf16.mxu0 0
        %6828 = vmatpush1.bf16.msra.mxu0 0
        %6829 = vmatprep.subr.bf16.mxu0 0
        %6830 = vmatpush1.bf16.msra.mxu0 0
        %6831 = vmatprep.subr.bf16.mxu0 0
        %6832 = vmatpush1.bf16.msra.mxu0 %v6774
        %6833 = vmatprep.subr.bf16.mxu0 0
        %6834 = vmatpush2.bf16.msra.mxu0 0
        %6835 = vmatprep.subr.bf16.mxu0 0
        %6836 = vmatpush2.bf16.msra.mxu0 0
        %6837 = vmatprep.subr.bf16.mxu0 0
        %6838 = vmatpush2.bf16.msra.mxu0 0
        %6839 = vmatprep.subr.bf16.mxu0 0
        %6840 = vmatpush2.bf16.msra.mxu0 0
        %6841 = vmatprep.subr.bf16.mxu0 0
        %6842 = vmatpush2.bf16.msra.mxu0 0
        %6843 = vmatprep.subr.bf16.mxu0 0
        %6844 = vmatpush2.bf16.msra.mxu0 0
        %6845 = vmatprep.subr.bf16.mxu0 0
        %6846 = vmatpush2.bf16.msra.mxu0 0
        %6847 = vmatprep.subr.bf16.mxu0 0
        %6848 = vmatpush2.bf16.msra.mxu0 0
        %6849 = vmatprep.mubr.bf16.mxu0 0
        %6850 = vmatmul.mubr.bf16.gmra.mxu0 %v6765
        %v6851 = vpop.f32.mrf.mxu0
        %v6852 = vadd.f32 0.0, %v6851
        %v6853 = vpop.f32.mrf.mxu0
        %v6854 = vpop.f32.mrf.mxu0
        %v6855 = vpop.f32.mrf.mxu0
        %6856 = vdwg.mxu0
        %v6857 = vadd.f32 %v6749, %v6811
        %v6858 = vadd.f32 %v6750, %v6813
        %v6859 = vadd.f32 %v6751, %v6852
        %v6860 = vld [vmem:[%s847] sm:$0xf]
        %6861 = vrot.lane.b32.xlu0 %v6214, 92
        %v6862 = vpop.permute.xlu0 %6861
        %6863 = vrot.lane.b32.xlu0 %v6215, 92
        %v6864 = vpop.permute.xlu0 %6863
        %6865 = vrot.lane.b32.xlu0 %v6216, 92
        %v6866 = vpop.permute.xlu0 %6865
        %6867 = vrot.lane.b32.xlu0 %v6217, 92
        %v6868 = vpop.permute.xlu0 %6867
        %v6869 = vsel %vm857, %v6862, %v6864
        %v6870 = vsel %vm857, %v6864, %v6866
        %v6871 = vsel %vm857, %v6866, %v6868
        %v6873 = vsel %vm214, %v6860, 0
        %v6876 = vsel %vm218, %v6869, 0
        %v6879 = vsel %vm218, %v6870, 0
        %v6882 = vsel %vm218, %v6871, 0
        %6884 = vmatprep.subr.bf16.mxu0 0
        %6885 = vmatpush1.bf16.msra.mxu0 0
        %6886 = vmatprep.subr.bf16.mxu0 0
        %6887 = vmatpush1.bf16.msra.mxu0 0
        %6888 = vmatprep.subr.bf16.mxu0 0
        %6889 = vmatpush1.bf16.msra.mxu0 0
        %6890 = vmatprep.subr.bf16.mxu0 0
        %6891 = vmatpush1.bf16.msra.mxu0 0
        %6892 = vmatprep.subr.bf16.mxu0 0
        %6893 = vmatpush1.bf16.msra.mxu0 0
        %6894 = vmatprep.subr.bf16.mxu0 0
        %6895 = vmatpush1.bf16.msra.mxu0 0
        %6896 = vmatprep.subr.bf16.mxu0 0
        %6897 = vmatpush1.bf16.msra.mxu0 0
        %6898 = vmatprep.subr.bf16.mxu0 %v6879
        %6899 = vmatpush1.bf16.msra.mxu0 %v6876
        %6900 = vmatprep.subr.bf16.mxu0 0
        %6901 = vmatpush2.bf16.msra.mxu0 0
        %6902 = vmatprep.subr.bf16.mxu0 0
        %6903 = vmatpush2.bf16.msra.mxu0 0
        %6904 = vmatprep.subr.bf16.mxu0 0
        %6905 = vmatpush2.bf16.msra.mxu0 0
        %6906 = vmatprep.subr.bf16.mxu0 0
        %6907 = vmatpush2.bf16.msra.mxu0 0
        %6908 = vmatprep.subr.bf16.mxu0 0
        %6909 = vmatpush2.bf16.msra.mxu0 0
        %6910 = vmatprep.subr.bf16.mxu0 0
        %6911 = vmatpush2.bf16.msra.mxu0 0
        %6912 = vmatprep.subr.bf16.mxu0 0
        %6913 = vmatpush2.bf16.msra.mxu0 0
        %6914 = vmatprep.subr.bf16.mxu0 0
        %6915 = vmatpush2.bf16.msra.mxu0 0
        %6916 = vmatprep.mubr.bf16.mxu0 0
        %6917 = vmatmul.mubr.bf16.gmra.mxu0 %v6873
        %v6918 = vpop.f32.mrf.mxu0
        %v6919 = vadd.f32 0.0, %v6918
        %v6920 = vpop.f32.mrf.mxu0
        %v6921 = vadd.f32 0.0, %v6920
        %v6922 = vpop.f32.mrf.mxu0
        %v6923 = vpop.f32.mrf.mxu0
        %6924 = vdwg.mxu0
        %6925 = vmatprep.subr.bf16.mxu0 0
        %6926 = vmatpush1.bf16.msra.mxu0 0
        %6927 = vmatprep.subr.bf16.mxu0 0
        %6928 = vmatpush1.bf16.msra.mxu0 0
        %6929 = vmatprep.subr.bf16.mxu0 0
        %6930 = vmatpush1.bf16.msra.mxu0 0
        %6931 = vmatprep.subr.bf16.mxu0 0
        %6932 = vmatpush1.bf16.msra.mxu0 0
        %6933 = vmatprep.subr.bf16.mxu0 0
        %6934 = vmatpush1.bf16.msra.mxu0 0
        %6935 = vmatprep.subr.bf16.mxu0 0
        %6936 = vmatpush1.bf16.msra.mxu0 0
        %6937 = vmatprep.subr.bf16.mxu0 0
        %6938 = vmatpush1.bf16.msra.mxu0 0
        %6939 = vmatprep.subr.bf16.mxu0 0
        %6940 = vmatpush1.bf16.msra.mxu0 %v6882
        %6941 = vmatprep.subr.bf16.mxu0 0
        %6942 = vmatpush2.bf16.msra.mxu0 0
        %6943 = vmatprep.subr.bf16.mxu0 0
        %6944 = vmatpush2.bf16.msra.mxu0 0
        %6945 = vmatprep.subr.bf16.mxu0 0
        %6946 = vmatpush2.bf16.msra.mxu0 0
        %6947 = vmatprep.subr.bf16.mxu0 0
        %6948 = vmatpush2.bf16.msra.mxu0 0
        %6949 = vmatprep.subr.bf16.mxu0 0
        %6950 = vmatpush2.bf16.msra.mxu0 0
        %6951 = vmatprep.subr.bf16.mxu0 0
        %6952 = vmatpush2.bf16.msra.mxu0 0
        %6953 = vmatprep.subr.bf16.mxu0 0
        %6954 = vmatpush2.bf16.msra.mxu0 0
        %6955 = vmatprep.subr.bf16.mxu0 0
        %6956 = vmatpush2.bf16.msra.mxu0 0
        %6957 = vmatprep.mubr.bf16.mxu0 0
        %6958 = vmatmul.mubr.bf16.gmra.mxu0 %v6873
        %v6959 = vpop.f32.mrf.mxu0
        %v6960 = vadd.f32 0.0, %v6959
        %v6961 = vpop.f32.mrf.mxu0
        %v6962 = vpop.f32.mrf.mxu0
        %v6963 = vpop.f32.mrf.mxu0
        %6964 = vdwg.mxu0
        %v6965 = vadd.f32 %v6857, %v6919
        %v6966 = vadd.f32 %v6858, %v6921
        %v6967 = vadd.f32 %v6859, %v6960
        %v6968 = vld [vmem:[%s957] sm:$0xf]
        %6969 = vrot.lane.b32.xlu0 %v6214, 91
        %v6970 = vpop.permute.xlu0 %6969
        %6971 = vrot.lane.b32.xlu0 %v6215, 91
        %v6972 = vpop.permute.xlu0 %6971
        %6973 = vrot.lane.b32.xlu0 %v6216, 91
        %v6974 = vpop.permute.xlu0 %6973
        %6975 = vrot.lane.b32.xlu0 %v6217, 91
        %v6976 = vpop.permute.xlu0 %6975
        %v6977 = vsel %vm967, %v6970, %v6972
        %v6978 = vsel %vm967, %v6972, %v6974
        %v6979 = vsel %vm967, %v6974, %v6976
        %v6981 = vsel %vm214, %v6968, 0
        %v6984 = vsel %vm218, %v6977, 0
        %v6987 = vsel %vm218, %v6978, 0
        %v6990 = vsel %vm218, %v6979, 0
        %6992 = vmatprep.subr.bf16.mxu0 0
        %6993 = vmatpush1.bf16.msra.mxu0 0
        %6994 = vmatprep.subr.bf16.mxu0 0
        %6995 = vmatpush1.bf16.msra.mxu0 0
        %6996 = vmatprep.subr.bf16.mxu0 0
        %6997 = vmatpush1.bf16.msra.mxu0 0
        %6998 = vmatprep.subr.bf16.mxu0 0
        %6999 = vmatpush1.bf16.msra.mxu0 0
        %7000 = vmatprep.subr.bf16.mxu0 0
        %7001 = vmatpush1.bf16.msra.mxu0 0
        %7002 = vmatprep.subr.bf16.mxu0 0
        %7003 = vmatpush1.bf16.msra.mxu0 0
        %7004 = vmatprep.subr.bf16.mxu0 0
        %7005 = vmatpush1.bf16.msra.mxu0 0
        %7006 = vmatprep.subr.bf16.mxu0 %v6987
        %7007 = vmatpush1.bf16.msra.mxu0 %v6984
        %7008 = vmatprep.subr.bf16.mxu0 0
        %7009 = vmatpush2.bf16.msra.mxu0 0
        %7010 = vmatprep.subr.bf16.mxu0 0
        %7011 = vmatpush2.bf16.msra.mxu0 0
        %7012 = vmatprep.subr.bf16.mxu0 0
        %7013 = vmatpush2.bf16.msra.mxu0 0
        %7014 = vmatprep.subr.bf16.mxu0 0
        %7015 = vmatpush2.bf16.msra.mxu0 0
        %7016 = vmatprep.subr.bf16.mxu0 0
        %7017 = vmatpush2.bf16.msra.mxu0 0
        %7018 = vmatprep.subr.bf16.mxu0 0
        %7019 = vmatpush2.bf16.msra.mxu0 0
        %7020 = vmatprep.subr.bf16.mxu0 0
        %7021 = vmatpush2.bf16.msra.mxu0 0
        %7022 = vmatprep.subr.bf16.mxu0 0
        %7023 = vmatpush2.bf16.msra.mxu0 0
        %7024 = vmatprep.mubr.bf16.mxu0 0
        %7025 = vmatmul.mubr.bf16.gmra.mxu0 %v6981
        %v7026 = vpop.f32.mrf.mxu0
        %v7027 = vadd.f32 0.0, %v7026
        %v7028 = vpop.f32.mrf.mxu0
        %v7029 = vadd.f32 0.0, %v7028
        %v7030 = vpop.f32.mrf.mxu0
        %v7031 = vpop.f32.mrf.mxu0
        %7032 = vdwg.mxu0
        %7033 = vmatprep.subr.bf16.mxu0 0
        %7034 = vmatpush1.bf16.msra.mxu0 0
        %7035 = vmatprep.subr.bf16.mxu0 0
        %7036 = vmatpush1.bf16.msra.mxu0 0
        %7037 = vmatprep.subr.bf16.mxu0 0
        %7038 = vmatpush1.bf16.msra.mxu0 0
        %7039 = vmatprep.subr.bf16.mxu0 0
        %7040 = vmatpush1.bf16.msra.mxu0 0
        %7041 = vmatprep.subr.bf16.mxu0 0
        %7042 = vmatpush1.bf16.msra.mxu0 0
        %7043 = vmatprep.subr.bf16.mxu0 0
        %7044 = vmatpush1.bf16.msra.mxu0 0
        %7045 = vmatprep.subr.bf16.mxu0 0
        %7046 = vmatpush1.bf16.msra.mxu0 0
        %7047 = vmatprep.subr.bf16.mxu0 0
        %7048 = vmatpush1.bf16.msra.mxu0 %v6990
        %7049 = vmatprep.subr.bf16.mxu0 0
        %7050 = vmatpush2.bf16.msra.mxu0 0
        %7051 = vmatprep.subr.bf16.mxu0 0
        %7052 = vmatpush2.bf16.msra.mxu0 0
        %7053 = vmatprep.subr.bf16.mxu0 0
        %7054 = vmatpush2.bf16.msra.mxu0 0
        %7055 = vmatprep.subr.bf16.mxu0 0
        %7056 = vmatpush2.bf16.msra.mxu0 0
        %7057 = vmatprep.subr.bf16.mxu0 0
        %7058 = vmatpush2.bf16.msra.mxu0 0
        %7059 = vmatprep.subr.bf16.mxu0 0
        %7060 = vmatpush2.bf16.msra.mxu0 0
        %7061 = vmatprep.subr.bf16.mxu0 0
        %7062 = vmatpush2.bf16.msra.mxu0 0
        %7063 = vmatprep.subr.bf16.mxu0 0
        %7064 = vmatpush2.bf16.msra.mxu0 0
        %7065 = vmatprep.mubr.bf16.mxu0 0
        %7066 = vmatmul.mubr.bf16.gmra.mxu0 %v6981
        %v7067 = vpop.f32.mrf.mxu0
        %v7068 = vadd.f32 0.0, %v7067
        %v7069 = vpop.f32.mrf.mxu0
        %v7070 = vpop.f32.mrf.mxu0
        %v7071 = vpop.f32.mrf.mxu0
        %7072 = vdwg.mxu0
        %v7073 = vadd.f32 %v6965, %v7027
        %v7074 = vadd.f32 %v6966, %v7029
        %v7075 = vadd.f32 %v6967, %v7068
        %v7076 = vld [vmem:[%s1067] sm:$0xf]
        %7077 = vrot.lane.b32.xlu0 %v6214, 90
        %v7078 = vpop.permute.xlu0 %7077
        %7079 = vrot.lane.b32.xlu0 %v6215, 90
        %v7080 = vpop.permute.xlu0 %7079
        %7081 = vrot.lane.b32.xlu0 %v6216, 90
        %v7082 = vpop.permute.xlu0 %7081
        %7083 = vrot.lane.b32.xlu0 %v6217, 90
        %v7084 = vpop.permute.xlu0 %7083
        %v7085 = vsel %vm1077, %v7078, %v7080
        %v7086 = vsel %vm1077, %v7080, %v7082
        %v7087 = vsel %vm1077, %v7082, %v7084
        %v7089 = vsel %vm214, %v7076, 0
        %v7092 = vsel %vm218, %v7085, 0
        %v7095 = vsel %vm218, %v7086, 0
        %v7098 = vsel %vm218, %v7087, 0
        %7100 = vmatprep.subr.bf16.mxu0 0
        %7101 = vmatpush1.bf16.msra.mxu0 0
        %7102 = vmatprep.subr.bf16.mxu0 0
        %7103 = vmatpush1.bf16.msra.mxu0 0
        %7104 = vmatprep.subr.bf16.mxu0 0
        %7105 = vmatpush1.bf16.msra.mxu0 0
        %7106 = vmatprep.subr.bf16.mxu0 0
        %7107 = vmatpush1.bf16.msra.mxu0 0
        %7108 = vmatprep.subr.bf16.mxu0 0
        %7109 = vmatpush1.bf16.msra.mxu0 0
        %7110 = vmatprep.subr.bf16.mxu0 0
        %7111 = vmatpush1.bf16.msra.mxu0 0
        %7112 = vmatprep.subr.bf16.mxu0 0
        %7113 = vmatpush1.bf16.msra.mxu0 0
        %7114 = vmatprep.subr.bf16.mxu0 %v7095
        %7115 = vmatpush1.bf16.msra.mxu0 %v7092
        %7116 = vmatprep.subr.bf16.mxu0 0
        %7117 = vmatpush2.bf16.msra.mxu0 0
        %7118 = vmatprep.subr.bf16.mxu0 0
        %7119 = vmatpush2.bf16.msra.mxu0 0
        %7120 = vmatprep.subr.bf16.mxu0 0
        %7121 = vmatpush2.bf16.msra.mxu0 0
        %7122 = vmatprep.subr.bf16.mxu0 0
        %7123 = vmatpush2.bf16.msra.mxu0 0
        %7124 = vmatprep.subr.bf16.mxu0 0
        %7125 = vmatpush2.bf16.msra.mxu0 0
        %7126 = vmatprep.subr.bf16.mxu0 0
        %7127 = vmatpush2.bf16.msra.mxu0 0
        %7128 = vmatprep.subr.bf16.mxu0 0
        %7129 = vmatpush2.bf16.msra.mxu0 0
        %7130 = vmatprep.subr.bf16.mxu0 0
        %7131 = vmatpush2.bf16.msra.mxu0 0
        %7132 = vmatprep.mubr.bf16.mxu0 0
        %7133 = vmatmul.mubr.bf16.gmra.mxu0 %v7089
        %v7134 = vpop.f32.mrf.mxu0
        %v7135 = vadd.f32 0.0, %v7134
        %v7136 = vpop.f32.mrf.mxu0
        %v7137 = vadd.f32 0.0, %v7136
        %v7138 = vpop.f32.mrf.mxu0
        %v7139 = vpop.f32.mrf.mxu0
        %7140 = vdwg.mxu0
        %7141 = vmatprep.subr.bf16.mxu0 0
        %7142 = vmatpush1.bf16.msra.mxu0 0
        %7143 = vmatprep.subr.bf16.mxu0 0
        %7144 = vmatpush1.bf16.msra.mxu0 0
        %7145 = vmatprep.subr.bf16.mxu0 0
        %7146 = vmatpush1.bf16.msra.mxu0 0
        %7147 = vmatprep.subr.bf16.mxu0 0
        %7148 = vmatpush1.bf16.msra.mxu0 0
        %7149 = vmatprep.subr.bf16.mxu0 0
        %7150 = vmatpush1.bf16.msra.mxu0 0
        %7151 = vmatprep.subr.bf16.mxu0 0
        %7152 = vmatpush1.bf16.msra.mxu0 0
        %7153 = vmatprep.subr.bf16.mxu0 0
        %7154 = vmatpush1.bf16.msra.mxu0 0
        %7155 = vmatprep.subr.bf16.mxu0 0
        %7156 = vmatpush1.bf16.msra.mxu0 %v7098
        %7157 = vmatprep.subr.bf16.mxu0 0
        %7158 = vmatpush2.bf16.msra.mxu0 0
        %7159 = vmatprep.subr.bf16.mxu0 0
        %7160 = vmatpush2.bf16.msra.mxu0 0
        %7161 = vmatprep.subr.bf16.mxu0 0
        %7162 = vmatpush2.bf16.msra.mxu0 0
        %7163 = vmatprep.subr.bf16.mxu0 0
        %7164 = vmatpush2.bf16.msra.mxu0 0
        %7165 = vmatprep.subr.bf16.mxu0 0
        %7166 = vmatpush2.bf16.msra.mxu0 0
        %7167 = vmatprep.subr.bf16.mxu0 0
        %7168 = vmatpush2.bf16.msra.mxu0 0
        %7169 = vmatprep.subr.bf16.mxu0 0
        %7170 = vmatpush2.bf16.msra.mxu0 0
        %7171 = vmatprep.subr.bf16.mxu0 0
        %7172 = vmatpush2.bf16.msra.mxu0 0
        %7173 = vmatprep.mubr.bf16.mxu0 0
        %7174 = vmatmul.mubr.bf16.gmra.mxu0 %v7089
        %v7175 = vpop.f32.mrf.mxu0
        %v7176 = vadd.f32 0.0, %v7175
        %v7177 = vpop.f32.mrf.mxu0
        %v7178 = vpop.f32.mrf.mxu0
        %v7179 = vpop.f32.mrf.mxu0
        %7180 = vdwg.mxu0
        %v7181 = vadd.f32 %v7073, %v7135
        %v7182 = vadd.f32 %v7074, %v7137
        %v7183 = vadd.f32 %v7075, %v7176
        %v7184 = vld [vmem:[%s2] sm:$0xff]
        %7186 = vset.pattern.permute.xlu0 0
        %7187 = vperm.xlu0 %7186, %v7184
        %v7188 = vpop.permute.xlu0 %7187
        %v7190 = vadd.f32 %v7181, %v7188
        %v7191 = vadd.f32 %v7182, %v7188
        %v7192 = vadd.f32 %v7183, %v7188
        %v7193 = vmax.f32 %v7190, 0.0
        %v7194 = vmax.f32 %v7191, 0.0
        %v7195 = vmax.f32 %v7192, 0.0
        %7196 = vst [vmem:[%s151 + $0x90] sm:$0xff] %v7193
        %7197 = vst [vmem:[%s151 + $0x98] sm:$0xff] %v7194
        %7198 = vst [vmem:[%s151 + $0xa0] sm:$0xff] %v7195
        %v7199 = vld [vmem:[#allocation2 + $0x30] sm:$0xcc]
        %v7200 = vld [vmem:[#allocation2 + $0x38] sm:$0xc]
        %v7201 = vld [vmem:[#allocation2 + $0x40] sm:$0xff]
        %v7202 = vld [vmem:[#allocation2 + $0x48] sm:$0xf]
        %v7203 = vld [vmem:[#allocation4] sm:$0xf]
        %v7204 = vld [vmem:[#allocation2 + $0x30] sm:$0xcc]
        %v7205 = vld [vmem:[#allocation2 + $0x38] sm:$0xcc]
        %v7206 = vld [vmem:[#allocation2 + $0x40] sm:$0xff]
        %v7207 = vld [vmem:[#allocation2 + $0x48] sm:$0xff]
        %v7208 = vld [vmem:[%s184] sm:$0xf]
        %v7213 = vunpack.c.l.b16 %v7204
        %v7214 = vunpack.c.h.b16 %v7204
        %v7215 = vunpack.c.l.b16 %v7205
        %v7216 = vunpack.c.h.b16 %v7205
        %v7217 = vunpack.c.l.b16 %v7206
        %v7218 = vunpack.c.h.b16 %v7206
        %v7219 = vunpack.c.l.b16 %v7207
        %v7220 = vunpack.c.h.b16 %v7207
        %v7221 = vpack.c.b16 %v7217, %v7213
        %v7222 = vpack.c.b16 %v7218, %v7214
        %v7223 = vpack.c.b16 %v7219, %v7215
        %v7224 = vpack.c.b16 %v7220, %v7216
        %v7225 = vrot.slane %v7221, 2
        %v7226 = vrot.slane %v7222, 2
        %v7227 = vrot.slane %v7223, 2
        %v7228 = vrot.slane %v7224, 2
        %7229 = vrot.lane.b32.xlu0 %v7225, 127
        %v7230 = vpop.permute.xlu0 %7229
        %7231 = vrot.lane.b32.xlu0 %v7226, 127
        %v7232 = vpop.permute.xlu0 %7231
        %7233 = vrot.lane.b32.xlu0 %v7227, 127
        %v7234 = vpop.permute.xlu0 %7233
        %7235 = vrot.lane.b32.xlu0 %v7228, 127
        %v7236 = vpop.permute.xlu0 %7235
        %v7237 = vsel %vm210, %v7230, %v7232
        %v7238 = vsel %vm210, %v7232, %v7234
        %v7239 = vsel %vm210, %v7234, %v7236
        %v7241 = vsel %vm214, %v7208, 0
        %v7244 = vsel %vm218, %v7237, 0
        %v7247 = vsel %vm218, %v7238, 0
        %v7250 = vsel %vm218, %v7239, 0
        %7252 = vmatprep.subr.bf16.mxu0 0
        %7253 = vmatpush1.bf16.msra.mxu0 0
        %7254 = vmatprep.subr.bf16.mxu0 0
        %7255 = vmatpush1.bf16.msra.mxu0 0
        %7256 = vmatprep.subr.bf16.mxu0 0
        %7257 = vmatpush1.bf16.msra.mxu0 0
        %7258 = vmatprep.subr.bf16.mxu0 0
        %7259 = vmatpush1.bf16.msra.mxu0 0
        %7260 = vmatprep.subr.bf16.mxu0 0
        %7261 = vmatpush1.bf16.msra.mxu0 0
        %7262 = vmatprep.subr.bf16.mxu0 0
        %7263 = vmatpush1.bf16.msra.mxu0 0
        %7264 = vmatprep.subr.bf16.mxu0 0
        %7265 = vmatpush1.bf16.msra.mxu0 0
        %7266 = vmatprep.subr.bf16.mxu0 %v7247
        %7267 = vmatpush1.bf16.msra.mxu0 %v7244
        %7268 = vmatprep.subr.bf16.mxu0 0
        %7269 = vmatpush2.bf16.msra.mxu0 0
        %7270 = vmatprep.subr.bf16.mxu0 0
        %7271 = vmatpush2.bf16.msra.mxu0 0
        %7272 = vmatprep.subr.bf16.mxu0 0
        %7273 = vmatpush2.bf16.msra.mxu0 0
        %7274 = vmatprep.subr.bf16.mxu0 0
        %7275 = vmatpush2.bf16.msra.mxu0 0
        %7276 = vmatprep.subr.bf16.mxu0 0
        %7277 = vmatpush2.bf16.msra.mxu0 0
        %7278 = vmatprep.subr.bf16.mxu0 0
        %7279 = vmatpush2.bf16.msra.mxu0 0
        %7280 = vmatprep.subr.bf16.mxu0 0
        %7281 = vmatpush2.bf16.msra.mxu0 0
        %7282 = vmatprep.subr.bf16.mxu0 0
        %7283 = vmatpush2.bf16.msra.mxu0 0
        %7284 = vmatprep.mubr.bf16.mxu0 0
        %7285 = vmatmul.mubr.bf16.gmra.mxu0 %v7241
        %v7286 = vpop.f32.mrf.mxu0
        %v7287 = vadd.f32 0.0, %v7286
        %v7288 = vpop.f32.mrf.mxu0
        %v7289 = vadd.f32 0.0, %v7288
        %v7290 = vpop.f32.mrf.mxu0
        %v7291 = vpop.f32.mrf.mxu0
        %7292 = vdwg.mxu0
        %7293 = vmatprep.subr.bf16.mxu0 0
        %7294 = vmatpush1.bf16.msra.mxu0 0
        %7295 = vmatprep.subr.bf16.mxu0 0
        %7296 = vmatpush1.bf16.msra.mxu0 0
        %7297 = vmatprep.subr.bf16.mxu0 0
        %7298 = vmatpush1.bf16.msra.mxu0 0
        %7299 = vmatprep.subr.bf16.mxu0 0
        %7300 = vmatpush1.bf16.msra.mxu0 0
        %7301 = vmatprep.subr.bf16.mxu0 0
        %7302 = vmatpush1.bf16.msra.mxu0 0
        %7303 = vmatprep.subr.bf16.mxu0 0
        %7304 = vmatpush1.bf16.msra.mxu0 0
        %7305 = vmatprep.subr.bf16.mxu0 0
        %7306 = vmatpush1.bf16.msra.mxu0 0
        %7307 = vmatprep.subr.bf16.mxu0 0
        %7308 = vmatpush1.bf16.msra.mxu0 %v7250
        %7309 = vmatprep.subr.bf16.mxu0 0
        %7310 = vmatpush2.bf16.msra.mxu0 0
        %7311 = vmatprep.subr.bf16.mxu0 0
        %7312 = vmatpush2.bf16.msra.mxu0 0
        %7313 = vmatprep.subr.bf16.mxu0 0
        %7314 = vmatpush2.bf16.msra.mxu0 0
        %7315 = vmatprep.subr.bf16.mxu0 0
        %7316 = vmatpush2.bf16.msra.mxu0 0
        %7317 = vmatprep.subr.bf16.mxu0 0
        %7318 = vmatpush2.bf16.msra.mxu0 0
        %7319 = vmatprep.subr.bf16.mxu0 0
        %7320 = vmatpush2.bf16.msra.mxu0 0
        %7321 = vmatprep.subr.bf16.mxu0 0
        %7322 = vmatpush2.bf16.msra.mxu0 0
        %7323 = vmatprep.subr.bf16.mxu0 0
        %7324 = vmatpush2.bf16.msra.mxu0 0
        %7325 = vmatprep.mubr.bf16.mxu0 0
        %7326 = vmatmul.mubr.bf16.gmra.mxu0 %v7241
        %v7327 = vpop.f32.mrf.mxu0
        %v7328 = vadd.f32 0.0, %v7327
        %v7329 = vpop.f32.mrf.mxu0
        %v7330 = vpop.f32.mrf.mxu0
        %v7331 = vpop.f32.mrf.mxu0
        %7332 = vdwg.mxu0
        %v7337 = vunpack.c.l.b16 %v7199
        %v7338 = vunpack.c.h.b16 %v7199
        %v7339 = vunpack.c.l.b16 %v7200
        %v7340 = vunpack.c.l.b16 %v7201
        %v7341 = vunpack.c.h.b16 %v7201
        %v7342 = vunpack.c.l.b16 %v7202
        %v7343 = vpack.c.b16 %v7340, %v7337
        %v7344 = vpack.c.b16 %v7341, %v7338
        %v7345 = vpack.c.b16 %v7342, %v7339
        %v7346 = vrot.slane %v7343, 2
        %v7347 = vrot.slane %v7344, 2
        %v7348 = vrot.slane %v7345, 2
        %v7350 = vsel %vm214, %v7203, 0
        %v7353 = vsel %vm218, %v7346, 0
        %v7356 = vsel %vm218, %v7347, 0
        %v7359 = vsel %vm218, %v7348, 0
        %7361 = vmatprep.subr.bf16.mxu0 0
        %7362 = vmatpush1.bf16.msra.mxu0 0
        %7363 = vmatprep.subr.bf16.mxu0 0
        %7364 = vmatpush1.bf16.msra.mxu0 0
        %7365 = vmatprep.subr.bf16.mxu0 0
        %7366 = vmatpush1.bf16.msra.mxu0 0
        %7367 = vmatprep.subr.bf16.mxu0 0
        %7368 = vmatpush1.bf16.msra.mxu0 0
        %7369 = vmatprep.subr.bf16.mxu0 0
        %7370 = vmatpush1.bf16.msra.mxu0 0
        %7371 = vmatprep.subr.bf16.mxu0 0
        %7372 = vmatpush1.bf16.msra.mxu0 0
        %7373 = vmatprep.subr.bf16.mxu0 0
        %7374 = vmatpush1.bf16.msra.mxu0 0
        %7375 = vmatprep.subr.bf16.mxu0 %v7356
        %7376 = vmatpush1.bf16.msra.mxu0 %v7353
        %7377 = vmatprep.subr.bf16.mxu0 0
        %7378 = vmatpush2.bf16.msra.mxu0 0
        %7379 = vmatprep.subr.bf16.mxu0 0
        %7380 = vmatpush2.bf16.msra.mxu0 0
        %7381 = vmatprep.subr.bf16.mxu0 0
        %7382 = vmatpush2.bf16.msra.mxu0 0
        %7383 = vmatprep.subr.bf16.mxu0 0
        %7384 = vmatpush2.bf16.msra.mxu0 0
        %7385 = vmatprep.subr.bf16.mxu0 0
        %7386 = vmatpush2.bf16.msra.mxu0 0
        %7387 = vmatprep.subr.bf16.mxu0 0
        %7388 = vmatpush2.bf16.msra.mxu0 0
        %7389 = vmatprep.subr.bf16.mxu0 0
        %7390 = vmatpush2.bf16.msra.mxu0 0
        %7391 = vmatprep.subr.bf16.mxu0 0
        %7392 = vmatpush2.bf16.msra.mxu0 0
        %7393 = vmatprep.mubr.bf16.mxu0 0
        %7394 = vmatmul.mubr.bf16.gmra.mxu0 %v7350
        %v7395 = vpop.f32.mrf.mxu0
        %v7396 = vadd.f32 %v7287, %v7395
        %v7397 = vpop.f32.mrf.mxu0
        %v7398 = vadd.f32 %v7289, %v7397
        %v7399 = vpop.f32.mrf.mxu0
        %v7400 = vpop.f32.mrf.mxu0
        %7401 = vdwg.mxu0
        %7402 = vmatprep.subr.bf16.mxu0 0
        %7403 = vmatpush1.bf16.msra.mxu0 0
        %7404 = vmatprep.subr.bf16.mxu0 0
        %7405 = vmatpush1.bf16.msra.mxu0 0
        %7406 = vmatprep.subr.bf16.mxu0 0
        %7407 = vmatpush1.bf16.msra.mxu0 0
        %7408 = vmatprep.subr.bf16.mxu0 0
        %7409 = vmatpush1.bf16.msra.mxu0 0
        %7410 = vmatprep.subr.bf16.mxu0 0
        %7411 = vmatpush1.bf16.msra.mxu0 0
        %7412 = vmatprep.subr.bf16.mxu0 0
        %7413 = vmatpush1.bf16.msra.mxu0 0
        %7414 = vmatprep.subr.bf16.mxu0 0
        %7415 = vmatpush1.bf16.msra.mxu0 0
        %7416 = vmatprep.subr.bf16.mxu0 0
        %7417 = vmatpush1.bf16.msra.mxu0 %v7359
        %7418 = vmatprep.subr.bf16.mxu0 0
        %7419 = vmatpush2.bf16.msra.mxu0 0
        %7420 = vmatprep.subr.bf16.mxu0 0
        %7421 = vmatpush2.bf16.msra.mxu0 0
        %7422 = vmatprep.subr.bf16.mxu0 0
        %7423 = vmatpush2.bf16.msra.mxu0 0
        %7424 = vmatprep.subr.bf16.mxu0 0
        %7425 = vmatpush2.bf16.msra.mxu0 0
        %7426 = vmatprep.subr.bf16.mxu0 0
        %7427 = vmatpush2.bf16.msra.mxu0 0
        %7428 = vmatprep.subr.bf16.mxu0 0
        %7429 = vmatpush2.bf16.msra.mxu0 0
        %7430 = vmatprep.subr.bf16.mxu0 0
        %7431 = vmatpush2.bf16.msra.mxu0 0
        %7432 = vmatprep.subr.bf16.mxu0 0
        %7433 = vmatpush2.bf16.msra.mxu0 0
        %7434 = vmatprep.mubr.bf16.mxu0 0
        %7435 = vmatmul.mubr.bf16.gmra.mxu0 %v7350
        %v7436 = vpop.f32.mrf.mxu0
        %v7437 = vadd.f32 %v7328, %v7436
        %v7438 = vpop.f32.mrf.mxu0
        %v7439 = vpop.f32.mrf.mxu0
        %v7440 = vpop.f32.mrf.mxu0
        %7441 = vdwg.mxu0
        %v7442 = vld [vmem:[%s407] sm:$0xf]
        %7443 = vrot.lane.b32.xlu0 %v7225, 126
        %v7444 = vpop.permute.xlu0 %7443
        %7445 = vrot.lane.b32.xlu0 %v7226, 126
        %v7446 = vpop.permute.xlu0 %7445
        %7447 = vrot.lane.b32.xlu0 %v7227, 126
        %v7448 = vpop.permute.xlu0 %7447
        %7449 = vrot.lane.b32.xlu0 %v7228, 126
        %v7450 = vpop.permute.xlu0 %7449
        %v7451 = vsel %vm417, %v7444, %v7446
        %v7452 = vsel %vm417, %v7446, %v7448
        %v7453 = vsel %vm417, %v7448, %v7450
        %v7455 = vsel %vm214, %v7442, 0
        %v7458 = vsel %vm218, %v7451, 0
        %v7461 = vsel %vm218, %v7452, 0
        %v7464 = vsel %vm218, %v7453, 0
        %7466 = vmatprep.subr.bf16.mxu0 0
        %7467 = vmatpush1.bf16.msra.mxu0 0
        %7468 = vmatprep.subr.bf16.mxu0 0
        %7469 = vmatpush1.bf16.msra.mxu0 0
        %7470 = vmatprep.subr.bf16.mxu0 0
        %7471 = vmatpush1.bf16.msra.mxu0 0
        %7472 = vmatprep.subr.bf16.mxu0 0
        %7473 = vmatpush1.bf16.msra.mxu0 0
        %7474 = vmatprep.subr.bf16.mxu0 0
        %7475 = vmatpush1.bf16.msra.mxu0 0
        %7476 = vmatprep.subr.bf16.mxu0 0
        %7477 = vmatpush1.bf16.msra.mxu0 0
        %7478 = vmatprep.subr.bf16.mxu0 0
        %7479 = vmatpush1.bf16.msra.mxu0 0
        %7480 = vmatprep.subr.bf16.mxu0 %v7461
        %7481 = vmatpush1.bf16.msra.mxu0 %v7458
        %7482 = vmatprep.subr.bf16.mxu0 0
        %7483 = vmatpush2.bf16.msra.mxu0 0
        %7484 = vmatprep.subr.bf16.mxu0 0
        %7485 = vmatpush2.bf16.msra.mxu0 0
        %7486 = vmatprep.subr.bf16.mxu0 0
        %7487 = vmatpush2.bf16.msra.mxu0 0
        %7488 = vmatprep.subr.bf16.mxu0 0
        %7489 = vmatpush2.bf16.msra.mxu0 0
        %7490 = vmatprep.subr.bf16.mxu0 0
        %7491 = vmatpush2.bf16.msra.mxu0 0
        %7492 = vmatprep.subr.bf16.mxu0 0
        %7493 = vmatpush2.bf16.msra.mxu0 0
        %7494 = vmatprep.subr.bf16.mxu0 0
        %7495 = vmatpush2.bf16.msra.mxu0 0
        %7496 = vmatprep.subr.bf16.mxu0 0
        %7497 = vmatpush2.bf16.msra.mxu0 0
        %7498 = vmatprep.mubr.bf16.mxu0 0
        %7499 = vmatmul.mubr.bf16.gmra.mxu0 %v7455
        %v7500 = vpop.f32.mrf.mxu0
        %v7501 = vadd.f32 0.0, %v7500
        %v7502 = vpop.f32.mrf.mxu0
        %v7503 = vadd.f32 0.0, %v7502
        %v7504 = vpop.f32.mrf.mxu0
        %v7505 = vpop.f32.mrf.mxu0
        %7506 = vdwg.mxu0
        %7507 = vmatprep.subr.bf16.mxu0 0
        %7508 = vmatpush1.bf16.msra.mxu0 0
        %7509 = vmatprep.subr.bf16.mxu0 0
        %7510 = vmatpush1.bf16.msra.mxu0 0
        %7511 = vmatprep.subr.bf16.mxu0 0
        %7512 = vmatpush1.bf16.msra.mxu0 0
        %7513 = vmatprep.subr.bf16.mxu0 0
        %7514 = vmatpush1.bf16.msra.mxu0 0
        %7515 = vmatprep.subr.bf16.mxu0 0
        %7516 = vmatpush1.bf16.msra.mxu0 0
        %7517 = vmatprep.subr.bf16.mxu0 0
        %7518 = vmatpush1.bf16.msra.mxu0 0
        %7519 = vmatprep.subr.bf16.mxu0 0
        %7520 = vmatpush1.bf16.msra.mxu0 0
        %7521 = vmatprep.subr.bf16.mxu0 0
        %7522 = vmatpush1.bf16.msra.mxu0 %v7464
        %7523 = vmatprep.subr.bf16.mxu0 0
        %7524 = vmatpush2.bf16.msra.mxu0 0
        %7525 = vmatprep.subr.bf16.mxu0 0
        %7526 = vmatpush2.bf16.msra.mxu0 0
        %7527 = vmatprep.subr.bf16.mxu0 0
        %7528 = vmatpush2.bf16.msra.mxu0 0
        %7529 = vmatprep.subr.bf16.mxu0 0
        %7530 = vmatpush2.bf16.msra.mxu0 0
        %7531 = vmatprep.subr.bf16.mxu0 0
        %7532 = vmatpush2.bf16.msra.mxu0 0
        %7533 = vmatprep.subr.bf16.mxu0 0
        %7534 = vmatpush2.bf16.msra.mxu0 0
        %7535 = vmatprep.subr.bf16.mxu0 0
        %7536 = vmatpush2.bf16.msra.mxu0 0
        %7537 = vmatprep.subr.bf16.mxu0 0
        %7538 = vmatpush2.bf16.msra.mxu0 0
        %7539 = vmatprep.mubr.bf16.mxu0 0
        %7540 = vmatmul.mubr.bf16.gmra.mxu0 %v7455
        %v7541 = vpop.f32.mrf.mxu0
        %v7542 = vadd.f32 0.0, %v7541
        %v7543 = vpop.f32.mrf.mxu0
        %v7544 = vpop.f32.mrf.mxu0
        %v7545 = vpop.f32.mrf.mxu0
        %7546 = vdwg.mxu0
        %v7547 = vadd.f32 %v7396, %v7501
        %v7548 = vadd.f32 %v7398, %v7503
        %v7549 = vadd.f32 %v7437, %v7542
        %v7550 = vld [vmem:[%s517] sm:$0xf]
        %7551 = vrot.lane.b32.xlu0 %v7225, 110
        %v7552 = vpop.permute.xlu0 %7551
        %7553 = vrot.lane.b32.xlu0 %v7226, 110
        %v7554 = vpop.permute.xlu0 %7553
        %7555 = vrot.lane.b32.xlu0 %v7227, 110
        %v7556 = vpop.permute.xlu0 %7555
        %7557 = vrot.lane.b32.xlu0 %v7228, 110
        %v7558 = vpop.permute.xlu0 %7557
        %v7559 = vsel %vm527, %v7552, %v7554
        %v7560 = vsel %vm527, %v7554, %v7556
        %v7561 = vsel %vm527, %v7556, %v7558
        %v7563 = vsel %vm214, %v7550, 0
        %v7566 = vsel %vm218, %v7559, 0
        %v7569 = vsel %vm218, %v7560, 0
        %v7572 = vsel %vm218, %v7561, 0
        %7574 = vmatprep.subr.bf16.mxu0 0
        %7575 = vmatpush1.bf16.msra.mxu0 0
        %7576 = vmatprep.subr.bf16.mxu0 0
        %7577 = vmatpush1.bf16.msra.mxu0 0
        %7578 = vmatprep.subr.bf16.mxu0 0
        %7579 = vmatpush1.bf16.msra.mxu0 0
        %7580 = vmatprep.subr.bf16.mxu0 0
        %7581 = vmatpush1.bf16.msra.mxu0 0
        %7582 = vmatprep.subr.bf16.mxu0 0
        %7583 = vmatpush1.bf16.msra.mxu0 0
        %7584 = vmatprep.subr.bf16.mxu0 0
        %7585 = vmatpush1.bf16.msra.mxu0 0
        %7586 = vmatprep.subr.bf16.mxu0 0
        %7587 = vmatpush1.bf16.msra.mxu0 0
        %7588 = vmatprep.subr.bf16.mxu0 %v7569
        %7589 = vmatpush1.bf16.msra.mxu0 %v7566
        %7590 = vmatprep.subr.bf16.mxu0 0
        %7591 = vmatpush2.bf16.msra.mxu0 0
        %7592 = vmatprep.subr.bf16.mxu0 0
        %7593 = vmatpush2.bf16.msra.mxu0 0
        %7594 = vmatprep.subr.bf16.mxu0 0
        %7595 = vmatpush2.bf16.msra.mxu0 0
        %7596 = vmatprep.subr.bf16.mxu0 0
        %7597 = vmatpush2.bf16.msra.mxu0 0
        %7598 = vmatprep.subr.bf16.mxu0 0
        %7599 = vmatpush2.bf16.msra.mxu0 0
        %7600 = vmatprep.subr.bf16.mxu0 0
        %7601 = vmatpush2.bf16.msra.mxu0 0
        %7602 = vmatprep.subr.bf16.mxu0 0
        %7603 = vmatpush2.bf16.msra.mxu0 0
        %7604 = vmatprep.subr.bf16.mxu0 0
        %7605 = vmatpush2.bf16.msra.mxu0 0
        %7606 = vmatprep.mubr.bf16.mxu0 0
        %7607 = vmatmul.mubr.bf16.gmra.mxu0 %v7563
        %v7608 = vpop.f32.mrf.mxu0
        %v7609 = vadd.f32 0.0, %v7608
        %v7610 = vpop.f32.mrf.mxu0
        %v7611 = vadd.f32 0.0, %v7610
        %v7612 = vpop.f32.mrf.mxu0
        %v7613 = vpop.f32.mrf.mxu0
        %7614 = vdwg.mxu0
        %7615 = vmatprep.subr.bf16.mxu0 0
        %7616 = vmatpush1.bf16.msra.mxu0 0
        %7617 = vmatprep.subr.bf16.mxu0 0
        %7618 = vmatpush1.bf16.msra.mxu0 0
        %7619 = vmatprep.subr.bf16.mxu0 0
        %7620 = vmatpush1.bf16.msra.mxu0 0
        %7621 = vmatprep.subr.bf16.mxu0 0
        %7622 = vmatpush1.bf16.msra.mxu0 0
        %7623 = vmatprep.subr.bf16.mxu0 0
        %7624 = vmatpush1.bf16.msra.mxu0 0
        %7625 = vmatprep.subr.bf16.mxu0 0
        %7626 = vmatpush1.bf16.msra.mxu0 0
        %7627 = vmatprep.subr.bf16.mxu0 0
        %7628 = vmatpush1.bf16.msra.mxu0 0
        %7629 = vmatprep.subr.bf16.mxu0 0
        %7630 = vmatpush1.bf16.msra.mxu0 %v7572
        %7631 = vmatprep.subr.bf16.mxu0 0
        %7632 = vmatpush2.bf16.msra.mxu0 0
        %7633 = vmatprep.subr.bf16.mxu0 0
        %7634 = vmatpush2.bf16.msra.mxu0 0
        %7635 = vmatprep.subr.bf16.mxu0 0
        %7636 = vmatpush2.bf16.msra.mxu0 0
        %7637 = vmatprep.subr.bf16.mxu0 0
        %7638 = vmatpush2.bf16.msra.mxu0 0
        %7639 = vmatprep.subr.bf16.mxu0 0
        %7640 = vmatpush2.bf16.msra.mxu0 0
        %7641 = vmatprep.subr.bf16.mxu0 0
        %7642 = vmatpush2.bf16.msra.mxu0 0
        %7643 = vmatprep.subr.bf16.mxu0 0
        %7644 = vmatpush2.bf16.msra.mxu0 0
        %7645 = vmatprep.subr.bf16.mxu0 0
        %7646 = vmatpush2.bf16.msra.mxu0 0
        %7647 = vmatprep.mubr.bf16.mxu0 0
        %7648 = vmatmul.mubr.bf16.gmra.mxu0 %v7563
        %v7649 = vpop.f32.mrf.mxu0
        %v7650 = vadd.f32 0.0, %v7649
        %v7651 = vpop.f32.mrf.mxu0
        %v7652 = vpop.f32.mrf.mxu0
        %v7653 = vpop.f32.mrf.mxu0
        %7654 = vdwg.mxu0
        %v7655 = vadd.f32 %v7547, %v7609
        %v7656 = vadd.f32 %v7548, %v7611
        %v7657 = vadd.f32 %v7549, %v7650
        %v7658 = vld [vmem:[%s627] sm:$0xf]
        %7659 = vrot.lane.b32.xlu0 %v7225, 109
        %v7660 = vpop.permute.xlu0 %7659
        %7661 = vrot.lane.b32.xlu0 %v7226, 109
        %v7662 = vpop.permute.xlu0 %7661
        %7663 = vrot.lane.b32.xlu0 %v7227, 109
        %v7664 = vpop.permute.xlu0 %7663
        %7665 = vrot.lane.b32.xlu0 %v7228, 109
        %v7666 = vpop.permute.xlu0 %7665
        %v7667 = vsel %vm637, %v7660, %v7662
        %v7668 = vsel %vm637, %v7662, %v7664
        %v7669 = vsel %vm637, %v7664, %v7666
        %v7671 = vsel %vm214, %v7658, 0
        %v7674 = vsel %vm218, %v7667, 0
        %v7677 = vsel %vm218, %v7668, 0
        %v7680 = vsel %vm218, %v7669, 0
        %7682 = vmatprep.subr.bf16.mxu0 0
        %7683 = vmatpush1.bf16.msra.mxu0 0
        %7684 = vmatprep.subr.bf16.mxu0 0
        %7685 = vmatpush1.bf16.msra.mxu0 0
        %7686 = vmatprep.subr.bf16.mxu0 0
        %7687 = vmatpush1.bf16.msra.mxu0 0
        %7688 = vmatprep.subr.bf16.mxu0 0
        %7689 = vmatpush1.bf16.msra.mxu0 0
        %7690 = vmatprep.subr.bf16.mxu0 0
        %7691 = vmatpush1.bf16.msra.mxu0 0
        %7692 = vmatprep.subr.bf16.mxu0 0
        %7693 = vmatpush1.bf16.msra.mxu0 0
        %7694 = vmatprep.subr.bf16.mxu0 0
        %7695 = vmatpush1.bf16.msra.mxu0 0
        %7696 = vmatprep.subr.bf16.mxu0 %v7677
        %7697 = vmatpush1.bf16.msra.mxu0 %v7674
        %7698 = vmatprep.subr.bf16.mxu0 0
        %7699 = vmatpush2.bf16.msra.mxu0 0
        %7700 = vmatprep.subr.bf16.mxu0 0
        %7701 = vmatpush2.bf16.msra.mxu0 0
        %7702 = vmatprep.subr.bf16.mxu0 0
        %7703 = vmatpush2.bf16.msra.mxu0 0
        %7704 = vmatprep.subr.bf16.mxu0 0
        %7705 = vmatpush2.bf16.msra.mxu0 0
        %7706 = vmatprep.subr.bf16.mxu0 0
        %7707 = vmatpush2.bf16.msra.mxu0 0
        %7708 = vmatprep.subr.bf16.mxu0 0
        %7709 = vmatpush2.bf16.msra.mxu0 0
        %7710 = vmatprep.subr.bf16.mxu0 0
        %7711 = vmatpush2.bf16.msra.mxu0 0
        %7712 = vmatprep.subr.bf16.mxu0 0
        %7713 = vmatpush2.bf16.msra.mxu0 0
        %7714 = vmatprep.mubr.bf16.mxu0 0
        %7715 = vmatmul.mubr.bf16.gmra.mxu0 %v7671
        %v7716 = vpop.f32.mrf.mxu0
        %v7717 = vadd.f32 0.0, %v7716
        %v7718 = vpop.f32.mrf.mxu0
        %v7719 = vadd.f32 0.0, %v7718
        %v7720 = vpop.f32.mrf.mxu0
        %v7721 = vpop.f32.mrf.mxu0
        %7722 = vdwg.mxu0
        %7723 = vmatprep.subr.bf16.mxu0 0
        %7724 = vmatpush1.bf16.msra.mxu0 0
        %7725 = vmatprep.subr.bf16.mxu0 0
        %7726 = vmatpush1.bf16.msra.mxu0 0
        %7727 = vmatprep.subr.bf16.mxu0 0
        %7728 = vmatpush1.bf16.msra.mxu0 0
        %7729 = vmatprep.subr.bf16.mxu0 0
        %7730 = vmatpush1.bf16.msra.mxu0 0
        %7731 = vmatprep.subr.bf16.mxu0 0
        %7732 = vmatpush1.bf16.msra.mxu0 0
        %7733 = vmatprep.subr.bf16.mxu0 0
        %7734 = vmatpush1.bf16.msra.mxu0 0
        %7735 = vmatprep.subr.bf16.mxu0 0
        %7736 = vmatpush1.bf16.msra.mxu0 0
        %7737 = vmatprep.subr.bf16.mxu0 0
        %7738 = vmatpush1.bf16.msra.mxu0 %v7680
        %7739 = vmatprep.subr.bf16.mxu0 0
        %7740 = vmatpush2.bf16.msra.mxu0 0
        %7741 = vmatprep.subr.bf16.mxu0 0
        %7742 = vmatpush2.bf16.msra.mxu0 0
        %7743 = vmatprep.subr.bf16.mxu0 0
        %7744 = vmatpush2.bf16.msra.mxu0 0
        %7745 = vmatprep.subr.bf16.mxu0 0
        %7746 = vmatpush2.bf16.msra.mxu0 0
        %7747 = vmatprep.subr.bf16.mxu0 0
        %7748 = vmatpush2.bf16.msra.mxu0 0
        %7749 = vmatprep.subr.bf16.mxu0 0
        %7750 = vmatpush2.bf16.msra.mxu0 0
        %7751 = vmatprep.subr.bf16.mxu0 0
        %7752 = vmatpush2.bf16.msra.mxu0 0
        %7753 = vmatprep.subr.bf16.mxu0 0
        %7754 = vmatpush2.bf16.msra.mxu0 0
        %7755 = vmatprep.mubr.bf16.mxu0 0
        %7756 = vmatmul.mubr.bf16.gmra.mxu0 %v7671
        %v7757 = vpop.f32.mrf.mxu0
        %v7758 = vadd.f32 0.0, %v7757
        %v7759 = vpop.f32.mrf.mxu0
        %v7760 = vpop.f32.mrf.mxu0
        %v7761 = vpop.f32.mrf.mxu0
        %7762 = vdwg.mxu0
        %v7763 = vadd.f32 %v7655, %v7717
        %v7764 = vadd.f32 %v7656, %v7719
        %v7765 = vadd.f32 %v7657, %v7758
        %v7766 = vld [vmem:[%s737] sm:$0xf]
        %7767 = vrot.lane.b32.xlu0 %v7225, 108
        %v7768 = vpop.permute.xlu0 %7767
        %7769 = vrot.lane.b32.xlu0 %v7226, 108
        %v7770 = vpop.permute.xlu0 %7769
        %7771 = vrot.lane.b32.xlu0 %v7227, 108
        %v7772 = vpop.permute.xlu0 %7771
        %7773 = vrot.lane.b32.xlu0 %v7228, 108
        %v7774 = vpop.permute.xlu0 %7773
        %v7775 = vsel %vm747, %v7768, %v7770
        %v7776 = vsel %vm747, %v7770, %v7772
        %v7777 = vsel %vm747, %v7772, %v7774
        %v7779 = vsel %vm214, %v7766, 0
        %v7782 = vsel %vm218, %v7775, 0
        %v7785 = vsel %vm218, %v7776, 0
        %v7788 = vsel %vm218, %v7777, 0
        %7790 = vmatprep.subr.bf16.mxu0 0
        %7791 = vmatpush1.bf16.msra.mxu0 0
        %7792 = vmatprep.subr.bf16.mxu0 0
        %7793 = vmatpush1.bf16.msra.mxu0 0
        %7794 = vmatprep.subr.bf16.mxu0 0
        %7795 = vmatpush1.bf16.msra.mxu0 0
        %7796 = vmatprep.subr.bf16.mxu0 0
        %7797 = vmatpush1.bf16.msra.mxu0 0
        %7798 = vmatprep.subr.bf16.mxu0 0
        %7799 = vmatpush1.bf16.msra.mxu0 0
        %7800 = vmatprep.subr.bf16.mxu0 0
        %7801 = vmatpush1.bf16.msra.mxu0 0
        %7802 = vmatprep.subr.bf16.mxu0 0
        %7803 = vmatpush1.bf16.msra.mxu0 0
        %7804 = vmatprep.subr.bf16.mxu0 %v7785
        %7805 = vmatpush1.bf16.msra.mxu0 %v7782
        %7806 = vmatprep.subr.bf16.mxu0 0
        %7807 = vmatpush2.bf16.msra.mxu0 0
        %7808 = vmatprep.subr.bf16.mxu0 0
        %7809 = vmatpush2.bf16.msra.mxu0 0
        %7810 = vmatprep.subr.bf16.mxu0 0
        %7811 = vmatpush2.bf16.msra.mxu0 0
        %7812 = vmatprep.subr.bf16.mxu0 0
        %7813 = vmatpush2.bf16.msra.mxu0 0
        %7814 = vmatprep.subr.bf16.mxu0 0
        %7815 = vmatpush2.bf16.msra.mxu0 0
        %7816 = vmatprep.subr.bf16.mxu0 0
        %7817 = vmatpush2.bf16.msra.mxu0 0
        %7818 = vmatprep.subr.bf16.mxu0 0
        %7819 = vmatpush2.bf16.msra.mxu0 0
        %7820 = vmatprep.subr.bf16.mxu0 0
        %7821 = vmatpush2.bf16.msra.mxu0 0
        %7822 = vmatprep.mubr.bf16.mxu0 0
        %7823 = vmatmul.mubr.bf16.gmra.mxu0 %v7779
        %v7824 = vpop.f32.mrf.mxu0
        %v7825 = vadd.f32 0.0, %v7824
        %v7826 = vpop.f32.mrf.mxu0
        %v7827 = vadd.f32 0.0, %v7826
        %v7828 = vpop.f32.mrf.mxu0
        %v7829 = vpop.f32.mrf.mxu0
        %7830 = vdwg.mxu0
        %7831 = vmatprep.subr.bf16.mxu0 0
        %7832 = vmatpush1.bf16.msra.mxu0 0
        %7833 = vmatprep.subr.bf16.mxu0 0
        %7834 = vmatpush1.bf16.msra.mxu0 0
        %7835 = vmatprep.subr.bf16.mxu0 0
        %7836 = vmatpush1.bf16.msra.mxu0 0
        %7837 = vmatprep.subr.bf16.mxu0 0
        %7838 = vmatpush1.bf16.msra.mxu0 0
        %7839 = vmatprep.subr.bf16.mxu0 0
        %7840 = vmatpush1.bf16.msra.mxu0 0
        %7841 = vmatprep.subr.bf16.mxu0 0
        %7842 = vmatpush1.bf16.msra.mxu0 0
        %7843 = vmatprep.subr.bf16.mxu0 0
        %7844 = vmatpush1.bf16.msra.mxu0 0
        %7845 = vmatprep.subr.bf16.mxu0 0
        %7846 = vmatpush1.bf16.msra.mxu0 %v7788
        %7847 = vmatprep.subr.bf16.mxu0 0
        %7848 = vmatpush2.bf16.msra.mxu0 0
        %7849 = vmatprep.subr.bf16.mxu0 0
        %7850 = vmatpush2.bf16.msra.mxu0 0
        %7851 = vmatprep.subr.bf16.mxu0 0
        %7852 = vmatpush2.bf16.msra.mxu0 0
        %7853 = vmatprep.subr.bf16.mxu0 0
        %7854 = vmatpush2.bf16.msra.mxu0 0
        %7855 = vmatprep.subr.bf16.mxu0 0
        %7856 = vmatpush2.bf16.msra.mxu0 0
        %7857 = vmatprep.subr.bf16.mxu0 0
        %7858 = vmatpush2.bf16.msra.mxu0 0
        %7859 = vmatprep.subr.bf16.mxu0 0
        %7860 = vmatpush2.bf16.msra.mxu0 0
        %7861 = vmatprep.subr.bf16.mxu0 0
        %7862 = vmatpush2.bf16.msra.mxu0 0
        %7863 = vmatprep.mubr.bf16.mxu0 0
        %7864 = vmatmul.mubr.bf16.gmra.mxu0 %v7779
        %v7865 = vpop.f32.mrf.mxu0
        %v7866 = vadd.f32 0.0, %v7865
        %v7867 = vpop.f32.mrf.mxu0
        %v7868 = vpop.f32.mrf.mxu0
        %v7869 = vpop.f32.mrf.mxu0
        %7870 = vdwg.mxu0
        %v7871 = vadd.f32 %v7763, %v7825
        %v7872 = vadd.f32 %v7764, %v7827
        %v7873 = vadd.f32 %v7765, %v7866
        %v7874 = vld [vmem:[%s847] sm:$0xf]
        %7875 = vrot.lane.b32.xlu0 %v7225, 92
        %v7876 = vpop.permute.xlu0 %7875
        %7877 = vrot.lane.b32.xlu0 %v7226, 92
        %v7878 = vpop.permute.xlu0 %7877
        %7879 = vrot.lane.b32.xlu0 %v7227, 92
        %v7880 = vpop.permute.xlu0 %7879
        %7881 = vrot.lane.b32.xlu0 %v7228, 92
        %v7882 = vpop.permute.xlu0 %7881
        %v7883 = vsel %vm857, %v7876, %v7878
        %v7884 = vsel %vm857, %v7878, %v7880
        %v7885 = vsel %vm857, %v7880, %v7882
        %v7887 = vsel %vm214, %v7874, 0
        %v7890 = vsel %vm218, %v7883, 0
        %v7893 = vsel %vm218, %v7884, 0
        %v7896 = vsel %vm218, %v7885, 0
        %7898 = vmatprep.subr.bf16.mxu0 0
        %7899 = vmatpush1.bf16.msra.mxu0 0
        %7900 = vmatprep.subr.bf16.mxu0 0
        %7901 = vmatpush1.bf16.msra.mxu0 0
        %7902 = vmatprep.subr.bf16.mxu0 0
        %7903 = vmatpush1.bf16.msra.mxu0 0
        %7904 = vmatprep.subr.bf16.mxu0 0
        %7905 = vmatpush1.bf16.msra.mxu0 0
        %7906 = vmatprep.subr.bf16.mxu0 0
        %7907 = vmatpush1.bf16.msra.mxu0 0
        %7908 = vmatprep.subr.bf16.mxu0 0
        %7909 = vmatpush1.bf16.msra.mxu0 0
        %7910 = vmatprep.subr.bf16.mxu0 0
        %7911 = vmatpush1.bf16.msra.mxu0 0
        %7912 = vmatprep.subr.bf16.mxu0 %v7893
        %7913 = vmatpush1.bf16.msra.mxu0 %v7890
        %7914 = vmatprep.subr.bf16.mxu0 0
        %7915 = vmatpush2.bf16.msra.mxu0 0
        %7916 = vmatprep.subr.bf16.mxu0 0
        %7917 = vmatpush2.bf16.msra.mxu0 0
        %7918 = vmatprep.subr.bf16.mxu0 0
        %7919 = vmatpush2.bf16.msra.mxu0 0
        %7920 = vmatprep.subr.bf16.mxu0 0
        %7921 = vmatpush2.bf16.msra.mxu0 0
        %7922 = vmatprep.subr.bf16.mxu0 0
        %7923 = vmatpush2.bf16.msra.mxu0 0
        %7924 = vmatprep.subr.bf16.mxu0 0
        %7925 = vmatpush2.bf16.msra.mxu0 0
        %7926 = vmatprep.subr.bf16.mxu0 0
        %7927 = vmatpush2.bf16.msra.mxu0 0
        %7928 = vmatprep.subr.bf16.mxu0 0
        %7929 = vmatpush2.bf16.msra.mxu0 0
        %7930 = vmatprep.mubr.bf16.mxu0 0
        %7931 = vmatmul.mubr.bf16.gmra.mxu0 %v7887
        %v7932 = vpop.f32.mrf.mxu0
        %v7933 = vadd.f32 0.0, %v7932
        %v7934 = vpop.f32.mrf.mxu0
        %v7935 = vadd.f32 0.0, %v7934
        %v7936 = vpop.f32.mrf.mxu0
        %v7937 = vpop.f32.mrf.mxu0
        %7938 = vdwg.mxu0
        %7939 = vmatprep.subr.bf16.mxu0 0
        %7940 = vmatpush1.bf16.msra.mxu0 0
        %7941 = vmatprep.subr.bf16.mxu0 0
        %7942 = vmatpush1.bf16.msra.mxu0 0
        %7943 = vmatprep.subr.bf16.mxu0 0
        %7944 = vmatpush1.bf16.msra.mxu0 0
        %7945 = vmatprep.subr.bf16.mxu0 0
        %7946 = vmatpush1.bf16.msra.mxu0 0
        %7947 = vmatprep.subr.bf16.mxu0 0
        %7948 = vmatpush1.bf16.msra.mxu0 0
        %7949 = vmatprep.subr.bf16.mxu0 0
        %7950 = vmatpush1.bf16.msra.mxu0 0
        %7951 = vmatprep.subr.bf16.mxu0 0
        %7952 = vmatpush1.bf16.msra.mxu0 0
        %7953 = vmatprep.subr.bf16.mxu0 0
        %7954 = vmatpush1.bf16.msra.mxu0 %v7896
        %7955 = vmatprep.subr.bf16.mxu0 0
        %7956 = vmatpush2.bf16.msra.mxu0 0
        %7957 = vmatprep.subr.bf16.mxu0 0
        %7958 = vmatpush2.bf16.msra.mxu0 0
        %7959 = vmatprep.subr.bf16.mxu0 0
        %7960 = vmatpush2.bf16.msra.mxu0 0
        %7961 = vmatprep.subr.bf16.mxu0 0
        %7962 = vmatpush2.bf16.msra.mxu0 0
        %7963 = vmatprep.subr.bf16.mxu0 0
        %7964 = vmatpush2.bf16.msra.mxu0 0
        %7965 = vmatprep.subr.bf16.mxu0 0
        %7966 = vmatpush2.bf16.msra.mxu0 0
        %7967 = vmatprep.subr.bf16.mxu0 0
        %7968 = vmatpush2.bf16.msra.mxu0 0
        %7969 = vmatprep.subr.bf16.mxu0 0
        %7970 = vmatpush2.bf16.msra.mxu0 0
        %7971 = vmatprep.mubr.bf16.mxu0 0
        %7972 = vmatmul.mubr.bf16.gmra.mxu0 %v7887
        %v7973 = vpop.f32.mrf.mxu0
        %v7974 = vadd.f32 0.0, %v7973
        %v7975 = vpop.f32.mrf.mxu0
        %v7976 = vpop.f32.mrf.mxu0
        %v7977 = vpop.f32.mrf.mxu0
        %7978 = vdwg.mxu0
        %v7979 = vadd.f32 %v7871, %v7933
        %v7980 = vadd.f32 %v7872, %v7935
        %v7981 = vadd.f32 %v7873, %v7974
        %v7982 = vld [vmem:[%s957] sm:$0xf]
        %7983 = vrot.lane.b32.xlu0 %v7225, 91
        %v7984 = vpop.permute.xlu0 %7983
        %7985 = vrot.lane.b32.xlu0 %v7226, 91
        %v7986 = vpop.permute.xlu0 %7985
        %7987 = vrot.lane.b32.xlu0 %v7227, 91
        %v7988 = vpop.permute.xlu0 %7987
        %7989 = vrot.lane.b32.xlu0 %v7228, 91
        %v7990 = vpop.permute.xlu0 %7989
        %v7991 = vsel %vm967, %v7984, %v7986
        %v7992 = vsel %vm967, %v7986, %v7988
        %v7993 = vsel %vm967, %v7988, %v7990
        %v7995 = vsel %vm214, %v7982, 0
        %v7998 = vsel %vm218, %v7991, 0
        %v8001 = vsel %vm218, %v7992, 0
        %v8004 = vsel %vm218, %v7993, 0
        %8006 = vmatprep.subr.bf16.mxu0 0
        %8007 = vmatpush1.bf16.msra.mxu0 0
        %8008 = vmatprep.subr.bf16.mxu0 0
        %8009 = vmatpush1.bf16.msra.mxu0 0
        %8010 = vmatprep.subr.bf16.mxu0 0
        %8011 = vmatpush1.bf16.msra.mxu0 0
        %8012 = vmatprep.subr.bf16.mxu0 0
        %8013 = vmatpush1.bf16.msra.mxu0 0
        %8014 = vmatprep.subr.bf16.mxu0 0
        %8015 = vmatpush1.bf16.msra.mxu0 0
        %8016 = vmatprep.subr.bf16.mxu0 0
        %8017 = vmatpush1.bf16.msra.mxu0 0
        %8018 = vmatprep.subr.bf16.mxu0 0
        %8019 = vmatpush1.bf16.msra.mxu0 0
        %8020 = vmatprep.subr.bf16.mxu0 %v8001
        %8021 = vmatpush1.bf16.msra.mxu0 %v7998
        %8022 = vmatprep.subr.bf16.mxu0 0
        %8023 = vmatpush2.bf16.msra.mxu0 0
        %8024 = vmatprep.subr.bf16.mxu0 0
        %8025 = vmatpush2.bf16.msra.mxu0 0
        %8026 = vmatprep.subr.bf16.mxu0 0
        %8027 = vmatpush2.bf16.msra.mxu0 0
        %8028 = vmatprep.subr.bf16.mxu0 0
        %8029 = vmatpush2.bf16.msra.mxu0 0
        %8030 = vmatprep.subr.bf16.mxu0 0
        %8031 = vmatpush2.bf16.msra.mxu0 0
        %8032 = vmatprep.subr.bf16.mxu0 0
        %8033 = vmatpush2.bf16.msra.mxu0 0
        %8034 = vmatprep.subr.bf16.mxu0 0
        %8035 = vmatpush2.bf16.msra.mxu0 0
        %8036 = vmatprep.subr.bf16.mxu0 0
        %8037 = vmatpush2.bf16.msra.mxu0 0
        %8038 = vmatprep.mubr.bf16.mxu0 0
        %8039 = vmatmul.mubr.bf16.gmra.mxu0 %v7995
        %v8040 = vpop.f32.mrf.mxu0
        %v8041 = vadd.f32 0.0, %v8040
        %v8042 = vpop.f32.mrf.mxu0
        %v8043 = vadd.f32 0.0, %v8042
        %v8044 = vpop.f32.mrf.mxu0
        %v8045 = vpop.f32.mrf.mxu0
        %8046 = vdwg.mxu0
        %8047 = vmatprep.subr.bf16.mxu0 0
        %8048 = vmatpush1.bf16.msra.mxu0 0
        %8049 = vmatprep.subr.bf16.mxu0 0
        %8050 = vmatpush1.bf16.msra.mxu0 0
        %8051 = vmatprep.subr.bf16.mxu0 0
        %8052 = vmatpush1.bf16.msra.mxu0 0
        %8053 = vmatprep.subr.bf16.mxu0 0
        %8054 = vmatpush1.bf16.msra.mxu0 0
        %8055 = vmatprep.subr.bf16.mxu0 0
        %8056 = vmatpush1.bf16.msra.mxu0 0
        %8057 = vmatprep.subr.bf16.mxu0 0
        %8058 = vmatpush1.bf16.msra.mxu0 0
        %8059 = vmatprep.subr.bf16.mxu0 0
        %8060 = vmatpush1.bf16.msra.mxu0 0
        %8061 = vmatprep.subr.bf16.mxu0 0
        %8062 = vmatpush1.bf16.msra.mxu0 %v8004
        %8063 = vmatprep.subr.bf16.mxu0 0
        %8064 = vmatpush2.bf16.msra.mxu0 0
        %8065 = vmatprep.subr.bf16.mxu0 0
        %8066 = vmatpush2.bf16.msra.mxu0 0
        %8067 = vmatprep.subr.bf16.mxu0 0
        %8068 = vmatpush2.bf16.msra.mxu0 0
        %8069 = vmatprep.subr.bf16.mxu0 0
        %8070 = vmatpush2.bf16.msra.mxu0 0
        %8071 = vmatprep.subr.bf16.mxu0 0
        %8072 = vmatpush2.bf16.msra.mxu0 0
        %8073 = vmatprep.subr.bf16.mxu0 0
        %8074 = vmatpush2.bf16.msra.mxu0 0
        %8075 = vmatprep.subr.bf16.mxu0 0
        %8076 = vmatpush2.bf16.msra.mxu0 0
        %8077 = vmatprep.subr.bf16.mxu0 0
        %8078 = vmatpush2.bf16.msra.mxu0 0
        %8079 = vmatprep.mubr.bf16.mxu0 0
        %8080 = vmatmul.mubr.bf16.gmra.mxu0 %v7995
        %v8081 = vpop.f32.mrf.mxu0
        %v8082 = vadd.f32 0.0, %v8081
        %v8083 = vpop.f32.mrf.mxu0
        %v8084 = vpop.f32.mrf.mxu0
        %v8085 = vpop.f32.mrf.mxu0
        %8086 = vdwg.mxu0
        %v8087 = vadd.f32 %v7979, %v8041
        %v8088 = vadd.f32 %v7980, %v8043
        %v8089 = vadd.f32 %v7981, %v8082
        %v8090 = vld [vmem:[%s1067] sm:$0xf]
        %8091 = vrot.lane.b32.xlu0 %v7225, 90
        %v8092 = vpop.permute.xlu0 %8091
        %8093 = vrot.lane.b32.xlu0 %v7226, 90
        %v8094 = vpop.permute.xlu0 %8093
        %8095 = vrot.lane.b32.xlu0 %v7227, 90
        %v8096 = vpop.permute.xlu0 %8095
        %8097 = vrot.lane.b32.xlu0 %v7228, 90
        %v8098 = vpop.permute.xlu0 %8097
        %v8099 = vsel %vm1077, %v8092, %v8094
        %v8100 = vsel %vm1077, %v8094, %v8096
        %v8101 = vsel %vm1077, %v8096, %v8098
        %v8103 = vsel %vm214, %v8090, 0
        %v8106 = vsel %vm218, %v8099, 0
        %v8109 = vsel %vm218, %v8100, 0
        %v8112 = vsel %vm218, %v8101, 0
        %8114 = vmatprep.subr.bf16.mxu0 0
        %8115 = vmatpush1.bf16.msra.mxu0 0
        %8116 = vmatprep.subr.bf16.mxu0 0
        %8117 = vmatpush1.bf16.msra.mxu0 0
        %8118 = vmatprep.subr.bf16.mxu0 0
        %8119 = vmatpush1.bf16.msra.mxu0 0
        %8120 = vmatprep.subr.bf16.mxu0 0
        %8121 = vmatpush1.bf16.msra.mxu0 0
        %8122 = vmatprep.subr.bf16.mxu0 0
        %8123 = vmatpush1.bf16.msra.mxu0 0
        %8124 = vmatprep.subr.bf16.mxu0 0
        %8125 = vmatpush1.bf16.msra.mxu0 0
        %8126 = vmatprep.subr.bf16.mxu0 0
        %8127 = vmatpush1.bf16.msra.mxu0 0
        %8128 = vmatprep.subr.bf16.mxu0 %v8109
        %8129 = vmatpush1.bf16.msra.mxu0 %v8106
        %8130 = vmatprep.subr.bf16.mxu0 0
        %8131 = vmatpush2.bf16.msra.mxu0 0
        %8132 = vmatprep.subr.bf16.mxu0 0
        %8133 = vmatpush2.bf16.msra.mxu0 0
        %8134 = vmatprep.subr.bf16.mxu0 0
        %8135 = vmatpush2.bf16.msra.mxu0 0
        %8136 = vmatprep.subr.bf16.mxu0 0
        %8137 = vmatpush2.bf16.msra.mxu0 0
        %8138 = vmatprep.subr.bf16.mxu0 0
        %8139 = vmatpush2.bf16.msra.mxu0 0
        %8140 = vmatprep.subr.bf16.mxu0 0
        %8141 = vmatpush2.bf16.msra.mxu0 0
        %8142 = vmatprep.subr.bf16.mxu0 0
        %8143 = vmatpush2.bf16.msra.mxu0 0
        %8144 = vmatprep.subr.bf16.mxu0 0
        %8145 = vmatpush2.bf16.msra.mxu0 0
        %8146 = vmatprep.mubr.bf16.mxu0 0
        %8147 = vmatmul.mubr.bf16.gmra.mxu0 %v8103
        %v8148 = vpop.f32.mrf.mxu0
        %v8149 = vadd.f32 0.0, %v8148
        %v8150 = vpop.f32.mrf.mxu0
        %v8151 = vadd.f32 0.0, %v8150
        %v8152 = vpop.f32.mrf.mxu0
        %v8153 = vpop.f32.mrf.mxu0
        %8154 = vdwg.mxu0
        %8155 = vmatprep.subr.bf16.mxu0 0
        %8156 = vmatpush1.bf16.msra.mxu0 0
        %8157 = vmatprep.subr.bf16.mxu0 0
        %8158 = vmatpush1.bf16.msra.mxu0 0
        %8159 = vmatprep.subr.bf16.mxu0 0
        %8160 = vmatpush1.bf16.msra.mxu0 0
        %8161 = vmatprep.subr.bf16.mxu0 0
        %8162 = vmatpush1.bf16.msra.mxu0 0
        %8163 = vmatprep.subr.bf16.mxu0 0
        %8164 = vmatpush1.bf16.msra.mxu0 0
        %8165 = vmatprep.subr.bf16.mxu0 0
        %8166 = vmatpush1.bf16.msra.mxu0 0
        %8167 = vmatprep.subr.bf16.mxu0 0
        %8168 = vmatpush1.bf16.msra.mxu0 0
        %8169 = vmatprep.subr.bf16.mxu0 0
        %8170 = vmatpush1.bf16.msra.mxu0 %v8112
        %8171 = vmatprep.subr.bf16.mxu0 0
        %8172 = vmatpush2.bf16.msra.mxu0 0
        %8173 = vmatprep.subr.bf16.mxu0 0
        %8174 = vmatpush2.bf16.msra.mxu0 0
        %8175 = vmatprep.subr.bf16.mxu0 0
        %8176 = vmatpush2.bf16.msra.mxu0 0
        %8177 = vmatprep.subr.bf16.mxu0 0
        %8178 = vmatpush2.bf16.msra.mxu0 0
        %8179 = vmatprep.subr.bf16.mxu0 0
        %8180 = vmatpush2.bf16.msra.mxu0 0
        %8181 = vmatprep.subr.bf16.mxu0 0
        %8182 = vmatpush2.bf16.msra.mxu0 0
        %8183 = vmatprep.subr.bf16.mxu0 0
        %8184 = vmatpush2.bf16.msra.mxu0 0
        %8185 = vmatprep.subr.bf16.mxu0 0
        %8186 = vmatpush2.bf16.msra.mxu0 0
        %8187 = vmatprep.mubr.bf16.mxu0 0
        %8188 = vmatmul.mubr.bf16.gmra.mxu0 %v8103
        %v8189 = vpop.f32.mrf.mxu0
        %v8190 = vadd.f32 0.0, %v8189
        %v8191 = vpop.f32.mrf.mxu0
        %v8192 = vpop.f32.mrf.mxu0
        %v8193 = vpop.f32.mrf.mxu0
        %8194 = vdwg.mxu0
        %v8195 = vadd.f32 %v8087, %v8149
        %v8196 = vadd.f32 %v8088, %v8151
        %v8197 = vadd.f32 %v8089, %v8190
        %v8198 = vld [vmem:[%s2] sm:$0xff]
        %8200 = vset.pattern.permute.xlu0 0
        %8201 = vperm.xlu0 %8200, %v8198
        %v8202 = vpop.permute.xlu0 %8201
        %v8204 = vadd.f32 %v8195, %v8202
        %v8205 = vadd.f32 %v8196, %v8202
        %v8206 = vadd.f32 %v8197, %v8202
        %v8207 = vmax.f32 %v8204, 0.0
        %v8208 = vmax.f32 %v8205, 0.0
        %v8209 = vmax.f32 %v8206, 0.0
        %8210 = vst [vmem:[%s151 + $0xa8] sm:$0xff] %v8207
        %8211 = vst [vmem:[%s151 + $0xb0] sm:$0xff] %v8208
        %8212 = vst [vmem:[%s151 + $0xb8] sm:$0xff] %v8209
        %s8213 = sand.u32 %s82, 1
        %s8214 = scalar_lea.sflag [#allocation6], %s8213
        %s8215 = sand.u32 %s82, 1
        %s8216 = smul.addr %s8215, 192
        %s8217 = scalar_lea.vmem [#allocation7], %s8216
        // Predicated region
        $region37: #{tpu_custom_call.1} parent=27 // pred_check
          %p8218 = pneg %p92
        $region38: #{tpu_custom_call.1} parent=27 // pred_check_branch
          %8220 = sbr.rel (%p8218) target = $region40
        $region39: #{tpu_custom_call.1} parent=27 // pred_region
          %s8221 = smul.u32 24, %s23
          %s8223 = ssub.s32 3072, 3072
          %8224 = vsyncadd %s8214, %s8223
          %s8225 = smul.addr %s22, 24
          %s8226 = sadd.s32 %s8221, %s8225
          %s8227 = smul.addr %s8226, 128
          %s8228 = scalar_lea.hbm %s3, %s8227
          %s8230 = sshll.u32 %s8217, 4
          %s8231 = int_to_ptr.vmem [resolvable:$true] %s8230
          %8233 = dma.vmem_to_hbm [thread:$0]  %s8231, 3072, %s8228, %s8214
        $region40: #{tpu_custom_call.1} parent=27 // pred_fallthru
          _
      $region28: #{tpu_custom_call.1} parent=5 // pred_fallthru
        _
      %p8234 = scmp.le.s32.totalorder 2, %s13
      // Predicated region
      $region41: #{tpu_custom_call.1} parent=5 // pred_check
        %p8235 = pneg %p8234
      $region42: #{tpu_custom_call.1} parent=5 // pred_check_branch
        %8237 = sbr.rel (%p8235) target = $region44
      $region43: #{tpu_custom_call.1} parent=5 // pred_region
        %s8238 = ssub.s32 %s13, 2
        // Predicated region
        $region45: #{tpu_custom_call.1} parent=43 // pred_check
          %p8239 = pneg %p98
        $region46: #{tpu_custom_call.1} parent=43 // pred_check_branch
          %8241 = sbr.rel (%p8239) target = $region48
        $region47: #{tpu_custom_call.1} parent=43 // pred_region
          %s8242 = sand.u32 %s83, 1
          %s8243 = scalar_lea.sflag [#allocation6], %s8242
          %s8244 = sand.u32 %s83, 1
          %s8245 = smul.addr %s8244, 192
          %s8246 = scalar_lea.vmem [#allocation7], %s8245
          %8247 = dma.done %s8243, 3072
        $region48: #{tpu_custom_call.1} parent=43 // pred_fallthru
          _
      $region44: #{tpu_custom_call.1} parent=5 // pred_fallthru
        _
    $region6: #{tpu_custom_call.1} parent=1 // loop_footer
      %s17 = sadd.s32 1, %s13
    $region7: #{tpu_custom_call.1} parent=1 // loop_footer_branch
      %12 = sbr.rel target = $region3
    $region8: #{tpu_custom_call.1} parent=1 // loop_exit
      _
    %8248 = vsyncpa [#allocation5], 1
    %s8249 = scalar_lea.sflag [#allocation5], 1
    %8250 = vsyncpa %s8249, 1
    %8251 = vsyncpa [#allocation6], 1
    %s8252 = scalar_lea.sflag [#allocation6], 1
    %8253 = vsyncpa %s8252, 1
  %8254 = vsyncmov [#allocation3]
  %s8255 = vpop.sfrf %8254
  %p8256 = scmp.eq.s32.totalorder %s8255, 0
  %p8257 = pneg %p8256
  %8259 = shalt.err (%p8257)

</llo_original>
